<compile_context>
chip_gen: v7x
topology: tpu7x:2x2x1
jax: 0.10.0
libtpu: 0.0.40
codegen_flags: <defaults>
</compile_context>

<pallas_src>
import jax
import jax.numpy as jnp
from jax import lax
from jax.experimental import pallas as pl
from jax.experimental.pallas import tpu as pltpu

# ---- hyperparameters from the PyTorch module ----
N_EMBD = 192
BLOCK_SIZE = 64
N_HEAD = 3
N_LAYER = 3
VOCAB_SIZE = 276
HEAD_SIZE = N_EMBD // N_HEAD            # 64
LN_EPS = 1e-5
VOCAB_PAD = 384                          # pad 276 -> multiple of 128 for lane-dense stores
NEG_BIG = -1e30                          # finite causal-mask bias (NaN-safe while scores are f32)
TARGET_M = 512                           # per-grid-step rows (NB*T); fills MXU, amortizes step cost


def _layernorm(x, g, b):
    mu = jnp.mean(x, axis=-1, keepdims=True)
    var = jnp.mean((x - mu) ** 2, axis=-1, keepdims=True)
    return (x - mu) * lax.rsqrt(var + LN_EPS) * g + b


# ---------------- fused GPT kernel: L blocks + final LN + lm_head ----------------
def gpt_kernel(x_ref, ln1g_ref, ln1b_ref, wqkv_ref, wproj_ref, bproj_ref,
               ln2g_ref, ln2b_ref, w1_ref, b1_ref, w2_ref, b2_ref,
               lnfg_ref, lnfb_ref, wlm_ref, blm_ref, o_ref):
    NB, T, C = x_ref.shape
    M = NB * T
    HS = HEAD_SIZE
    HNB = N_HEAD * NB

    x = x_ref[...].reshape(M, C)                 # (M, C) f32 residual stream

    # causal-mask additive bias, computed once for all layers
    row = lax.broadcasted_iota(jnp.int32, (T, T), 0)
    col = lax.broadcasted_iota(jnp.int32, (T, T), 1)
    mask_bias = jnp.where(col <= row, 0.0, NEG_BIG).astype(jnp.float32)[None]   # (1,T,T)

    for l in range(N_LAYER):                     # static unroll over the 3 layers
        # ---------- self-attention branch ----------
        xn = _layernorm(x, ln1g_ref[l], ln1b_ref[l]).astype(jnp.bfloat16)       # (M, C)

        # single fused QKV matmul: (M,192)@(192,576); q columns pre-scaled by HS**-0.5
        qkv = jnp.dot(xn, wqkv_ref[l], preferred_element_type=jnp.float32)      # (M, 3C)
        qkvb = qkv.astype(jnp.bfloat16)

        def heads(base):
            # gather the N_HEAD (M, HS) lane slabs of one q/k/v group -> (HNB, T, HS)
            return jnp.stack(
                [qkvb[:, base + h * HS: base + (h + 1) * HS] for h in range(N_HEAD)],
                axis=0).reshape(HNB, T, HS)

        q = heads(0)
        k = heads(C)
        v = heads(2 * C)

        s = jnp.einsum('btd,bsd->bts', q, k,
                       preferred_element_type=jnp.float32)                      # (HNB, T, T)
        # NOTE: gravity term omitted — constant along the key axis => softmax-invariant.
        s = s + mask_bias
        s = s - jnp.max(s, axis=-1, keepdims=True)
        e = jnp.exp(s)
        p = e * pl.reciprocal(jnp.sum(e, axis=-1, keepdims=True), approx=True)
        att = jnp.einsum('bts,bsd->btd', p.astype(jnp.bfloat16), v,
                         preferred_element_type=jnp.float32)                    # (HNB, T, HS)

        att = att.astype(jnp.bfloat16).reshape(N_HEAD, M, HS)
        att_cat = jnp.concatenate([att[h] for h in range(N_HEAD)], axis=-1)     # (M, 192)
        # one fused K=192 projection matmul, bias folded into the same add
        sa = jnp.dot(att_cat, wproj_ref[l],
                     preferred_element_type=jnp.float32) + bproj_ref[l]
        x = x + sa

        # ---------- feed-forward branch ----------
        xn2 = _layernorm(x, ln2g_ref[l], ln2b_ref[l]).astype(jnp.bfloat16)
        h1 = jnp.dot(xn2, w1_ref[l], preferred_element_type=jnp.float32) + b1_ref[l]
        h1 = jnp.maximum(h1, 0.0).astype(jnp.bfloat16)
        ff = jnp.dot(h1, w2_ref[l], preferred_element_type=jnp.float32) + b2_ref[l]
        x = x + ff

    # ---------- final layernorm + lm_head ----------
    xf = _layernorm(x, lnfg_ref[...], lnfb_ref[...]).astype(jnp.bfloat16)
    logits = jnp.dot(xf, wlm_ref[...], preferred_element_type=jnp.float32) + blm_ref[...]
    o_ref[...] = logits.reshape(NB, T, VOCAB_PAD)


def _choose_nb(B, T):
    """Largest divisor NB of B with NB*T <= TARGET_M, keeping >=2 grid steps when B >= 2
    (so v7x's second TensorCore has work on the 'parallel' axis)."""
    best = 1
    for cand in range(1, B + 1):
        if B % cand:
            continue
        if cand * T > TARGET_M:
            continue
        if B >= 2 and (B // cand) < 2:
            continue
        best = cand
    return best


# ---------------- full GPT forward (glue: embeddings + fused kernel call) ----------------
def gpt_forward(idx, params):
    B, T = idx.shape
    tok = jnp.take(params["tok_emb"], idx, axis=0)            # (B, T, C) embedding gather (glue)
    pos = params["pos_emb"][:T]                                # (T, C)
    x = (tok + pos[None, :, :]).astype(jnp.float32)

    # pad T to a multiple of 16 so all in-kernel reshapes are free view changes;
    # padded rows are causal-masked garbage and sliced off below.
    Tp = ((T + 15) // 16) * 16
    if Tp != T:
        x = jnp.pad(x, ((0, 0), (0, Tp - T), (0, 0)))

    C, H4, L = N_EMBD, 4 * N_EMBD, N_LAYER
    NB = _choose_nb(B, Tp)

    idx_x = lambda i: (i, 0, 0)
    c2 = lambda i: (0, 0)
    c3 = lambda i: (0, 0, 0)

    in_specs = [
        pl.BlockSpec((NB, Tp, C), idx_x),           # x
        pl.BlockSpec((L, 1, C), c3),                # ln1 gamma
        pl.BlockSpec((L, 1, C), c3),                # ln1 beta
        pl.BlockSpec((L, C, 3 * C), c3),            # fused Wqkv (q/k/v groups, head-major; q pre-scaled)
        pl.BlockSpec((L, C, C), c3),                # Wproj (heads concatenated along contraction axis)
        pl.BlockSpec((L, 1, C), c3),                # bproj
        pl.BlockSpec((L, 1, C), c3),                # ln2 gamma
        pl.BlockSpec((L, 1, C), c3),                # ln2 beta
        pl.BlockSpec((L, C, H4), c3),               # W1
        pl.BlockSpec((L, 1, H4), c3),               # b1
        pl.BlockSpec((L, H4, C), c3),               # W2
        pl.BlockSpec((L, 1, C), c3),                # b2
        pl.BlockSpec((1, C), c2),                   # lnf gamma
        pl.BlockSpec((1, C), c2),                   # lnf beta
        pl.BlockSpec((C, VOCAB_PAD), c2),           # W_lm (lane-padded)
        pl.BlockSpec((1, VOCAB_PAD), c2),           # b_lm
    ]

    logits = pl.pallas_call(
        gpt_kernel,
        out_shape=jax.ShapeDtypeStruct((B, Tp, VOCAB_PAD), jnp.float32),
        grid=(B // NB,),
        in_specs=in_specs,
        out_specs=pl.BlockSpec((NB, Tp, VOCAB_PAD), idx_x),
        compiler_params=pltpu.CompilerParams(
            dimension_semantics=("parallel",),
            vmem_limit_bytes=48 * 1024 * 1024),
    )(x, params["ln1_g"], params["ln1_b"], params["wqkv"], params["wproj"],
      params["bproj"], params["ln2_g"], params["ln2_b"], params["w1"],
      params["b1"], params["w2"], params["b2"], params["lnf_g"],
      params["lnf_b"], params["w_lm"], params["b_lm"])

    return logits[:, :T, :VOCAB_SIZE]               # drop T / lane padding


gpt_forward_jit = jax.jit(gpt_forward)


# ---------------- deterministic parameter init (matches module shapes) ----------------
def init_params(key):
    def normal(k, shape):
        return jax.random.normal(k, shape, jnp.float32) * 0.02

    keys = iter(jax.random.split(key, 16))
    L, C, H4 = N_LAYER, N_EMBD, 4 * N_EMBD
    scale = HEAD_SIZE ** -0.5

    # fused QKV weight, head-major within each group: cols [q_h0..q_h2 | k_h0..k_h2 | v_h0..v_h2];
    # the 1/sqrt(head_size) attention scale is folded into the q columns here.
    wq = normal(next(keys), (L, C, C)) * scale
    wk = normal(next(keys), (L, C, C))
    wv = normal(next(keys), (L, C, C))

    params = {
        "tok_emb": normal(next(keys), (VOCAB_SIZE, C)),
        "pos_emb": normal(next(keys), (BLOCK_SIZE, C)),
        "ln1_g": jnp.ones((L, 1, C), jnp.float32),
        "ln1_b": jnp.zeros((L, 1, C), jnp.float32),
        "wqkv": jnp.concatenate([wq, wk, wv], axis=-1).astype(jnp.bfloat16),   # (L, C, 3C)
        "wproj": normal(next(keys), (L, C, C)).astype(jnp.bfloat16),           # (L, H*HS, C)
        "bproj": jnp.zeros((L, 1, C), jnp.float32),
        "ln2_g": jnp.ones((L, 1, C), jnp.float32),
        "ln2_b": jnp.zeros((L, 1, C), jnp.float32),
        "w1": normal(next(keys), (L, C, H4)).astype(jnp.bfloat16),
        "b1": jnp.zeros((L, 1, H4), jnp.float32),
        "w2": normal(next(keys), (L, H4, C)).astype(jnp.bfloat16),
        "b2": jnp.zeros((L, 1, C), jnp.float32),
        "lnf_g": jnp.ones((1, C), jnp.float32),
        "lnf_b": jnp.zeros((1, C), jnp.float32),
        "w_lm": jnp.pad(normal(next(keys), (C, VOCAB_SIZE)),
                        ((0, 0), (0, VOCAB_PAD - VOCAB_SIZE))).astype(jnp.bfloat16),
        "b_lm": jnp.zeros((1, VOCAB_PAD), jnp.float32),
    }
    return params


if __name__ == "__main__":
    key = jax.random.PRNGKey(0)
    pkey, ikey = jax.random.split(key)
    params = init_params(pkey)

    B, T = 2, 16                                   # small shapes; T <= block_size
    idx = jax.random.randint(ikey, (B, T), 0, VOCAB_SIZE, dtype=jnp.int32)

    logits = gpt_forward_jit(idx, params)
    jax.block_until_ready(logits)
    assert logits.shape == (B, T, VOCAB_SIZE)
    assert bool(jnp.all(jnp.isfinite(logits)))
    print("KERNEL_OK")
</pallas_src>

<mosaic_0001>
module attributes {stable_mosaic.version = 11 : i64} {
  func.func @gpt_kernel(%arg0: i32, %arg1: memref<1x16x192xf32, #tpu.memory_space<vmem>>, %arg2: memref<3x1x192xf32, #tpu.memory_space<vmem>>, %arg3: memref<3x1x192xf32, #tpu.memory_space<vmem>>, %arg4: memref<3x192x576xbf16, #tpu.memory_space<vmem>>, %arg5: memref<3x192x192xbf16, #tpu.memory_space<vmem>>, %arg6: memref<3x1x192xf32, #tpu.memory_space<vmem>>, %arg7: memref<3x1x192xf32, #tpu.memory_space<vmem>>, %arg8: memref<3x1x192xf32, #tpu.memory_space<vmem>>, %arg9: memref<3x192x768xbf16, #tpu.memory_space<vmem>>, %arg10: memref<3x1x768xf32, #tpu.memory_space<vmem>>, %arg11: memref<3x768x192xbf16, #tpu.memory_space<vmem>>, %arg12: memref<3x1x192xf32, #tpu.memory_space<vmem>>, %arg13: memref<1x192xf32, #tpu.memory_space<vmem>>, %arg14: memref<1x192xf32, #tpu.memory_space<vmem>>, %arg15: memref<192x384xbf16, #tpu.memory_space<vmem>>, %arg16: memref<1x384xf32, #tpu.memory_space<vmem>>, %arg17: memref<1x16x384xf32, #tpu.memory_space<vmem>>) attributes {dimension_semantics = [#tpu.dimension_semantics<parallel>], iteration_bounds = array<i64: 2>, scalar_prefetch = 0 : i64, scratch_operands = 0 : i64, tpu.core_type = #tpu.core_type<tc>, window_params = [{transform_indices = @transform_0, window_bounds = array<i64: 1, 16, 192>}, {pipeline_mode = #tpu.pipeline_mode<synchronous>, transform_indices = @transform_1, window_bounds = array<i64: 3, 1, 192>}, {pipeline_mode = #tpu.pipeline_mode<synchronous>, transform_indices = @transform_2, window_bounds = array<i64: 3, 1, 192>}, {pipeline_mode = #tpu.pipeline_mode<synchronous>, transform_indices = @transform_3, window_bounds = array<i64: 3, 192, 576>}, {pipeline_mode = #tpu.pipeline_mode<synchronous>, transform_indices = @transform_4, window_bounds = array<i64: 3, 192, 192>}, {pipeline_mode = #tpu.pipeline_mode<synchronous>, transform_indices = @transform_5, window_bounds = array<i64: 3, 1, 192>}, {pipeline_mode = #tpu.pipeline_mode<synchronous>, transform_indices = @transform_6, window_bounds = array<i64: 3, 1, 192>}, {pipeline_mode = #tpu.pipeline_mode<synchronous>, transform_indices = @transform_7, window_bounds = array<i64: 3, 1, 192>}, {pipeline_mode = #tpu.pipeline_mode<synchronous>, transform_indices = @transform_8, window_bounds = array<i64: 3, 192, 768>}, {pipeline_mode = #tpu.pipeline_mode<synchronous>, transform_indices = @transform_9, window_bounds = array<i64: 3, 1, 768>}, {pipeline_mode = #tpu.pipeline_mode<synchronous>, transform_indices = @transform_10, window_bounds = array<i64: 3, 768, 192>}, {pipeline_mode = #tpu.pipeline_mode<synchronous>, transform_indices = @transform_11, window_bounds = array<i64: 3, 1, 192>}, {pipeline_mode = #tpu.pipeline_mode<synchronous>, transform_indices = @transform_12, window_bounds = array<i64: 1, 192>}, {pipeline_mode = #tpu.pipeline_mode<synchronous>, transform_indices = @transform_13, window_bounds = array<i64: 1, 192>}, {pipeline_mode = #tpu.pipeline_mode<synchronous>, transform_indices = @transform_14, window_bounds = array<i64: 192, 384>}, {pipeline_mode = #tpu.pipeline_mode<synchronous>, transform_indices = @transform_15, window_bounds = array<i64: 1, 384>}, {transform_indices = @transform_16, window_bounds = array<i64: 1, 16, 384>}]} {
    %c0 = arith.constant 0 : index
    %c0_0 = arith.constant 0 : index
    %c0_1 = arith.constant 0 : index
    %0 = vector.load %arg1[%c0, %c0_0, %c0_1] : memref<1x16x192xf32, #tpu.memory_space<vmem>>, vector<1x16x192xf32>
    %1 = vector.shape_cast %0 : vector<1x16x192xf32> to vector<16x192xf32>
    %2 = tpu.iota {dimensions = array<i32: 0>} : vector<16x16xi32>
    %3 = tpu.iota {dimensions = array<i32: 1>} : vector<16x16xi32>
    %4 = arith.cmpi sle, %3, %2 : vector<16x16xi32>
    %cst = arith.constant 0.000000e+00 : f32
    %cst_2 = arith.constant -1.000000e+30 : f32
    %5 = vector.broadcast %cst : f32 to vector<16x16xf32>
    %6 = vector.broadcast %cst_2 : f32 to vector<16x16xf32>
    %7 = arith.select %4, %5, %6 : vector<16x16xi1>, vector<16x16xf32>
    %8 = vector.shape_cast %7 : vector<16x16xf32> to vector<1x16x16xf32>
    %c0_3 = arith.constant 0 : index
    %c0_4 = arith.constant 0 : index
    %c0_5 = arith.constant 0 : index
    %9 = vector.load %arg2[%c0_3, %c0_4, %c0_5] : memref<3x1x192xf32, #tpu.memory_space<vmem>>, vector<1x1x192xf32>
    %10 = vector.shape_cast %9 : vector<1x1x192xf32> to vector<1x192xf32>
    %c0_6 = arith.constant 0 : index
    %c0_7 = arith.constant 0 : index
    %c0_8 = arith.constant 0 : index
    %11 = vector.load %arg3[%c0_6, %c0_7, %c0_8] : memref<3x1x192xf32, #tpu.memory_space<vmem>>, vector<1x1x192xf32>
    %12 = vector.shape_cast %11 : vector<1x1x192xf32> to vector<1x192xf32>
    %cst_9 = arith.constant dense<0.000000e+00> : vector<16xf32>
    %13 = vector.multi_reduction <add>, %1, %cst_9 [1] : vector<16x192xf32> to vector<16xf32>
    %14 = vector.shape_cast %13 : vector<16xf32> to vector<16x1xf32>
    %cst_10 = arith.constant 1.920000e+02 : f32
    %15 = vector.broadcast %cst_10 : f32 to vector<16x1xf32>
    %16 = arith.divf %14, %15 : vector<16x1xf32>
    %17 = vector.broadcast %16 : vector<16x1xf32> to vector<16x192xf32>
    %18 = arith.subf %1, %17 : vector<16x192xf32>
    %19 = arith.mulf %18, %18 : vector<16x192xf32>
    %cst_11 = arith.constant dense<0.000000e+00> : vector<16xf32>
    %20 = vector.multi_reduction <add>, %19, %cst_11 [1] : vector<16x192xf32> to vector<16xf32>
    %21 = vector.shape_cast %20 : vector<16xf32> to vector<16x1xf32>
    %cst_12 = arith.constant 1.920000e+02 : f32
    %22 = vector.broadcast %cst_12 : f32 to vector<16x1xf32>
    %23 = arith.divf %21, %22 : vector<16x1xf32>
    %24 = vector.broadcast %16 : vector<16x1xf32> to vector<16x192xf32>
    %25 = arith.subf %1, %24 : vector<16x192xf32>
    %cst_13 = arith.constant 9.99999974E-6 : f32
    %26 = vector.broadcast %cst_13 : f32 to vector<16x1xf32>
    %27 = arith.addf %23, %26 : vector<16x1xf32>
    %28 = math.rsqrt %27 : vector<16x1xf32>
    %29 = vector.broadcast %28 : vector<16x1xf32> to vector<16x192xf32>
    %30 = arith.mulf %25, %29 : vector<16x192xf32>
    %31 = vector.broadcast %10 : vector<1x192xf32> to vector<16x192xf32>
    %32 = arith.mulf %30, %31 : vector<16x192xf32>
    %33 = vector.broadcast %12 : vector<1x192xf32> to vector<16x192xf32>
    %34 = arith.addf %32, %33 : vector<16x192xf32>
    %35 = arith.truncf %34 : vector<16x192xf32> to vector<16x192xbf16>
    %c0_14 = arith.constant 0 : index
    %c0_15 = arith.constant 0 : index
    %c0_16 = arith.constant 0 : index
    %36 = vector.load %arg4[%c0_14, %c0_15, %c0_16] : memref<3x192x576xbf16, #tpu.memory_space<vmem>>, vector<1x192x576xbf16>
    %37 = vector.shape_cast %36 : vector<1x192x576xbf16> to vector<192x576xbf16>
    %cst_17 = arith.constant dense<0.000000e+00> : vector<16x576xf32>
    %38 = tpu.matmul %35, %37, %cst_17 {dimension_numbers = #tpu.dot_dimension_numbers<[1], [0], [0], [1], [0, 0, 1, 1], [], []>} : vector<16x192xbf16>, vector<192x576xbf16>, vector<16x576xf32> -> vector<16x576xf32>
    %39 = arith.truncf %38 : vector<16x576xf32> to vector<16x576xbf16>
    %40 = vector.extract_strided_slice %39 {offsets = [0, 0], sizes = [16, 64], strides = [1, 1]} : vector<16x576xbf16> to vector<16x64xbf16>
    %41 = vector.extract_strided_slice %39 {offsets = [0, 64], sizes = [16, 64], strides = [1, 1]} : vector<16x576xbf16> to vector<16x64xbf16>
    %42 = vector.extract_strided_slice %39 {offsets = [0, 128], sizes = [16, 64], strides = [1, 1]} : vector<16x576xbf16> to vector<16x64xbf16>
    %43 = vector.shape_cast %40 : vector<16x64xbf16> to vector<1x16x64xbf16>
    %44 = vector.shape_cast %41 : vector<16x64xbf16> to vector<1x16x64xbf16>
    %45 = vector.shape_cast %42 : vector<16x64xbf16> to vector<1x16x64xbf16>
    %46 = tpu.concatenate %43, %44, %45 in 0 : vector<1x16x64xbf16>, vector<1x16x64xbf16>, vector<1x16x64xbf16> -> vector<3x16x64xbf16>
    %47 = vector.extract_strided_slice %39 {offsets = [0, 192], sizes = [16, 64], strides = [1, 1]} : vector<16x576xbf16> to vector<16x64xbf16>
    %48 = vector.extract_strided_slice %39 {offsets = [0, 256], sizes = [16, 64], strides = [1, 1]} : vector<16x576xbf16> to vector<16x64xbf16>
    %49 = vector.extract_strided_slice %39 {offsets = [0, 320], sizes = [16, 64], strides = [1, 1]} : vector<16x576xbf16> to vector<16x64xbf16>
    %50 = vector.shape_cast %47 : vector<16x64xbf16> to vector<1x16x64xbf16>
    %51 = vector.shape_cast %48 : vector<16x64xbf16> to vector<1x16x64xbf16>
    %52 = vector.shape_cast %49 : vector<16x64xbf16> to vector<1x16x64xbf16>
    %53 = tpu.concatenate %50, %51, %52 in 0 : vector<1x16x64xbf16>, vector<1x16x64xbf16>, vector<1x16x64xbf16> -> vector<3x16x64xbf16>
    %54 = vector.extract_strided_slice %39 {offsets = [0, 384], sizes = [16, 64], strides = [1, 1]} : vector<16x576xbf16> to vector<16x64xbf16>
    %55 = vector.extract_strided_slice %39 {offsets = [0, 448], sizes = [16, 64], strides = [1, 1]} : vector<16x576xbf16> to vector<16x64xbf16>
    %56 = vector.extract_strided_slice %39 {offsets = [0, 512], sizes = [16, 64], strides = [1, 1]} : vector<16x576xbf16> to vector<16x64xbf16>
    %57 = vector.shape_cast %54 : vector<16x64xbf16> to vector<1x16x64xbf16>
    %58 = vector.shape_cast %55 : vector<16x64xbf16> to vector<1x16x64xbf16>
    %59 = vector.shape_cast %56 : vector<16x64xbf16> to vector<1x16x64xbf16>
    %60 = tpu.concatenate %57, %58, %59 in 0 : vector<1x16x64xbf16>, vector<1x16x64xbf16>, vector<1x16x64xbf16> -> vector<3x16x64xbf16>
    "tpu.trace_start"() <{level = 10 : i32, message = "btd,bsd->bts"}> : () -> ()
    %cst_18 = arith.constant dense<0.000000e+00> : vector<3x16x16xf32>
    %61 = tpu.matmul %46, %53, %cst_18 {dimension_numbers = #tpu.dot_dimension_numbers<[2], [2], [1], [1], [0, 0, 0, 1, 1, 1], [0], [0]>} : vector<3x16x64xbf16>, vector<3x16x64xbf16>, vector<3x16x16xf32> -> vector<3x16x16xf32>
    "tpu.trace_stop"() : () -> ()
    %62 = vector.broadcast %8 : vector<1x16x16xf32> to vector<3x16x16xf32>
    %63 = arith.addf %61, %62 : vector<3x16x16xf32>
    %cst_19 = arith.constant dense<0xFF800000> : vector<3x16xf32>
    %64 = vector.multi_reduction <maximumf>, %63, %cst_19 [2] : vector<3x16x16xf32> to vector<3x16xf32>
    %65 = vector.shape_cast %64 : vector<3x16xf32> to vector<3x16x1xf32>
    %66 = vector.broadcast %65 : vector<3x16x1xf32> to vector<3x16x16xf32>
    %67 = arith.subf %63, %66 : vector<3x16x16xf32>
    %68 = math.exp %67 : vector<3x16x16xf32>
    %cst_20 = arith.constant dense<0.000000e+00> : vector<3x16xf32>
    %69 = vector.multi_reduction <add>, %68, %cst_20 [2] : vector<3x16x16xf32> to vector<3x16xf32>
    %70 = vector.shape_cast %69 : vector<3x16xf32> to vector<3x16x1xf32>
    %71 = tpu.reciprocal %70 {approx = true} : vector<3x16x1xf32> -> vector<3x16x1xf32>
    %72 = vector.broadcast %71 : vector<3x16x1xf32> to vector<3x16x16xf32>
    %73 = arith.mulf %68, %72 : vector<3x16x16xf32>
    %74 = arith.truncf %73 : vector<3x16x16xf32> to vector<3x16x16xbf16>
    "tpu.trace_start"() <{level = 10 : i32, message = "bts,bsd->btd"}> : () -> ()
    %cst_21 = arith.constant dense<0.000000e+00> : vector<3x16x64xf32>
    %75 = tpu.matmul %74, %60, %cst_21 {dimension_numbers = #tpu.dot_dimension_numbers<[2], [1], [1], [2], [0, 0, 0, 1, 1, 2], [0], [0]>} : vector<3x16x16xbf16>, vector<3x16x64xbf16>, vector<3x16x64xf32> -> vector<3x16x64xf32>
    "tpu.trace_stop"() : () -> ()
    %76 = arith.truncf %75 : vector<3x16x64xf32> to vector<3x16x64xbf16>
    %77 = vector.extract_strided_slice %76 {offsets = [0, 0, 0], sizes = [1, 16, 64], strides = [1, 1, 1]} : vector<3x16x64xbf16> to vector<1x16x64xbf16>
    %78 = vector.shape_cast %77 : vector<1x16x64xbf16> to vector<16x64xbf16>
    %79 = vector.extract_strided_slice %76 {offsets = [1, 0, 0], sizes = [1, 16, 64], strides = [1, 1, 1]} : vector<3x16x64xbf16> to vector<1x16x64xbf16>
    %80 = vector.shape_cast %79 : vector<1x16x64xbf16> to vector<16x64xbf16>
    %81 = vector.extract_strided_slice %76 {offsets = [2, 0, 0], sizes = [1, 16, 64], strides = [1, 1, 1]} : vector<3x16x64xbf16> to vector<1x16x64xbf16>
    %82 = vector.shape_cast %81 : vector<1x16x64xbf16> to vector<16x64xbf16>
    %83 = tpu.concatenate %78, %80, %82 in 1 : vector<16x64xbf16>, vector<16x64xbf16>, vector<16x64xbf16> -> vector<16x192xbf16>
    %c0_22 = arith.constant 0 : index
    %c0_23 = arith.constant 0 : index
    %c0_24 = arith.constant 0 : index
    %84 = vector.load %arg5[%c0_22, %c0_23, %c0_24] : memref<3x192x192xbf16, #tpu.memory_space<vmem>>, vector<1x192x192xbf16>
    %85 = vector.shape_cast %84 : vector<1x192x192xbf16> to vector<192x192xbf16>
    %cst_25 = arith.constant dense<0.000000e+00> : vector<16x192xf32>
    %86 = tpu.matmul %83, %85, %cst_25 {dimension_numbers = #tpu.dot_dimension_numbers<[1], [0], [0], [1], [0, 0, 1, 1], [], []>} : vector<16x192xbf16>, vector<192x192xbf16>, vector<16x192xf32> -> vector<16x192xf32>
    %c0_26 = arith.constant 0 : index
    %c0_27 = arith.constant 0 : index
    %c0_28 = arith.constant 0 : index
    %87 = vector.load %arg6[%c0_26, %c0_27, %c0_28] : memref<3x1x192xf32, #tpu.memory_space<vmem>>, vector<1x1x192xf32>
    %88 = vector.shape_cast %87 : vector<1x1x192xf32> to vector<1x192xf32>
    %89 = vector.broadcast %88 : vector<1x192xf32> to vector<16x192xf32>
    %90 = arith.addf %86, %89 : vector<16x192xf32>
    %91 = arith.addf %1, %90 : vector<16x192xf32>
    %c0_29 = arith.constant 0 : index
    %c0_30 = arith.constant 0 : index
    %c0_31 = arith.constant 0 : index
    %92 = vector.load %arg7[%c0_29, %c0_30, %c0_31] : memref<3x1x192xf32, #tpu.memory_space<vmem>>, vector<1x1x192xf32>
    %93 = vector.shape_cast %92 : vector<1x1x192xf32> to vector<1x192xf32>
    %c0_32 = arith.constant 0 : index
    %c0_33 = arith.constant 0 : index
    %c0_34 = arith.constant 0 : index
    %94 = vector.load %arg8[%c0_32, %c0_33, %c0_34] : memref<3x1x192xf32, #tpu.memory_space<vmem>>, vector<1x1x192xf32>
    %95 = vector.shape_cast %94 : vector<1x1x192xf32> to vector<1x192xf32>
    %cst_35 = arith.constant dense<0.000000e+00> : vector<16xf32>
    %96 = vector.multi_reduction <add>, %91, %cst_35 [1] : vector<16x192xf32> to vector<16xf32>
    %97 = vector.shape_cast %96 : vector<16xf32> to vector<16x1xf32>
    %cst_36 = arith.constant 1.920000e+02 : f32
    %98 = vector.broadcast %cst_36 : f32 to vector<16x1xf32>
    %99 = arith.divf %97, %98 : vector<16x1xf32>
    %100 = vector.broadcast %99 : vector<16x1xf32> to vector<16x192xf32>
    %101 = arith.subf %91, %100 : vector<16x192xf32>
    %102 = arith.mulf %101, %101 : vector<16x192xf32>
    %cst_37 = arith.constant dense<0.000000e+00> : vector<16xf32>
    %103 = vector.multi_reduction <add>, %102, %cst_37 [1] : vector<16x192xf32> to vector<16xf32>
    %104 = vector.shape_cast %103 : vector<16xf32> to vector<16x1xf32>
    %cst_38 = arith.constant 1.920000e+02 : f32
    %105 = vector.broadcast %cst_38 : f32 to vector<16x1xf32>
    %106 = arith.divf %104, %105 : vector<16x1xf32>
    %107 = vector.broadcast %99 : vector<16x1xf32> to vector<16x192xf32>
    %108 = arith.subf %91, %107 : vector<16x192xf32>
    %cst_39 = arith.constant 9.99999974E-6 : f32
    %109 = vector.broadcast %cst_39 : f32 to vector<16x1xf32>
    %110 = arith.addf %106, %109 : vector<16x1xf32>
    %111 = math.rsqrt %110 : vector<16x1xf32>
    %112 = vector.broadcast %111 : vector<16x1xf32> to vector<16x192xf32>
    %113 = arith.mulf %108, %112 : vector<16x192xf32>
    %114 = vector.broadcast %93 : vector<1x192xf32> to vector<16x192xf32>
    %115 = arith.mulf %113, %114 : vector<16x192xf32>
    %116 = vector.broadcast %95 : vector<1x192xf32> to vector<16x192xf32>
    %117 = arith.addf %115, %116 : vector<16x192xf32>
    %118 = arith.truncf %117 : vector<16x192xf32> to vector<16x192xbf16>
    %c0_40 = arith.constant 0 : index
    %c0_41 = arith.constant 0 : index
    %c0_42 = arith.constant 0 : index
    %119 = vector.load %arg9[%c0_40, %c0_41, %c0_42] : memref<3x192x768xbf16, #tpu.memory_space<vmem>>, vector<1x192x768xbf16>
    %120 = vector.shape_cast %119 : vector<1x192x768xbf16> to vector<192x768xbf16>
    %cst_43 = arith.constant dense<0.000000e+00> : vector<16x768xf32>
    %121 = tpu.matmul %118, %120, %cst_43 {dimension_numbers = #tpu.dot_dimension_numbers<[1], [0], [0], [1], [0, 0, 1, 1], [], []>} : vector<16x192xbf16>, vector<192x768xbf16>, vector<16x768xf32> -> vector<16x768xf32>
    %c0_44 = arith.constant 0 : index
    %c0_45 = arith.constant 0 : index
    %c0_46 = arith.constant 0 : index
    %122 = vector.load %arg10[%c0_44, %c0_45, %c0_46] : memref<3x1x768xf32, #tpu.memory_space<vmem>>, vector<1x1x768xf32>
    %123 = vector.shape_cast %122 : vector<1x1x768xf32> to vector<1x768xf32>
    %124 = vector.broadcast %123 : vector<1x768xf32> to vector<16x768xf32>
    %125 = arith.addf %121, %124 : vector<16x768xf32>
    %cst_47 = arith.constant 0.000000e+00 : f32
    %126 = vector.broadcast %cst_47 : f32 to vector<16x768xf32>
    %127 = arith.maximumf %125, %126 : vector<16x768xf32>
    %128 = arith.truncf %127 : vector<16x768xf32> to vector<16x768xbf16>
    %c0_48 = arith.constant 0 : index
    %c0_49 = arith.constant 0 : index
    %c0_50 = arith.constant 0 : index
    %129 = vector.load %arg11[%c0_48, %c0_49, %c0_50] : memref<3x768x192xbf16, #tpu.memory_space<vmem>>, vector<1x768x192xbf16>
    %130 = vector.shape_cast %129 : vector<1x768x192xbf16> to vector<768x192xbf16>
    %cst_51 = arith.constant dense<0.000000e+00> : vector<16x192xf32>
    %131 = tpu.matmul %128, %130, %cst_51 {dimension_numbers = #tpu.dot_dimension_numbers<[1], [0], [0], [1], [0, 0, 1, 1], [], []>} : vector<16x768xbf16>, vector<768x192xbf16>, vector<16x192xf32> -> vector<16x192xf32>
    %c0_52 = arith.constant 0 : index
    %c0_53 = arith.constant 0 : index
    %c0_54 = arith.constant 0 : index
    %132 = vector.load %arg12[%c0_52, %c0_53, %c0_54] : memref<3x1x192xf32, #tpu.memory_space<vmem>>, vector<1x1x192xf32>
    %133 = vector.shape_cast %132 : vector<1x1x192xf32> to vector<1x192xf32>
    %134 = vector.broadcast %133 : vector<1x192xf32> to vector<16x192xf32>
    %135 = arith.addf %131, %134 : vector<16x192xf32>
    %136 = arith.addf %91, %135 : vector<16x192xf32>
    %c1 = arith.constant 1 : index
    %c0_55 = arith.constant 0 : index
    %c0_56 = arith.constant 0 : index
    %137 = vector.load %arg2[%c1, %c0_55, %c0_56] : memref<3x1x192xf32, #tpu.memory_space<vmem>>, vector<1x1x192xf32>
    %138 = vector.shape_cast %137 : vector<1x1x192xf32> to vector<1x192xf32>
    %c1_57 = arith.constant 1 : index
    %c0_58 = arith.constant 0 : index
    %c0_59 = arith.constant 0 : index
    %139 = vector.load %arg3[%c1_57, %c0_58, %c0_59] : memref<3x1x192xf32, #tpu.memory_space<vmem>>, vector<1x1x192xf32>
    %140 = vector.shape_cast %139 : vector<1x1x192xf32> to vector<1x192xf32>
    %cst_60 = arith.constant dense<0.000000e+00> : vector<16xf32>
    %141 = vector.multi_reduction <add>, %136, %cst_60 [1] : vector<16x192xf32> to vector<16xf32>
    %142 = vector.shape_cast %141 : vector<16xf32> to vector<16x1xf32>
    %cst_61 = arith.constant 1.920000e+02 : f32
    %143 = vector.broadcast %cst_61 : f32 to vector<16x1xf32>
    %144 = arith.divf %142, %143 : vector<16x1xf32>
    %145 = vector.broadcast %144 : vector<16x1xf32> to vector<16x192xf32>
    %146 = arith.subf %136, %145 : vector<16x192xf32>
    %147 = arith.mulf %146, %146 : vector<16x192xf32>
    %cst_62 = arith.constant dense<0.000000e+00> : vector<16xf32>
    %148 = vector.multi_reduction <add>, %147, %cst_62 [1] : vector<16x192xf32> to vector<16xf32>
    %149 = vector.shape_cast %148 : vector<16xf32> to vector<16x1xf32>
    %cst_63 = arith.constant 1.920000e+02 : f32
    %150 = vector.broadcast %cst_63 : f32 to vector<16x1xf32>
    %151 = arith.divf %149, %150 : vector<16x1xf32>
    %152 = vector.broadcast %144 : vector<16x1xf32> to vector<16x192xf32>
    %153 = arith.subf %136, %152 : vector<16x192xf32>
    %cst_64 = arith.constant 9.99999974E-6 : f32
    %154 = vector.broadcast %cst_64 : f32 to vector<16x1xf32>
    %155 = arith.addf %151, %154 : vector<16x1xf32>
    %156 = math.rsqrt %155 : vector<16x1xf32>
    %157 = vector.broadcast %156 : vector<16x1xf32> to vector<16x192xf32>
    %158 = arith.mulf %153, %157 : vector<16x192xf32>
    %159 = vector.broadcast %138 : vector<1x192xf32> to vector<16x192xf32>
    %160 = arith.mulf %158, %159 : vector<16x192xf32>
    %161 = vector.broadcast %140 : vector<1x192xf32> to vector<16x192xf32>
    %162 = arith.addf %160, %161 : vector<16x192xf32>
    %163 = arith.truncf %162 : vector<16x192xf32> to vector<16x192xbf16>
    %c1_65 = arith.constant 1 : index
    %c0_66 = arith.constant 0 : index
    %c0_67 = arith.constant 0 : index
    %164 = vector.load %arg4[%c1_65, %c0_66, %c0_67] : memref<3x192x576xbf16, #tpu.memory_space<vmem>>, vector<1x192x576xbf16>
    %165 = vector.shape_cast %164 : vector<1x192x576xbf16> to vector<192x576xbf16>
    %cst_68 = arith.constant dense<0.000000e+00> : vector<16x576xf32>
    %166 = tpu.matmul %163, %165, %cst_68 {dimension_numbers = #tpu.dot_dimension_numbers<[1], [0], [0], [1], [0, 0, 1, 1], [], []>} : vector<16x192xbf16>, vector<192x576xbf16>, vector<16x576xf32> -> vector<16x576xf32>
    %167 = arith.truncf %166 : vector<16x576xf32> to vector<16x576xbf16>
    %168 = vector.extract_strided_slice %167 {offsets = [0, 0], sizes = [16, 64], strides = [1, 1]} : vector<16x576xbf16> to vector<16x64xbf16>
    %169 = vector.extract_strided_slice %167 {offsets = [0, 64], sizes = [16, 64], strides = [1, 1]} : vector<16x576xbf16> to vector<16x64xbf16>
    %170 = vector.extract_strided_slice %167 {offsets = [0, 128], sizes = [16, 64], strides = [1, 1]} : vector<16x576xbf16> to vector<16x64xbf16>
    %171 = vector.shape_cast %168 : vector<16x64xbf16> to vector<1x16x64xbf16>
    %172 = vector.shape_cast %169 : vector<16x64xbf16> to vector<1x16x64xbf16>
    %173 = vector.shape_cast %170 : vector<16x64xbf16> to vector<1x16x64xbf16>
    %174 = tpu.concatenate %171, %172, %173 in 0 : vector<1x16x64xbf16>, vector<1x16x64xbf16>, vector<1x16x64xbf16> -> vector<3x16x64xbf16>
    %175 = vector.extract_strided_slice %167 {offsets = [0, 192], sizes = [16, 64], strides = [1, 1]} : vector<16x576xbf16> to vector<16x64xbf16>
    %176 = vector.extract_strided_slice %167 {offsets = [0, 256], sizes = [16, 64], strides = [1, 1]} : vector<16x576xbf16> to vector<16x64xbf16>
    %177 = vector.extract_strided_slice %167 {offsets = [0, 320], sizes = [16, 64], strides = [1, 1]} : vector<16x576xbf16> to vector<16x64xbf16>
    %178 = vector.shape_cast %175 : vector<16x64xbf16> to vector<1x16x64xbf16>
    %179 = vector.shape_cast %176 : vector<16x64xbf16> to vector<1x16x64xbf16>
    %180 = vector.shape_cast %177 : vector<16x64xbf16> to vector<1x16x64xbf16>
    %181 = tpu.concatenate %178, %179, %180 in 0 : vector<1x16x64xbf16>, vector<1x16x64xbf16>, vector<1x16x64xbf16> -> vector<3x16x64xbf16>
    %182 = vector.extract_strided_slice %167 {offsets = [0, 384], sizes = [16, 64], strides = [1, 1]} : vector<16x576xbf16> to vector<16x64xbf16>
    %183 = vector.extract_strided_slice %167 {offsets = [0, 448], sizes = [16, 64], strides = [1, 1]} : vector<16x576xbf16> to vector<16x64xbf16>
    %184 = vector.extract_strided_slice %167 {offsets = [0, 512], sizes = [16, 64], strides = [1, 1]} : vector<16x576xbf16> to vector<16x64xbf16>
    %185 = vector.shape_cast %182 : vector<16x64xbf16> to vector<1x16x64xbf16>
    %186 = vector.shape_cast %183 : vector<16x64xbf16> to vector<1x16x64xbf16>
    %187 = vector.shape_cast %184 : vector<16x64xbf16> to vector<1x16x64xbf16>
    %188 = tpu.concatenate %185, %186, %187 in 0 : vector<1x16x64xbf16>, vector<1x16x64xbf16>, vector<1x16x64xbf16> -> vector<3x16x64xbf16>
    "tpu.trace_start"() <{level = 10 : i32, message = "btd,bsd->bts"}> : () -> ()
    %cst_69 = arith.constant dense<0.000000e+00> : vector<3x16x16xf32>
    %189 = tpu.matmul %174, %181, %cst_69 {dimension_numbers = #tpu.dot_dimension_numbers<[2], [2], [1], [1], [0, 0, 0, 1, 1, 1], [0], [0]>} : vector<3x16x64xbf16>, vector<3x16x64xbf16>, vector<3x16x16xf32> -> vector<3x16x16xf32>
    "tpu.trace_stop"() : () -> ()
    %190 = vector.broadcast %8 : vector<1x16x16xf32> to vector<3x16x16xf32>
    %191 = arith.addf %189, %190 : vector<3x16x16xf32>
    %cst_70 = arith.constant dense<0xFF800000> : vector<3x16xf32>
    %192 = vector.multi_reduction <maximumf>, %191, %cst_70 [2] : vector<3x16x16xf32> to vector<3x16xf32>
    %193 = vector.shape_cast %192 : vector<3x16xf32> to vector<3x16x1xf32>
    %194 = vector.broadcast %193 : vector<3x16x1xf32> to vector<3x16x16xf32>
    %195 = arith.subf %191, %194 : vector<3x16x16xf32>
    %196 = math.exp %195 : vector<3x16x16xf32>
    %cst_71 = arith.constant dense<0.000000e+00> : vector<3x16xf32>
    %197 = vector.multi_reduction <add>, %196, %cst_71 [2] : vector<3x16x16xf32> to vector<3x16xf32>
    %198 = vector.shape_cast %197 : vector<3x16xf32> to vector<3x16x1xf32>
    %199 = tpu.reciprocal %198 {approx = true} : vector<3x16x1xf32> -> vector<3x16x1xf32>
    %200 = vector.broadcast %199 : vector<3x16x1xf32> to vector<3x16x16xf32>
    %201 = arith.mulf %196, %200 : vector<3x16x16xf32>
    %202 = arith.truncf %201 : vector<3x16x16xf32> to vector<3x16x16xbf16>
    "tpu.trace_start"() <{level = 10 : i32, message = "bts,bsd->btd"}> : () -> ()
    %cst_72 = arith.constant dense<0.000000e+00> : vector<3x16x64xf32>
    %203 = tpu.matmul %202, %188, %cst_72 {dimension_numbers = #tpu.dot_dimension_numbers<[2], [1], [1], [2], [0, 0, 0, 1, 1, 2], [0], [0]>} : vector<3x16x16xbf16>, vector<3x16x64xbf16>, vector<3x16x64xf32> -> vector<3x16x64xf32>
    "tpu.trace_stop"() : () -> ()
    %204 = arith.truncf %203 : vector<3x16x64xf32> to vector<3x16x64xbf16>
    %205 = vector.extract_strided_slice %204 {offsets = [0, 0, 0], sizes = [1, 16, 64], strides = [1, 1, 1]} : vector<3x16x64xbf16> to vector<1x16x64xbf16>
    %206 = vector.shape_cast %205 : vector<1x16x64xbf16> to vector<16x64xbf16>
    %207 = vector.extract_strided_slice %204 {offsets = [1, 0, 0], sizes = [1, 16, 64], strides = [1, 1, 1]} : vector<3x16x64xbf16> to vector<1x16x64xbf16>
    %208 = vector.shape_cast %207 : vector<1x16x64xbf16> to vector<16x64xbf16>
    %209 = vector.extract_strided_slice %204 {offsets = [2, 0, 0], sizes = [1, 16, 64], strides = [1, 1, 1]} : vector<3x16x64xbf16> to vector<1x16x64xbf16>
    %210 = vector.shape_cast %209 : vector<1x16x64xbf16> to vector<16x64xbf16>
    %211 = tpu.concatenate %206, %208, %210 in 1 : vector<16x64xbf16>, vector<16x64xbf16>, vector<16x64xbf16> -> vector<16x192xbf16>
    %c1_73 = arith.constant 1 : index
    %c0_74 = arith.constant 0 : index
    %c0_75 = arith.constant 0 : index
    %212 = vector.load %arg5[%c1_73, %c0_74, %c0_75] : memref<3x192x192xbf16, #tpu.memory_space<vmem>>, vector<1x192x192xbf16>
    %213 = vector.shape_cast %212 : vector<1x192x192xbf16> to vector<192x192xbf16>
    %cst_76 = arith.constant dense<0.000000e+00> : vector<16x192xf32>
    %214 = tpu.matmul %211, %213, %cst_76 {dimension_numbers = #tpu.dot_dimension_numbers<[1], [0], [0], [1], [0, 0, 1, 1], [], []>} : vector<16x192xbf16>, vector<192x192xbf16>, vector<16x192xf32> -> vector<16x192xf32>
    %c1_77 = arith.constant 1 : index
    %c0_78 = arith.constant 0 : index
    %c0_79 = arith.constant 0 : index
    %215 = vector.load %arg6[%c1_77, %c0_78, %c0_79] : memref<3x1x192xf32, #tpu.memory_space<vmem>>, vector<1x1x192xf32>
    %216 = vector.shape_cast %215 : vector<1x1x192xf32> to vector<1x192xf32>
    %217 = vector.broadcast %216 : vector<1x192xf32> to vector<16x192xf32>
    %218 = arith.addf %214, %217 : vector<16x192xf32>
    %219 = arith.addf %136, %218 : vector<16x192xf32>
    %c1_80 = arith.constant 1 : index
    %c0_81 = arith.constant 0 : index
    %c0_82 = arith.constant 0 : index
    %220 = vector.load %arg7[%c1_80, %c0_81, %c0_82] : memref<3x1x192xf32, #tpu.memory_space<vmem>>, vector<1x1x192xf32>
    %221 = vector.shape_cast %220 : vector<1x1x192xf32> to vector<1x192xf32>
    %c1_83 = arith.constant 1 : index
    %c0_84 = arith.constant 0 : index
    %c0_85 = arith.constant 0 : index
    %222 = vector.load %arg8[%c1_83, %c0_84, %c0_85] : memref<3x1x192xf32, #tpu.memory_space<vmem>>, vector<1x1x192xf32>
    %223 = vector.shape_cast %222 : vector<1x1x192xf32> to vector<1x192xf32>
    %cst_86 = arith.constant dense<0.000000e+00> : vector<16xf32>
    %224 = vector.multi_reduction <add>, %219, %cst_86 [1] : vector<16x192xf32> to vector<16xf32>
    %225 = vector.shape_cast %224 : vector<16xf32> to vector<16x1xf32>
    %cst_87 = arith.constant 1.920000e+02 : f32
    %226 = vector.broadcast %cst_87 : f32 to vector<16x1xf32>
    %227 = arith.divf %225, %226 : vector<16x1xf32>
    %228 = vector.broadcast %227 : vector<16x1xf32> to vector<16x192xf32>
    %229 = arith.subf %219, %228 : vector<16x192xf32>
    %230 = arith.mulf %229, %229 : vector<16x192xf32>
    %cst_88 = arith.constant dense<0.000000e+00> : vector<16xf32>
    %231 = vector.multi_reduction <add>, %230, %cst_88 [1] : vector<16x192xf32> to vector<16xf32>
    %232 = vector.shape_cast %231 : vector<16xf32> to vector<16x1xf32>
    %cst_89 = arith.constant 1.920000e+02 : f32
    %233 = vector.broadcast %cst_89 : f32 to vector<16x1xf32>
    %234 = arith.divf %232, %233 : vector<16x1xf32>
    %235 = vector.broadcast %227 : vector<16x1xf32> to vector<16x192xf32>
    %236 = arith.subf %219, %235 : vector<16x192xf32>
    %cst_90 = arith.constant 9.99999974E-6 : f32
    %237 = vector.broadcast %cst_90 : f32 to vector<16x1xf32>
    %238 = arith.addf %234, %237 : vector<16x1xf32>
    %239 = math.rsqrt %238 : vector<16x1xf32>
    %240 = vector.broadcast %239 : vector<16x1xf32> to vector<16x192xf32>
    %241 = arith.mulf %236, %240 : vector<16x192xf32>
    %242 = vector.broadcast %221 : vector<1x192xf32> to vector<16x192xf32>
    %243 = arith.mulf %241, %242 : vector<16x192xf32>
    %244 = vector.broadcast %223 : vector<1x192xf32> to vector<16x192xf32>
    %245 = arith.addf %243, %244 : vector<16x192xf32>
    %246 = arith.truncf %245 : vector<16x192xf32> to vector<16x192xbf16>
    %c1_91 = arith.constant 1 : index
    %c0_92 = arith.constant 0 : index
    %c0_93 = arith.constant 0 : index
    %247 = vector.load %arg9[%c1_91, %c0_92, %c0_93] : memref<3x192x768xbf16, #tpu.memory_space<vmem>>, vector<1x192x768xbf16>
    %248 = vector.shape_cast %247 : vector<1x192x768xbf16> to vector<192x768xbf16>
    %cst_94 = arith.constant dense<0.000000e+00> : vector<16x768xf32>
    %249 = tpu.matmul %246, %248, %cst_94 {dimension_numbers = #tpu.dot_dimension_numbers<[1], [0], [0], [1], [0, 0, 1, 1], [], []>} : vector<16x192xbf16>, vector<192x768xbf16>, vector<16x768xf32> -> vector<16x768xf32>
    %c1_95 = arith.constant 1 : index
    %c0_96 = arith.constant 0 : index
    %c0_97 = arith.constant 0 : index
    %250 = vector.load %arg10[%c1_95, %c0_96, %c0_97] : memref<3x1x768xf32, #tpu.memory_space<vmem>>, vector<1x1x768xf32>
    %251 = vector.shape_cast %250 : vector<1x1x768xf32> to vector<1x768xf32>
    %252 = vector.broadcast %251 : vector<1x768xf32> to vector<16x768xf32>
    %253 = arith.addf %249, %252 : vector<16x768xf32>
    %cst_98 = arith.constant 0.000000e+00 : f32
    %254 = vector.broadcast %cst_98 : f32 to vector<16x768xf32>
    %255 = arith.maximumf %253, %254 : vector<16x768xf32>
    %256 = arith.truncf %255 : vector<16x768xf32> to vector<16x768xbf16>
    %c1_99 = arith.constant 1 : index
    %c0_100 = arith.constant 0 : index
    %c0_101 = arith.constant 0 : index
    %257 = vector.load %arg11[%c1_99, %c0_100, %c0_101] : memref<3x768x192xbf16, #tpu.memory_space<vmem>>, vector<1x768x192xbf16>
    %258 = vector.shape_cast %257 : vector<1x768x192xbf16> to vector<768x192xbf16>
    %cst_102 = arith.constant dense<0.000000e+00> : vector<16x192xf32>
    %259 = tpu.matmul %256, %258, %cst_102 {dimension_numbers = #tpu.dot_dimension_numbers<[1], [0], [0], [1], [0, 0, 1, 1], [], []>} : vector<16x768xbf16>, vector<768x192xbf16>, vector<16x192xf32> -> vector<16x192xf32>
    %c1_103 = arith.constant 1 : index
    %c0_104 = arith.constant 0 : index
    %c0_105 = arith.constant 0 : index
    %260 = vector.load %arg12[%c1_103, %c0_104, %c0_105] : memref<3x1x192xf32, #tpu.memory_space<vmem>>, vector<1x1x192xf32>
    %261 = vector.shape_cast %260 : vector<1x1x192xf32> to vector<1x192xf32>
    %262 = vector.broadcast %261 : vector<1x192xf32> to vector<16x192xf32>
    %263 = arith.addf %259, %262 : vector<16x192xf32>
    %264 = arith.addf %219, %263 : vector<16x192xf32>
    %c2 = arith.constant 2 : index
    %c0_106 = arith.constant 0 : index
    %c0_107 = arith.constant 0 : index
    %265 = vector.load %arg2[%c2, %c0_106, %c0_107] : memref<3x1x192xf32, #tpu.memory_space<vmem>>, vector<1x1x192xf32>
    %266 = vector.shape_cast %265 : vector<1x1x192xf32> to vector<1x192xf32>
    %c2_108 = arith.constant 2 : index
    %c0_109 = arith.constant 0 : index
    %c0_110 = arith.constant 0 : index
    %267 = vector.load %arg3[%c2_108, %c0_109, %c0_110] : memref<3x1x192xf32, #tpu.memory_space<vmem>>, vector<1x1x192xf32>
    %268 = vector.shape_cast %267 : vector<1x1x192xf32> to vector<1x192xf32>
    %cst_111 = arith.constant dense<0.000000e+00> : vector<16xf32>
    %269 = vector.multi_reduction <add>, %264, %cst_111 [1] : vector<16x192xf32> to vector<16xf32>
    %270 = vector.shape_cast %269 : vector<16xf32> to vector<16x1xf32>
    %cst_112 = arith.constant 1.920000e+02 : f32
    %271 = vector.broadcast %cst_112 : f32 to vector<16x1xf32>
    %272 = arith.divf %270, %271 : vector<16x1xf32>
    %273 = vector.broadcast %272 : vector<16x1xf32> to vector<16x192xf32>
    %274 = arith.subf %264, %273 : vector<16x192xf32>
    %275 = arith.mulf %274, %274 : vector<16x192xf32>
    %cst_113 = arith.constant dense<0.000000e+00> : vector<16xf32>
    %276 = vector.multi_reduction <add>, %275, %cst_113 [1] : vector<16x192xf32> to vector<16xf32>
    %277 = vector.shape_cast %276 : vector<16xf32> to vector<16x1xf32>
    %cst_114 = arith.constant 1.920000e+02 : f32
    %278 = vector.broadcast %cst_114 : f32 to vector<16x1xf32>
    %279 = arith.divf %277, %278 : vector<16x1xf32>
    %280 = vector.broadcast %272 : vector<16x1xf32> to vector<16x192xf32>
    %281 = arith.subf %264, %280 : vector<16x192xf32>
    %cst_115 = arith.constant 9.99999974E-6 : f32
    %282 = vector.broadcast %cst_115 : f32 to vector<16x1xf32>
    %283 = arith.addf %279, %282 : vector<16x1xf32>
    %284 = math.rsqrt %283 : vector<16x1xf32>
    %285 = vector.broadcast %284 : vector<16x1xf32> to vector<16x192xf32>
    %286 = arith.mulf %281, %285 : vector<16x192xf32>
    %287 = vector.broadcast %266 : vector<1x192xf32> to vector<16x192xf32>
    %288 = arith.mulf %286, %287 : vector<16x192xf32>
    %289 = vector.broadcast %268 : vector<1x192xf32> to vector<16x192xf32>
    %290 = arith.addf %288, %289 : vector<16x192xf32>
    %291 = arith.truncf %290 : vector<16x192xf32> to vector<16x192xbf16>
    %c2_116 = arith.constant 2 : index
    %c0_117 = arith.constant 0 : index
    %c0_118 = arith.constant 0 : index
    %292 = vector.load %arg4[%c2_116, %c0_117, %c0_118] : memref<3x192x576xbf16, #tpu.memory_space<vmem>>, vector<1x192x576xbf16>
    %293 = vector.shape_cast %292 : vector<1x192x576xbf16> to vector<192x576xbf16>
    %cst_119 = arith.constant dense<0.000000e+00> : vector<16x576xf32>
    %294 = tpu.matmul %291, %293, %cst_119 {dimension_numbers = #tpu.dot_dimension_numbers<[1], [0], [0], [1], [0, 0, 1, 1], [], []>} : vector<16x192xbf16>, vector<192x576xbf16>, vector<16x576xf32> -> vector<16x576xf32>
    %295 = arith.truncf %294 : vector<16x576xf32> to vector<16x576xbf16>
    %296 = vector.extract_strided_slice %295 {offsets = [0, 0], sizes = [16, 64], strides = [1, 1]} : vector<16x576xbf16> to vector<16x64xbf16>
    %297 = vector.extract_strided_slice %295 {offsets = [0, 64], sizes = [16, 64], strides = [1, 1]} : vector<16x576xbf16> to vector<16x64xbf16>
    %298 = vector.extract_strided_slice %295 {offsets = [0, 128], sizes = [16, 64], strides = [1, 1]} : vector<16x576xbf16> to vector<16x64xbf16>
    %299 = vector.shape_cast %296 : vector<16x64xbf16> to vector<1x16x64xbf16>
    %300 = vector.shape_cast %297 : vector<16x64xbf16> to vector<1x16x64xbf16>
    %301 = vector.shape_cast %298 : vector<16x64xbf16> to vector<1x16x64xbf16>
    %302 = tpu.concatenate %299, %300, %301 in 0 : vector<1x16x64xbf16>, vector<1x16x64xbf16>, vector<1x16x64xbf16> -> vector<3x16x64xbf16>
    %303 = vector.extract_strided_slice %295 {offsets = [0, 192], sizes = [16, 64], strides = [1, 1]} : vector<16x576xbf16> to vector<16x64xbf16>
    %304 = vector.extract_strided_slice %295 {offsets = [0, 256], sizes = [16, 64], strides = [1, 1]} : vector<16x576xbf16> to vector<16x64xbf16>
    %305 = vector.extract_strided_slice %295 {offsets = [0, 320], sizes = [16, 64], strides = [1, 1]} : vector<16x576xbf16> to vector<16x64xbf16>
    %306 = vector.shape_cast %303 : vector<16x64xbf16> to vector<1x16x64xbf16>
    %307 = vector.shape_cast %304 : vector<16x64xbf16> to vector<1x16x64xbf16>
    %308 = vector.shape_cast %305 : vector<16x64xbf16> to vector<1x16x64xbf16>
    %309 = tpu.concatenate %306, %307, %308 in 0 : vector<1x16x64xbf16>, vector<1x16x64xbf16>, vector<1x16x64xbf16> -> vector<3x16x64xbf16>
    %310 = vector.extract_strided_slice %295 {offsets = [0, 384], sizes = [16, 64], strides = [1, 1]} : vector<16x576xbf16> to vector<16x64xbf16>
    %311 = vector.extract_strided_slice %295 {offsets = [0, 448], sizes = [16, 64], strides = [1, 1]} : vector<16x576xbf16> to vector<16x64xbf16>
    %312 = vector.extract_strided_slice %295 {offsets = [0, 512], sizes = [16, 64], strides = [1, 1]} : vector<16x576xbf16> to vector<16x64xbf16>
    %313 = vector.shape_cast %310 : vector<16x64xbf16> to vector<1x16x64xbf16>
    %314 = vector.shape_cast %311 : vector<16x64xbf16> to vector<1x16x64xbf16>
    %315 = vector.shape_cast %312 : vector<16x64xbf16> to vector<1x16x64xbf16>
    %316 = tpu.concatenate %313, %314, %315 in 0 : vector<1x16x64xbf16>, vector<1x16x64xbf16>, vector<1x16x64xbf16> -> vector<3x16x64xbf16>
    "tpu.trace_start"() <{level = 10 : i32, message = "btd,bsd->bts"}> : () -> ()
    %cst_120 = arith.constant dense<0.000000e+00> : vector<3x16x16xf32>
    %317 = tpu.matmul %302, %309, %cst_120 {dimension_numbers = #tpu.dot_dimension_numbers<[2], [2], [1], [1], [0, 0, 0, 1, 1, 1], [0], [0]>} : vector<3x16x64xbf16>, vector<3x16x64xbf16>, vector<3x16x16xf32> -> vector<3x16x16xf32>
    "tpu.trace_stop"() : () -> ()
    %318 = vector.broadcast %8 : vector<1x16x16xf32> to vector<3x16x16xf32>
    %319 = arith.addf %317, %318 : vector<3x16x16xf32>
    %cst_121 = arith.constant dense<0xFF800000> : vector<3x16xf32>
    %320 = vector.multi_reduction <maximumf>, %319, %cst_121 [2] : vector<3x16x16xf32> to vector<3x16xf32>
    %321 = vector.shape_cast %320 : vector<3x16xf32> to vector<3x16x1xf32>
    %322 = vector.broadcast %321 : vector<3x16x1xf32> to vector<3x16x16xf32>
    %323 = arith.subf %319, %322 : vector<3x16x16xf32>
    %324 = math.exp %323 : vector<3x16x16xf32>
    %cst_122 = arith.constant dense<0.000000e+00> : vector<3x16xf32>
    %325 = vector.multi_reduction <add>, %324, %cst_122 [2] : vector<3x16x16xf32> to vector<3x16xf32>
    %326 = vector.shape_cast %325 : vector<3x16xf32> to vector<3x16x1xf32>
    %327 = tpu.reciprocal %326 {approx = true} : vector<3x16x1xf32> -> vector<3x16x1xf32>
    %328 = vector.broadcast %327 : vector<3x16x1xf32> to vector<3x16x16xf32>
    %329 = arith.mulf %324, %328 : vector<3x16x16xf32>
    %330 = arith.truncf %329 : vector<3x16x16xf32> to vector<3x16x16xbf16>
    "tpu.trace_start"() <{level = 10 : i32, message = "bts,bsd->btd"}> : () -> ()
    %cst_123 = arith.constant dense<0.000000e+00> : vector<3x16x64xf32>
    %331 = tpu.matmul %330, %316, %cst_123 {dimension_numbers = #tpu.dot_dimension_numbers<[2], [1], [1], [2], [0, 0, 0, 1, 1, 2], [0], [0]>} : vector<3x16x16xbf16>, vector<3x16x64xbf16>, vector<3x16x64xf32> -> vector<3x16x64xf32>
    "tpu.trace_stop"() : () -> ()
    %332 = arith.truncf %331 : vector<3x16x64xf32> to vector<3x16x64xbf16>
    %333 = vector.extract_strided_slice %332 {offsets = [0, 0, 0], sizes = [1, 16, 64], strides = [1, 1, 1]} : vector<3x16x64xbf16> to vector<1x16x64xbf16>
    %334 = vector.shape_cast %333 : vector<1x16x64xbf16> to vector<16x64xbf16>
    %335 = vector.extract_strided_slice %332 {offsets = [1, 0, 0], sizes = [1, 16, 64], strides = [1, 1, 1]} : vector<3x16x64xbf16> to vector<1x16x64xbf16>
    %336 = vector.shape_cast %335 : vector<1x16x64xbf16> to vector<16x64xbf16>
    %337 = vector.extract_strided_slice %332 {offsets = [2, 0, 0], sizes = [1, 16, 64], strides = [1, 1, 1]} : vector<3x16x64xbf16> to vector<1x16x64xbf16>
    %338 = vector.shape_cast %337 : vector<1x16x64xbf16> to vector<16x64xbf16>
    %339 = tpu.concatenate %334, %336, %338 in 1 : vector<16x64xbf16>, vector<16x64xbf16>, vector<16x64xbf16> -> vector<16x192xbf16>
    %c2_124 = arith.constant 2 : index
    %c0_125 = arith.constant 0 : index
    %c0_126 = arith.constant 0 : index
    %340 = vector.load %arg5[%c2_124, %c0_125, %c0_126] : memref<3x192x192xbf16, #tpu.memory_space<vmem>>, vector<1x192x192xbf16>
    %341 = vector.shape_cast %340 : vector<1x192x192xbf16> to vector<192x192xbf16>
    %cst_127 = arith.constant dense<0.000000e+00> : vector<16x192xf32>
    %342 = tpu.matmul %339, %341, %cst_127 {dimension_numbers = #tpu.dot_dimension_numbers<[1], [0], [0], [1], [0, 0, 1, 1], [], []>} : vector<16x192xbf16>, vector<192x192xbf16>, vector<16x192xf32> -> vector<16x192xf32>
    %c2_128 = arith.constant 2 : index
    %c0_129 = arith.constant 0 : index
    %c0_130 = arith.constant 0 : index
    %343 = vector.load %arg6[%c2_128, %c0_129, %c0_130] : memref<3x1x192xf32, #tpu.memory_space<vmem>>, vector<1x1x192xf32>
    %344 = vector.shape_cast %343 : vector<1x1x192xf32> to vector<1x192xf32>
    %345 = vector.broadcast %344 : vector<1x192xf32> to vector<16x192xf32>
    %346 = arith.addf %342, %345 : vector<16x192xf32>
    %347 = arith.addf %264, %346 : vector<16x192xf32>
    %c2_131 = arith.constant 2 : index
    %c0_132 = arith.constant 0 : index
    %c0_133 = arith.constant 0 : index
    %348 = vector.load %arg7[%c2_131, %c0_132, %c0_133] : memref<3x1x192xf32, #tpu.memory_space<vmem>>, vector<1x1x192xf32>
    %349 = vector.shape_cast %348 : vector<1x1x192xf32> to vector<1x192xf32>
    %c2_134 = arith.constant 2 : index
    %c0_135 = arith.constant 0 : index
    %c0_136 = arith.constant 0 : index
    %350 = vector.load %arg8[%c2_134, %c0_135, %c0_136] : memref<3x1x192xf32, #tpu.memory_space<vmem>>, vector<1x1x192xf32>
    %351 = vector.shape_cast %350 : vector<1x1x192xf32> to vector<1x192xf32>
    %cst_137 = arith.constant dense<0.000000e+00> : vector<16xf32>
    %352 = vector.multi_reduction <add>, %347, %cst_137 [1] : vector<16x192xf32> to vector<16xf32>
    %353 = vector.shape_cast %352 : vector<16xf32> to vector<16x1xf32>
    %cst_138 = arith.constant 1.920000e+02 : f32
    %354 = vector.broadcast %cst_138 : f32 to vector<16x1xf32>
    %355 = arith.divf %353, %354 : vector<16x1xf32>
    %356 = vector.broadcast %355 : vector<16x1xf32> to vector<16x192xf32>
    %357 = arith.subf %347, %356 : vector<16x192xf32>
    %358 = arith.mulf %357, %357 : vector<16x192xf32>
    %cst_139 = arith.constant dense<0.000000e+00> : vector<16xf32>
    %359 = vector.multi_reduction <add>, %358, %cst_139 [1] : vector<16x192xf32> to vector<16xf32>
    %360 = vector.shape_cast %359 : vector<16xf32> to vector<16x1xf32>
    %cst_140 = arith.constant 1.920000e+02 : f32
    %361 = vector.broadcast %cst_140 : f32 to vector<16x1xf32>
    %362 = arith.divf %360, %361 : vector<16x1xf32>
    %363 = vector.broadcast %355 : vector<16x1xf32> to vector<16x192xf32>
    %364 = arith.subf %347, %363 : vector<16x192xf32>
    %cst_141 = arith.constant 9.99999974E-6 : f32
    %365 = vector.broadcast %cst_141 : f32 to vector<16x1xf32>
    %366 = arith.addf %362, %365 : vector<16x1xf32>
    %367 = math.rsqrt %366 : vector<16x1xf32>
    %368 = vector.broadcast %367 : vector<16x1xf32> to vector<16x192xf32>
    %369 = arith.mulf %364, %368 : vector<16x192xf32>
    %370 = vector.broadcast %349 : vector<1x192xf32> to vector<16x192xf32>
    %371 = arith.mulf %369, %370 : vector<16x192xf32>
    %372 = vector.broadcast %351 : vector<1x192xf32> to vector<16x192xf32>
    %373 = arith.addf %371, %372 : vector<16x192xf32>
    %374 = arith.truncf %373 : vector<16x192xf32> to vector<16x192xbf16>
    %c2_142 = arith.constant 2 : index
    %c0_143 = arith.constant 0 : index
    %c0_144 = arith.constant 0 : index
    %375 = vector.load %arg9[%c2_142, %c0_143, %c0_144] : memref<3x192x768xbf16, #tpu.memory_space<vmem>>, vector<1x192x768xbf16>
    %376 = vector.shape_cast %375 : vector<1x192x768xbf16> to vector<192x768xbf16>
    %cst_145 = arith.constant dense<0.000000e+00> : vector<16x768xf32>
    %377 = tpu.matmul %374, %376, %cst_145 {dimension_numbers = #tpu.dot_dimension_numbers<[1], [0], [0], [1], [0, 0, 1, 1], [], []>} : vector<16x192xbf16>, vector<192x768xbf16>, vector<16x768xf32> -> vector<16x768xf32>
    %c2_146 = arith.constant 2 : index
    %c0_147 = arith.constant 0 : index
    %c0_148 = arith.constant 0 : index
    %378 = vector.load %arg10[%c2_146, %c0_147, %c0_148] : memref<3x1x768xf32, #tpu.memory_space<vmem>>, vector<1x1x768xf32>
    %379 = vector.shape_cast %378 : vector<1x1x768xf32> to vector<1x768xf32>
    %380 = vector.broadcast %379 : vector<1x768xf32> to vector<16x768xf32>
    %381 = arith.addf %377, %380 : vector<16x768xf32>
    %cst_149 = arith.constant 0.000000e+00 : f32
    %382 = vector.broadcast %cst_149 : f32 to vector<16x768xf32>
    %383 = arith.maximumf %381, %382 : vector<16x768xf32>
    %384 = arith.truncf %383 : vector<16x768xf32> to vector<16x768xbf16>
    %c2_150 = arith.constant 2 : index
    %c0_151 = arith.constant 0 : index
    %c0_152 = arith.constant 0 : index
    %385 = vector.load %arg11[%c2_150, %c0_151, %c0_152] : memref<3x768x192xbf16, #tpu.memory_space<vmem>>, vector<1x768x192xbf16>
    %386 = vector.shape_cast %385 : vector<1x768x192xbf16> to vector<768x192xbf16>
    %cst_153 = arith.constant dense<0.000000e+00> : vector<16x192xf32>
    %387 = tpu.matmul %384, %386, %cst_153 {dimension_numbers = #tpu.dot_dimension_numbers<[1], [0], [0], [1], [0, 0, 1, 1], [], []>} : vector<16x768xbf16>, vector<768x192xbf16>, vector<16x192xf32> -> vector<16x192xf32>
    %c2_154 = arith.constant 2 : index
    %c0_155 = arith.constant 0 : index
    %c0_156 = arith.constant 0 : index
    %388 = vector.load %arg12[%c2_154, %c0_155, %c0_156] : memref<3x1x192xf32, #tpu.memory_space<vmem>>, vector<1x1x192xf32>
    %389 = vector.shape_cast %388 : vector<1x1x192xf32> to vector<1x192xf32>
    %390 = vector.broadcast %389 : vector<1x192xf32> to vector<16x192xf32>
    %391 = arith.addf %387, %390 : vector<16x192xf32>
    %392 = arith.addf %347, %391 : vector<16x192xf32>
    %c0_157 = arith.constant 0 : index
    %c0_158 = arith.constant 0 : index
    %393 = vector.load %arg13[%c0_157, %c0_158] : memref<1x192xf32, #tpu.memory_space<vmem>>, vector<1x192xf32>
    %c0_159 = arith.constant 0 : index
    %c0_160 = arith.constant 0 : index
    %394 = vector.load %arg14[%c0_159, %c0_160] : memref<1x192xf32, #tpu.memory_space<vmem>>, vector<1x192xf32>
    %cst_161 = arith.constant dense<0.000000e+00> : vector<16xf32>
    %395 = vector.multi_reduction <add>, %392, %cst_161 [1] : vector<16x192xf32> to vector<16xf32>
    %396 = vector.shape_cast %395 : vector<16xf32> to vector<16x1xf32>
    %cst_162 = arith.constant 1.920000e+02 : f32
    %397 = vector.broadcast %cst_162 : f32 to vector<16x1xf32>
    %398 = arith.divf %396, %397 : vector<16x1xf32>
    %399 = vector.broadcast %398 : vector<16x1xf32> to vector<16x192xf32>
    %400 = arith.subf %392, %399 : vector<16x192xf32>
    %401 = arith.mulf %400, %400 : vector<16x192xf32>
    %cst_163 = arith.constant dense<0.000000e+00> : vector<16xf32>
    %402 = vector.multi_reduction <add>, %401, %cst_163 [1] : vector<16x192xf32> to vector<16xf32>
    %403 = vector.shape_cast %402 : vector<16xf32> to vector<16x1xf32>
    %cst_164 = arith.constant 1.920000e+02 : f32
    %404 = vector.broadcast %cst_164 : f32 to vector<16x1xf32>
    %405 = arith.divf %403, %404 : vector<16x1xf32>
    %406 = vector.broadcast %398 : vector<16x1xf32> to vector<16x192xf32>
    %407 = arith.subf %392, %406 : vector<16x192xf32>
    %cst_165 = arith.constant 9.99999974E-6 : f32
    %408 = vector.broadcast %cst_165 : f32 to vector<16x1xf32>
    %409 = arith.addf %405, %408 : vector<16x1xf32>
    %410 = math.rsqrt %409 : vector<16x1xf32>
    %411 = vector.broadcast %410 : vector<16x1xf32> to vector<16x192xf32>
    %412 = arith.mulf %407, %411 : vector<16x192xf32>
    %413 = vector.broadcast %393 : vector<1x192xf32> to vector<16x192xf32>
    %414 = arith.mulf %412, %413 : vector<16x192xf32>
    %415 = vector.broadcast %394 : vector<1x192xf32> to vector<16x192xf32>
    %416 = arith.addf %414, %415 : vector<16x192xf32>
    %417 = arith.truncf %416 : vector<16x192xf32> to vector<16x192xbf16>
    %c0_166 = arith.constant 0 : index
    %c0_167 = arith.constant 0 : index
    %418 = vector.load %arg15[%c0_166, %c0_167] : memref<192x384xbf16, #tpu.memory_space<vmem>>, vector<192x384xbf16>
    %cst_168 = arith.constant dense<0.000000e+00> : vector<16x384xf32>
    %419 = tpu.matmul %417, %418, %cst_168 {dimension_numbers = #tpu.dot_dimension_numbers<[1], [0], [0], [1], [0, 0, 1, 1], [], []>} : vector<16x192xbf16>, vector<192x384xbf16>, vector<16x384xf32> -> vector<16x384xf32>
    %c0_169 = arith.constant 0 : index
    %c0_170 = arith.constant 0 : index
    %420 = vector.load %arg16[%c0_169, %c0_170] : memref<1x384xf32, #tpu.memory_space<vmem>>, vector<1x384xf32>
    %421 = vector.broadcast %420 : vector<1x384xf32> to vector<16x384xf32>
    %422 = arith.addf %419, %421 : vector<16x384xf32>
    %423 = vector.shape_cast %422 : vector<16x384xf32> to vector<1x16x384xf32>
    %c0_171 = arith.constant 0 : index
    %c0_172 = arith.constant 0 : index
    %c0_173 = arith.constant 0 : index
    %424 = vector.load %arg17[%c0_171, %c0_172, %c0_173] : memref<1x16x384xf32, #tpu.memory_space<vmem>>, vector<1x16x384xf32>
    tpu.vector_store %arg17[%c0_171, %c0_172, %c0_173], %423 {strides = array<i32>} : memref<1x16x384xf32, #tpu.memory_space<vmem>>, vector<1x16x384xf32>,
    return
  }
  func.func @transform_0(%arg0: i32) -> (i32, i32, i32) {
    %c0_i32 = arith.constant 0 : i32
    %c0_i32_0 = arith.constant 0 : i32
    %c0_i32_1 = arith.constant 0 : i32
    return %arg0, %c0_i32, %c0_i32_0 : i32, i32, i32
  }
  func.func @transform_1(%arg0: i32) -> (i32, i32, i32) {
    %c0_i32 = arith.constant 0 : i32
    %c0_i32_0 = arith.constant 0 : i32
    %c0_i32_1 = arith.constant 0 : i32
    %c0_i32_2 = arith.constant 0 : i32
    return %c0_i32, %c0_i32_0, %c0_i32_1 : i32, i32, i32
  }
  func.func @transform_2(%arg0: i32) -> (i32, i32, i32) {
    %c0_i32 = arith.constant 0 : i32
    %c0_i32_0 = arith.constant 0 : i32
    %c0_i32_1 = arith.constant 0 : i32
    %c0_i32_2 = arith.constant 0 : i32
    return %c0_i32, %c0_i32_0, %c0_i32_1 : i32, i32, i32
  }
  func.func @transform_3(%arg0: i32) -> (i32, i32, i32) {
    %c0_i32 = arith.constant 0 : i32
    %c0_i32_0 = arith.constant 0 : i32
    %c0_i32_1 = arith.constant 0 : i32
    %c0_i32_2 = arith.constant 0 : i32
    return %c0_i32, %c0_i32_0, %c0_i32_1 : i32, i32, i32
  }
  func.func @transform_4(%arg0: i32) -> (i32, i32, i32) {
    %c0_i32 = arith.constant 0 : i32
    %c0_i32_0 = arith.constant 0 : i32
    %c0_i32_1 = arith.constant 0 : i32
    %c0_i32_2 = arith.constant 0 : i32
    return %c0_i32, %c0_i32_0, %c0_i32_1 : i32, i32, i32
  }
  func.func @transform_5(%arg0: i32) -> (i32, i32, i32) {
    %c0_i32 = arith.constant 0 : i32
    %c0_i32_0 = arith.constant 0 : i32
    %c0_i32_1 = arith.constant 0 : i32
    %c0_i32_2 = arith.constant 0 : i32
    return %c0_i32, %c0_i32_0, %c0_i32_1 : i32, i32, i32
  }
  func.func @transform_6(%arg0: i32) -> (i32, i32, i32) {
    %c0_i32 = arith.constant 0 : i32
    %c0_i32_0 = arith.constant 0 : i32
    %c0_i32_1 = arith.constant 0 : i32
    %c0_i32_2 = arith.constant 0 : i32
    return %c0_i32, %c0_i32_0, %c0_i32_1 : i32, i32, i32
  }
  func.func @transform_7(%arg0: i32) -> (i32, i32, i32) {
    %c0_i32 = arith.constant 0 : i32
    %c0_i32_0 = arith.constant 0 : i32
    %c0_i32_1 = arith.constant 0 : i32
    %c0_i32_2 = arith.constant 0 : i32
    return %c0_i32, %c0_i32_0, %c0_i32_1 : i32, i32, i32
  }
  func.func @transform_8(%arg0: i32) -> (i32, i32, i32) {
    %c0_i32 = arith.constant 0 : i32
    %c0_i32_0 = arith.constant 0 : i32
    %c0_i32_1 = arith.constant 0 : i32
    %c0_i32_2 = arith.constant 0 : i32
    return %c0_i32, %c0_i32_0, %c0_i32_1 : i32, i32, i32
  }
  func.func @transform_9(%arg0: i32) -> (i32, i32, i32) {
    %c0_i32 = arith.constant 0 : i32
    %c0_i32_0 = arith.constant 0 : i32
    %c0_i32_1 = arith.constant 0 : i32
    %c0_i32_2 = arith.constant 0 : i32
    return %c0_i32, %c0_i32_0, %c0_i32_1 : i32, i32, i32
  }
  func.func @transform_10(%arg0: i32) -> (i32, i32, i32) {
    %c0_i32 = arith.constant 0 : i32
    %c0_i32_0 = arith.constant 0 : i32
    %c0_i32_1 = arith.constant 0 : i32
    %c0_i32_2 = arith.constant 0 : i32
    return %c0_i32, %c0_i32_0, %c0_i32_1 : i32, i32, i32
  }
  func.func @transform_11(%arg0: i32) -> (i32, i32, i32) {
    %c0_i32 = arith.constant 0 : i32
    %c0_i32_0 = arith.constant 0 : i32
    %c0_i32_1 = arith.constant 0 : i32
    %c0_i32_2 = arith.constant 0 : i32
    return %c0_i32, %c0_i32_0, %c0_i32_1 : i32, i32, i32
  }
  func.func @transform_12(%arg0: i32) -> (i32, i32) {
    %c0_i32 = arith.constant 0 : i32
    %c0_i32_0 = arith.constant 0 : i32
    %c0_i32_1 = arith.constant 0 : i32
    return %c0_i32, %c0_i32_0 : i32, i32
  }
  func.func @transform_13(%arg0: i32) -> (i32, i32) {
    %c0_i32 = arith.constant 0 : i32
    %c0_i32_0 = arith.constant 0 : i32
    %c0_i32_1 = arith.constant 0 : i32
    return %c0_i32, %c0_i32_0 : i32, i32
  }
  func.func @transform_14(%arg0: i32) -> (i32, i32) {
    %c0_i32 = arith.constant 0 : i32
    %c0_i32_0 = arith.constant 0 : i32
    %c0_i32_1 = arith.constant 0 : i32
    return %c0_i32, %c0_i32_0 : i32, i32
  }
  func.func @transform_15(%arg0: i32) -> (i32, i32) {
    %c0_i32 = arith.constant 0 : i32
    %c0_i32_0 = arith.constant 0 : i32
    %c0_i32_1 = arith.constant 0 : i32
    return %c0_i32, %c0_i32_0 : i32, i32
  }
  func.func @transform_16(%arg0: i32) -> (i32, i32, i32) {
    %c0_i32 = arith.constant 0 : i32
    %c0_i32_0 = arith.constant 0 : i32
    %c0_i32_1 = arith.constant 0 : i32
    return %arg0, %c0_i32, %c0_i32_0 : i32, i32, i32
  }
}

</mosaic_0001>

<llo_original>
// kernel: gpt_forward.1
$region0: #{gpt_forward.1}
  #allocation0 [shape = 'u32[]', space=smem, size = 0x4, offset = 0x4, fixed_abs, tag = 'smem constant byte address 0x4 - core index']
  #allocation1 [shape = 'u32[144,128]{1,0:T(1,128)}', space=vmem, size = 0x12000, scoped, tag = 'internal scratch']
  %s0 = inlined_call_operand.vmem [shape: f32[2,16,192], index: 0, kind: input, shape index: {}]
  %s1 = inlined_call_operand.vmem [shape: f32[3,1,192], index: 1, kind: input, shape index: {}]
  %s2 = inlined_call_operand.vmem [shape: f32[3,1,192], index: 2, kind: input, shape index: {}]
  %s3 = inlined_call_operand.vmem [shape: bf16[3,192,576], index: 3, kind: input, shape index: {}]
  %s4 = inlined_call_operand.vmem [shape: bf16[3,192,192], index: 4, kind: input, shape index: {}]
  %s5 = inlined_call_operand.vmem [shape: f32[3,1,192], index: 5, kind: input, shape index: {}]
  %s6 = inlined_call_operand.vmem [shape: f32[3,1,192], index: 6, kind: input, shape index: {}]
  %s7 = inlined_call_operand.vmem [shape: f32[3,1,192], index: 7, kind: input, shape index: {}]
  %s8 = inlined_call_operand.vmem [shape: bf16[3,192,768], index: 8, kind: input, shape index: {}]
  %s9 = inlined_call_operand.vmem [shape: f32[3,1,768], index: 9, kind: input, shape index: {}]
  %s10 = inlined_call_operand.vmem [shape: bf16[3,768,192], index: 10, kind: input, shape index: {}]
  %s11 = inlined_call_operand.vmem [shape: f32[3,1,192], index: 11, kind: input, shape index: {}]
  %s12 = inlined_call_operand.vmem [shape: f32[1,192], index: 12, kind: input, shape index: {}]
  %s13 = inlined_call_operand.vmem [shape: f32[1,192], index: 13, kind: input, shape index: {}]
  %s14 = inlined_call_operand.vmem [shape: bf16[192,384], index: 14, kind: input, shape index: {}]
  %s15 = inlined_call_operand.vmem [shape: f32[1,384], index: 15, kind: input, shape index: {}]
  %s16 = inlined_call_operand.hbm [shape: f32[2,16,384], index: 16, kind: output, shape index: {}]
  %s17 = sld [smem:[#allocation0]]
  $region97: #{gpt_forward.1} parent=0
    _
  %s19 = ssub.s32 1, %s17
  %s20 = scalar_select 0, %s19, %s17
  $region1: #{gpt_forward.1} parent=0
    #allocation2 [shape = 'u8[49152]{0}', space=vmem, size = 0xc000, scoped, tag = 'output window, operand 0']
    #allocation3 [shape = 's32[2]{0}', space=sflag, size = 0x8, scoped, tag = 'scoped memory for gpt_forward.1']
    %21 = vsyncpa [#allocation3], 0
    %s22 = scalar_lea.sflag [#allocation3], 1
    %23 = vsyncpa %s22, 0
    loop: start=0, step=1, limit=4
    $region2: #{gpt_forward.1} parent=1 // loop_pre_header
      _
    $region3: #{gpt_forward.1} parent=1 // loop_header
      %s25 = sphi 0, %s29
      %p26 = scmp.ge.s32.totalorder %s25, 4
      %s35 = sphi 0, %s37
      %s38 = sphi 0, %s35
      %s39 = sphi 0, %s38
      %s55 = sphi 0, %s39
      %s59 = sphi 0, %s59
      %s61 = sphi 0, %s59
      %s62 = sphi 0, %s61
      %s76 = sphi 0, %s62
      %s80 = sphi 0, %s80
      %s82 = sphi 0, %s80
      %s83 = sphi 0, %s82
      %s97 = sphi 0, %s83
      %s101 = sphi 0, %s101
      %s103 = sphi 0, %s101
      %s104 = sphi 0, %s103
      %s118 = sphi 0, %s104
      %s122 = sphi 0, %s122
      %s124 = sphi 0, %s122
      %s125 = sphi 0, %s124
      %s139 = sphi 0, %s125
      %s143 = sphi 0, %s143
      %s145 = sphi 0, %s143
      %s146 = sphi 0, %s145
      %s160 = sphi 0, %s146
      %s164 = sphi 0, %s164
      %s166 = sphi 0, %s164
      %s167 = sphi 0, %s166
      %s181 = sphi 0, %s167
      %s185 = sphi 0, %s185
      %s187 = sphi 0, %s185
      %s188 = sphi 0, %s187
      %s202 = sphi 0, %s188
      %s206 = sphi 0, %s206
      %s208 = sphi 0, %s206
      %s209 = sphi 0, %s208
      %s223 = sphi 0, %s209
      %s227 = sphi 0, %s227
      %s229 = sphi 0, %s227
      %s230 = sphi 0, %s229
      %s244 = sphi 0, %s230
      %s248 = sphi 0, %s248
      %s250 = sphi 0, %s248
      %s251 = sphi 0, %s250
      %s265 = sphi 0, %s251
      %s269 = sphi 0, %s269
      %s271 = sphi 0, %s269
      %s272 = sphi 0, %s271
      %s286 = sphi 0, %s272
      %s290 = sphi 0, %s290
      %s292 = sphi 0, %s290
      %s293 = sphi 0, %s292
      %s307 = sphi 0, %s293
      %s311 = sphi 0, %s311
      %s313 = sphi 0, %s311
      %s314 = sphi 0, %s313
      %s328 = sphi 0, %s314
      %s332 = sphi 0, %s332
      %s334 = sphi 0, %s332
      %s335 = sphi 0, %s334
      %s349 = sphi 0, %s335
      %s353 = sphi 0, %s353
      %s355 = sphi 0, %s353
      %s356 = sphi 0, %s355
      %s370 = sphi 0, %s356
      %s376 = sphi 0, %s378
      %s379 = sphi 0, %s376
      %s380 = sphi 0, %s379
      %s396 = sphi 0, %s380
    $region4: #{gpt_forward.1} parent=1 // loop_header_branch
      %28 = sbr.rel (%p26) target = $region8
    $region5: #{gpt_forward.1} parent=1 // loop_body
      %s30 = ssub.s32 %s25, 1
      %s31 = ssub.s32 %s25, 2
      %s32 = sadd.s32 %s25, 1
      %s33 = ssub.s32 %s25, %s32
      %p34 = scmp.eq.s32.totalorder %s33, 0
      %s36 = sadd.s32 %s35, 1
      %s37 = scalar_select %p34, %s35, %s36
      %p40 = pneg %p34
      %p41 = scmp.eq.s32.totalorder %s25, 1
      %p42 = por %p40, %p41
      %p43 = scmp.ne.s32.totalorder %s35, %s38
      %p44 = scmp.eq.s32.totalorder %s25, 0
      %p45 = por %p43, %p44
      %p46 = scmp.ne.s32.totalorder %s35, %s38
      %p47 = scmp.eq.s32.totalorder %s30, 1
      %p48 = por %p46, %p47
      %p49 = scmp.ne.s32.totalorder %s38, %s39
      %p50 = scmp.eq.s32.totalorder %s30, 0
      %p51 = por %p49, %p50
      %p52 = scmp.ne.s32.totalorder %s38, %s39
      %p53 = scmp.eq.s32.totalorder %s31, 1
      %p54 = por %p52, %p53
      %p56 = scmp.ne.s32.totalorder %s39, %s55
      %p57 = scmp.eq.s32.totalorder %s31, 0
      %p58 = por %p56, %p57
      %s60 = sadd.s32 %s59, 1
      %p63 = scmp.eq.s32.totalorder %s25, 1
      %p64 = scmp.ne.s32.totalorder %s59, %s61
      %p65 = scmp.eq.s32.totalorder %s25, 0
      %p66 = por %p64, %p65
      %p67 = scmp.ne.s32.totalorder %s59, %s61
      %p68 = scmp.eq.s32.totalorder %s30, 1
      %p69 = por %p67, %p68
      %p70 = scmp.ne.s32.totalorder %s61, %s62
      %p71 = scmp.eq.s32.totalorder %s30, 0
      %p72 = por %p70, %p71
      %p73 = scmp.ne.s32.totalorder %s61, %s62
      %p74 = scmp.eq.s32.totalorder %s31, 1
      %p75 = por %p73, %p74
      %p77 = scmp.ne.s32.totalorder %s62, %s76
      %p78 = scmp.eq.s32.totalorder %s31, 0
      %p79 = por %p77, %p78
      %s81 = sadd.s32 %s80, 1
      %p84 = scmp.eq.s32.totalorder %s25, 1
      %p85 = scmp.ne.s32.totalorder %s80, %s82
      %p86 = scmp.eq.s32.totalorder %s25, 0
      %p87 = por %p85, %p86
      %p88 = scmp.ne.s32.totalorder %s80, %s82
      %p89 = scmp.eq.s32.totalorder %s30, 1
      %p90 = por %p88, %p89
      %p91 = scmp.ne.s32.totalorder %s82, %s83
      %p92 = scmp.eq.s32.totalorder %s30, 0
      %p93 = por %p91, %p92
      %p94 = scmp.ne.s32.totalorder %s82, %s83
      %p95 = scmp.eq.s32.totalorder %s31, 1
      %p96 = por %p94, %p95
      %p98 = scmp.ne.s32.totalorder %s83, %s97
      %p99 = scmp.eq.s32.totalorder %s31, 0
      %p100 = por %p98, %p99
      %s102 = sadd.s32 %s101, 1
      %p105 = scmp.eq.s32.totalorder %s25, 1
      %p106 = scmp.ne.s32.totalorder %s101, %s103
      %p107 = scmp.eq.s32.totalorder %s25, 0
      %p108 = por %p106, %p107
      %p109 = scmp.ne.s32.totalorder %s101, %s103
      %p110 = scmp.eq.s32.totalorder %s30, 1
      %p111 = por %p109, %p110
      %p112 = scmp.ne.s32.totalorder %s103, %s104
      %p113 = scmp.eq.s32.totalorder %s30, 0
      %p114 = por %p112, %p113
      %p115 = scmp.ne.s32.totalorder %s103, %s104
      %p116 = scmp.eq.s32.totalorder %s31, 1
      %p117 = por %p115, %p116
      %p119 = scmp.ne.s32.totalorder %s104, %s118
      %p120 = scmp.eq.s32.totalorder %s31, 0
      %p121 = por %p119, %p120
      %s123 = sadd.s32 %s122, 1
      %p126 = scmp.eq.s32.totalorder %s25, 1
      %p127 = scmp.ne.s32.totalorder %s122, %s124
      %p128 = scmp.eq.s32.totalorder %s25, 0
      %p129 = por %p127, %p128
      %p130 = scmp.ne.s32.totalorder %s122, %s124
      %p131 = scmp.eq.s32.totalorder %s30, 1
      %p132 = por %p130, %p131
      %p133 = scmp.ne.s32.totalorder %s124, %s125
      %p134 = scmp.eq.s32.totalorder %s30, 0
      %p135 = por %p133, %p134
      %p136 = scmp.ne.s32.totalorder %s124, %s125
      %p137 = scmp.eq.s32.totalorder %s31, 1
      %p138 = por %p136, %p137
      %p140 = scmp.ne.s32.totalorder %s125, %s139
      %p141 = scmp.eq.s32.totalorder %s31, 0
      %p142 = por %p140, %p141
      %s144 = sadd.s32 %s143, 1
      %p147 = scmp.eq.s32.totalorder %s25, 1
      %p148 = scmp.ne.s32.totalorder %s143, %s145
      %p149 = scmp.eq.s32.totalorder %s25, 0
      %p150 = por %p148, %p149
      %p151 = scmp.ne.s32.totalorder %s143, %s145
      %p152 = scmp.eq.s32.totalorder %s30, 1
      %p153 = por %p151, %p152
      %p154 = scmp.ne.s32.totalorder %s145, %s146
      %p155 = scmp.eq.s32.totalorder %s30, 0
      %p156 = por %p154, %p155
      %p157 = scmp.ne.s32.totalorder %s145, %s146
      %p158 = scmp.eq.s32.totalorder %s31, 1
      %p159 = por %p157, %p158
      %p161 = scmp.ne.s32.totalorder %s146, %s160
      %p162 = scmp.eq.s32.totalorder %s31, 0
      %p163 = por %p161, %p162
      %s165 = sadd.s32 %s164, 1
      %p168 = scmp.eq.s32.totalorder %s25, 1
      %p169 = scmp.ne.s32.totalorder %s164, %s166
      %p170 = scmp.eq.s32.totalorder %s25, 0
      %p171 = por %p169, %p170
      %p172 = scmp.ne.s32.totalorder %s164, %s166
      %p173 = scmp.eq.s32.totalorder %s30, 1
      %p174 = por %p172, %p173
      %p175 = scmp.ne.s32.totalorder %s166, %s167
      %p176 = scmp.eq.s32.totalorder %s30, 0
      %p177 = por %p175, %p176
      %p178 = scmp.ne.s32.totalorder %s166, %s167
      %p179 = scmp.eq.s32.totalorder %s31, 1
      %p180 = por %p178, %p179
      %p182 = scmp.ne.s32.totalorder %s167, %s181
      %p183 = scmp.eq.s32.totalorder %s31, 0
      %p184 = por %p182, %p183
      %s186 = sadd.s32 %s185, 1
      %p189 = scmp.eq.s32.totalorder %s25, 1
      %p190 = scmp.ne.s32.totalorder %s185, %s187
      %p191 = scmp.eq.s32.totalorder %s25, 0
      %p192 = por %p190, %p191
      %p193 = scmp.ne.s32.totalorder %s185, %s187
      %p194 = scmp.eq.s32.totalorder %s30, 1
      %p195 = por %p193, %p194
      %p196 = scmp.ne.s32.totalorder %s187, %s188
      %p197 = scmp.eq.s32.totalorder %s30, 0
      %p198 = por %p196, %p197
      %p199 = scmp.ne.s32.totalorder %s187, %s188
      %p200 = scmp.eq.s32.totalorder %s31, 1
      %p201 = por %p199, %p200
      %p203 = scmp.ne.s32.totalorder %s188, %s202
      %p204 = scmp.eq.s32.totalorder %s31, 0
      %p205 = por %p203, %p204
      %s207 = sadd.s32 %s206, 1
      %p210 = scmp.eq.s32.totalorder %s25, 1
      %p211 = scmp.ne.s32.totalorder %s206, %s208
      %p212 = scmp.eq.s32.totalorder %s25, 0
      %p213 = por %p211, %p212
      %p214 = scmp.ne.s32.totalorder %s206, %s208
      %p215 = scmp.eq.s32.totalorder %s30, 1
      %p216 = por %p214, %p215
      %p217 = scmp.ne.s32.totalorder %s208, %s209
      %p218 = scmp.eq.s32.totalorder %s30, 0
      %p219 = por %p217, %p218
      %p220 = scmp.ne.s32.totalorder %s208, %s209
      %p221 = scmp.eq.s32.totalorder %s31, 1
      %p222 = por %p220, %p221
      %p224 = scmp.ne.s32.totalorder %s209, %s223
      %p225 = scmp.eq.s32.totalorder %s31, 0
      %p226 = por %p224, %p225
      %s228 = sadd.s32 %s227, 1
      %p231 = scmp.eq.s32.totalorder %s25, 1
      %p232 = scmp.ne.s32.totalorder %s227, %s229
      %p233 = scmp.eq.s32.totalorder %s25, 0
      %p234 = por %p232, %p233
      %p235 = scmp.ne.s32.totalorder %s227, %s229
      %p236 = scmp.eq.s32.totalorder %s30, 1
      %p237 = por %p235, %p236
      %p238 = scmp.ne.s32.totalorder %s229, %s230
      %p239 = scmp.eq.s32.totalorder %s30, 0
      %p240 = por %p238, %p239
      %p241 = scmp.ne.s32.totalorder %s229, %s230
      %p242 = scmp.eq.s32.totalorder %s31, 1
      %p243 = por %p241, %p242
      %p245 = scmp.ne.s32.totalorder %s230, %s244
      %p246 = scmp.eq.s32.totalorder %s31, 0
      %p247 = por %p245, %p246
      %s249 = sadd.s32 %s248, 1
      %p252 = scmp.eq.s32.totalorder %s25, 1
      %p253 = scmp.ne.s32.totalorder %s248, %s250
      %p254 = scmp.eq.s32.totalorder %s25, 0
      %p255 = por %p253, %p254
      %p256 = scmp.ne.s32.totalorder %s248, %s250
      %p257 = scmp.eq.s32.totalorder %s30, 1
      %p258 = por %p256, %p257
      %p259 = scmp.ne.s32.totalorder %s250, %s251
      %p260 = scmp.eq.s32.totalorder %s30, 0
      %p261 = por %p259, %p260
      %p262 = scmp.ne.s32.totalorder %s250, %s251
      %p263 = scmp.eq.s32.totalorder %s31, 1
      %p264 = por %p262, %p263
      %p266 = scmp.ne.s32.totalorder %s251, %s265
      %p267 = scmp.eq.s32.totalorder %s31, 0
      %p268 = por %p266, %p267
      %s270 = sadd.s32 %s269, 1
      %p273 = scmp.eq.s32.totalorder %s25, 1
      %p274 = scmp.ne.s32.totalorder %s269, %s271
      %p275 = scmp.eq.s32.totalorder %s25, 0
      %p276 = por %p274, %p275
      %p277 = scmp.ne.s32.totalorder %s269, %s271
      %p278 = scmp.eq.s32.totalorder %s30, 1
      %p279 = por %p277, %p278
      %p280 = scmp.ne.s32.totalorder %s271, %s272
      %p281 = scmp.eq.s32.totalorder %s30, 0
      %p282 = por %p280, %p281
      %p283 = scmp.ne.s32.totalorder %s271, %s272
      %p284 = scmp.eq.s32.totalorder %s31, 1
      %p285 = por %p283, %p284
      %p287 = scmp.ne.s32.totalorder %s272, %s286
      %p288 = scmp.eq.s32.totalorder %s31, 0
      %p289 = por %p287, %p288
      %s291 = sadd.s32 %s290, 1
      %p294 = scmp.eq.s32.totalorder %s25, 1
      %p295 = scmp.ne.s32.totalorder %s290, %s292
      %p296 = scmp.eq.s32.totalorder %s25, 0
      %p297 = por %p295, %p296
      %p298 = scmp.ne.s32.totalorder %s290, %s292
      %p299 = scmp.eq.s32.totalorder %s30, 1
      %p300 = por %p298, %p299
      %p301 = scmp.ne.s32.totalorder %s292, %s293
      %p302 = scmp.eq.s32.totalorder %s30, 0
      %p303 = por %p301, %p302
      %p304 = scmp.ne.s32.totalorder %s292, %s293
      %p305 = scmp.eq.s32.totalorder %s31, 1
      %p306 = por %p304, %p305
      %p308 = scmp.ne.s32.totalorder %s293, %s307
      %p309 = scmp.eq.s32.totalorder %s31, 0
      %p310 = por %p308, %p309
      %s312 = sadd.s32 %s311, 1
      %p315 = scmp.eq.s32.totalorder %s25, 1
      %p316 = scmp.ne.s32.totalorder %s311, %s313
      %p317 = scmp.eq.s32.totalorder %s25, 0
      %p318 = por %p316, %p317
      %p319 = scmp.ne.s32.totalorder %s311, %s313
      %p320 = scmp.eq.s32.totalorder %s30, 1
      %p321 = por %p319, %p320
      %p322 = scmp.ne.s32.totalorder %s313, %s314
      %p323 = scmp.eq.s32.totalorder %s30, 0
      %p324 = por %p322, %p323
      %p325 = scmp.ne.s32.totalorder %s313, %s314
      %p326 = scmp.eq.s32.totalorder %s31, 1
      %p327 = por %p325, %p326
      %p329 = scmp.ne.s32.totalorder %s314, %s328
      %p330 = scmp.eq.s32.totalorder %s31, 0
      %p331 = por %p329, %p330
      %s333 = sadd.s32 %s332, 1
      %p336 = scmp.eq.s32.totalorder %s25, 1
      %p337 = scmp.ne.s32.totalorder %s332, %s334
      %p338 = scmp.eq.s32.totalorder %s25, 0
      %p339 = por %p337, %p338
      %p340 = scmp.ne.s32.totalorder %s332, %s334
      %p341 = scmp.eq.s32.totalorder %s30, 1
      %p342 = por %p340, %p341
      %p343 = scmp.ne.s32.totalorder %s334, %s335
      %p344 = scmp.eq.s32.totalorder %s30, 0
      %p345 = por %p343, %p344
      %p346 = scmp.ne.s32.totalorder %s334, %s335
      %p347 = scmp.eq.s32.totalorder %s31, 1
      %p348 = por %p346, %p347
      %p350 = scmp.ne.s32.totalorder %s335, %s349
      %p351 = scmp.eq.s32.totalorder %s31, 0
      %p352 = por %p350, %p351
      %s354 = sadd.s32 %s353, 1
      %p357 = scmp.eq.s32.totalorder %s25, 1
      %p358 = scmp.ne.s32.totalorder %s353, %s355
      %p359 = scmp.eq.s32.totalorder %s25, 0
      %p360 = por %p358, %p359
      %p361 = scmp.ne.s32.totalorder %s353, %s355
      %p362 = scmp.eq.s32.totalorder %s30, 1
      %p363 = por %p361, %p362
      %p364 = scmp.ne.s32.totalorder %s355, %s356
      %p365 = scmp.eq.s32.totalorder %s30, 0
      %p366 = por %p364, %p365
      %p367 = scmp.ne.s32.totalorder %s355, %s356
      %p368 = scmp.eq.s32.totalorder %s31, 1
      %p369 = por %p367, %p368
      %p371 = scmp.ne.s32.totalorder %s356, %s370
      %p372 = scmp.eq.s32.totalorder %s31, 0
      %p373 = por %p371, %p372
      %s374 = ssub.s32 %s25, %s32
      %p375 = scmp.eq.s32.totalorder %s374, 0
      %s377 = sadd.s32 %s376, 1
      %s378 = scalar_select %p375, %s376, %s377
      %p381 = pneg %p375
      %p382 = scmp.eq.s32.totalorder %s25, 1
      %p383 = por %p381, %p382
      %p384 = scmp.ne.s32.totalorder %s376, %s379
      %p385 = scmp.eq.s32.totalorder %s25, 0
      %p386 = por %p384, %p385
      %p387 = scmp.ne.s32.totalorder %s376, %s379
      %p388 = scmp.eq.s32.totalorder %s30, 1
      %p389 = por %p387, %p388
      %p390 = scmp.ne.s32.totalorder %s379, %s380
      %p391 = scmp.eq.s32.totalorder %s30, 0
      %p392 = por %p390, %p391
      %p393 = scmp.ne.s32.totalorder %s379, %s380
      %p394 = scmp.eq.s32.totalorder %s31, 1
      %p395 = por %p393, %p394
      %p397 = scmp.ne.s32.totalorder %s380, %s396
      %p398 = scmp.eq.s32.totalorder %s31, 0
      %p399 = por %p397, %p398
      %p400 = scmp.le.s32.totalorder 1, %s25
      %p401 = scmp.lt.s32.totalorder %s25, 3
      %p402 = pnand %p400, %p401
      %p403 = pneg %p402
      // Predicated region
      $region9: #{gpt_forward.1} parent=5 // pred_check
        _
      $region10: #{gpt_forward.1} parent=5 // pred_check_branch
        %405 = sbr.rel (%p402) target = $region12
      $region11: #{gpt_forward.1} parent=5 // pred_region
        %s406 = ssub.s32 %s25, 1
        // Predicated region
        $region13: #{gpt_forward.1} parent=11 // pred_check
          %p407 = pneg %p72
        $region14: #{gpt_forward.1} parent=11 // pred_check_branch
          %409 = sbr.rel (%p407) target = $region16
        $region15: #{gpt_forward.1} parent=11 // pred_region
          _
        $region16: #{gpt_forward.1} parent=11 // pred_fallthru
          _
        // Predicated region
        $region17: #{gpt_forward.1} parent=11 // pred_check
          %p410 = pneg %p93
        $region18: #{gpt_forward.1} parent=11 // pred_check_branch
          %412 = sbr.rel (%p410) target = $region20
        $region19: #{gpt_forward.1} parent=11 // pred_region
          _
        $region20: #{gpt_forward.1} parent=11 // pred_fallthru
          _
        // Predicated region
        $region21: #{gpt_forward.1} parent=11 // pred_check
          %p413 = pneg %p114
        $region22: #{gpt_forward.1} parent=11 // pred_check_branch
          %415 = sbr.rel (%p413) target = $region24
        $region23: #{gpt_forward.1} parent=11 // pred_region
          _
        $region24: #{gpt_forward.1} parent=11 // pred_fallthru
          _
        // Predicated region
        $region25: #{gpt_forward.1} parent=11 // pred_check
          %p416 = pneg %p135
        $region26: #{gpt_forward.1} parent=11 // pred_check_branch
          %418 = sbr.rel (%p416) target = $region28
        $region27: #{gpt_forward.1} parent=11 // pred_region
          _
        $region28: #{gpt_forward.1} parent=11 // pred_fallthru
          _
        // Predicated region
        $region29: #{gpt_forward.1} parent=11 // pred_check
          %p419 = pneg %p156
        $region30: #{gpt_forward.1} parent=11 // pred_check_branch
          %421 = sbr.rel (%p419) target = $region32
        $region31: #{gpt_forward.1} parent=11 // pred_region
          _
        $region32: #{gpt_forward.1} parent=11 // pred_fallthru
          _
        // Predicated region
        $region33: #{gpt_forward.1} parent=11 // pred_check
          %p422 = pneg %p177
        $region34: #{gpt_forward.1} parent=11 // pred_check_branch
          %424 = sbr.rel (%p422) target = $region36
        $region35: #{gpt_forward.1} parent=11 // pred_region
          _
        $region36: #{gpt_forward.1} parent=11 // pred_fallthru
          _
        // Predicated region
        $region37: #{gpt_forward.1} parent=11 // pred_check
          %p425 = pneg %p198
        $region38: #{gpt_forward.1} parent=11 // pred_check_branch
          %427 = sbr.rel (%p425) target = $region40
        $region39: #{gpt_forward.1} parent=11 // pred_region
          _
        $region40: #{gpt_forward.1} parent=11 // pred_fallthru
          _
        // Predicated region
        $region41: #{gpt_forward.1} parent=11 // pred_check
          %p428 = pneg %p219
        $region42: #{gpt_forward.1} parent=11 // pred_check_branch
          %430 = sbr.rel (%p428) target = $region44
        $region43: #{gpt_forward.1} parent=11 // pred_region
          _
        $region44: #{gpt_forward.1} parent=11 // pred_fallthru
          _
        // Predicated region
        $region45: #{gpt_forward.1} parent=11 // pred_check
          %p431 = pneg %p240
        $region46: #{gpt_forward.1} parent=11 // pred_check_branch
          %433 = sbr.rel (%p431) target = $region48
        $region47: #{gpt_forward.1} parent=11 // pred_region
          _
        $region48: #{gpt_forward.1} parent=11 // pred_fallthru
          _
        // Predicated region
        $region49: #{gpt_forward.1} parent=11 // pred_check
          %p434 = pneg %p261
        $region50: #{gpt_forward.1} parent=11 // pred_check_branch
          %436 = sbr.rel (%p434) target = $region52
        $region51: #{gpt_forward.1} parent=11 // pred_region
          _
        $region52: #{gpt_forward.1} parent=11 // pred_fallthru
          _
        // Predicated region
        $region53: #{gpt_forward.1} parent=11 // pred_check
          %p437 = pneg %p282
        $region54: #{gpt_forward.1} parent=11 // pred_check_branch
          %439 = sbr.rel (%p437) target = $region56
        $region55: #{gpt_forward.1} parent=11 // pred_region
          _
        $region56: #{gpt_forward.1} parent=11 // pred_fallthru
          _
        // Predicated region
        $region57: #{gpt_forward.1} parent=11 // pred_check
          %p440 = pneg %p303
        $region58: #{gpt_forward.1} parent=11 // pred_check_branch
          %442 = sbr.rel (%p440) target = $region60
        $region59: #{gpt_forward.1} parent=11 // pred_region
          _
        $region60: #{gpt_forward.1} parent=11 // pred_fallthru
          _
        // Predicated region
        $region61: #{gpt_forward.1} parent=11 // pred_check
          %p443 = pneg %p324
        $region62: #{gpt_forward.1} parent=11 // pred_check_branch
          %445 = sbr.rel (%p443) target = $region64
        $region63: #{gpt_forward.1} parent=11 // pred_region
          _
        $region64: #{gpt_forward.1} parent=11 // pred_fallthru
          _
        // Predicated region
        $region65: #{gpt_forward.1} parent=11 // pred_check
          %p446 = pneg %p345
        $region66: #{gpt_forward.1} parent=11 // pred_check_branch
          %448 = sbr.rel (%p446) target = $region68
        $region67: #{gpt_forward.1} parent=11 // pred_region
          _
        $region68: #{gpt_forward.1} parent=11 // pred_fallthru
          _
        // Predicated region
        $region69: #{gpt_forward.1} parent=11 // pred_check
          %p449 = pneg %p366
        $region70: #{gpt_forward.1} parent=11 // pred_check_branch
          %451 = sbr.rel (%p449) target = $region72
        $region71: #{gpt_forward.1} parent=11 // pred_region
          _
        $region72: #{gpt_forward.1} parent=11 // pred_fallthru
          _
      $region12: #{gpt_forward.1} parent=5 // pred_fallthru
        _
      %p452 = scmp.lt.s32.totalorder %s25, 2
      // Predicated region
      $region73: #{gpt_forward.1} parent=5 // pred_check
        %p453 = pneg %p452
      $region74: #{gpt_forward.1} parent=5 // pred_check_branch
        %455 = sbr.rel (%p453) target = $region76
      $region75: #{gpt_forward.1} parent=5 // pred_region
        // Predicated region
        $region77: #{gpt_forward.1} parent=75 // pred_check
          %p456 = pneg %p45
        $region78: #{gpt_forward.1} parent=75 // pred_check_branch
          %458 = sbr.rel (%p456) target = $region80
        $region79: #{gpt_forward.1} parent=75 // pred_region
          %p459 = scmp.lt.s32.totalorder %s25, 1
          %s460 = scalar_select %p459, %s25, 1
          %s461 = smul.addr %s460, 4
          %s462 = smul.addr %s461, 8
          %s463 = scalar_lea.vmem %s0, %s462
        $region80: #{gpt_forward.1} parent=75 // pred_fallthru
          _
      $region76: #{gpt_forward.1} parent=5 // pred_fallthru
        _
      %p464 = scmp.le.s32.totalorder 1, %s25
      %p465 = scmp.lt.s32.totalorder %s25, 3
      %p466 = pnand %p464, %p465
      %p467 = pneg %p466
      // Predicated region
      $region81: #{gpt_forward.1} parent=5 // pred_check
        _
      $region82: #{gpt_forward.1} parent=5 // pred_check_branch
        %469 = sbr.rel (%p466) target = $region84
      $region83: #{gpt_forward.1} parent=5 // pred_region
        %s470 = ssub.s32 %s25, 1
        %p471 = scmp.lt.s32.totalorder %s30, 1
        %s472 = scalar_select %p471, %s30, 1
        %s473 = smul.addr %s472, 4
        %s474 = smul.addr %s473, 8
        %s475 = scalar_lea.vmem %s0, %s474
        %p476 = pneg %p51
        %p477 = pneg %p48
        %p478 = pneg %p72
        %p479 = pneg %p69
        %p480 = pneg %p93
        %p481 = pneg %p90
        %p482 = pneg %p114
        %p483 = pneg %p111
        %p484 = pneg %p135
        %p485 = pneg %p132
        %p486 = pneg %p156
        %p487 = pneg %p153
        %p488 = pneg %p177
        %p489 = pneg %p174
        %p490 = pneg %p198
        %p491 = pneg %p195
        %p492 = pneg %p219
        %p493 = pneg %p216
        %p494 = pneg %p240
        %p495 = pneg %p237
        %p496 = pneg %p261
        %p497 = pneg %p258
        %p498 = pneg %p282
        %p499 = pneg %p279
        %p500 = pneg %p303
        %p501 = pneg %p300
        %p502 = pneg %p324
        %p503 = pneg %p321
        %p504 = pneg %p345
        %p505 = pneg %p342
        %p506 = pneg %p366
        %p507 = pneg %p363
        %p508 = pneg %p392
        %p509 = pneg %p389
        %s510 = sand.u32 %s379, 1
        %s511 = scalar_lea.sflag [#allocation3], %s510
        %s512 = sand.u32 %s379, 1
        %s513 = smul.addr %s512, 48
        %s514 = scalar_lea.vmem [#allocation2], %s513
        %p515 = scmp.lt.s32.totalorder %s30, 1
        %s516 = scalar_select %p515, %s30, 1
        %s517 = smul.addr %s516, 4
        %s518 = smul.addr %s517, 8
        %s519 = scalar_lea.vmem %s0, %s518
        %v521 = vld [vmem:[%s519] sm:$0xff]
        %v522 = vld [vmem:[%s519 + $0x8] sm:$0xff]
        %v523 = vld [vmem:[%s519 + $0x10] sm:$0xff]
        %v524 = vld [vmem:[%s519 + $0x18] sm:$0xff]
        %v525 = vlaneseq
        %v526 = vshrl.u32 %v525, 7
        %v527 = vadd.s32 %v526, 8
        %v528 = vlaneseq
        %v529 = vand.u32 %v528, 127
        %vm530 = vcmp.le.s32.totalorder %v529, %v526
        %vm531 = vcmp.le.s32.totalorder %v529, %v527
        %v532 = vsel %vm530, 0.0, -1e+30
        %v533 = vsel %vm531, 0.0, -1e+30
        %v534 = vld [vmem:[%s1] sm:$0x3]
        %v535 = vld [vmem:[%s2] sm:$0x3]
        %vm536 = vcmask 523264
        %v537 = vsel %vm536, %v522, 0.0
        %v538 = vadd.f32 %v521, %v537
        %539 = vadd.xlane.f32.xlu0 %v538
        %v540 = vpop.xlane.xlu0 %539
        %v541 = vsel %vm536, %v524, 0.0
        %v542 = vadd.f32 %v523, %v541
        %543 = vadd.xlane.f32.xlu0 %v542
        %v544 = vpop.xlane.xlu0 %543
        %v545 = vrcp.pop 192.0
        %v546 = vmul.f32 %v540, %v545
        %v547 = vmul.f32 %v544, %v545
        %v548 = vsub.f32 %v521, %v546
        %v549 = vsub.f32 %v522, %v546
        %v550 = vsub.f32 %v523, %v547
        %v551 = vsub.f32 %v524, %v547
        %v552 = vmul.f32 %v548, %v548
        %v553 = vmul.f32 %v549, %v549
        %v554 = vmul.f32 %v550, %v550
        %v555 = vmul.f32 %v551, %v551
        %v556 = vsel %vm536, %v553, 0.0
        %v557 = vadd.f32 %v552, %v556
        %558 = vadd.xlane.f32.xlu0 %v557
        %v559 = vpop.xlane.xlu0 %558
        %v560 = vsel %vm536, %v555, 0.0
        %v561 = vadd.f32 %v554, %v560
        %562 = vadd.xlane.f32.xlu0 %v561
        %v563 = vpop.xlane.xlu0 %562
        %v564 = vmul.f32 %v559, %v545
        %v565 = vmul.f32 %v563, %v545
        %v566 = vadd.f32 %v564, 1e-05
        %v567 = vadd.f32 %v565, 1e-05
        %v568 = vrsqrt.pop %v566
        %v569 = vrsqrt.pop %v567
        %v570 = vmul.f32 %v548, %v568
        %v571 = vmul.f32 %v549, %v568
        %v572 = vmul.f32 %v550, %v569
        %v573 = vmul.f32 %v551, %v569
        %v575 = vlaneseq
        %v576 = vshrl.u32 %v575, 7
        %v577 = vsub.s32 0, %v576
        %v578 = vrot.slane %v534, %v577
        %v579 = vlaneseq
        %v580 = vshrl.u32 %v579, 7
        %v581 = vsub.s32 1, %v580
        %v582 = vrot.slane %v534, %v581
        %v585 = vmul.f32 %v570, %v578
        %v586 = vmul.f32 %v571, %v582
        %v587 = vmul.f32 %v572, %v578
        %v588 = vmul.f32 %v573, %v582
        %v590 = vlaneseq
        %v591 = vshrl.u32 %v590, 7
        %v592 = vsub.s32 0, %v591
        %v593 = vrot.slane %v535, %v592
        %v594 = vlaneseq
        %v595 = vshrl.u32 %v594, 7
        %v596 = vsub.s32 1, %v595
        %v597 = vrot.slane %v535, %v596
        %v600 = vadd.f32 %v585, %v593
        %v601 = vadd.f32 %v586, %v597
        %v602 = vadd.f32 %v587, %v593
        %v603 = vadd.f32 %v588, %v597
        %v604 = vpack.c.bf16 %v602, %v600
        %v605 = vpack.c.bf16 %v603, %v601
        %v606 = vld [vmem:[%s3] sm:$0xff]
        %v607 = vld [vmem:[%s3 + $0x8] sm:$0xff]
        %v608 = vld [vmem:[%s3 + $0x10] sm:$0xf]
        %v609 = vld [vmem:[%s3 + $0x14] sm:$0xff]
        %v610 = vld [vmem:[%s3 + $0x1c] sm:$0xff]
        %v611 = vld [vmem:[%s3 + $0x24] sm:$0xf]
        %v612 = vld [vmem:[%s3 + $0x28] sm:$0xff]
        %v613 = vld [vmem:[%s3 + $0x30] sm:$0xff]
        %v614 = vld [vmem:[%s3 + $0x38] sm:$0xf]
        %v615 = vld [vmem:[%s3 + $0x3c] sm:$0xff]
        %v616 = vld [vmem:[%s3 + $0x44] sm:$0xff]
        %v617 = vld [vmem:[%s3 + $0x4c] sm:$0xf]
        %v618 = vld [vmem:[%s3 + $0x50] sm:$0xff]
        %v619 = vld [vmem:[%s3 + $0x58] sm:$0xff]
        %v620 = vld [vmem:[%s3 + $0x60] sm:$0xf]
        %v621 = vld [vmem:[%s3 + $0x64] sm:$0xff]
        %v622 = vld [vmem:[%s3 + $0x6c] sm:$0xff]
        %v623 = vld [vmem:[%s3 + $0x74] sm:$0xf]
        %v624 = vld [vmem:[%s3 + $0x78] sm:$0xff]
        %v625 = vld [vmem:[%s3 + $0x80] sm:$0xff]
        %v626 = vld [vmem:[%s3 + $0x88] sm:$0xf]
        %v627 = vld [vmem:[%s3 + $0x8c] sm:$0xff]
        %v628 = vld [vmem:[%s3 + $0x94] sm:$0xff]
        %v629 = vld [vmem:[%s3 + $0x9c] sm:$0xf]
        %v630 = vld [vmem:[%s3 + $0xa0] sm:$0xff]
        %v631 = vld [vmem:[%s3 + $0xa8] sm:$0xff]
        %v632 = vld [vmem:[%s3 + $0xb0] sm:$0xf]
        %v633 = vld [vmem:[%s3 + $0xb4] sm:$0xff]
        %v634 = vld [vmem:[%s3 + $0xbc] sm:$0xff]
        %v635 = vld [vmem:[%s3 + $0xc4] sm:$0xf]
        %v636 = vld [vmem:[%s3 + $0xc8] sm:$0xff]
        %v637 = vld [vmem:[%s3 + $0xd0] sm:$0xff]
        %v638 = vld [vmem:[%s3 + $0xd8] sm:$0xf]
        %v639 = vld [vmem:[%s3 + $0xdc] sm:$0xff]
        %v640 = vld [vmem:[%s3 + $0xe4] sm:$0xff]
        %v641 = vld [vmem:[%s3 + $0xec] sm:$0xf]
        %v642 = vld [vmem:[%s3 + $0xf0] sm:$0xff]
        %v643 = vld [vmem:[%s3 + $0xf8] sm:$0xff]
        %v644 = vld [vmem:[%s3 + $0x100] sm:$0xf]
        %v645 = vld [vmem:[%s3 + $0x104] sm:$0xff]
        %v646 = vld [vmem:[%s3 + $0x10c] sm:$0xff]
        %v647 = vld [vmem:[%s3 + $0x114] sm:$0xf]
        %v648 = vld [vmem:[%s3 + $0x118] sm:$0xff]
        %v649 = vld [vmem:[%s3 + $0x120] sm:$0xff]
        %v650 = vld [vmem:[%s3 + $0x128] sm:$0xf]
        %v651 = vld [vmem:[%s3 + $0x12c] sm:$0xff]
        %v652 = vld [vmem:[%s3 + $0x134] sm:$0xff]
        %v653 = vld [vmem:[%s3 + $0x13c] sm:$0xf]
        %v654 = vld [vmem:[%s3 + $0x140] sm:$0xff]
        %v655 = vld [vmem:[%s3 + $0x148] sm:$0xff]
        %v656 = vld [vmem:[%s3 + $0x150] sm:$0xf]
        %v657 = vld [vmem:[%s3 + $0x154] sm:$0xff]
        %v658 = vld [vmem:[%s3 + $0x15c] sm:$0xff]
        %v659 = vld [vmem:[%s3 + $0x164] sm:$0xf]
        %v660 = vld [vmem:[%s3 + $0x168] sm:$0xff]
        %v661 = vld [vmem:[%s3 + $0x170] sm:$0xff]
        %v662 = vld [vmem:[%s3 + $0x178] sm:$0xf]
        %v663 = vld [vmem:[%s3 + $0x17c] sm:$0xff]
        %v664 = vld [vmem:[%s3 + $0x184] sm:$0xff]
        %v665 = vld [vmem:[%s3 + $0x18c] sm:$0xf]
        %v666 = vld [vmem:[%s3 + $0x190] sm:$0xff]
        %v667 = vld [vmem:[%s3 + $0x198] sm:$0xff]
        %v668 = vld [vmem:[%s3 + $0x1a0] sm:$0xf]
        %v669 = vld [vmem:[%s3 + $0x1a4] sm:$0xff]
        %v670 = vld [vmem:[%s3 + $0x1ac] sm:$0xff]
        %v671 = vld [vmem:[%s3 + $0x1b4] sm:$0xf]
        %v672 = vld [vmem:[%s3 + $0x1b8] sm:$0xff]
        %v673 = vld [vmem:[%s3 + $0x1c0] sm:$0xff]
        %v674 = vld [vmem:[%s3 + $0x1c8] sm:$0xf]
        %v675 = vld [vmem:[%s3 + $0x1cc] sm:$0xff]
        %v676 = vld [vmem:[%s3 + $0x1d4] sm:$0xff]
        %v677 = vld [vmem:[%s3 + $0x1dc] sm:$0xf]
        %v750 = vunpack.c.l.b16 %v606
        %v751 = vunpack.c.h.b16 %v606
        %v752 = vunpack.c.l.b16 %v607
        %v753 = vunpack.c.h.b16 %v607
        %v754 = vunpack.c.l.b16 %v608
        %v755 = vunpack.c.l.b16 %v609
        %v756 = vunpack.c.h.b16 %v609
        %v757 = vunpack.c.l.b16 %v610
        %v758 = vunpack.c.h.b16 %v610
        %v759 = vunpack.c.l.b16 %v611
        %v760 = vunpack.c.l.b16 %v612
        %v761 = vunpack.c.h.b16 %v612
        %v762 = vunpack.c.l.b16 %v613
        %v763 = vunpack.c.h.b16 %v613
        %v764 = vunpack.c.l.b16 %v614
        %v765 = vunpack.c.l.b16 %v615
        %v766 = vunpack.c.h.b16 %v615
        %v767 = vunpack.c.l.b16 %v616
        %v768 = vunpack.c.h.b16 %v616
        %v769 = vunpack.c.l.b16 %v617
        %v770 = vunpack.c.l.b16 %v618
        %v771 = vunpack.c.h.b16 %v618
        %v772 = vunpack.c.l.b16 %v619
        %v773 = vunpack.c.h.b16 %v619
        %v774 = vunpack.c.l.b16 %v620
        %v775 = vunpack.c.l.b16 %v621
        %v776 = vunpack.c.h.b16 %v621
        %v777 = vunpack.c.l.b16 %v622
        %v778 = vunpack.c.h.b16 %v622
        %v779 = vunpack.c.l.b16 %v623
        %v780 = vunpack.c.l.b16 %v624
        %v781 = vunpack.c.h.b16 %v624
        %v782 = vunpack.c.l.b16 %v625
        %v783 = vunpack.c.h.b16 %v625
        %v784 = vunpack.c.l.b16 %v626
        %v785 = vunpack.c.l.b16 %v627
        %v786 = vunpack.c.h.b16 %v627
        %v787 = vunpack.c.l.b16 %v628
        %v788 = vunpack.c.h.b16 %v628
        %v789 = vunpack.c.l.b16 %v629
        %v790 = vunpack.c.l.b16 %v630
        %v791 = vunpack.c.h.b16 %v630
        %v792 = vunpack.c.l.b16 %v631
        %v793 = vunpack.c.h.b16 %v631
        %v794 = vunpack.c.l.b16 %v632
        %v795 = vunpack.c.l.b16 %v633
        %v796 = vunpack.c.h.b16 %v633
        %v797 = vunpack.c.l.b16 %v634
        %v798 = vunpack.c.h.b16 %v634
        %v799 = vunpack.c.l.b16 %v635
        %v800 = vunpack.c.l.b16 %v636
        %v801 = vunpack.c.h.b16 %v636
        %v802 = vunpack.c.l.b16 %v637
        %v803 = vunpack.c.h.b16 %v637
        %v804 = vunpack.c.l.b16 %v638
        %v805 = vunpack.c.l.b16 %v639
        %v806 = vunpack.c.h.b16 %v639
        %v807 = vunpack.c.l.b16 %v640
        %v808 = vunpack.c.h.b16 %v640
        %v809 = vunpack.c.l.b16 %v641
        %v810 = vunpack.c.l.b16 %v642
        %v811 = vunpack.c.h.b16 %v642
        %v812 = vunpack.c.l.b16 %v643
        %v813 = vunpack.c.h.b16 %v643
        %v814 = vunpack.c.l.b16 %v644
        %v815 = vunpack.c.l.b16 %v645
        %v816 = vunpack.c.h.b16 %v645
        %v817 = vunpack.c.l.b16 %v646
        %v818 = vunpack.c.h.b16 %v646
        %v819 = vunpack.c.l.b16 %v647
        %v820 = vunpack.c.l.b16 %v648
        %v821 = vunpack.c.h.b16 %v648
        %v822 = vunpack.c.l.b16 %v649
        %v823 = vunpack.c.h.b16 %v649
        %v824 = vunpack.c.l.b16 %v650
        %v825 = vunpack.c.l.b16 %v651
        %v826 = vunpack.c.h.b16 %v651
        %v827 = vunpack.c.l.b16 %v652
        %v828 = vunpack.c.h.b16 %v652
        %v829 = vunpack.c.l.b16 %v653
        %v830 = vunpack.c.l.b16 %v654
        %v831 = vunpack.c.h.b16 %v654
        %v832 = vunpack.c.l.b16 %v655
        %v833 = vunpack.c.h.b16 %v655
        %v834 = vunpack.c.l.b16 %v656
        %v835 = vunpack.c.l.b16 %v657
        %v836 = vunpack.c.h.b16 %v657
        %v837 = vunpack.c.l.b16 %v658
        %v838 = vunpack.c.h.b16 %v658
        %v839 = vunpack.c.l.b16 %v659
        %v840 = vunpack.c.l.b16 %v660
        %v841 = vunpack.c.h.b16 %v660
        %v842 = vunpack.c.l.b16 %v661
        %v843 = vunpack.c.h.b16 %v661
        %v844 = vunpack.c.l.b16 %v662
        %v845 = vunpack.c.l.b16 %v663
        %v846 = vunpack.c.h.b16 %v663
        %v847 = vunpack.c.l.b16 %v664
        %v848 = vunpack.c.h.b16 %v664
        %v849 = vunpack.c.l.b16 %v665
        %v850 = vunpack.c.l.b16 %v666
        %v851 = vunpack.c.h.b16 %v666
        %v852 = vunpack.c.l.b16 %v667
        %v853 = vunpack.c.h.b16 %v667
        %v854 = vunpack.c.l.b16 %v668
        %v855 = vunpack.c.l.b16 %v669
        %v856 = vunpack.c.h.b16 %v669
        %v857 = vunpack.c.l.b16 %v670
        %v858 = vunpack.c.h.b16 %v670
        %v859 = vunpack.c.l.b16 %v671
        %v860 = vunpack.c.l.b16 %v672
        %v861 = vunpack.c.h.b16 %v672
        %v862 = vunpack.c.l.b16 %v673
        %v863 = vunpack.c.h.b16 %v673
        %v864 = vunpack.c.l.b16 %v674
        %v865 = vunpack.c.l.b16 %v675
        %v866 = vunpack.c.h.b16 %v675
        %v867 = vunpack.c.l.b16 %v676
        %v868 = vunpack.c.h.b16 %v676
        %v869 = vunpack.c.l.b16 %v677
        %v870 = vpack.c.b16 %v755, %v750
        %v871 = vpack.c.b16 %v756, %v751
        %v872 = vpack.c.b16 %v757, %v752
        %v873 = vpack.c.b16 %v758, %v753
        %v874 = vpack.c.b16 %v759, %v754
        %v875 = vpack.c.b16 %v765, %v760
        %v876 = vpack.c.b16 %v766, %v761
        %v877 = vpack.c.b16 %v767, %v762
        %v878 = vpack.c.b16 %v768, %v763
        %v879 = vpack.c.b16 %v769, %v764
        %v880 = vpack.c.b16 %v775, %v770
        %v881 = vpack.c.b16 %v776, %v771
        %v882 = vpack.c.b16 %v777, %v772
        %v883 = vpack.c.b16 %v778, %v773
        %v884 = vpack.c.b16 %v779, %v774
        %v885 = vpack.c.b16 %v785, %v780
        %v886 = vpack.c.b16 %v786, %v781
        %v887 = vpack.c.b16 %v787, %v782
        %v888 = vpack.c.b16 %v788, %v783
        %v889 = vpack.c.b16 %v789, %v784
        %v890 = vpack.c.b16 %v795, %v790
        %v891 = vpack.c.b16 %v796, %v791
        %v892 = vpack.c.b16 %v797, %v792
        %v893 = vpack.c.b16 %v798, %v793
        %v894 = vpack.c.b16 %v799, %v794
        %v895 = vpack.c.b16 %v805, %v800
        %v896 = vpack.c.b16 %v806, %v801
        %v897 = vpack.c.b16 %v807, %v802
        %v898 = vpack.c.b16 %v808, %v803
        %v899 = vpack.c.b16 %v809, %v804
        %v900 = vpack.c.b16 %v815, %v810
        %v901 = vpack.c.b16 %v816, %v811
        %v902 = vpack.c.b16 %v817, %v812
        %v903 = vpack.c.b16 %v818, %v813
        %v904 = vpack.c.b16 %v819, %v814
        %v905 = vpack.c.b16 %v825, %v820
        %v906 = vpack.c.b16 %v826, %v821
        %v907 = vpack.c.b16 %v827, %v822
        %v908 = vpack.c.b16 %v828, %v823
        %v909 = vpack.c.b16 %v829, %v824
        %v910 = vpack.c.b16 %v835, %v830
        %v911 = vpack.c.b16 %v836, %v831
        %v912 = vpack.c.b16 %v837, %v832
        %v913 = vpack.c.b16 %v838, %v833
        %v914 = vpack.c.b16 %v839, %v834
        %v915 = vpack.c.b16 %v845, %v840
        %v916 = vpack.c.b16 %v846, %v841
        %v917 = vpack.c.b16 %v847, %v842
        %v918 = vpack.c.b16 %v848, %v843
        %v919 = vpack.c.b16 %v849, %v844
        %v920 = vpack.c.b16 %v855, %v850
        %v921 = vpack.c.b16 %v856, %v851
        %v922 = vpack.c.b16 %v857, %v852
        %v923 = vpack.c.b16 %v858, %v853
        %v924 = vpack.c.b16 %v859, %v854
        %v925 = vpack.c.b16 %v865, %v860
        %v926 = vpack.c.b16 %v866, %v861
        %v927 = vpack.c.b16 %v867, %v862
        %v928 = vpack.c.b16 %v868, %v863
        %v929 = vpack.c.b16 %v869, %v864
        %v991 = vsel %vm536, %v605, 0
        %993 = vmatprep.subr.bf16.mxu0 %v871
        %994 = vmatpush1.bf16.msra.mxu0 %v870
        %995 = vmatprep.subr.bf16.mxu0 %v876
        %996 = vmatpush1.bf16.msra.mxu0 %v875
        %997 = vmatprep.subr.bf16.mxu0 %v881
        %998 = vmatpush1.bf16.msra.mxu0 %v880
        %999 = vmatprep.subr.bf16.mxu0 %v886
        %1000 = vmatpush1.bf16.msra.mxu0 %v885
        %1001 = vmatprep.subr.bf16.mxu0 %v891
        %1002 = vmatpush1.bf16.msra.mxu0 %v890
        %1003 = vmatprep.subr.bf16.mxu0 %v896
        %1004 = vmatpush1.bf16.msra.mxu0 %v895
        %1005 = vmatprep.subr.bf16.mxu0 %v901
        %1006 = vmatpush1.bf16.msra.mxu0 %v900
        %1007 = vmatprep.subr.bf16.mxu0 %v906
        %1008 = vmatpush1.bf16.msra.mxu0 %v905
        %1009 = vmatprep.subr.bf16.mxu0 %v911
        %1010 = vmatpush1.bf16.msra.mxu0 %v910
        %1011 = vmatprep.subr.bf16.mxu0 %v916
        %1012 = vmatpush1.bf16.msra.mxu0 %v915
        %1013 = vmatprep.subr.bf16.mxu0 %v921
        %1014 = vmatpush1.bf16.msra.mxu0 %v920
        %1015 = vmatprep.subr.bf16.mxu0 %v926
        %1016 = vmatpush1.bf16.msra.mxu0 %v925
        %1017 = vmatprep.subr.bf16.mxu0 0
        %1018 = vmatpush1.bf16.msra.mxu0 0
        %1019 = vmatprep.subr.bf16.mxu0 0
        %1020 = vmatpush1.bf16.msra.mxu0 0
        %1021 = vmatprep.subr.bf16.mxu0 0
        %1022 = vmatpush1.bf16.msra.mxu0 0
        %1023 = vmatprep.subr.bf16.mxu0 0
        %1024 = vmatpush1.bf16.msra.mxu0 0
        %1025 = vmatprep.mubr.bf16.mxu0 %v991
        %1026 = vmatmul.mubr.bf16.gmra.mrb[0].mxu0 %v604
        %v1027 = vpop.f32.mrb[0].mxu0
        %v1028 = vadd.f32 0.0, %v1027
        %v1029 = vpop.f32.mrb[0].mxu0
        %v1030 = vadd.f32 0.0, %v1029
        %v1031 = vpop.f32.mrb[0].mxu0
        %v1032 = vadd.f32 0.0, %v1031
        %v1033 = vpop.f32.mrb[0].mxu0
        %v1034 = vadd.f32 0.0, %v1033
        %1035 = vdwg.mxu0
        %1036 = vmatprep.subr.bf16.mxu0 %v873
        %1037 = vmatpush1.bf16.msra.mxu0 %v872
        %1038 = vmatprep.subr.bf16.mxu0 %v878
        %1039 = vmatpush1.bf16.msra.mxu0 %v877
        %1040 = vmatprep.subr.bf16.mxu0 %v883
        %1041 = vmatpush1.bf16.msra.mxu0 %v882
        %1042 = vmatprep.subr.bf16.mxu0 %v888
        %1043 = vmatpush1.bf16.msra.mxu0 %v887
        %1044 = vmatprep.subr.bf16.mxu0 %v893
        %1045 = vmatpush1.bf16.msra.mxu0 %v892
        %1046 = vmatprep.subr.bf16.mxu0 %v898
        %1047 = vmatpush1.bf16.msra.mxu0 %v897
        %1048 = vmatprep.subr.bf16.mxu0 %v903
        %1049 = vmatpush1.bf16.msra.mxu0 %v902
        %1050 = vmatprep.subr.bf16.mxu0 %v908
        %1051 = vmatpush1.bf16.msra.mxu0 %v907
        %1052 = vmatprep.subr.bf16.mxu0 %v913
        %1053 = vmatpush1.bf16.msra.mxu0 %v912
        %1054 = vmatprep.subr.bf16.mxu0 %v918
        %1055 = vmatpush1.bf16.msra.mxu0 %v917
        %1056 = vmatprep.subr.bf16.mxu0 %v923
        %1057 = vmatpush1.bf16.msra.mxu0 %v922
        %1058 = vmatprep.subr.bf16.mxu0 %v928
        %1059 = vmatpush1.bf16.msra.mxu0 %v927
        %1060 = vmatprep.subr.bf16.mxu0 0
        %1061 = vmatpush1.bf16.msra.mxu0 0
        %1062 = vmatprep.subr.bf16.mxu0 0
        %1063 = vmatpush1.bf16.msra.mxu0 0
        %1064 = vmatprep.subr.bf16.mxu0 0
        %1065 = vmatpush1.bf16.msra.mxu0 0
        %1066 = vmatprep.subr.bf16.mxu0 0
        %1067 = vmatpush1.bf16.msra.mxu0 0
        %1068 = vmatprep.mubr.bf16.mxu0 %v991
        %1069 = vmatmul.mubr.bf16.gmra.mrb[0].mxu0 %v604
        %v1070 = vpop.f32.mrb[0].mxu0
        %v1071 = vadd.f32 0.0, %v1070
        %v1072 = vpop.f32.mrb[0].mxu0
        %v1073 = vadd.f32 0.0, %v1072
        %v1074 = vpop.f32.mrb[0].mxu0
        %v1075 = vadd.f32 0.0, %v1074
        %v1076 = vpop.f32.mrb[0].mxu0
        %v1077 = vadd.f32 0.0, %v1076
        %1078 = vdwg.mxu0
        %1079 = vmatprep.subr.bf16.mxu0 0
        %1080 = vmatpush1.bf16.msra.mxu0 %v874
        %1081 = vmatprep.subr.bf16.mxu0 0
        %1082 = vmatpush1.bf16.msra.mxu0 %v879
        %1083 = vmatprep.subr.bf16.mxu0 0
        %1084 = vmatpush1.bf16.msra.mxu0 %v884
        %1085 = vmatprep.subr.bf16.mxu0 0
        %1086 = vmatpush1.bf16.msra.mxu0 %v889
        %1087 = vmatprep.subr.bf16.mxu0 0
        %1088 = vmatpush1.bf16.msra.mxu0 %v894
        %1089 = vmatprep.subr.bf16.mxu0 0
        %1090 = vmatpush1.bf16.msra.mxu0 %v899
        %1091 = vmatprep.subr.bf16.mxu0 0
        %1092 = vmatpush1.bf16.msra.mxu0 %v904
        %1093 = vmatprep.subr.bf16.mxu0 0
        %1094 = vmatpush1.bf16.msra.mxu0 %v909
        %1095 = vmatprep.subr.bf16.mxu0 0
        %1096 = vmatpush1.bf16.msra.mxu0 %v914
        %1097 = vmatprep.subr.bf16.mxu0 0
        %1098 = vmatpush1.bf16.msra.mxu0 %v919
        %1099 = vmatprep.subr.bf16.mxu0 0
        %1100 = vmatpush1.bf16.msra.mxu0 %v924
        %1101 = vmatprep.subr.bf16.mxu0 0
        %1102 = vmatpush1.bf16.msra.mxu0 %v929
        %1103 = vmatprep.subr.bf16.mxu0 0
        %1104 = vmatpush1.bf16.msra.mxu0 0
        %1105 = vmatprep.subr.bf16.mxu0 0
        %1106 = vmatpush1.bf16.msra.mxu0 0
        %1107 = vmatprep.subr.bf16.mxu0 0
        %1108 = vmatpush1.bf16.msra.mxu0 0
        %1109 = vmatprep.subr.bf16.mxu0 0
        %1110 = vmatpush1.bf16.msra.mxu0 0
        %1111 = vmatprep.mubr.bf16.mxu0 %v991
        %1112 = vmatmul.mubr.bf16.gmra.mrb[0].mxu0 %v604
        %v1113 = vpop.f32.mrb[0].mxu0
        %v1114 = vadd.f32 0.0, %v1113
        %v1115 = vpop.f32.mrb[0].mxu0
        %v1116 = vpop.f32.mrb[0].mxu0
        %v1117 = vadd.f32 0.0, %v1116
        %v1118 = vpop.f32.mrb[0].mxu0
        %1119 = vdwg.mxu0
        %v1120 = vpack.c.bf16 %v1032, %v1028
        %v1121 = vpack.c.bf16 %v1034, %v1030
        %v1122 = vpack.c.bf16 %v1075, %v1071
        %v1123 = vpack.c.bf16 %v1077, %v1073
        %v1124 = vpack.c.bf16 %v1117, %v1114
        %1126 = vrot.lane.b32.xlu0 %v1120, 64
        %v1127 = vpop.permute.xlu0 %1126
        %1129 = vrot.lane.b32.xlu0 %v1122, 64
        %v1130 = vpop.permute.xlu0 %1129
        %1132 = vrot.lane.b32.xlu0 %v1123, 64
        %v1133 = vpop.permute.xlu0 %1132
        %1136 = vrot.lane.b32.xlu0 %v1121, 64
        %v1137 = vpop.permute.xlu0 %1136
        %v1139 = vsel %vm536, %v1120, 0
        %v1142 = vsel %vm536, %v1137, 0
        %1144 = vmatprep.subr.bf16.mxu0 0
        %1145 = vmatpush1.bf16.xpose.msra.mxu0 %v1142
        %1146 = vmatprep.subr.bf16.mxu0 0
        %1147 = vmatpush1.bf16.xpose.msra.mxu0 0
        %1148 = vmatprep.subr.bf16.mxu0 0
        %1149 = vmatpush1.bf16.xpose.msra.mxu0 0
        %1150 = vmatprep.subr.bf16.mxu0 0
        %1151 = vmatpush1.bf16.xpose.msra.mxu0 0
        %1152 = vmatprep.subr.bf16.mxu0 0
        %1153 = vmatpush1.bf16.xpose.msra.mxu0 0
        %1154 = vmatprep.subr.bf16.mxu0 0
        %1155 = vmatpush1.bf16.xpose.msra.mxu0 0
        %1156 = vmatprep.subr.bf16.mxu0 0
        %1157 = vmatpush1.bf16.xpose.msra.mxu0 0
        %1158 = vmatprep.subr.bf16.mxu0 0
        %1159 = vmatpush1.bf16.xpose.msra.mxu0 0
        %1160 = vmatprep.subr.bf16.mxu0 0
        %1161 = vmatpush1.bf16.xpose.msra.mxu0 0
        %1162 = vmatprep.subr.bf16.mxu0 0
        %1163 = vmatpush1.bf16.xpose.msra.mxu0 0
        %1164 = vmatprep.subr.bf16.mxu0 0
        %1165 = vmatpush1.bf16.xpose.msra.mxu0 0
        %1166 = vmatprep.subr.bf16.mxu0 0
        %1167 = vmatpush1.bf16.xpose.msra.mxu0 0
        %1168 = vmatprep.subr.bf16.mxu0 0
        %1169 = vmatpush1.bf16.xpose.msra.mxu0 0
        %1170 = vmatprep.subr.bf16.mxu0 0
        %1171 = vmatpush1.bf16.xpose.msra.mxu0 0
        %1172 = vmatprep.subr.bf16.mxu0 0
        %1173 = vmatpush1.bf16.xpose.msra.mxu0 0
        %1174 = vmatprep.subr.bf16.mxu0 0
        %1175 = vmatpush1.bf16.xpose.msra.mxu0 0
        %1176 = vmatprep.mubr.bf16.mxu0 0
        %1177 = vmatmul.mubr.bf16.gmra.mrb[0].mxu0 %v1139
        %v1178 = vpop.f32.mrb[0].mxu0
        %v1179 = vadd.f32 %v532, %v1178
        %v1180 = vpop.f32.mrb[0].mxu0
        %v1181 = vpop.f32.mrb[0].mxu0
        %v1182 = vadd.f32 %v533, %v1181
        %v1183 = vpop.f32.mrb[0].mxu0
        %1184 = vdwg.mxu0
        %1185 = vrot.lane.b32.xlu0 %v1130, 64
        %v1186 = vpop.permute.xlu0 %1185
        %v1188 = vsel %vm536, %v1127, 0
        %v1191 = vsel %vm536, %v1186, 0
        %1193 = vmatprep.subr.bf16.mxu0 0
        %1194 = vmatpush1.bf16.xpose.msra.mxu0 %v1191
        %1195 = vmatprep.subr.bf16.mxu0 0
        %1196 = vmatpush1.bf16.xpose.msra.mxu0 0
        %1197 = vmatprep.subr.bf16.mxu0 0
        %1198 = vmatpush1.bf16.xpose.msra.mxu0 0
        %1199 = vmatprep.subr.bf16.mxu0 0
        %1200 = vmatpush1.bf16.xpose.msra.mxu0 0
        %1201 = vmatprep.subr.bf16.mxu0 0
        %1202 = vmatpush1.bf16.xpose.msra.mxu0 0
        %1203 = vmatprep.subr.bf16.mxu0 0
        %1204 = vmatpush1.bf16.xpose.msra.mxu0 0
        %1205 = vmatprep.subr.bf16.mxu0 0
        %1206 = vmatpush1.bf16.xpose.msra.mxu0 0
        %1207 = vmatprep.subr.bf16.mxu0 0
        %1208 = vmatpush1.bf16.xpose.msra.mxu0 0
        %1209 = vmatprep.subr.bf16.mxu0 0
        %1210 = vmatpush1.bf16.xpose.msra.mxu0 0
        %1211 = vmatprep.subr.bf16.mxu0 0
        %1212 = vmatpush1.bf16.xpose.msra.mxu0 0
        %1213 = vmatprep.subr.bf16.mxu0 0
        %1214 = vmatpush1.bf16.xpose.msra.mxu0 0
        %1215 = vmatprep.subr.bf16.mxu0 0
        %1216 = vmatpush1.bf16.xpose.msra.mxu0 0
        %1217 = vmatprep.subr.bf16.mxu0 0
        %1218 = vmatpush1.bf16.xpose.msra.mxu0 0
        %1219 = vmatprep.subr.bf16.mxu0 0
        %1220 = vmatpush1.bf16.xpose.msra.mxu0 0
        %1221 = vmatprep.subr.bf16.mxu0 0
        %1222 = vmatpush1.bf16.xpose.msra.mxu0 0
        %1223 = vmatprep.subr.bf16.mxu0 0
        %1224 = vmatpush1.bf16.xpose.msra.mxu0 0
        %1225 = vmatprep.mubr.bf16.mxu0 0
        %1226 = vmatmul.mubr.bf16.gmra.mrb[0].mxu0 %v1188
        %v1227 = vpop.f32.mrb[0].mxu0
        %v1228 = vadd.f32 %v532, %v1227
        %v1229 = vpop.f32.mrb[0].mxu0
        %v1230 = vpop.f32.mrb[0].mxu0
        %v1231 = vadd.f32 %v533, %v1230
        %v1232 = vpop.f32.mrb[0].mxu0
        %1233 = vdwg.mxu0
        %v1235 = vsel %vm536, %v1121, 0
        %v1238 = vsel %vm536, %v1130, 0
        %1240 = vmatprep.subr.bf16.mxu0 0
        %1241 = vmatpush1.bf16.xpose.msra.mxu0 %v1238
        %1242 = vmatprep.subr.bf16.mxu0 0
        %1243 = vmatpush1.bf16.xpose.msra.mxu0 0
        %1244 = vmatprep.subr.bf16.mxu0 0
        %1245 = vmatpush1.bf16.xpose.msra.mxu0 0
        %1246 = vmatprep.subr.bf16.mxu0 0
        %1247 = vmatpush1.bf16.xpose.msra.mxu0 0
        %1248 = vmatprep.subr.bf16.mxu0 0
        %1249 = vmatpush1.bf16.xpose.msra.mxu0 0
        %1250 = vmatprep.subr.bf16.mxu0 0
        %1251 = vmatpush1.bf16.xpose.msra.mxu0 0
        %1252 = vmatprep.subr.bf16.mxu0 0
        %1253 = vmatpush1.bf16.xpose.msra.mxu0 0
        %1254 = vmatprep.subr.bf16.mxu0 0
        %1255 = vmatpush1.bf16.xpose.msra.mxu0 0
        %1256 = vmatprep.subr.bf16.mxu0 0
        %1257 = vmatpush1.bf16.xpose.msra.mxu0 0
        %1258 = vmatprep.subr.bf16.mxu0 0
        %1259 = vmatpush1.bf16.xpose.msra.mxu0 0
        %1260 = vmatprep.subr.bf16.mxu0 0
        %1261 = vmatpush1.bf16.xpose.msra.mxu0 0
        %1262 = vmatprep.subr.bf16.mxu0 0
        %1263 = vmatpush1.bf16.xpose.msra.mxu0 0
        %1264 = vmatprep.subr.bf16.mxu0 0
        %1265 = vmatpush1.bf16.xpose.msra.mxu0 0
        %1266 = vmatprep.subr.bf16.mxu0 0
        %1267 = vmatpush1.bf16.xpose.msra.mxu0 0
        %1268 = vmatprep.subr.bf16.mxu0 0
        %1269 = vmatpush1.bf16.xpose.msra.mxu0 0
        %1270 = vmatprep.subr.bf16.mxu0 0
        %1271 = vmatpush1.bf16.xpose.msra.mxu0 0
        %1272 = vmatprep.mubr.bf16.mxu0 0
        %1273 = vmatmul.mubr.bf16.gmra.mrb[0].mxu0 %v1235
        %v1274 = vpop.f32.mrb[0].mxu0
        %v1275 = vadd.f32 %v532, %v1274
        %v1276 = vpop.f32.mrb[0].mxu0
        %v1277 = vpop.f32.mrb[0].mxu0
        %v1278 = vadd.f32 %v533, %v1277
        %v1279 = vpop.f32.mrb[0].mxu0
        %1280 = vdwg.mxu0
        %vm1281 = vcmask 130048
        %v1282 = vsel %vm1281, %v1179, -inf
        %1283 = vmax.xlane.f32.xlu0 %v1282
        %v1284 = vpop.xlane.xlu0 %1283
        %v1285 = vsel %vm1281, %v1182, -inf
        %1286 = vmax.xlane.f32.xlu0 %v1285
        %v1287 = vpop.xlane.xlu0 %1286
        %v1288 = vsel %vm1281, %v1228, -inf
        %1289 = vmax.xlane.f32.xlu0 %v1288
        %v1290 = vpop.xlane.xlu0 %1289
        %v1291 = vsel %vm1281, %v1231, -inf
        %1292 = vmax.xlane.f32.xlu0 %v1291
        %v1293 = vpop.xlane.xlu0 %1292
        %v1294 = vsel %vm1281, %v1275, -inf
        %1295 = vmax.xlane.f32.xlu0 %v1294
        %v1296 = vpop.xlane.xlu0 %1295
        %v1297 = vsel %vm1281, %v1278, -inf
        %1298 = vmax.xlane.f32.xlu0 %v1297
        %v1299 = vpop.xlane.xlu0 %1298
        %v1300 = vsub.f32 %v1179, %v1284
        %v1301 = vsub.f32 %v1182, %v1287
        %v1302 = vsub.f32 %v1228, %v1290
        %v1303 = vsub.f32 %v1231, %v1293
        %v1304 = vsub.f32 %v1275, %v1296
        %v1305 = vsub.f32 %v1278, %v1299
        %v1306 = vmul.f32 %v1300, 1.442695
        %v1307 = vpow.pop %v1306
        %v1308 = vmul.f32 %v1301, 1.442695
        %v1309 = vpow.pop %v1308
        %v1310 = vmul.f32 %v1302, 1.442695
        %v1311 = vpow.pop %v1310
        %v1312 = vmul.f32 %v1303, 1.442695
        %v1313 = vpow.pop %v1312
        %v1314 = vmul.f32 %v1304, 1.442695
        %v1315 = vpow.pop %v1314
        %v1316 = vmul.f32 %v1305, 1.442695
        %v1317 = vpow.pop %v1316
        %v1318 = vsel %vm1281, %v1307, 0.0
        %1319 = vadd.xlane.f32.xlu0 %v1318
        %v1320 = vpop.xlane.xlu0 %1319
        %v1321 = vsel %vm1281, %v1309, 0.0
        %1322 = vadd.xlane.f32.xlu0 %v1321
        %v1323 = vpop.xlane.xlu0 %1322
        %v1324 = vsel %vm1281, %v1311, 0.0
        %1325 = vadd.xlane.f32.xlu0 %v1324
        %v1326 = vpop.xlane.xlu0 %1325
        %v1327 = vsel %vm1281, %v1313, 0.0
        %1328 = vadd.xlane.f32.xlu0 %v1327
        %v1329 = vpop.xlane.xlu0 %1328
        %v1330 = vsel %vm1281, %v1315, 0.0
        %1331 = vadd.xlane.f32.xlu0 %v1330
        %v1332 = vpop.xlane.xlu0 %1331
        %v1333 = vsel %vm1281, %v1317, 0.0
        %1334 = vadd.xlane.f32.xlu0 %v1333
        %v1335 = vpop.xlane.xlu0 %1334
        %v1336 = vrcp.pop %v1320
        %v1337 = vrcp.pop %v1323
        %v1338 = vrcp.pop %v1326
        %v1339 = vrcp.pop %v1329
        %v1340 = vrcp.pop %v1332
        %v1341 = vrcp.pop %v1335
        %v1342 = vmul.f32 %v1307, %v1336
        %v1343 = vmul.f32 %v1309, %v1337
        %v1344 = vmul.f32 %v1311, %v1338
        %v1345 = vmul.f32 %v1313, %v1339
        %v1346 = vmul.f32 %v1315, %v1340
        %v1347 = vmul.f32 %v1317, %v1341
        %v1348 = vpack.c.bf16 %v1343, %v1342
        %v1349 = vpack.c.bf16 %v1345, %v1344
        %v1350 = vpack.c.bf16 %v1347, %v1346
        %v1352 = vsel %vm1281, %v1348, 0
        %1354 = vmatprep.subr.bf16.mxu0 0
        %1355 = vmatpush1.bf16.msra.mxu0 %v1123
        %1356 = vmatprep.subr.bf16.mxu0 0
        %1357 = vmatpush1.bf16.msra.mxu0 0
        %1358 = vmatprep.subr.bf16.mxu0 0
        %1359 = vmatpush1.bf16.msra.mxu0 0
        %1360 = vmatprep.subr.bf16.mxu0 0
        %1361 = vmatpush1.bf16.msra.mxu0 0
        %1362 = vmatprep.subr.bf16.mxu0 0
        %1363 = vmatpush1.bf16.msra.mxu0 0
        %1364 = vmatprep.subr.bf16.mxu0 0
        %1365 = vmatpush1.bf16.msra.mxu0 0
        %1366 = vmatprep.subr.bf16.mxu0 0
        %1367 = vmatpush1.bf16.msra.mxu0 0
        %1368 = vmatprep.subr.bf16.mxu0 0
        %1369 = vmatpush1.bf16.msra.mxu0 0
        %1370 = vmatprep.subr.bf16.mxu0 0
        %1371 = vmatpush1.bf16.msra.mxu0 0
        %1372 = vmatprep.subr.bf16.mxu0 0
        %1373 = vmatpush1.bf16.msra.mxu0 0
        %1374 = vmatprep.subr.bf16.mxu0 0
        %1375 = vmatpush1.bf16.msra.mxu0 0
        %1376 = vmatprep.subr.bf16.mxu0 0
        %1377 = vmatpush1.bf16.msra.mxu0 0
        %1378 = vmatprep.subr.bf16.mxu0 0
        %1379 = vmatpush1.bf16.msra.mxu0 0
        %1380 = vmatprep.subr.bf16.mxu0 0
        %1381 = vmatpush1.bf16.msra.mxu0 0
        %1382 = vmatprep.subr.bf16.mxu0 0
        %1383 = vmatpush1.bf16.msra.mxu0 0
        %1384 = vmatprep.subr.bf16.mxu0 0
        %1385 = vmatpush1.bf16.msra.mxu0 0
        %1386 = vmatprep.mubr.bf16.mxu0 0
        %1387 = vmatmul.mubr.bf16.gmra.mrb[0].mxu0 %v1352
        %v1388 = vpop.f32.mrb[0].mxu0
        %v1389 = vadd.f32 0.0, %v1388
        %v1390 = vpop.f32.mrb[0].mxu0
        %v1391 = vpop.f32.mrb[0].mxu0
        %v1392 = vadd.f32 0.0, %v1391
        %v1393 = vpop.f32.mrb[0].mxu0
        %1394 = vdwg.mxu0
        %v1396 = vsel %vm1281, %v1349, 0
        %1398 = vmatprep.subr.bf16.mxu0 0
        %1399 = vmatpush1.bf16.msra.mxu0 %v1133
        %1400 = vmatprep.subr.bf16.mxu0 0
        %1401 = vmatpush1.bf16.msra.mxu0 0
        %1402 = vmatprep.subr.bf16.mxu0 0
        %1403 = vmatpush1.bf16.msra.mxu0 0
        %1404 = vmatprep.subr.bf16.mxu0 0
        %1405 = vmatpush1.bf16.msra.mxu0 0
        %1406 = vmatprep.subr.bf16.mxu0 0
        %1407 = vmatpush1.bf16.msra.mxu0 0
        %1408 = vmatprep.subr.bf16.mxu0 0
        %1409 = vmatpush1.bf16.msra.mxu0 0
        %1410 = vmatprep.subr.bf16.mxu0 0
        %1411 = vmatpush1.bf16.msra.mxu0 0
        %1412 = vmatprep.subr.bf16.mxu0 0
        %1413 = vmatpush1.bf16.msra.mxu0 0
        %1414 = vmatprep.subr.bf16.mxu0 0
        %1415 = vmatpush1.bf16.msra.mxu0 0
        %1416 = vmatprep.subr.bf16.mxu0 0
        %1417 = vmatpush1.bf16.msra.mxu0 0
        %1418 = vmatprep.subr.bf16.mxu0 0
        %1419 = vmatpush1.bf16.msra.mxu0 0
        %1420 = vmatprep.subr.bf16.mxu0 0
        %1421 = vmatpush1.bf16.msra.mxu0 0
        %1422 = vmatprep.subr.bf16.mxu0 0
        %1423 = vmatpush1.bf16.msra.mxu0 0
        %1424 = vmatprep.subr.bf16.mxu0 0
        %1425 = vmatpush1.bf16.msra.mxu0 0
        %1426 = vmatprep.subr.bf16.mxu0 0
        %1427 = vmatpush1.bf16.msra.mxu0 0
        %1428 = vmatprep.subr.bf16.mxu0 0
        %1429 = vmatpush1.bf16.msra.mxu0 0
        %1430 = vmatprep.mubr.bf16.mxu0 0
        %1431 = vmatmul.mubr.bf16.gmra.mrb[0].mxu0 %v1396
        %v1432 = vpop.f32.mrb[0].mxu0
        %v1433 = vadd.f32 0.0, %v1432
        %v1434 = vpop.f32.mrb[0].mxu0
        %v1435 = vpop.f32.mrb[0].mxu0
        %v1436 = vadd.f32 0.0, %v1435
        %v1437 = vpop.f32.mrb[0].mxu0
        %1438 = vdwg.mxu0
        %v1440 = vsel %vm1281, %v1350, 0
        %1442 = vmatprep.subr.bf16.mxu0 0
        %1443 = vmatpush1.bf16.msra.mxu0 %v1124
        %1444 = vmatprep.subr.bf16.mxu0 0
        %1445 = vmatpush1.bf16.msra.mxu0 0
        %1446 = vmatprep.subr.bf16.mxu0 0
        %1447 = vmatpush1.bf16.msra.mxu0 0
        %1448 = vmatprep.subr.bf16.mxu0 0
        %1449 = vmatpush1.bf16.msra.mxu0 0
        %1450 = vmatprep.subr.bf16.mxu0 0
        %1451 = vmatpush1.bf16.msra.mxu0 0
        %1452 = vmatprep.subr.bf16.mxu0 0
        %1453 = vmatpush1.bf16.msra.mxu0 0
        %1454 = vmatprep.subr.bf16.mxu0 0
        %1455 = vmatpush1.bf16.msra.mxu0 0
        %1456 = vmatprep.subr.bf16.mxu0 0
        %1457 = vmatpush1.bf16.msra.mxu0 0
        %1458 = vmatprep.subr.bf16.mxu0 0
        %1459 = vmatpush1.bf16.msra.mxu0 0
        %1460 = vmatprep.subr.bf16.mxu0 0
        %1461 = vmatpush1.bf16.msra.mxu0 0
        %1462 = vmatprep.subr.bf16.mxu0 0
        %1463 = vmatpush1.bf16.msra.mxu0 0
        %1464 = vmatprep.subr.bf16.mxu0 0
        %1465 = vmatpush1.bf16.msra.mxu0 0
        %1466 = vmatprep.subr.bf16.mxu0 0
        %1467 = vmatpush1.bf16.msra.mxu0 0
        %1468 = vmatprep.subr.bf16.mxu0 0
        %1469 = vmatpush1.bf16.msra.mxu0 0
        %1470 = vmatprep.subr.bf16.mxu0 0
        %1471 = vmatpush1.bf16.msra.mxu0 0
        %1472 = vmatprep.subr.bf16.mxu0 0
        %1473 = vmatpush1.bf16.msra.mxu0 0
        %1474 = vmatprep.mubr.bf16.mxu0 0
        %1475 = vmatmul.mubr.bf16.gmra.mrb[0].mxu0 %v1440
        %v1476 = vpop.f32.mrb[0].mxu0
        %v1477 = vadd.f32 0.0, %v1476
        %v1478 = vpop.f32.mrb[0].mxu0
        %v1479 = vpop.f32.mrb[0].mxu0
        %v1480 = vadd.f32 0.0, %v1479
        %v1481 = vpop.f32.mrb[0].mxu0
        %1482 = vdwg.mxu0
        %v1483 = vpack.c.bf16 %v1392, %v1389
        %v1484 = vpack.c.bf16 %v1436, %v1433
        %v1485 = vpack.c.bf16 %v1480, %v1477
        %1487 = vrot.lane.b32.xlu0 %v1484, 64
        %v1488 = vpop.permute.xlu0 %1487
        %v1491 = vsel %vm536, %v1483, %v1488
        %v1493 = vld [vmem:[%s4] sm:$0xff]
        %v1494 = vld [vmem:[%s4 + $0x8] sm:$0xff]
        %v1495 = vld [vmem:[%s4 + $0x10] sm:$0xff]
        %v1496 = vld [vmem:[%s4 + $0x18] sm:$0xff]
        %v1497 = vld [vmem:[%s4 + $0x20] sm:$0xff]
        %v1498 = vld [vmem:[%s4 + $0x28] sm:$0xff]
        %v1499 = vld [vmem:[%s4 + $0x30] sm:$0xff]
        %v1500 = vld [vmem:[%s4 + $0x38] sm:$0xff]
        %v1501 = vld [vmem:[%s4 + $0x40] sm:$0xff]
        %v1502 = vld [vmem:[%s4 + $0x48] sm:$0xff]
        %v1503 = vld [vmem:[%s4 + $0x50] sm:$0xff]
        %v1504 = vld [vmem:[%s4 + $0x58] sm:$0xff]
        %v1505 = vld [vmem:[%s4 + $0x60] sm:$0xff]
        %v1506 = vld [vmem:[%s4 + $0x68] sm:$0xff]
        %v1507 = vld [vmem:[%s4 + $0x70] sm:$0xff]
        %v1508 = vld [vmem:[%s4 + $0x78] sm:$0xff]
        %v1509 = vld [vmem:[%s4 + $0x80] sm:$0xff]
        %v1510 = vld [vmem:[%s4 + $0x88] sm:$0xff]
        %v1511 = vld [vmem:[%s4 + $0x90] sm:$0xff]
        %v1512 = vld [vmem:[%s4 + $0x98] sm:$0xff]
        %v1513 = vld [vmem:[%s4 + $0xa0] sm:$0xff]
        %v1514 = vld [vmem:[%s4 + $0xa8] sm:$0xff]
        %v1515 = vld [vmem:[%s4 + $0xb0] sm:$0xff]
        %v1516 = vld [vmem:[%s4 + $0xb8] sm:$0xff]
        %v1517 = vld [vmem:[%s5] sm:$0x3]
        %v1519 = vlaneseq
        %v1520 = vshrl.u32 %v1519, 7
        %v1521 = vsub.s32 0, %v1520
        %v1522 = vrot.slane %v1517, %v1521
        %v1523 = vlaneseq
        %v1524 = vshrl.u32 %v1523, 7
        %v1525 = vsub.s32 1, %v1524
        %v1526 = vrot.slane %v1517, %v1525
        %v1553 = vunpack.c.l.b16 %v1493
        %v1554 = vunpack.c.h.b16 %v1493
        %v1555 = vunpack.c.l.b16 %v1494
        %v1556 = vunpack.c.h.b16 %v1494
        %v1557 = vunpack.c.l.b16 %v1495
        %v1558 = vunpack.c.h.b16 %v1495
        %v1559 = vunpack.c.l.b16 %v1496
        %v1560 = vunpack.c.h.b16 %v1496
        %v1561 = vunpack.c.l.b16 %v1497
        %v1562 = vunpack.c.h.b16 %v1497
        %v1563 = vunpack.c.l.b16 %v1498
        %v1564 = vunpack.c.h.b16 %v1498
        %v1565 = vunpack.c.l.b16 %v1499
        %v1566 = vunpack.c.h.b16 %v1499
        %v1567 = vunpack.c.l.b16 %v1500
        %v1568 = vunpack.c.h.b16 %v1500
        %v1569 = vunpack.c.l.b16 %v1501
        %v1570 = vunpack.c.h.b16 %v1501
        %v1571 = vunpack.c.l.b16 %v1502
        %v1572 = vunpack.c.h.b16 %v1502
        %v1573 = vunpack.c.l.b16 %v1503
        %v1574 = vunpack.c.h.b16 %v1503
        %v1575 = vunpack.c.l.b16 %v1504
        %v1576 = vunpack.c.h.b16 %v1504
        %v1577 = vunpack.c.l.b16 %v1505
        %v1578 = vunpack.c.h.b16 %v1505
        %v1579 = vunpack.c.l.b16 %v1506
        %v1580 = vunpack.c.h.b16 %v1506
        %v1581 = vunpack.c.l.b16 %v1507
        %v1582 = vunpack.c.h.b16 %v1507
        %v1583 = vunpack.c.l.b16 %v1508
        %v1584 = vunpack.c.h.b16 %v1508
        %v1585 = vunpack.c.l.b16 %v1509
        %v1586 = vunpack.c.h.b16 %v1509
        %v1587 = vunpack.c.l.b16 %v1510
        %v1588 = vunpack.c.h.b16 %v1510
        %v1589 = vunpack.c.l.b16 %v1511
        %v1590 = vunpack.c.h.b16 %v1511
        %v1591 = vunpack.c.l.b16 %v1512
        %v1592 = vunpack.c.h.b16 %v1512
        %v1593 = vunpack.c.l.b16 %v1513
        %v1594 = vunpack.c.h.b16 %v1513
        %v1595 = vunpack.c.l.b16 %v1514
        %v1596 = vunpack.c.h.b16 %v1514
        %v1597 = vunpack.c.l.b16 %v1515
        %v1598 = vunpack.c.h.b16 %v1515
        %v1599 = vunpack.c.l.b16 %v1516
        %v1600 = vunpack.c.h.b16 %v1516
        %v1601 = vpack.c.b16 %v1555, %v1553
        %v1602 = vpack.c.b16 %v1556, %v1554
        %v1603 = vpack.c.b16 %v1559, %v1557
        %v1604 = vpack.c.b16 %v1560, %v1558
        %v1605 = vpack.c.b16 %v1563, %v1561
        %v1606 = vpack.c.b16 %v1564, %v1562
        %v1607 = vpack.c.b16 %v1567, %v1565
        %v1608 = vpack.c.b16 %v1568, %v1566
        %v1609 = vpack.c.b16 %v1571, %v1569
        %v1610 = vpack.c.b16 %v1572, %v1570
        %v1611 = vpack.c.b16 %v1575, %v1573
        %v1612 = vpack.c.b16 %v1576, %v1574
        %v1613 = vpack.c.b16 %v1579, %v1577
        %v1614 = vpack.c.b16 %v1580, %v1578
        %v1615 = vpack.c.b16 %v1583, %v1581
        %v1616 = vpack.c.b16 %v1584, %v1582
        %v1617 = vpack.c.b16 %v1587, %v1585
        %v1618 = vpack.c.b16 %v1588, %v1586
        %v1619 = vpack.c.b16 %v1591, %v1589
        %v1620 = vpack.c.b16 %v1592, %v1590
        %v1621 = vpack.c.b16 %v1595, %v1593
        %v1622 = vpack.c.b16 %v1596, %v1594
        %v1623 = vpack.c.b16 %v1599, %v1597
        %v1624 = vpack.c.b16 %v1600, %v1598
        %v1650 = vsel %vm536, %v1485, 0
        %1652 = vmatprep.subr.bf16.mxu0 %v1602
        %1653 = vmatpush1.bf16.msra.mxu0 %v1601
        %1654 = vmatprep.subr.bf16.mxu0 %v1604
        %1655 = vmatpush1.bf16.msra.mxu0 %v1603
        %1656 = vmatprep.subr.bf16.mxu0 %v1606
        %1657 = vmatpush1.bf16.msra.mxu0 %v1605
        %1658 = vmatprep.subr.bf16.mxu0 %v1608
        %1659 = vmatpush1.bf16.msra.mxu0 %v1607
        %1660 = vmatprep.subr.bf16.mxu0 %v1610
        %1661 = vmatpush1.bf16.msra.mxu0 %v1609
        %1662 = vmatprep.subr.bf16.mxu0 %v1612
        %1663 = vmatpush1.bf16.msra.mxu0 %v1611
        %1664 = vmatprep.subr.bf16.mxu0 %v1614
        %1665 = vmatpush1.bf16.msra.mxu0 %v1613
        %1666 = vmatprep.subr.bf16.mxu0 %v1616
        %1667 = vmatpush1.bf16.msra.mxu0 %v1615
        %1668 = vmatprep.subr.bf16.mxu0 %v1618
        %1669 = vmatpush1.bf16.msra.mxu0 %v1617
        %1670 = vmatprep.subr.bf16.mxu0 %v1620
        %1671 = vmatpush1.bf16.msra.mxu0 %v1619
        %1672 = vmatprep.subr.bf16.mxu0 %v1622
        %1673 = vmatpush1.bf16.msra.mxu0 %v1621
        %1674 = vmatprep.subr.bf16.mxu0 %v1624
        %1675 = vmatpush1.bf16.msra.mxu0 %v1623
        %1676 = vmatprep.subr.bf16.mxu0 0
        %1677 = vmatpush1.bf16.msra.mxu0 0
        %1678 = vmatprep.subr.bf16.mxu0 0
        %1679 = vmatpush1.bf16.msra.mxu0 0
        %1680 = vmatprep.subr.bf16.mxu0 0
        %1681 = vmatpush1.bf16.msra.mxu0 0
        %1682 = vmatprep.subr.bf16.mxu0 0
        %1683 = vmatpush1.bf16.msra.mxu0 0
        %1684 = vmatprep.mubr.bf16.mxu0 %v1650
        %1685 = vmatmul.mubr.bf16.gmra.mrb[0].mxu0 %v1491
        %v1686 = vpop.f32.mrb[0].mxu0
        %v1687 = vadd.f32 %v1522, %v1686
        %v1688 = vpop.f32.mrb[0].mxu0
        %v1689 = vadd.f32 %v1526, %v1688
        %v1690 = vpop.f32.mrb[0].mxu0
        %v1691 = vadd.f32 %v1522, %v1690
        %v1692 = vpop.f32.mrb[0].mxu0
        %v1693 = vadd.f32 %v1526, %v1692
        %1694 = vdwg.mxu0
        %v1695 = vadd.f32 %v521, %v1687
        %v1696 = vadd.f32 %v522, %v1689
        %v1697 = vadd.f32 %v523, %v1691
        %v1698 = vadd.f32 %v524, %v1693
        %v1699 = vld [vmem:[%s6] sm:$0x3]
        %v1700 = vld [vmem:[%s7] sm:$0x3]
        %v1701 = vsel %vm536, %v1696, 0.0
        %v1702 = vadd.f32 %v1695, %v1701
        %1703 = vadd.xlane.f32.xlu0 %v1702
        %v1704 = vpop.xlane.xlu0 %1703
        %v1705 = vsel %vm536, %v1698, 0.0
        %v1706 = vadd.f32 %v1697, %v1705
        %1707 = vadd.xlane.f32.xlu0 %v1706
        %v1708 = vpop.xlane.xlu0 %1707
        %v1709 = vmul.f32 %v1704, %v545
        %v1710 = vmul.f32 %v1708, %v545
        %v1711 = vsub.f32 %v1695, %v1709
        %v1712 = vsub.f32 %v1696, %v1709
        %v1713 = vsub.f32 %v1697, %v1710
        %v1714 = vsub.f32 %v1698, %v1710
        %v1715 = vmul.f32 %v1711, %v1711
        %v1716 = vmul.f32 %v1712, %v1712
        %v1717 = vmul.f32 %v1713, %v1713
        %v1718 = vmul.f32 %v1714, %v1714
        %v1719 = vsel %vm536, %v1716, 0.0
        %v1720 = vadd.f32 %v1715, %v1719
        %1721 = vadd.xlane.f32.xlu0 %v1720
        %v1722 = vpop.xlane.xlu0 %1721
        %v1723 = vsel %vm536, %v1718, 0.0
        %v1724 = vadd.f32 %v1717, %v1723
        %1725 = vadd.xlane.f32.xlu0 %v1724
        %v1726 = vpop.xlane.xlu0 %1725
        %v1727 = vmul.f32 %v1722, %v545
        %v1728 = vmul.f32 %v1726, %v545
        %v1729 = vadd.f32 %v1727, 1e-05
        %v1730 = vadd.f32 %v1728, 1e-05
        %v1731 = vrsqrt.pop %v1729
        %v1732 = vrsqrt.pop %v1730
        %v1733 = vmul.f32 %v1711, %v1731
        %v1734 = vmul.f32 %v1712, %v1731
        %v1735 = vmul.f32 %v1713, %v1732
        %v1736 = vmul.f32 %v1714, %v1732
        %v1738 = vlaneseq
        %v1739 = vshrl.u32 %v1738, 7
        %v1740 = vsub.s32 0, %v1739
        %v1741 = vrot.slane %v1699, %v1740
        %v1742 = vlaneseq
        %v1743 = vshrl.u32 %v1742, 7
        %v1744 = vsub.s32 1, %v1743
        %v1745 = vrot.slane %v1699, %v1744
        %v1748 = vmul.f32 %v1733, %v1741
        %v1749 = vmul.f32 %v1734, %v1745
        %v1750 = vmul.f32 %v1735, %v1741
        %v1751 = vmul.f32 %v1736, %v1745
        %v1753 = vlaneseq
        %v1754 = vshrl.u32 %v1753, 7
        %v1755 = vsub.s32 0, %v1754
        %v1756 = vrot.slane %v1700, %v1755
        %v1757 = vlaneseq
        %v1758 = vshrl.u32 %v1757, 7
        %v1759 = vsub.s32 1, %v1758
        %v1760 = vrot.slane %v1700, %v1759
        %v1763 = vadd.f32 %v1748, %v1756
        %v1764 = vadd.f32 %v1749, %v1760
        %v1765 = vadd.f32 %v1750, %v1756
        %v1766 = vadd.f32 %v1751, %v1760
        %v1767 = vpack.c.bf16 %v1765, %v1763
        %v1768 = vpack.c.bf16 %v1766, %v1764
        %v1769 = vld [vmem:[%s8] sm:$0xff]
        %v1770 = vld [vmem:[%s8 + $0x8] sm:$0xff]
        %v1771 = vld [vmem:[%s8 + $0x10] sm:$0xff]
        %v1772 = vld [vmem:[%s8 + $0x18] sm:$0xff]
        %v1773 = vld [vmem:[%s8 + $0x20] sm:$0xff]
        %v1774 = vld [vmem:[%s8 + $0x28] sm:$0xff]
        %v1775 = vld [vmem:[%s8 + $0x30] sm:$0xff]
        %v1776 = vld [vmem:[%s8 + $0x38] sm:$0xff]
        %v1777 = vld [vmem:[%s8 + $0x40] sm:$0xff]
        %v1778 = vld [vmem:[%s8 + $0x48] sm:$0xff]
        %v1779 = vld [vmem:[%s8 + $0x50] sm:$0xff]
        %v1780 = vld [vmem:[%s8 + $0x58] sm:$0xff]
        %v1781 = vld [vmem:[%s8 + $0x60] sm:$0xff]
        %v1782 = vld [vmem:[%s8 + $0x68] sm:$0xff]
        %v1783 = vld [vmem:[%s8 + $0x70] sm:$0xff]
        %v1784 = vld [vmem:[%s8 + $0x78] sm:$0xff]
        %v1785 = vld [vmem:[%s8 + $0x80] sm:$0xff]
        %v1786 = vld [vmem:[%s8 + $0x88] sm:$0xff]
        %v1787 = vld [vmem:[%s8 + $0x90] sm:$0xff]
        %v1788 = vld [vmem:[%s8 + $0x98] sm:$0xff]
        %v1789 = vld [vmem:[%s8 + $0xa0] sm:$0xff]
        %v1790 = vld [vmem:[%s8 + $0xa8] sm:$0xff]
        %v1791 = vld [vmem:[%s8 + $0xb0] sm:$0xff]
        %v1792 = vld [vmem:[%s8 + $0xb8] sm:$0xff]
        %v1793 = vld [vmem:[%s8 + $0xc0] sm:$0xff]
        %v1794 = vld [vmem:[%s8 + $0xc8] sm:$0xff]
        %v1795 = vld [vmem:[%s8 + $0xd0] sm:$0xff]
        %v1796 = vld [vmem:[%s8 + $0xd8] sm:$0xff]
        %v1797 = vld [vmem:[%s8 + $0xe0] sm:$0xff]
        %v1798 = vld [vmem:[%s8 + $0xe8] sm:$0xff]
        %v1799 = vld [vmem:[%s8 + $0xf0] sm:$0xff]
        %v1800 = vld [vmem:[%s8 + $0xf8] sm:$0xff]
        %v1801 = vld [vmem:[%s8 + $0x100] sm:$0xff]
        %v1802 = vld [vmem:[%s8 + $0x108] sm:$0xff]
        %v1803 = vld [vmem:[%s8 + $0x110] sm:$0xff]
        %v1804 = vld [vmem:[%s8 + $0x118] sm:$0xff]
        %v1805 = vld [vmem:[%s8 + $0x120] sm:$0xff]
        %v1806 = vld [vmem:[%s8 + $0x128] sm:$0xff]
        %v1807 = vld [vmem:[%s8 + $0x130] sm:$0xff]
        %v1808 = vld [vmem:[%s8 + $0x138] sm:$0xff]
        %v1809 = vld [vmem:[%s8 + $0x140] sm:$0xff]
        %v1810 = vld [vmem:[%s8 + $0x148] sm:$0xff]
        %v1811 = vld [vmem:[%s8 + $0x150] sm:$0xff]
        %v1812 = vld [vmem:[%s8 + $0x158] sm:$0xff]
        %v1813 = vld [vmem:[%s8 + $0x160] sm:$0xff]
        %v1814 = vld [vmem:[%s8 + $0x168] sm:$0xff]
        %v1815 = vld [vmem:[%s8 + $0x170] sm:$0xff]
        %v1816 = vld [vmem:[%s8 + $0x178] sm:$0xff]
        %v1817 = vld [vmem:[%s8 + $0x180] sm:$0xff]
        %v1818 = vld [vmem:[%s8 + $0x188] sm:$0xff]
        %v1819 = vld [vmem:[%s8 + $0x190] sm:$0xff]
        %v1820 = vld [vmem:[%s8 + $0x198] sm:$0xff]
        %v1821 = vld [vmem:[%s8 + $0x1a0] sm:$0xff]
        %v1822 = vld [vmem:[%s8 + $0x1a8] sm:$0xff]
        %v1823 = vld [vmem:[%s8 + $0x1b0] sm:$0xff]
        %v1824 = vld [vmem:[%s8 + $0x1b8] sm:$0xff]
        %v1825 = vld [vmem:[%s8 + $0x1c0] sm:$0xff]
        %v1826 = vld [vmem:[%s8 + $0x1c8] sm:$0xff]
        %v1827 = vld [vmem:[%s8 + $0x1d0] sm:$0xff]
        %v1828 = vld [vmem:[%s8 + $0x1d8] sm:$0xff]
        %v1829 = vld [vmem:[%s8 + $0x1e0] sm:$0xff]
        %v1830 = vld [vmem:[%s8 + $0x1e8] sm:$0xff]
        %v1831 = vld [vmem:[%s8 + $0x1f0] sm:$0xff]
        %v1832 = vld [vmem:[%s8 + $0x1f8] sm:$0xff]
        %v1833 = vld [vmem:[%s8 + $0x200] sm:$0xff]
        %v1834 = vld [vmem:[%s8 + $0x208] sm:$0xff]
        %v1835 = vld [vmem:[%s8 + $0x210] sm:$0xff]
        %v1836 = vld [vmem:[%s8 + $0x218] sm:$0xff]
        %v1837 = vld [vmem:[%s8 + $0x220] sm:$0xff]
        %v1838 = vld [vmem:[%s8 + $0x228] sm:$0xff]
        %v1839 = vld [vmem:[%s8 + $0x230] sm:$0xff]
        %v1840 = vld [vmem:[%s8 + $0x238] sm:$0xff]
        %v1841 = vld [vmem:[%s9] sm:$0x3f]
        %v1843 = vlaneseq
        %v1844 = vshrl.u32 %v1843, 7
        %v1845 = vsub.s32 0, %v1844
        %v1846 = vrot.slane %v1841, %v1845
        %v1847 = vlaneseq
        %v1848 = vshrl.u32 %v1847, 7
        %v1849 = vsub.s32 1, %v1848
        %v1850 = vrot.slane %v1841, %v1849
        %v1851 = vlaneseq
        %v1852 = vshrl.u32 %v1851, 7
        %v1853 = vsub.s32 2, %v1852
        %v1854 = vrot.slane %v1841, %v1853
        %v1855 = vlaneseq
        %v1856 = vshrl.u32 %v1855, 7
        %v1857 = vsub.s32 3, %v1856
        %v1858 = vrot.slane %v1841, %v1857
        %v1859 = vlaneseq
        %v1860 = vshrl.u32 %v1859, 7
        %v1861 = vsub.s32 4, %v1860
        %v1862 = vrot.slane %v1841, %v1861
        %v1863 = vlaneseq
        %v1864 = vshrl.u32 %v1863, 7
        %v1865 = vsub.s32 5, %v1864
        %v1866 = vrot.slane %v1841, %v1865
        %v1945 = vunpack.c.l.b16 %v1769
        %v1946 = vunpack.c.h.b16 %v1769
        %v1947 = vunpack.c.l.b16 %v1770
        %v1948 = vunpack.c.h.b16 %v1770
        %v1949 = vunpack.c.l.b16 %v1771
        %v1950 = vunpack.c.h.b16 %v1771
        %v1951 = vunpack.c.l.b16 %v1772
        %v1952 = vunpack.c.h.b16 %v1772
        %v1953 = vunpack.c.l.b16 %v1773
        %v1954 = vunpack.c.h.b16 %v1773
        %v1955 = vunpack.c.l.b16 %v1774
        %v1956 = vunpack.c.h.b16 %v1774
        %v1957 = vunpack.c.l.b16 %v1775
        %v1958 = vunpack.c.h.b16 %v1775
        %v1959 = vunpack.c.l.b16 %v1776
        %v1960 = vunpack.c.h.b16 %v1776
        %v1961 = vunpack.c.l.b16 %v1777
        %v1962 = vunpack.c.h.b16 %v1777
        %v1963 = vunpack.c.l.b16 %v1778
        %v1964 = vunpack.c.h.b16 %v1778
        %v1965 = vunpack.c.l.b16 %v1779
        %v1966 = vunpack.c.h.b16 %v1779
        %v1967 = vunpack.c.l.b16 %v1780
        %v1968 = vunpack.c.h.b16 %v1780
        %v1969 = vunpack.c.l.b16 %v1781
        %v1970 = vunpack.c.h.b16 %v1781
        %v1971 = vunpack.c.l.b16 %v1782
        %v1972 = vunpack.c.h.b16 %v1782
        %v1973 = vunpack.c.l.b16 %v1783
        %v1974 = vunpack.c.h.b16 %v1783
        %v1975 = vunpack.c.l.b16 %v1784
        %v1976 = vunpack.c.h.b16 %v1784
        %v1977 = vunpack.c.l.b16 %v1785
        %v1978 = vunpack.c.h.b16 %v1785
        %v1979 = vunpack.c.l.b16 %v1786
        %v1980 = vunpack.c.h.b16 %v1786
        %v1981 = vunpack.c.l.b16 %v1787
        %v1982 = vunpack.c.h.b16 %v1787
        %v1983 = vunpack.c.l.b16 %v1788
        %v1984 = vunpack.c.h.b16 %v1788
        %v1985 = vunpack.c.l.b16 %v1789
        %v1986 = vunpack.c.h.b16 %v1789
        %v1987 = vunpack.c.l.b16 %v1790
        %v1988 = vunpack.c.h.b16 %v1790
        %v1989 = vunpack.c.l.b16 %v1791
        %v1990 = vunpack.c.h.b16 %v1791
        %v1991 = vunpack.c.l.b16 %v1792
        %v1992 = vunpack.c.h.b16 %v1792
        %v1993 = vunpack.c.l.b16 %v1793
        %v1994 = vunpack.c.h.b16 %v1793
        %v1995 = vunpack.c.l.b16 %v1794
        %v1996 = vunpack.c.h.b16 %v1794
        %v1997 = vunpack.c.l.b16 %v1795
        %v1998 = vunpack.c.h.b16 %v1795
        %v1999 = vunpack.c.l.b16 %v1796
        %v2000 = vunpack.c.h.b16 %v1796
        %v2001 = vunpack.c.l.b16 %v1797
        %v2002 = vunpack.c.h.b16 %v1797
        %v2003 = vunpack.c.l.b16 %v1798
        %v2004 = vunpack.c.h.b16 %v1798
        %v2005 = vunpack.c.l.b16 %v1799
        %v2006 = vunpack.c.h.b16 %v1799
        %v2007 = vunpack.c.l.b16 %v1800
        %v2008 = vunpack.c.h.b16 %v1800
        %v2009 = vunpack.c.l.b16 %v1801
        %v2010 = vunpack.c.h.b16 %v1801
        %v2011 = vunpack.c.l.b16 %v1802
        %v2012 = vunpack.c.h.b16 %v1802
        %v2013 = vunpack.c.l.b16 %v1803
        %v2014 = vunpack.c.h.b16 %v1803
        %v2015 = vunpack.c.l.b16 %v1804
        %v2016 = vunpack.c.h.b16 %v1804
        %v2017 = vunpack.c.l.b16 %v1805
        %v2018 = vunpack.c.h.b16 %v1805
        %v2019 = vunpack.c.l.b16 %v1806
        %v2020 = vunpack.c.h.b16 %v1806
        %v2021 = vunpack.c.l.b16 %v1807
        %v2022 = vunpack.c.h.b16 %v1807
        %v2023 = vunpack.c.l.b16 %v1808
        %v2024 = vunpack.c.h.b16 %v1808
        %v2025 = vunpack.c.l.b16 %v1809
        %v2026 = vunpack.c.h.b16 %v1809
        %v2027 = vunpack.c.l.b16 %v1810
        %v2028 = vunpack.c.h.b16 %v1810
        %v2029 = vunpack.c.l.b16 %v1811
        %v2030 = vunpack.c.h.b16 %v1811
        %v2031 = vunpack.c.l.b16 %v1812
        %v2032 = vunpack.c.h.b16 %v1812
        %v2033 = vunpack.c.l.b16 %v1813
        %v2034 = vunpack.c.h.b16 %v1813
        %v2035 = vunpack.c.l.b16 %v1814
        %v2036 = vunpack.c.h.b16 %v1814
        %v2037 = vunpack.c.l.b16 %v1815
        %v2038 = vunpack.c.h.b16 %v1815
        %v2039 = vunpack.c.l.b16 %v1816
        %v2040 = vunpack.c.h.b16 %v1816
        %v2041 = vunpack.c.l.b16 %v1817
        %v2042 = vunpack.c.h.b16 %v1817
        %v2043 = vunpack.c.l.b16 %v1818
        %v2044 = vunpack.c.h.b16 %v1818
        %v2045 = vunpack.c.l.b16 %v1819
        %v2046 = vunpack.c.h.b16 %v1819
        %v2047 = vunpack.c.l.b16 %v1820
        %v2048 = vunpack.c.h.b16 %v1820
        %v2049 = vunpack.c.l.b16 %v1821
        %v2050 = vunpack.c.h.b16 %v1821
        %v2051 = vunpack.c.l.b16 %v1822
        %v2052 = vunpack.c.h.b16 %v1822
        %v2053 = vunpack.c.l.b16 %v1823
        %v2054 = vunpack.c.h.b16 %v1823
        %v2055 = vunpack.c.l.b16 %v1824
        %v2056 = vunpack.c.h.b16 %v1824
        %v2057 = vunpack.c.l.b16 %v1825
        %v2058 = vunpack.c.h.b16 %v1825
        %v2059 = vunpack.c.l.b16 %v1826
        %v2060 = vunpack.c.h.b16 %v1826
        %v2061 = vunpack.c.l.b16 %v1827
        %v2062 = vunpack.c.h.b16 %v1827
        %v2063 = vunpack.c.l.b16 %v1828
        %v2064 = vunpack.c.h.b16 %v1828
        %v2065 = vunpack.c.l.b16 %v1829
        %v2066 = vunpack.c.h.b16 %v1829
        %v2067 = vunpack.c.l.b16 %v1830
        %v2068 = vunpack.c.h.b16 %v1830
        %v2069 = vunpack.c.l.b16 %v1831
        %v2070 = vunpack.c.h.b16 %v1831
        %v2071 = vunpack.c.l.b16 %v1832
        %v2072 = vunpack.c.h.b16 %v1832
        %v2073 = vunpack.c.l.b16 %v1833
        %v2074 = vunpack.c.h.b16 %v1833
        %v2075 = vunpack.c.l.b16 %v1834
        %v2076 = vunpack.c.h.b16 %v1834
        %v2077 = vunpack.c.l.b16 %v1835
        %v2078 = vunpack.c.h.b16 %v1835
        %v2079 = vunpack.c.l.b16 %v1836
        %v2080 = vunpack.c.h.b16 %v1836
        %v2081 = vunpack.c.l.b16 %v1837
        %v2082 = vunpack.c.h.b16 %v1837
        %v2083 = vunpack.c.l.b16 %v1838
        %v2084 = vunpack.c.h.b16 %v1838
        %v2085 = vunpack.c.l.b16 %v1839
        %v2086 = vunpack.c.h.b16 %v1839
        %v2087 = vunpack.c.l.b16 %v1840
        %v2088 = vunpack.c.h.b16 %v1840
        %v2089 = vpack.c.b16 %v1951, %v1945
        %v2090 = vpack.c.b16 %v1952, %v1946
        %v2091 = vpack.c.b16 %v1953, %v1947
        %v2092 = vpack.c.b16 %v1954, %v1948
        %v2093 = vpack.c.b16 %v1955, %v1949
        %v2094 = vpack.c.b16 %v1956, %v1950
        %v2095 = vpack.c.b16 %v1963, %v1957
        %v2096 = vpack.c.b16 %v1964, %v1958
        %v2097 = vpack.c.b16 %v1965, %v1959
        %v2098 = vpack.c.b16 %v1966, %v1960
        %v2099 = vpack.c.b16 %v1967, %v1961
        %v2100 = vpack.c.b16 %v1968, %v1962
        %v2101 = vpack.c.b16 %v1975, %v1969
        %v2102 = vpack.c.b16 %v1976, %v1970
        %v2103 = vpack.c.b16 %v1977, %v1971
        %v2104 = vpack.c.b16 %v1978, %v1972
        %v2105 = vpack.c.b16 %v1979, %v1973
        %v2106 = vpack.c.b16 %v1980, %v1974
        %v2107 = vpack.c.b16 %v1987, %v1981
        %v2108 = vpack.c.b16 %v1988, %v1982
        %v2109 = vpack.c.b16 %v1989, %v1983
        %v2110 = vpack.c.b16 %v1990, %v1984
        %v2111 = vpack.c.b16 %v1991, %v1985
        %v2112 = vpack.c.b16 %v1992, %v1986
        %v2113 = vpack.c.b16 %v1999, %v1993
        %v2114 = vpack.c.b16 %v2000, %v1994
        %v2115 = vpack.c.b16 %v2001, %v1995
        %v2116 = vpack.c.b16 %v2002, %v1996
        %v2117 = vpack.c.b16 %v2003, %v1997
        %v2118 = vpack.c.b16 %v2004, %v1998
        %v2119 = vpack.c.b16 %v2011, %v2005
        %v2120 = vpack.c.b16 %v2012, %v2006
        %v2121 = vpack.c.b16 %v2013, %v2007
        %v2122 = vpack.c.b16 %v2014, %v2008
        %v2123 = vpack.c.b16 %v2015, %v2009
        %v2124 = vpack.c.b16 %v2016, %v2010
        %v2125 = vpack.c.b16 %v2023, %v2017
        %v2126 = vpack.c.b16 %v2024, %v2018
        %v2127 = vpack.c.b16 %v2025, %v2019
        %v2128 = vpack.c.b16 %v2026, %v2020
        %v2129 = vpack.c.b16 %v2027, %v2021
        %v2130 = vpack.c.b16 %v2028, %v2022
        %v2131 = vpack.c.b16 %v2035, %v2029
        %v2132 = vpack.c.b16 %v2036, %v2030
        %v2133 = vpack.c.b16 %v2037, %v2031
        %v2134 = vpack.c.b16 %v2038, %v2032
        %v2135 = vpack.c.b16 %v2039, %v2033
        %v2136 = vpack.c.b16 %v2040, %v2034
        %v2137 = vpack.c.b16 %v2047, %v2041
        %v2138 = vpack.c.b16 %v2048, %v2042
        %v2139 = vpack.c.b16 %v2049, %v2043
        %v2140 = vpack.c.b16 %v2050, %v2044
        %v2141 = vpack.c.b16 %v2051, %v2045
        %v2142 = vpack.c.b16 %v2052, %v2046
        %v2143 = vpack.c.b16 %v2059, %v2053
        %v2144 = vpack.c.b16 %v2060, %v2054
        %v2145 = vpack.c.b16 %v2061, %v2055
        %v2146 = vpack.c.b16 %v2062, %v2056
        %v2147 = vpack.c.b16 %v2063, %v2057
        %v2148 = vpack.c.b16 %v2064, %v2058
        %v2149 = vpack.c.b16 %v2071, %v2065
        %v2150 = vpack.c.b16 %v2072, %v2066
        %v2151 = vpack.c.b16 %v2073, %v2067
        %v2152 = vpack.c.b16 %v2074, %v2068
        %v2153 = vpack.c.b16 %v2075, %v2069
        %v2154 = vpack.c.b16 %v2076, %v2070
        %v2155 = vpack.c.b16 %v2083, %v2077
        %v2156 = vpack.c.b16 %v2084, %v2078
        %v2157 = vpack.c.b16 %v2085, %v2079
        %v2158 = vpack.c.b16 %v2086, %v2080
        %v2159 = vpack.c.b16 %v2087, %v2081
        %v2160 = vpack.c.b16 %v2088, %v2082
        %v2234 = vsel %vm536, %v1768, 0
        %2236 = vmatprep.subr.bf16.mxu0 %v2090
        %2237 = vmatpush1.bf16.msra.mxu0 %v2089
        %2238 = vmatprep.subr.bf16.mxu0 %v2096
        %2239 = vmatpush1.bf16.msra.mxu0 %v2095
        %2240 = vmatprep.subr.bf16.mxu0 %v2102
        %2241 = vmatpush1.bf16.msra.mxu0 %v2101
        %2242 = vmatprep.subr.bf16.mxu0 %v2108
        %2243 = vmatpush1.bf16.msra.mxu0 %v2107
        %2244 = vmatprep.subr.bf16.mxu0 %v2114
        %2245 = vmatpush1.bf16.msra.mxu0 %v2113
        %2246 = vmatprep.subr.bf16.mxu0 %v2120
        %2247 = vmatpush1.bf16.msra.mxu0 %v2119
        %2248 = vmatprep.subr.bf16.mxu0 %v2126
        %2249 = vmatpush1.bf16.msra.mxu0 %v2125
        %2250 = vmatprep.subr.bf16.mxu0 %v2132
        %2251 = vmatpush1.bf16.msra.mxu0 %v2131
        %2252 = vmatprep.subr.bf16.mxu0 %v2138
        %2253 = vmatpush1.bf16.msra.mxu0 %v2137
        %2254 = vmatprep.subr.bf16.mxu0 %v2144
        %2255 = vmatpush1.bf16.msra.mxu0 %v2143
        %2256 = vmatprep.subr.bf16.mxu0 %v2150
        %2257 = vmatpush1.bf16.msra.mxu0 %v2149
        %2258 = vmatprep.subr.bf16.mxu0 %v2156
        %2259 = vmatpush1.bf16.msra.mxu0 %v2155
        %2260 = vmatprep.subr.bf16.mxu0 0
        %2261 = vmatpush1.bf16.msra.mxu0 0
        %2262 = vmatprep.subr.bf16.mxu0 0
        %2263 = vmatpush1.bf16.msra.mxu0 0
        %2264 = vmatprep.subr.bf16.mxu0 0
        %2265 = vmatpush1.bf16.msra.mxu0 0
        %2266 = vmatprep.subr.bf16.mxu0 0
        %2267 = vmatpush1.bf16.msra.mxu0 0
        %2268 = vmatprep.mubr.bf16.mxu0 %v2234
        %2269 = vmatmul.mubr.bf16.gmra.mrb[0].mxu0 %v1767
        %v2270 = vpop.f32.mrb[0].mxu0
        %v2271 = vadd.f32 %v1846, %v2270
        %v2272 = vpop.f32.mrb[0].mxu0
        %v2273 = vadd.f32 %v1850, %v2272
        %v2274 = vpop.f32.mrb[0].mxu0
        %v2275 = vadd.f32 %v1846, %v2274
        %v2276 = vpop.f32.mrb[0].mxu0
        %v2277 = vadd.f32 %v1850, %v2276
        %2278 = vdwg.mxu0
        %2279 = vmatprep.subr.bf16.mxu0 %v2092
        %2280 = vmatpush1.bf16.msra.mxu0 %v2091
        %2281 = vmatprep.subr.bf16.mxu0 %v2098
        %2282 = vmatpush1.bf16.msra.mxu0 %v2097
        %2283 = vmatprep.subr.bf16.mxu0 %v2104
        %2284 = vmatpush1.bf16.msra.mxu0 %v2103
        %2285 = vmatprep.subr.bf16.mxu0 %v2110
        %2286 = vmatpush1.bf16.msra.mxu0 %v2109
        %2287 = vmatprep.subr.bf16.mxu0 %v2116
        %2288 = vmatpush1.bf16.msra.mxu0 %v2115
        %2289 = vmatprep.subr.bf16.mxu0 %v2122
        %2290 = vmatpush1.bf16.msra.mxu0 %v2121
        %2291 = vmatprep.subr.bf16.mxu0 %v2128
        %2292 = vmatpush1.bf16.msra.mxu0 %v2127
        %2293 = vmatprep.subr.bf16.mxu0 %v2134
        %2294 = vmatpush1.bf16.msra.mxu0 %v2133
        %2295 = vmatprep.subr.bf16.mxu0 %v2140
        %2296 = vmatpush1.bf16.msra.mxu0 %v2139
        %2297 = vmatprep.subr.bf16.mxu0 %v2146
        %2298 = vmatpush1.bf16.msra.mxu0 %v2145
        %2299 = vmatprep.subr.bf16.mxu0 %v2152
        %2300 = vmatpush1.bf16.msra.mxu0 %v2151
        %2301 = vmatprep.subr.bf16.mxu0 %v2158
        %2302 = vmatpush1.bf16.msra.mxu0 %v2157
        %2303 = vmatprep.subr.bf16.mxu0 0
        %2304 = vmatpush1.bf16.msra.mxu0 0
        %2305 = vmatprep.subr.bf16.mxu0 0
        %2306 = vmatpush1.bf16.msra.mxu0 0
        %2307 = vmatprep.subr.bf16.mxu0 0
        %2308 = vmatpush1.bf16.msra.mxu0 0
        %2309 = vmatprep.subr.bf16.mxu0 0
        %2310 = vmatpush1.bf16.msra.mxu0 0
        %2311 = vmatprep.mubr.bf16.mxu0 %v2234
        %2312 = vmatmul.mubr.bf16.gmra.mrb[0].mxu0 %v1767
        %v2313 = vpop.f32.mrb[0].mxu0
        %v2314 = vadd.f32 %v1854, %v2313
        %v2315 = vpop.f32.mrb[0].mxu0
        %v2316 = vadd.f32 %v1858, %v2315
        %v2317 = vpop.f32.mrb[0].mxu0
        %v2318 = vadd.f32 %v1854, %v2317
        %v2319 = vpop.f32.mrb[0].mxu0
        %v2320 = vadd.f32 %v1858, %v2319
        %2321 = vdwg.mxu0
        %2322 = vmatprep.subr.bf16.mxu0 %v2094
        %2323 = vmatpush1.bf16.msra.mxu0 %v2093
        %2324 = vmatprep.subr.bf16.mxu0 %v2100
        %2325 = vmatpush1.bf16.msra.mxu0 %v2099
        %2326 = vmatprep.subr.bf16.mxu0 %v2106
        %2327 = vmatpush1.bf16.msra.mxu0 %v2105
        %2328 = vmatprep.subr.bf16.mxu0 %v2112
        %2329 = vmatpush1.bf16.msra.mxu0 %v2111
        %2330 = vmatprep.subr.bf16.mxu0 %v2118
        %2331 = vmatpush1.bf16.msra.mxu0 %v2117
        %2332 = vmatprep.subr.bf16.mxu0 %v2124
        %2333 = vmatpush1.bf16.msra.mxu0 %v2123
        %2334 = vmatprep.subr.bf16.mxu0 %v2130
        %2335 = vmatpush1.bf16.msra.mxu0 %v2129
        %2336 = vmatprep.subr.bf16.mxu0 %v2136
        %2337 = vmatpush1.bf16.msra.mxu0 %v2135
        %2338 = vmatprep.subr.bf16.mxu0 %v2142
        %2339 = vmatpush1.bf16.msra.mxu0 %v2141
        %2340 = vmatprep.subr.bf16.mxu0 %v2148
        %2341 = vmatpush1.bf16.msra.mxu0 %v2147
        %2342 = vmatprep.subr.bf16.mxu0 %v2154
        %2343 = vmatpush1.bf16.msra.mxu0 %v2153
        %2344 = vmatprep.subr.bf16.mxu0 %v2160
        %2345 = vmatpush1.bf16.msra.mxu0 %v2159
        %2346 = vmatprep.subr.bf16.mxu0 0
        %2347 = vmatpush1.bf16.msra.mxu0 0
        %2348 = vmatprep.subr.bf16.mxu0 0
        %2349 = vmatpush1.bf16.msra.mxu0 0
        %2350 = vmatprep.subr.bf16.mxu0 0
        %2351 = vmatpush1.bf16.msra.mxu0 0
        %2352 = vmatprep.subr.bf16.mxu0 0
        %2353 = vmatpush1.bf16.msra.mxu0 0
        %2354 = vmatprep.mubr.bf16.mxu0 %v2234
        %2355 = vmatmul.mubr.bf16.gmra.mrb[0].mxu0 %v1767
        %v2356 = vpop.f32.mrb[0].mxu0
        %v2357 = vadd.f32 %v1862, %v2356
        %v2358 = vpop.f32.mrb[0].mxu0
        %v2359 = vadd.f32 %v1866, %v2358
        %v2360 = vpop.f32.mrb[0].mxu0
        %v2361 = vadd.f32 %v1862, %v2360
        %v2362 = vpop.f32.mrb[0].mxu0
        %v2363 = vadd.f32 %v1866, %v2362
        %2364 = vdwg.mxu0
        %v2365 = vmax.f32 %v2271, 0.0
        %v2366 = vmax.f32 %v2273, 0.0
        %v2367 = vmax.f32 %v2314, 0.0
        %v2368 = vmax.f32 %v2316, 0.0
        %v2369 = vmax.f32 %v2357, 0.0
        %v2370 = vmax.f32 %v2359, 0.0
        %v2371 = vmax.f32 %v2275, 0.0
        %v2372 = vmax.f32 %v2277, 0.0
        %v2373 = vmax.f32 %v2318, 0.0
        %v2374 = vmax.f32 %v2320, 0.0
        %v2375 = vmax.f32 %v2361, 0.0
        %v2376 = vmax.f32 %v2363, 0.0
        %v2377 = vpack.c.bf16 %v2371, %v2365
        %v2378 = vpack.c.bf16 %v2372, %v2366
        %v2379 = vpack.c.bf16 %v2373, %v2367
        %v2380 = vpack.c.bf16 %v2374, %v2368
        %v2381 = vpack.c.bf16 %v2375, %v2369
        %v2382 = vpack.c.bf16 %v2376, %v2370
        %v2383 = vld [vmem:[%s10] sm:$0xff]
        %v2384 = vld [vmem:[%s10 + $0x8] sm:$0xff]
        %v2385 = vld [vmem:[%s10 + $0x10] sm:$0xff]
        %v2386 = vld [vmem:[%s10 + $0x18] sm:$0xff]
        %v2387 = vld [vmem:[%s10 + $0x20] sm:$0xff]
        %v2388 = vld [vmem:[%s10 + $0x28] sm:$0xff]
        %v2389 = vld [vmem:[%s10 + $0x30] sm:$0xff]
        %v2390 = vld [vmem:[%s10 + $0x38] sm:$0xff]
        %v2391 = vld [vmem:[%s10 + $0x40] sm:$0xff]
        %v2392 = vld [vmem:[%s10 + $0x48] sm:$0xff]
        %v2393 = vld [vmem:[%s10 + $0x50] sm:$0xff]
        %v2394 = vld [vmem:[%s10 + $0x58] sm:$0xff]
        %v2395 = vld [vmem:[%s10 + $0x60] sm:$0xff]
        %v2396 = vld [vmem:[%s10 + $0x68] sm:$0xff]
        %v2397 = vld [vmem:[%s10 + $0x70] sm:$0xff]
        %v2398 = vld [vmem:[%s10 + $0x78] sm:$0xff]
        %v2399 = vld [vmem:[%s10 + $0x80] sm:$0xff]
        %v2400 = vld [vmem:[%s10 + $0x88] sm:$0xff]
        %v2401 = vld [vmem:[%s10 + $0x90] sm:$0xff]
        %v2402 = vld [vmem:[%s10 + $0x98] sm:$0xff]
        %v2403 = vld [vmem:[%s10 + $0xa0] sm:$0xff]
        %v2404 = vld [vmem:[%s10 + $0xa8] sm:$0xff]
        %v2405 = vld [vmem:[%s10 + $0xb0] sm:$0xff]
        %v2406 = vld [vmem:[%s10 + $0xb8] sm:$0xff]
        %v2407 = vld [vmem:[%s10 + $0xc0] sm:$0xff]
        %v2408 = vld [vmem:[%s10 + $0xc8] sm:$0xff]
        %v2409 = vld [vmem:[%s10 + $0xd0] sm:$0xff]
        %v2410 = vld [vmem:[%s10 + $0xd8] sm:$0xff]
        %v2411 = vld [vmem:[%s10 + $0xe0] sm:$0xff]
        %v2412 = vld [vmem:[%s10 + $0xe8] sm:$0xff]
        %v2413 = vld [vmem:[%s10 + $0xf0] sm:$0xff]
        %v2414 = vld [vmem:[%s10 + $0xf8] sm:$0xff]
        %v2415 = vld [vmem:[%s10 + $0x100] sm:$0xff]
        %v2416 = vld [vmem:[%s10 + $0x108] sm:$0xff]
        %v2417 = vld [vmem:[%s10 + $0x110] sm:$0xff]
        %v2418 = vld [vmem:[%s10 + $0x118] sm:$0xff]
        %v2419 = vld [vmem:[%s10 + $0x120] sm:$0xff]
        %v2420 = vld [vmem:[%s10 + $0x128] sm:$0xff]
        %v2421 = vld [vmem:[%s10 + $0x130] sm:$0xff]
        %v2422 = vld [vmem:[%s10 + $0x138] sm:$0xff]
        %v2423 = vld [vmem:[%s10 + $0x140] sm:$0xff]
        %v2424 = vld [vmem:[%s10 + $0x148] sm:$0xff]
        %v2425 = vld [vmem:[%s10 + $0x150] sm:$0xff]
        %v2426 = vld [vmem:[%s10 + $0x158] sm:$0xff]
        %v2427 = vld [vmem:[%s10 + $0x160] sm:$0xff]
        %v2428 = vld [vmem:[%s10 + $0x168] sm:$0xff]
        %v2429 = vld [vmem:[%s10 + $0x170] sm:$0xff]
        %v2430 = vld [vmem:[%s10 + $0x178] sm:$0xff]
        %v2431 = vld [vmem:[%s10 + $0x180] sm:$0xff]
        %v2432 = vld [vmem:[%s10 + $0x188] sm:$0xff]
        %v2433 = vld [vmem:[%s10 + $0x190] sm:$0xff]
        %v2434 = vld [vmem:[%s10 + $0x198] sm:$0xff]
        %v2435 = vld [vmem:[%s10 + $0x1a0] sm:$0xff]
        %v2436 = vld [vmem:[%s10 + $0x1a8] sm:$0xff]
        %v2437 = vld [vmem:[%s10 + $0x1b0] sm:$0xff]
        %v2438 = vld [vmem:[%s10 + $0x1b8] sm:$0xff]
        %v2439 = vld [vmem:[%s10 + $0x1c0] sm:$0xff]
        %v2440 = vld [vmem:[%s10 + $0x1c8] sm:$0xff]
        %v2441 = vld [vmem:[%s10 + $0x1d0] sm:$0xff]
        %v2442 = vld [vmem:[%s10 + $0x1d8] sm:$0xff]
        %v2443 = vld [vmem:[%s10 + $0x1e0] sm:$0xff]
        %v2444 = vld [vmem:[%s10 + $0x1e8] sm:$0xff]
        %v2445 = vld [vmem:[%s10 + $0x1f0] sm:$0xff]
        %v2446 = vld [vmem:[%s10 + $0x1f8] sm:$0xff]
        %v2447 = vld [vmem:[%s10 + $0x200] sm:$0xff]
        %v2448 = vld [vmem:[%s10 + $0x208] sm:$0xff]
        %v2449 = vld [vmem:[%s10 + $0x210] sm:$0xff]
        %v2450 = vld [vmem:[%s10 + $0x218] sm:$0xff]
        %v2451 = vld [vmem:[%s10 + $0x220] sm:$0xff]
        %v2452 = vld [vmem:[%s10 + $0x228] sm:$0xff]
        %v2453 = vld [vmem:[%s10 + $0x230] sm:$0xff]
        %v2454 = vld [vmem:[%s10 + $0x238] sm:$0xff]
        %v2455 = vld [vmem:[%s10 + $0x240] sm:$0xff]
        %v2456 = vld [vmem:[%s10 + $0x248] sm:$0xff]
        %v2457 = vld [vmem:[%s10 + $0x250] sm:$0xff]
        %v2458 = vld [vmem:[%s10 + $0x258] sm:$0xff]
        %v2459 = vld [vmem:[%s10 + $0x260] sm:$0xff]
        %v2460 = vld [vmem:[%s10 + $0x268] sm:$0xff]
        %v2461 = vld [vmem:[%s10 + $0x270] sm:$0xff]
        %v2462 = vld [vmem:[%s10 + $0x278] sm:$0xff]
        %v2463 = vld [vmem:[%s10 + $0x280] sm:$0xff]
        %v2464 = vld [vmem:[%s10 + $0x288] sm:$0xff]
        %v2465 = vld [vmem:[%s10 + $0x290] sm:$0xff]
        %v2466 = vld [vmem:[%s10 + $0x298] sm:$0xff]
        %v2467 = vld [vmem:[%s10 + $0x2a0] sm:$0xff]
        %v2468 = vld [vmem:[%s10 + $0x2a8] sm:$0xff]
        %v2469 = vld [vmem:[%s10 + $0x2b0] sm:$0xff]
        %v2470 = vld [vmem:[%s10 + $0x2b8] sm:$0xff]
        %v2471 = vld [vmem:[%s10 + $0x2c0] sm:$0xff]
        %v2472 = vld [vmem:[%s10 + $0x2c8] sm:$0xff]
        %v2473 = vld [vmem:[%s10 + $0x2d0] sm:$0xff]
        %v2474 = vld [vmem:[%s10 + $0x2d8] sm:$0xff]
        %v2475 = vld [vmem:[%s10 + $0x2e0] sm:$0xff]
        %v2476 = vld [vmem:[%s10 + $0x2e8] sm:$0xff]
        %v2477 = vld [vmem:[%s10 + $0x2f0] sm:$0xff]
        %v2478 = vld [vmem:[%s10 + $0x2f8] sm:$0xff]
        %v2479 = vld [vmem:[%s11] sm:$0x3]
        %v2481 = vlaneseq
        %v2482 = vshrl.u32 %v2481, 7
        %v2483 = vsub.s32 0, %v2482
        %v2484 = vrot.slane %v2479, %v2483
        %v2485 = vlaneseq
        %v2486 = vshrl.u32 %v2485, 7
        %v2487 = vsub.s32 1, %v2486
        %v2488 = vrot.slane %v2479, %v2487
        %v2587 = vunpack.c.l.b16 %v2383
        %v2588 = vunpack.c.h.b16 %v2383
        %v2589 = vunpack.c.l.b16 %v2384
        %v2590 = vunpack.c.h.b16 %v2384
        %v2591 = vunpack.c.l.b16 %v2385
        %v2592 = vunpack.c.h.b16 %v2385
        %v2593 = vunpack.c.l.b16 %v2386
        %v2594 = vunpack.c.h.b16 %v2386
        %v2595 = vunpack.c.l.b16 %v2387
        %v2596 = vunpack.c.h.b16 %v2387
        %v2597 = vunpack.c.l.b16 %v2388
        %v2598 = vunpack.c.h.b16 %v2388
        %v2599 = vunpack.c.l.b16 %v2389
        %v2600 = vunpack.c.h.b16 %v2389
        %v2601 = vunpack.c.l.b16 %v2390
        %v2602 = vunpack.c.h.b16 %v2390
        %v2603 = vunpack.c.l.b16 %v2391
        %v2604 = vunpack.c.h.b16 %v2391
        %v2605 = vunpack.c.l.b16 %v2392
        %v2606 = vunpack.c.h.b16 %v2392
        %v2607 = vunpack.c.l.b16 %v2393
        %v2608 = vunpack.c.h.b16 %v2393
        %v2609 = vunpack.c.l.b16 %v2394
        %v2610 = vunpack.c.h.b16 %v2394
        %v2611 = vunpack.c.l.b16 %v2395
        %v2612 = vunpack.c.h.b16 %v2395
        %v2613 = vunpack.c.l.b16 %v2396
        %v2614 = vunpack.c.h.b16 %v2396
        %v2615 = vunpack.c.l.b16 %v2397
        %v2616 = vunpack.c.h.b16 %v2397
        %v2617 = vunpack.c.l.b16 %v2398
        %v2618 = vunpack.c.h.b16 %v2398
        %v2619 = vunpack.c.l.b16 %v2399
        %v2620 = vunpack.c.h.b16 %v2399
        %v2621 = vunpack.c.l.b16 %v2400
        %v2622 = vunpack.c.h.b16 %v2400
        %v2623 = vunpack.c.l.b16 %v2401
        %v2624 = vunpack.c.h.b16 %v2401
        %v2625 = vunpack.c.l.b16 %v2402
        %v2626 = vunpack.c.h.b16 %v2402
        %v2627 = vunpack.c.l.b16 %v2403
        %v2628 = vunpack.c.h.b16 %v2403
        %v2629 = vunpack.c.l.b16 %v2404
        %v2630 = vunpack.c.h.b16 %v2404
        %v2631 = vunpack.c.l.b16 %v2405
        %v2632 = vunpack.c.h.b16 %v2405
        %v2633 = vunpack.c.l.b16 %v2406
        %v2634 = vunpack.c.h.b16 %v2406
        %v2635 = vunpack.c.l.b16 %v2407
        %v2636 = vunpack.c.h.b16 %v2407
        %v2637 = vunpack.c.l.b16 %v2408
        %v2638 = vunpack.c.h.b16 %v2408
        %v2639 = vunpack.c.l.b16 %v2409
        %v2640 = vunpack.c.h.b16 %v2409
        %v2641 = vunpack.c.l.b16 %v2410
        %v2642 = vunpack.c.h.b16 %v2410
        %v2643 = vunpack.c.l.b16 %v2411
        %v2644 = vunpack.c.h.b16 %v2411
        %v2645 = vunpack.c.l.b16 %v2412
        %v2646 = vunpack.c.h.b16 %v2412
        %v2647 = vunpack.c.l.b16 %v2413
        %v2648 = vunpack.c.h.b16 %v2413
        %v2649 = vunpack.c.l.b16 %v2414
        %v2650 = vunpack.c.h.b16 %v2414
        %v2651 = vunpack.c.l.b16 %v2415
        %v2652 = vunpack.c.h.b16 %v2415
        %v2653 = vunpack.c.l.b16 %v2416
        %v2654 = vunpack.c.h.b16 %v2416
        %v2655 = vunpack.c.l.b16 %v2417
        %v2656 = vunpack.c.h.b16 %v2417
        %v2657 = vunpack.c.l.b16 %v2418
        %v2658 = vunpack.c.h.b16 %v2418
        %v2659 = vunpack.c.l.b16 %v2419
        %v2660 = vunpack.c.h.b16 %v2419
        %v2661 = vunpack.c.l.b16 %v2420
        %v2662 = vunpack.c.h.b16 %v2420
        %v2663 = vunpack.c.l.b16 %v2421
        %v2664 = vunpack.c.h.b16 %v2421
        %v2665 = vunpack.c.l.b16 %v2422
        %v2666 = vunpack.c.h.b16 %v2422
        %v2667 = vunpack.c.l.b16 %v2423
        %v2668 = vunpack.c.h.b16 %v2423
        %v2669 = vunpack.c.l.b16 %v2424
        %v2670 = vunpack.c.h.b16 %v2424
        %v2671 = vunpack.c.l.b16 %v2425
        %v2672 = vunpack.c.h.b16 %v2425
        %v2673 = vunpack.c.l.b16 %v2426
        %v2674 = vunpack.c.h.b16 %v2426
        %v2675 = vunpack.c.l.b16 %v2427
        %v2676 = vunpack.c.h.b16 %v2427
        %v2677 = vunpack.c.l.b16 %v2428
        %v2678 = vunpack.c.h.b16 %v2428
        %v2679 = vunpack.c.l.b16 %v2429
        %v2680 = vunpack.c.h.b16 %v2429
        %v2681 = vunpack.c.l.b16 %v2430
        %v2682 = vunpack.c.h.b16 %v2430
        %v2683 = vunpack.c.l.b16 %v2431
        %v2684 = vunpack.c.h.b16 %v2431
        %v2685 = vunpack.c.l.b16 %v2432
        %v2686 = vunpack.c.h.b16 %v2432
        %v2687 = vunpack.c.l.b16 %v2433
        %v2688 = vunpack.c.h.b16 %v2433
        %v2689 = vunpack.c.l.b16 %v2434
        %v2690 = vunpack.c.h.b16 %v2434
        %v2691 = vunpack.c.l.b16 %v2435
        %v2692 = vunpack.c.h.b16 %v2435
        %v2693 = vunpack.c.l.b16 %v2436
        %v2694 = vunpack.c.h.b16 %v2436
        %v2695 = vunpack.c.l.b16 %v2437
        %v2696 = vunpack.c.h.b16 %v2437
        %v2697 = vunpack.c.l.b16 %v2438
        %v2698 = vunpack.c.h.b16 %v2438
        %v2699 = vunpack.c.l.b16 %v2439
        %v2700 = vunpack.c.h.b16 %v2439
        %v2701 = vunpack.c.l.b16 %v2440
        %v2702 = vunpack.c.h.b16 %v2440
        %v2703 = vunpack.c.l.b16 %v2441
        %v2704 = vunpack.c.h.b16 %v2441
        %v2705 = vunpack.c.l.b16 %v2442
        %v2706 = vunpack.c.h.b16 %v2442
        %v2707 = vunpack.c.l.b16 %v2443
        %v2708 = vunpack.c.h.b16 %v2443
        %v2709 = vunpack.c.l.b16 %v2444
        %v2710 = vunpack.c.h.b16 %v2444
        %v2711 = vunpack.c.l.b16 %v2445
        %v2712 = vunpack.c.h.b16 %v2445
        %v2713 = vunpack.c.l.b16 %v2446
        %v2714 = vunpack.c.h.b16 %v2446
        %v2715 = vunpack.c.l.b16 %v2447
        %v2716 = vunpack.c.h.b16 %v2447
        %v2717 = vunpack.c.l.b16 %v2448
        %v2718 = vunpack.c.h.b16 %v2448
        %v2719 = vunpack.c.l.b16 %v2449
        %v2720 = vunpack.c.h.b16 %v2449
        %v2721 = vunpack.c.l.b16 %v2450
        %v2722 = vunpack.c.h.b16 %v2450
        %v2723 = vunpack.c.l.b16 %v2451
        %v2724 = vunpack.c.h.b16 %v2451
        %v2725 = vunpack.c.l.b16 %v2452
        %v2726 = vunpack.c.h.b16 %v2452
        %v2727 = vunpack.c.l.b16 %v2453
        %v2728 = vunpack.c.h.b16 %v2453
        %v2729 = vunpack.c.l.b16 %v2454
        %v2730 = vunpack.c.h.b16 %v2454
        %v2731 = vunpack.c.l.b16 %v2455
        %v2732 = vunpack.c.h.b16 %v2455
        %v2733 = vunpack.c.l.b16 %v2456
        %v2734 = vunpack.c.h.b16 %v2456
        %v2735 = vunpack.c.l.b16 %v2457
        %v2736 = vunpack.c.h.b16 %v2457
        %v2737 = vunpack.c.l.b16 %v2458
        %v2738 = vunpack.c.h.b16 %v2458
        %v2739 = vunpack.c.l.b16 %v2459
        %v2740 = vunpack.c.h.b16 %v2459
        %v2741 = vunpack.c.l.b16 %v2460
        %v2742 = vunpack.c.h.b16 %v2460
        %v2743 = vunpack.c.l.b16 %v2461
        %v2744 = vunpack.c.h.b16 %v2461
        %v2745 = vunpack.c.l.b16 %v2462
        %v2746 = vunpack.c.h.b16 %v2462
        %v2747 = vunpack.c.l.b16 %v2463
        %v2748 = vunpack.c.h.b16 %v2463
        %v2749 = vunpack.c.l.b16 %v2464
        %v2750 = vunpack.c.h.b16 %v2464
        %v2751 = vunpack.c.l.b16 %v2465
        %v2752 = vunpack.c.h.b16 %v2465
        %v2753 = vunpack.c.l.b16 %v2466
        %v2754 = vunpack.c.h.b16 %v2466
        %v2755 = vunpack.c.l.b16 %v2467
        %v2756 = vunpack.c.h.b16 %v2467
        %v2757 = vunpack.c.l.b16 %v2468
        %v2758 = vunpack.c.h.b16 %v2468
        %v2759 = vunpack.c.l.b16 %v2469
        %v2760 = vunpack.c.h.b16 %v2469
        %v2761 = vunpack.c.l.b16 %v2470
        %v2762 = vunpack.c.h.b16 %v2470
        %v2763 = vunpack.c.l.b16 %v2471
        %v2764 = vunpack.c.h.b16 %v2471
        %v2765 = vunpack.c.l.b16 %v2472
        %v2766 = vunpack.c.h.b16 %v2472
        %v2767 = vunpack.c.l.b16 %v2473
        %v2768 = vunpack.c.h.b16 %v2473
        %v2769 = vunpack.c.l.b16 %v2474
        %v2770 = vunpack.c.h.b16 %v2474
        %v2771 = vunpack.c.l.b16 %v2475
        %v2772 = vunpack.c.h.b16 %v2475
        %v2773 = vunpack.c.l.b16 %v2476
        %v2774 = vunpack.c.h.b16 %v2476
        %v2775 = vunpack.c.l.b16 %v2477
        %v2776 = vunpack.c.h.b16 %v2477
        %v2777 = vunpack.c.l.b16 %v2478
        %v2778 = vunpack.c.h.b16 %v2478
        %v2779 = vpack.c.b16 %v2589, %v2587
        %v2780 = vpack.c.b16 %v2590, %v2588
        %v2781 = vpack.c.b16 %v2593, %v2591
        %v2782 = vpack.c.b16 %v2594, %v2592
        %v2783 = vpack.c.b16 %v2597, %v2595
        %v2784 = vpack.c.b16 %v2598, %v2596
        %v2785 = vpack.c.b16 %v2601, %v2599
        %v2786 = vpack.c.b16 %v2602, %v2600
        %v2787 = vpack.c.b16 %v2605, %v2603
        %v2788 = vpack.c.b16 %v2606, %v2604
        %v2789 = vpack.c.b16 %v2609, %v2607
        %v2790 = vpack.c.b16 %v2610, %v2608
        %v2791 = vpack.c.b16 %v2613, %v2611
        %v2792 = vpack.c.b16 %v2614, %v2612
        %v2793 = vpack.c.b16 %v2617, %v2615
        %v2794 = vpack.c.b16 %v2618, %v2616
        %v2795 = vpack.c.b16 %v2621, %v2619
        %v2796 = vpack.c.b16 %v2622, %v2620
        %v2797 = vpack.c.b16 %v2625, %v2623
        %v2798 = vpack.c.b16 %v2626, %v2624
        %v2799 = vpack.c.b16 %v2629, %v2627
        %v2800 = vpack.c.b16 %v2630, %v2628
        %v2801 = vpack.c.b16 %v2633, %v2631
        %v2802 = vpack.c.b16 %v2634, %v2632
        %v2803 = vpack.c.b16 %v2637, %v2635
        %v2804 = vpack.c.b16 %v2638, %v2636
        %v2805 = vpack.c.b16 %v2641, %v2639
        %v2806 = vpack.c.b16 %v2642, %v2640
        %v2807 = vpack.c.b16 %v2645, %v2643
        %v2808 = vpack.c.b16 %v2646, %v2644
        %v2809 = vpack.c.b16 %v2649, %v2647
        %v2810 = vpack.c.b16 %v2650, %v2648
        %v2811 = vpack.c.b16 %v2653, %v2651
        %v2812 = vpack.c.b16 %v2654, %v2652
        %v2813 = vpack.c.b16 %v2657, %v2655
        %v2814 = vpack.c.b16 %v2658, %v2656
        %v2815 = vpack.c.b16 %v2661, %v2659
        %v2816 = vpack.c.b16 %v2662, %v2660
        %v2817 = vpack.c.b16 %v2665, %v2663
        %v2818 = vpack.c.b16 %v2666, %v2664
        %v2819 = vpack.c.b16 %v2669, %v2667
        %v2820 = vpack.c.b16 %v2670, %v2668
        %v2821 = vpack.c.b16 %v2673, %v2671
        %v2822 = vpack.c.b16 %v2674, %v2672
        %v2823 = vpack.c.b16 %v2677, %v2675
        %v2824 = vpack.c.b16 %v2678, %v2676
        %v2825 = vpack.c.b16 %v2681, %v2679
        %v2826 = vpack.c.b16 %v2682, %v2680
        %v2827 = vpack.c.b16 %v2685, %v2683
        %v2828 = vpack.c.b16 %v2686, %v2684
        %v2829 = vpack.c.b16 %v2689, %v2687
        %v2830 = vpack.c.b16 %v2690, %v2688
        %v2831 = vpack.c.b16 %v2693, %v2691
        %v2832 = vpack.c.b16 %v2694, %v2692
        %v2833 = vpack.c.b16 %v2697, %v2695
        %v2834 = vpack.c.b16 %v2698, %v2696
        %v2835 = vpack.c.b16 %v2701, %v2699
        %v2836 = vpack.c.b16 %v2702, %v2700
        %v2837 = vpack.c.b16 %v2705, %v2703
        %v2838 = vpack.c.b16 %v2706, %v2704
        %v2839 = vpack.c.b16 %v2709, %v2707
        %v2840 = vpack.c.b16 %v2710, %v2708
        %v2841 = vpack.c.b16 %v2713, %v2711
        %v2842 = vpack.c.b16 %v2714, %v2712
        %v2843 = vpack.c.b16 %v2717, %v2715
        %v2844 = vpack.c.b16 %v2718, %v2716
        %v2845 = vpack.c.b16 %v2721, %v2719
        %v2846 = vpack.c.b16 %v2722, %v2720
        %v2847 = vpack.c.b16 %v2725, %v2723
        %v2848 = vpack.c.b16 %v2726, %v2724
        %v2849 = vpack.c.b16 %v2729, %v2727
        %v2850 = vpack.c.b16 %v2730, %v2728
        %v2851 = vpack.c.b16 %v2733, %v2731
        %v2852 = vpack.c.b16 %v2734, %v2732
        %v2853 = vpack.c.b16 %v2737, %v2735
        %v2854 = vpack.c.b16 %v2738, %v2736
        %v2855 = vpack.c.b16 %v2741, %v2739
        %v2856 = vpack.c.b16 %v2742, %v2740
        %v2857 = vpack.c.b16 %v2745, %v2743
        %v2858 = vpack.c.b16 %v2746, %v2744
        %v2859 = vpack.c.b16 %v2749, %v2747
        %v2860 = vpack.c.b16 %v2750, %v2748
        %v2861 = vpack.c.b16 %v2753, %v2751
        %v2862 = vpack.c.b16 %v2754, %v2752
        %v2863 = vpack.c.b16 %v2757, %v2755
        %v2864 = vpack.c.b16 %v2758, %v2756
        %v2865 = vpack.c.b16 %v2761, %v2759
        %v2866 = vpack.c.b16 %v2762, %v2760
        %v2867 = vpack.c.b16 %v2765, %v2763
        %v2868 = vpack.c.b16 %v2766, %v2764
        %v2869 = vpack.c.b16 %v2769, %v2767
        %v2870 = vpack.c.b16 %v2770, %v2768
        %v2871 = vpack.c.b16 %v2773, %v2771
        %v2872 = vpack.c.b16 %v2774, %v2772
        %v2873 = vpack.c.b16 %v2777, %v2775
        %v2874 = vpack.c.b16 %v2778, %v2776
        %2971 = vmatprep.subr.bf16.mxu0 %v2780
        %2972 = vmatpush1.bf16.msra.mxu0 %v2779
        %2973 = vmatprep.subr.bf16.mxu0 %v2782
        %2974 = vmatpush1.bf16.msra.mxu0 %v2781
        %2975 = vmatprep.subr.bf16.mxu0 %v2784
        %2976 = vmatpush1.bf16.msra.mxu0 %v2783
        %2977 = vmatprep.subr.bf16.mxu0 %v2786
        %2978 = vmatpush1.bf16.msra.mxu0 %v2785
        %2979 = vmatprep.subr.bf16.mxu0 %v2788
        %2980 = vmatpush1.bf16.msra.mxu0 %v2787
        %2981 = vmatprep.subr.bf16.mxu0 %v2790
        %2982 = vmatpush1.bf16.msra.mxu0 %v2789
        %2983 = vmatprep.subr.bf16.mxu0 %v2792
        %2984 = vmatpush1.bf16.msra.mxu0 %v2791
        %2985 = vmatprep.subr.bf16.mxu0 %v2794
        %2986 = vmatpush1.bf16.msra.mxu0 %v2793
        %2987 = vmatprep.subr.bf16.mxu0 %v2796
        %2988 = vmatpush1.bf16.msra.mxu0 %v2795
        %2989 = vmatprep.subr.bf16.mxu0 %v2798
        %2990 = vmatpush1.bf16.msra.mxu0 %v2797
        %2991 = vmatprep.subr.bf16.mxu0 %v2800
        %2992 = vmatpush1.bf16.msra.mxu0 %v2799
        %2993 = vmatprep.subr.bf16.mxu0 %v2802
        %2994 = vmatpush1.bf16.msra.mxu0 %v2801
        %2995 = vmatprep.subr.bf16.mxu0 %v2804
        %2996 = vmatpush1.bf16.msra.mxu0 %v2803
        %2997 = vmatprep.subr.bf16.mxu0 %v2806
        %2998 = vmatpush1.bf16.msra.mxu0 %v2805
        %2999 = vmatprep.subr.bf16.mxu0 %v2808
        %3000 = vmatpush1.bf16.msra.mxu0 %v2807
        %3001 = vmatprep.subr.bf16.mxu0 %v2810
        %3002 = vmatpush1.bf16.msra.mxu0 %v2809
        %3003 = vmatprep.mubr.bf16.mxu0 %v2378
        %3004 = vmatmul.mubr.bf16.gmra.mrb[0].mxu0 %v2377
        %v3005 = vpop.f32.mrb[0].mxu0
        %v3006 = vadd.f32 %v2484, %v3005
        %v3007 = vpop.f32.mrb[0].mxu0
        %v3008 = vadd.f32 %v2488, %v3007
        %v3009 = vpop.f32.mrb[0].mxu0
        %v3010 = vadd.f32 %v2484, %v3009
        %v3011 = vpop.f32.mrb[0].mxu0
        %v3012 = vadd.f32 %v2488, %v3011
        %3013 = vdwg.mxu0
        %3014 = vmatprep.subr.bf16.mxu0 %v2812
        %3015 = vmatpush1.bf16.msra.mxu0 %v2811
        %3016 = vmatprep.subr.bf16.mxu0 %v2814
        %3017 = vmatpush1.bf16.msra.mxu0 %v2813
        %3018 = vmatprep.subr.bf16.mxu0 %v2816
        %3019 = vmatpush1.bf16.msra.mxu0 %v2815
        %3020 = vmatprep.subr.bf16.mxu0 %v2818
        %3021 = vmatpush1.bf16.msra.mxu0 %v2817
        %3022 = vmatprep.subr.bf16.mxu0 %v2820
        %3023 = vmatpush1.bf16.msra.mxu0 %v2819
        %3024 = vmatprep.subr.bf16.mxu0 %v2822
        %3025 = vmatpush1.bf16.msra.mxu0 %v2821
        %3026 = vmatprep.subr.bf16.mxu0 %v2824
        %3027 = vmatpush1.bf16.msra.mxu0 %v2823
        %3028 = vmatprep.subr.bf16.mxu0 %v2826
        %3029 = vmatpush1.bf16.msra.mxu0 %v2825
        %3030 = vmatprep.subr.bf16.mxu0 %v2828
        %3031 = vmatpush1.bf16.msra.mxu0 %v2827
        %3032 = vmatprep.subr.bf16.mxu0 %v2830
        %3033 = vmatpush1.bf16.msra.mxu0 %v2829
        %3034 = vmatprep.subr.bf16.mxu0 %v2832
        %3035 = vmatpush1.bf16.msra.mxu0 %v2831
        %3036 = vmatprep.subr.bf16.mxu0 %v2834
        %3037 = vmatpush1.bf16.msra.mxu0 %v2833
        %3038 = vmatprep.subr.bf16.mxu0 %v2836
        %3039 = vmatpush1.bf16.msra.mxu0 %v2835
        %3040 = vmatprep.subr.bf16.mxu0 %v2838
        %3041 = vmatpush1.bf16.msra.mxu0 %v2837
        %3042 = vmatprep.subr.bf16.mxu0 %v2840
        %3043 = vmatpush1.bf16.msra.mxu0 %v2839
        %3044 = vmatprep.subr.bf16.mxu0 %v2842
        %3045 = vmatpush1.bf16.msra.mxu0 %v2841
        %3046 = vmatprep.mubr.bf16.mxu0 %v2380
        %3047 = vmatmul.mubr.bf16.gmra.mrb[0].mxu0 %v2379
        %v3048 = vpop.f32.mrb[0].mxu0
        %v3049 = vadd.f32 %v3006, %v3048
        %v3050 = vpop.f32.mrb[0].mxu0
        %v3051 = vadd.f32 %v3008, %v3050
        %v3052 = vpop.f32.mrb[0].mxu0
        %v3053 = vadd.f32 %v3010, %v3052
        %v3054 = vpop.f32.mrb[0].mxu0
        %v3055 = vadd.f32 %v3012, %v3054
        %3056 = vdwg.mxu0
        %3057 = vmatprep.subr.bf16.mxu0 %v2844
        %3058 = vmatpush1.bf16.msra.mxu0 %v2843
        %3059 = vmatprep.subr.bf16.mxu0 %v2846
        %3060 = vmatpush1.bf16.msra.mxu0 %v2845
        %3061 = vmatprep.subr.bf16.mxu0 %v2848
        %3062 = vmatpush1.bf16.msra.mxu0 %v2847
        %3063 = vmatprep.subr.bf16.mxu0 %v2850
        %3064 = vmatpush1.bf16.msra.mxu0 %v2849
        %3065 = vmatprep.subr.bf16.mxu0 %v2852
        %3066 = vmatpush1.bf16.msra.mxu0 %v2851
        %3067 = vmatprep.subr.bf16.mxu0 %v2854
        %3068 = vmatpush1.bf16.msra.mxu0 %v2853
        %3069 = vmatprep.subr.bf16.mxu0 %v2856
        %3070 = vmatpush1.bf16.msra.mxu0 %v2855
        %3071 = vmatprep.subr.bf16.mxu0 %v2858
        %3072 = vmatpush1.bf16.msra.mxu0 %v2857
        %3073 = vmatprep.subr.bf16.mxu0 %v2860
        %3074 = vmatpush1.bf16.msra.mxu0 %v2859
        %3075 = vmatprep.subr.bf16.mxu0 %v2862
        %3076 = vmatpush1.bf16.msra.mxu0 %v2861
        %3077 = vmatprep.subr.bf16.mxu0 %v2864
        %3078 = vmatpush1.bf16.msra.mxu0 %v2863
        %3079 = vmatprep.subr.bf16.mxu0 %v2866
        %3080 = vmatpush1.bf16.msra.mxu0 %v2865
        %3081 = vmatprep.subr.bf16.mxu0 %v2868
        %3082 = vmatpush1.bf16.msra.mxu0 %v2867
        %3083 = vmatprep.subr.bf16.mxu0 %v2870
        %3084 = vmatpush1.bf16.msra.mxu0 %v2869
        %3085 = vmatprep.subr.bf16.mxu0 %v2872
        %3086 = vmatpush1.bf16.msra.mxu0 %v2871
        %3087 = vmatprep.subr.bf16.mxu0 %v2874
        %3088 = vmatpush1.bf16.msra.mxu0 %v2873
        %3089 = vmatprep.mubr.bf16.mxu0 %v2382
        %3090 = vmatmul.mubr.bf16.gmra.mrb[0].mxu0 %v2381
        %v3091 = vpop.f32.mrb[0].mxu0
        %v3092 = vadd.f32 %v3049, %v3091
        %v3093 = vpop.f32.mrb[0].mxu0
        %v3094 = vadd.f32 %v3051, %v3093
        %v3095 = vpop.f32.mrb[0].mxu0
        %v3096 = vadd.f32 %v3053, %v3095
        %v3097 = vpop.f32.mrb[0].mxu0
        %v3098 = vadd.f32 %v3055, %v3097
        %3099 = vdwg.mxu0
        %v3100 = vadd.f32 %v1695, %v3092
        %v3101 = vadd.f32 %v1696, %v3094
        %v3102 = vadd.f32 %v1697, %v3096
        %v3103 = vadd.f32 %v1698, %v3098
        %s3104 = scalar_lea.vmem %s1, 2
        %v3105 = vld [vmem:[%s3104] sm:$0x3]
        %s3106 = scalar_lea.vmem %s2, 2
        %v3107 = vld [vmem:[%s3106] sm:$0x3]
        %v3108 = vsel %vm536, %v3101, 0.0
        %v3109 = vadd.f32 %v3100, %v3108
        %3110 = vadd.xlane.f32.xlu0 %v3109
        %v3111 = vpop.xlane.xlu0 %3110
        %v3112 = vsel %vm536, %v3103, 0.0
        %v3113 = vadd.f32 %v3102, %v3112
        %3114 = vadd.xlane.f32.xlu0 %v3113
        %v3115 = vpop.xlane.xlu0 %3114
        %v3116 = vmul.f32 %v3111, %v545
        %v3117 = vmul.f32 %v3115, %v545
        %v3118 = vsub.f32 %v3100, %v3116
        %v3119 = vsub.f32 %v3101, %v3116
        %v3120 = vsub.f32 %v3102, %v3117
        %v3121 = vsub.f32 %v3103, %v3117
        %v3122 = vmul.f32 %v3118, %v3118
        %v3123 = vmul.f32 %v3119, %v3119
        %v3124 = vmul.f32 %v3120, %v3120
        %v3125 = vmul.f32 %v3121, %v3121
        %v3126 = vsel %vm536, %v3123, 0.0
        %v3127 = vadd.f32 %v3122, %v3126
        %3128 = vadd.xlane.f32.xlu0 %v3127
        %v3129 = vpop.xlane.xlu0 %3128
        %v3130 = vsel %vm536, %v3125, 0.0
        %v3131 = vadd.f32 %v3124, %v3130
        %3132 = vadd.xlane.f32.xlu0 %v3131
        %v3133 = vpop.xlane.xlu0 %3132
        %v3134 = vmul.f32 %v3129, %v545
        %v3135 = vmul.f32 %v3133, %v545
        %v3136 = vadd.f32 %v3134, 1e-05
        %v3137 = vadd.f32 %v3135, 1e-05
        %v3138 = vrsqrt.pop %v3136
        %v3139 = vrsqrt.pop %v3137
        %v3140 = vmul.f32 %v3118, %v3138
        %v3141 = vmul.f32 %v3119, %v3138
        %v3142 = vmul.f32 %v3120, %v3139
        %v3143 = vmul.f32 %v3121, %v3139
        %v3145 = vlaneseq
        %v3146 = vshrl.u32 %v3145, 7
        %v3147 = vsub.s32 0, %v3146
        %v3148 = vrot.slane %v3105, %v3147
        %v3149 = vlaneseq
        %v3150 = vshrl.u32 %v3149, 7
        %v3151 = vsub.s32 1, %v3150
        %v3152 = vrot.slane %v3105, %v3151
        %v3155 = vmul.f32 %v3140, %v3148
        %v3156 = vmul.f32 %v3141, %v3152
        %v3157 = vmul.f32 %v3142, %v3148
        %v3158 = vmul.f32 %v3143, %v3152
        %v3160 = vlaneseq
        %v3161 = vshrl.u32 %v3160, 7
        %v3162 = vsub.s32 0, %v3161
        %v3163 = vrot.slane %v3107, %v3162
        %v3164 = vlaneseq
        %v3165 = vshrl.u32 %v3164, 7
        %v3166 = vsub.s32 1, %v3165
        %v3167 = vrot.slane %v3107, %v3166
        %v3170 = vadd.f32 %v3155, %v3163
        %v3171 = vadd.f32 %v3156, %v3167
        %v3172 = vadd.f32 %v3157, %v3163
        %v3173 = vadd.f32 %v3158, %v3167
        %v3174 = vpack.c.bf16 %v3172, %v3170
        %v3175 = vpack.c.bf16 %v3173, %v3171
        %s3176 = scalar_lea.vmem %s3, 480
        %v3177 = vld [vmem:[%s3176] sm:$0xff]
        %v3178 = vld [vmem:[%s3176 + $0x8] sm:$0xff]
        %v3179 = vld [vmem:[%s3176 + $0x10] sm:$0xf]
        %v3180 = vld [vmem:[%s3176 + $0x14] sm:$0xff]
        %v3181 = vld [vmem:[%s3176 + $0x1c] sm:$0xff]
        %v3182 = vld [vmem:[%s3176 + $0x24] sm:$0xf]
        %v3183 = vld [vmem:[%s3176 + $0x28] sm:$0xff]
        %v3184 = vld [vmem:[%s3176 + $0x30] sm:$0xff]
        %v3185 = vld [vmem:[%s3176 + $0x38] sm:$0xf]
        %v3186 = vld [vmem:[%s3176 + $0x3c] sm:$0xff]
        %v3187 = vld [vmem:[%s3176 + $0x44] sm:$0xff]
        %v3188 = vld [vmem:[%s3176 + $0x4c] sm:$0xf]
        %v3189 = vld [vmem:[%s3176 + $0x50] sm:$0xff]
        %v3190 = vld [vmem:[%s3176 + $0x58] sm:$0xff]
        %v3191 = vld [vmem:[%s3176 + $0x60] sm:$0xf]
        %v3192 = vld [vmem:[%s3176 + $0x64] sm:$0xff]
        %v3193 = vld [vmem:[%s3176 + $0x6c] sm:$0xff]
        %v3194 = vld [vmem:[%s3176 + $0x74] sm:$0xf]
        %v3195 = vld [vmem:[%s3176 + $0x78] sm:$0xff]
        %v3196 = vld [vmem:[%s3176 + $0x80] sm:$0xff]
        %v3197 = vld [vmem:[%s3176 + $0x88] sm:$0xf]
        %v3198 = vld [vmem:[%s3176 + $0x8c] sm:$0xff]
        %v3199 = vld [vmem:[%s3176 + $0x94] sm:$0xff]
        %v3200 = vld [vmem:[%s3176 + $0x9c] sm:$0xf]
        %v3201 = vld [vmem:[%s3176 + $0xa0] sm:$0xff]
        %v3202 = vld [vmem:[%s3176 + $0xa8] sm:$0xff]
        %v3203 = vld [vmem:[%s3176 + $0xb0] sm:$0xf]
        %v3204 = vld [vmem:[%s3176 + $0xb4] sm:$0xff]
        %v3205 = vld [vmem:[%s3176 + $0xbc] sm:$0xff]
        %v3206 = vld [vmem:[%s3176 + $0xc4] sm:$0xf]
        %v3207 = vld [vmem:[%s3176 + $0xc8] sm:$0xff]
        %v3208 = vld [vmem:[%s3176 + $0xd0] sm:$0xff]
        %v3209 = vld [vmem:[%s3176 + $0xd8] sm:$0xf]
        %v3210 = vld [vmem:[%s3176 + $0xdc] sm:$0xff]
        %v3211 = vld [vmem:[%s3176 + $0xe4] sm:$0xff]
        %v3212 = vld [vmem:[%s3176 + $0xec] sm:$0xf]
        %v3213 = vld [vmem:[%s3176 + $0xf0] sm:$0xff]
        %v3214 = vld [vmem:[%s3176 + $0xf8] sm:$0xff]
        %v3215 = vld [vmem:[%s3176 + $0x100] sm:$0xf]
        %v3216 = vld [vmem:[%s3176 + $0x104] sm:$0xff]
        %v3217 = vld [vmem:[%s3176 + $0x10c] sm:$0xff]
        %v3218 = vld [vmem:[%s3176 + $0x114] sm:$0xf]
        %v3219 = vld [vmem:[%s3176 + $0x118] sm:$0xff]
        %v3220 = vld [vmem:[%s3176 + $0x120] sm:$0xff]
        %v3221 = vld [vmem:[%s3176 + $0x128] sm:$0xf]
        %v3222 = vld [vmem:[%s3176 + $0x12c] sm:$0xff]
        %v3223 = vld [vmem:[%s3176 + $0x134] sm:$0xff]
        %v3224 = vld [vmem:[%s3176 + $0x13c] sm:$0xf]
        %v3225 = vld [vmem:[%s3176 + $0x140] sm:$0xff]
        %v3226 = vld [vmem:[%s3176 + $0x148] sm:$0xff]
        %v3227 = vld [vmem:[%s3176 + $0x150] sm:$0xf]
        %v3228 = vld [vmem:[%s3176 + $0x154] sm:$0xff]
        %v3229 = vld [vmem:[%s3176 + $0x15c] sm:$0xff]
        %v3230 = vld [vmem:[%s3176 + $0x164] sm:$0xf]
        %v3231 = vld [vmem:[%s3176 + $0x168] sm:$0xff]
        %v3232 = vld [vmem:[%s3176 + $0x170] sm:$0xff]
        %v3233 = vld [vmem:[%s3176 + $0x178] sm:$0xf]
        %v3234 = vld [vmem:[%s3176 + $0x17c] sm:$0xff]
        %v3235 = vld [vmem:[%s3176 + $0x184] sm:$0xff]
        %v3236 = vld [vmem:[%s3176 + $0x18c] sm:$0xf]
        %v3237 = vld [vmem:[%s3176 + $0x190] sm:$0xff]
        %v3238 = vld [vmem:[%s3176 + $0x198] sm:$0xff]
        %v3239 = vld [vmem:[%s3176 + $0x1a0] sm:$0xf]
        %v3240 = vld [vmem:[%s3176 + $0x1a4] sm:$0xff]
        %v3241 = vld [vmem:[%s3176 + $0x1ac] sm:$0xff]
        %v3242 = vld [vmem:[%s3176 + $0x1b4] sm:$0xf]
        %v3243 = vld [vmem:[%s3176 + $0x1b8] sm:$0xff]
        %v3244 = vld [vmem:[%s3176 + $0x1c0] sm:$0xff]
        %v3245 = vld [vmem:[%s3176 + $0x1c8] sm:$0xf]
        %v3246 = vld [vmem:[%s3176 + $0x1cc] sm:$0xff]
        %v3247 = vld [vmem:[%s3176 + $0x1d4] sm:$0xff]
        %v3248 = vld [vmem:[%s3176 + $0x1dc] sm:$0xf]
        %v3321 = vunpack.c.l.b16 %v3177
        %v3322 = vunpack.c.h.b16 %v3177
        %v3323 = vunpack.c.l.b16 %v3178
        %v3324 = vunpack.c.h.b16 %v3178
        %v3325 = vunpack.c.l.b16 %v3179
        %v3326 = vunpack.c.l.b16 %v3180
        %v3327 = vunpack.c.h.b16 %v3180
        %v3328 = vunpack.c.l.b16 %v3181
        %v3329 = vunpack.c.h.b16 %v3181
        %v3330 = vunpack.c.l.b16 %v3182
        %v3331 = vunpack.c.l.b16 %v3183
        %v3332 = vunpack.c.h.b16 %v3183
        %v3333 = vunpack.c.l.b16 %v3184
        %v3334 = vunpack.c.h.b16 %v3184
        %v3335 = vunpack.c.l.b16 %v3185
        %v3336 = vunpack.c.l.b16 %v3186
        %v3337 = vunpack.c.h.b16 %v3186
        %v3338 = vunpack.c.l.b16 %v3187
        %v3339 = vunpack.c.h.b16 %v3187
        %v3340 = vunpack.c.l.b16 %v3188
        %v3341 = vunpack.c.l.b16 %v3189
        %v3342 = vunpack.c.h.b16 %v3189
        %v3343 = vunpack.c.l.b16 %v3190
        %v3344 = vunpack.c.h.b16 %v3190
        %v3345 = vunpack.c.l.b16 %v3191
        %v3346 = vunpack.c.l.b16 %v3192
        %v3347 = vunpack.c.h.b16 %v3192
        %v3348 = vunpack.c.l.b16 %v3193
        %v3349 = vunpack.c.h.b16 %v3193
        %v3350 = vunpack.c.l.b16 %v3194
        %v3351 = vunpack.c.l.b16 %v3195
        %v3352 = vunpack.c.h.b16 %v3195
        %v3353 = vunpack.c.l.b16 %v3196
        %v3354 = vunpack.c.h.b16 %v3196
        %v3355 = vunpack.c.l.b16 %v3197
        %v3356 = vunpack.c.l.b16 %v3198
        %v3357 = vunpack.c.h.b16 %v3198
        %v3358 = vunpack.c.l.b16 %v3199
        %v3359 = vunpack.c.h.b16 %v3199
        %v3360 = vunpack.c.l.b16 %v3200
        %v3361 = vunpack.c.l.b16 %v3201
        %v3362 = vunpack.c.h.b16 %v3201
        %v3363 = vunpack.c.l.b16 %v3202
        %v3364 = vunpack.c.h.b16 %v3202
        %v3365 = vunpack.c.l.b16 %v3203
        %v3366 = vunpack.c.l.b16 %v3204
        %v3367 = vunpack.c.h.b16 %v3204
        %v3368 = vunpack.c.l.b16 %v3205
        %v3369 = vunpack.c.h.b16 %v3205
        %v3370 = vunpack.c.l.b16 %v3206
        %v3371 = vunpack.c.l.b16 %v3207
        %v3372 = vunpack.c.h.b16 %v3207
        %v3373 = vunpack.c.l.b16 %v3208
        %v3374 = vunpack.c.h.b16 %v3208
        %v3375 = vunpack.c.l.b16 %v3209
        %v3376 = vunpack.c.l.b16 %v3210
        %v3377 = vunpack.c.h.b16 %v3210
        %v3378 = vunpack.c.l.b16 %v3211
        %v3379 = vunpack.c.h.b16 %v3211
        %v3380 = vunpack.c.l.b16 %v3212
        %v3381 = vunpack.c.l.b16 %v3213
        %v3382 = vunpack.c.h.b16 %v3213
        %v3383 = vunpack.c.l.b16 %v3214
        %v3384 = vunpack.c.h.b16 %v3214
        %v3385 = vunpack.c.l.b16 %v3215
        %v3386 = vunpack.c.l.b16 %v3216
        %v3387 = vunpack.c.h.b16 %v3216
        %v3388 = vunpack.c.l.b16 %v3217
        %v3389 = vunpack.c.h.b16 %v3217
        %v3390 = vunpack.c.l.b16 %v3218
        %v3391 = vunpack.c.l.b16 %v3219
        %v3392 = vunpack.c.h.b16 %v3219
        %v3393 = vunpack.c.l.b16 %v3220
        %v3394 = vunpack.c.h.b16 %v3220
        %v3395 = vunpack.c.l.b16 %v3221
        %v3396 = vunpack.c.l.b16 %v3222
        %v3397 = vunpack.c.h.b16 %v3222
        %v3398 = vunpack.c.l.b16 %v3223
        %v3399 = vunpack.c.h.b16 %v3223
        %v3400 = vunpack.c.l.b16 %v3224
        %v3401 = vunpack.c.l.b16 %v3225
        %v3402 = vunpack.c.h.b16 %v3225
        %v3403 = vunpack.c.l.b16 %v3226
        %v3404 = vunpack.c.h.b16 %v3226
        %v3405 = vunpack.c.l.b16 %v3227
        %v3406 = vunpack.c.l.b16 %v3228
        %v3407 = vunpack.c.h.b16 %v3228
        %v3408 = vunpack.c.l.b16 %v3229
        %v3409 = vunpack.c.h.b16 %v3229
        %v3410 = vunpack.c.l.b16 %v3230
        %v3411 = vunpack.c.l.b16 %v3231
        %v3412 = vunpack.c.h.b16 %v3231
        %v3413 = vunpack.c.l.b16 %v3232
        %v3414 = vunpack.c.h.b16 %v3232
        %v3415 = vunpack.c.l.b16 %v3233
        %v3416 = vunpack.c.l.b16 %v3234
        %v3417 = vunpack.c.h.b16 %v3234
        %v3418 = vunpack.c.l.b16 %v3235
        %v3419 = vunpack.c.h.b16 %v3235
        %v3420 = vunpack.c.l.b16 %v3236
        %v3421 = vunpack.c.l.b16 %v3237
        %v3422 = vunpack.c.h.b16 %v3237
        %v3423 = vunpack.c.l.b16 %v3238
        %v3424 = vunpack.c.h.b16 %v3238
        %v3425 = vunpack.c.l.b16 %v3239
        %v3426 = vunpack.c.l.b16 %v3240
        %v3427 = vunpack.c.h.b16 %v3240
        %v3428 = vunpack.c.l.b16 %v3241
        %v3429 = vunpack.c.h.b16 %v3241
        %v3430 = vunpack.c.l.b16 %v3242
        %v3431 = vunpack.c.l.b16 %v3243
        %v3432 = vunpack.c.h.b16 %v3243
        %v3433 = vunpack.c.l.b16 %v3244
        %v3434 = vunpack.c.h.b16 %v3244
        %v3435 = vunpack.c.l.b16 %v3245
        %v3436 = vunpack.c.l.b16 %v3246
        %v3437 = vunpack.c.h.b16 %v3246
        %v3438 = vunpack.c.l.b16 %v3247
        %v3439 = vunpack.c.h.b16 %v3247
        %v3440 = vunpack.c.l.b16 %v3248
        %v3441 = vpack.c.b16 %v3326, %v3321
        %v3442 = vpack.c.b16 %v3327, %v3322
        %v3443 = vpack.c.b16 %v3328, %v3323
        %v3444 = vpack.c.b16 %v3329, %v3324
        %v3445 = vpack.c.b16 %v3330, %v3325
        %v3446 = vpack.c.b16 %v3336, %v3331
        %v3447 = vpack.c.b16 %v3337, %v3332
        %v3448 = vpack.c.b16 %v3338, %v3333
        %v3449 = vpack.c.b16 %v3339, %v3334
        %v3450 = vpack.c.b16 %v3340, %v3335
        %v3451 = vpack.c.b16 %v3346, %v3341
        %v3452 = vpack.c.b16 %v3347, %v3342
        %v3453 = vpack.c.b16 %v3348, %v3343
        %v3454 = vpack.c.b16 %v3349, %v3344
        %v3455 = vpack.c.b16 %v3350, %v3345
        %v3456 = vpack.c.b16 %v3356, %v3351
        %v3457 = vpack.c.b16 %v3357, %v3352
        %v3458 = vpack.c.b16 %v3358, %v3353
        %v3459 = vpack.c.b16 %v3359, %v3354
        %v3460 = vpack.c.b16 %v3360, %v3355
        %v3461 = vpack.c.b16 %v3366, %v3361
        %v3462 = vpack.c.b16 %v3367, %v3362
        %v3463 = vpack.c.b16 %v3368, %v3363
        %v3464 = vpack.c.b16 %v3369, %v3364
        %v3465 = vpack.c.b16 %v3370, %v3365
        %v3466 = vpack.c.b16 %v3376, %v3371
        %v3467 = vpack.c.b16 %v3377, %v3372
        %v3468 = vpack.c.b16 %v3378, %v3373
        %v3469 = vpack.c.b16 %v3379, %v3374
        %v3470 = vpack.c.b16 %v3380, %v3375
        %v3471 = vpack.c.b16 %v3386, %v3381
        %v3472 = vpack.c.b16 %v3387, %v3382
        %v3473 = vpack.c.b16 %v3388, %v3383
        %v3474 = vpack.c.b16 %v3389, %v3384
        %v3475 = vpack.c.b16 %v3390, %v3385
        %v3476 = vpack.c.b16 %v3396, %v3391
        %v3477 = vpack.c.b16 %v3397, %v3392
        %v3478 = vpack.c.b16 %v3398, %v3393
        %v3479 = vpack.c.b16 %v3399, %v3394
        %v3480 = vpack.c.b16 %v3400, %v3395
        %v3481 = vpack.c.b16 %v3406, %v3401
        %v3482 = vpack.c.b16 %v3407, %v3402
        %v3483 = vpack.c.b16 %v3408, %v3403
        %v3484 = vpack.c.b16 %v3409, %v3404
        %v3485 = vpack.c.b16 %v3410, %v3405
        %v3486 = vpack.c.b16 %v3416, %v3411
        %v3487 = vpack.c.b16 %v3417, %v3412
        %v3488 = vpack.c.b16 %v3418, %v3413
        %v3489 = vpack.c.b16 %v3419, %v3414
        %v3490 = vpack.c.b16 %v3420, %v3415
        %v3491 = vpack.c.b16 %v3426, %v3421
        %v3492 = vpack.c.b16 %v3427, %v3422
        %v3493 = vpack.c.b16 %v3428, %v3423
        %v3494 = vpack.c.b16 %v3429, %v3424
        %v3495 = vpack.c.b16 %v3430, %v3425
        %v3496 = vpack.c.b16 %v3436, %v3431
        %v3497 = vpack.c.b16 %v3437, %v3432
        %v3498 = vpack.c.b16 %v3438, %v3433
        %v3499 = vpack.c.b16 %v3439, %v3434
        %v3500 = vpack.c.b16 %v3440, %v3435
        %v3562 = vsel %vm536, %v3175, 0
        %3564 = vmatprep.subr.bf16.mxu0 %v3442
        %3565 = vmatpush1.bf16.msra.mxu0 %v3441
        %3566 = vmatprep.subr.bf16.mxu0 %v3447
        %3567 = vmatpush1.bf16.msra.mxu0 %v3446
        %3568 = vmatprep.subr.bf16.mxu0 %v3452
        %3569 = vmatpush1.bf16.msra.mxu0 %v3451
        %3570 = vmatprep.subr.bf16.mxu0 %v3457
        %3571 = vmatpush1.bf16.msra.mxu0 %v3456
        %3572 = vmatprep.subr.bf16.mxu0 %v3462
        %3573 = vmatpush1.bf16.msra.mxu0 %v3461
        %3574 = vmatprep.subr.bf16.mxu0 %v3467
        %3575 = vmatpush1.bf16.msra.mxu0 %v3466
        %3576 = vmatprep.subr.bf16.mxu0 %v3472
        %3577 = vmatpush1.bf16.msra.mxu0 %v3471
        %3578 = vmatprep.subr.bf16.mxu0 %v3477
        %3579 = vmatpush1.bf16.msra.mxu0 %v3476
        %3580 = vmatprep.subr.bf16.mxu0 %v3482
        %3581 = vmatpush1.bf16.msra.mxu0 %v3481
        %3582 = vmatprep.subr.bf16.mxu0 %v3487
        %3583 = vmatpush1.bf16.msra.mxu0 %v3486
        %3584 = vmatprep.subr.bf16.mxu0 %v3492
        %3585 = vmatpush1.bf16.msra.mxu0 %v3491
        %3586 = vmatprep.subr.bf16.mxu0 %v3497
        %3587 = vmatpush1.bf16.msra.mxu0 %v3496
        %3588 = vmatprep.subr.bf16.mxu0 0
        %3589 = vmatpush1.bf16.msra.mxu0 0
        %3590 = vmatprep.subr.bf16.mxu0 0
        %3591 = vmatpush1.bf16.msra.mxu0 0
        %3592 = vmatprep.subr.bf16.mxu0 0
        %3593 = vmatpush1.bf16.msra.mxu0 0
        %3594 = vmatprep.subr.bf16.mxu0 0
        %3595 = vmatpush1.bf16.msra.mxu0 0
        %3596 = vmatprep.mubr.bf16.mxu0 %v3562
        %3597 = vmatmul.mubr.bf16.gmra.mrb[0].mxu0 %v3174
        %v3598 = vpop.f32.mrb[0].mxu0
        %v3599 = vadd.f32 0.0, %v3598
        %v3600 = vpop.f32.mrb[0].mxu0
        %v3601 = vadd.f32 0.0, %v3600
        %v3602 = vpop.f32.mrb[0].mxu0
        %v3603 = vadd.f32 0.0, %v3602
        %v3604 = vpop.f32.mrb[0].mxu0
        %v3605 = vadd.f32 0.0, %v3604
        %3606 = vdwg.mxu0
        %3607 = vmatprep.subr.bf16.mxu0 %v3444
        %3608 = vmatpush1.bf16.msra.mxu0 %v3443
        %3609 = vmatprep.subr.bf16.mxu0 %v3449
        %3610 = vmatpush1.bf16.msra.mxu0 %v3448
        %3611 = vmatprep.subr.bf16.mxu0 %v3454
        %3612 = vmatpush1.bf16.msra.mxu0 %v3453
        %3613 = vmatprep.subr.bf16.mxu0 %v3459
        %3614 = vmatpush1.bf16.msra.mxu0 %v3458
        %3615 = vmatprep.subr.bf16.mxu0 %v3464
        %3616 = vmatpush1.bf16.msra.mxu0 %v3463
        %3617 = vmatprep.subr.bf16.mxu0 %v3469
        %3618 = vmatpush1.bf16.msra.mxu0 %v3468
        %3619 = vmatprep.subr.bf16.mxu0 %v3474
        %3620 = vmatpush1.bf16.msra.mxu0 %v3473
        %3621 = vmatprep.subr.bf16.mxu0 %v3479
        %3622 = vmatpush1.bf16.msra.mxu0 %v3478
        %3623 = vmatprep.subr.bf16.mxu0 %v3484
        %3624 = vmatpush1.bf16.msra.mxu0 %v3483
        %3625 = vmatprep.subr.bf16.mxu0 %v3489
        %3626 = vmatpush1.bf16.msra.mxu0 %v3488
        %3627 = vmatprep.subr.bf16.mxu0 %v3494
        %3628 = vmatpush1.bf16.msra.mxu0 %v3493
        %3629 = vmatprep.subr.bf16.mxu0 %v3499
        %3630 = vmatpush1.bf16.msra.mxu0 %v3498
        %3631 = vmatprep.subr.bf16.mxu0 0
        %3632 = vmatpush1.bf16.msra.mxu0 0
        %3633 = vmatprep.subr.bf16.mxu0 0
        %3634 = vmatpush1.bf16.msra.mxu0 0
        %3635 = vmatprep.subr.bf16.mxu0 0
        %3636 = vmatpush1.bf16.msra.mxu0 0
        %3637 = vmatprep.subr.bf16.mxu0 0
        %3638 = vmatpush1.bf16.msra.mxu0 0
        %3639 = vmatprep.mubr.bf16.mxu0 %v3562
        %3640 = vmatmul.mubr.bf16.gmra.mrb[0].mxu0 %v3174
        %v3641 = vpop.f32.mrb[0].mxu0
        %v3642 = vadd.f32 0.0, %v3641
        %v3643 = vpop.f32.mrb[0].mxu0
        %v3644 = vadd.f32 0.0, %v3643
        %v3645 = vpop.f32.mrb[0].mxu0
        %v3646 = vadd.f32 0.0, %v3645
        %v3647 = vpop.f32.mrb[0].mxu0
        %v3648 = vadd.f32 0.0, %v3647
        %3649 = vdwg.mxu0
        %3650 = vmatprep.subr.bf16.mxu0 0
        %3651 = vmatpush1.bf16.msra.mxu0 %v3445
        %3652 = vmatprep.subr.bf16.mxu0 0
        %3653 = vmatpush1.bf16.msra.mxu0 %v3450
        %3654 = vmatprep.subr.bf16.mxu0 0
        %3655 = vmatpush1.bf16.msra.mxu0 %v3455
        %3656 = vmatprep.subr.bf16.mxu0 0
        %3657 = vmatpush1.bf16.msra.mxu0 %v3460
        %3658 = vmatprep.subr.bf16.mxu0 0
        %3659 = vmatpush1.bf16.msra.mxu0 %v3465
        %3660 = vmatprep.subr.bf16.mxu0 0
        %3661 = vmatpush1.bf16.msra.mxu0 %v3470
        %3662 = vmatprep.subr.bf16.mxu0 0
        %3663 = vmatpush1.bf16.msra.mxu0 %v3475
        %3664 = vmatprep.subr.bf16.mxu0 0
        %3665 = vmatpush1.bf16.msra.mxu0 %v3480
        %3666 = vmatprep.subr.bf16.mxu0 0
        %3667 = vmatpush1.bf16.msra.mxu0 %v3485
        %3668 = vmatprep.subr.bf16.mxu0 0
        %3669 = vmatpush1.bf16.msra.mxu0 %v3490
        %3670 = vmatprep.subr.bf16.mxu0 0
        %3671 = vmatpush1.bf16.msra.mxu0 %v3495
        %3672 = vmatprep.subr.bf16.mxu0 0
        %3673 = vmatpush1.bf16.msra.mxu0 %v3500
        %3674 = vmatprep.subr.bf16.mxu0 0
        %3675 = vmatpush1.bf16.msra.mxu0 0
        %3676 = vmatprep.subr.bf16.mxu0 0
        %3677 = vmatpush1.bf16.msra.mxu0 0
        %3678 = vmatprep.subr.bf16.mxu0 0
        %3679 = vmatpush1.bf16.msra.mxu0 0
        %3680 = vmatprep.subr.bf16.mxu0 0
        %3681 = vmatpush1.bf16.msra.mxu0 0
        %3682 = vmatprep.mubr.bf16.mxu0 %v3562
        %3683 = vmatmul.mubr.bf16.gmra.mrb[0].mxu0 %v3174
        %v3684 = vpop.f32.mrb[0].mxu0
        %v3685 = vadd.f32 0.0, %v3684
        %v3686 = vpop.f32.mrb[0].mxu0
        %v3687 = vpop.f32.mrb[0].mxu0
        %v3688 = vadd.f32 0.0, %v3687
        %v3689 = vpop.f32.mrb[0].mxu0
        %3690 = vdwg.mxu0
        %v3691 = vpack.c.bf16 %v3603, %v3599
        %v3692 = vpack.c.bf16 %v3605, %v3601
        %v3693 = vpack.c.bf16 %v3646, %v3642
        %v3694 = vpack.c.bf16 %v3648, %v3644
        %v3695 = vpack.c.bf16 %v3688, %v3685
        %3697 = vrot.lane.b32.xlu0 %v3691, 64
        %v3698 = vpop.permute.xlu0 %3697
        %3700 = vrot.lane.b32.xlu0 %v3693, 64
        %v3701 = vpop.permute.xlu0 %3700
        %3703 = vrot.lane.b32.xlu0 %v3694, 64
        %v3704 = vpop.permute.xlu0 %3703
        %3707 = vrot.lane.b32.xlu0 %v3692, 64
        %v3708 = vpop.permute.xlu0 %3707
        %v3710 = vsel %vm536, %v3691, 0
        %v3713 = vsel %vm536, %v3708, 0
        %3715 = vmatprep.subr.bf16.mxu0 0
        %3716 = vmatpush1.bf16.xpose.msra.mxu0 %v3713
        %3717 = vmatprep.subr.bf16.mxu0 0
        %3718 = vmatpush1.bf16.xpose.msra.mxu0 0
        %3719 = vmatprep.subr.bf16.mxu0 0
        %3720 = vmatpush1.bf16.xpose.msra.mxu0 0
        %3721 = vmatprep.subr.bf16.mxu0 0
        %3722 = vmatpush1.bf16.xpose.msra.mxu0 0
        %3723 = vmatprep.subr.bf16.mxu0 0
        %3724 = vmatpush1.bf16.xpose.msra.mxu0 0
        %3725 = vmatprep.subr.bf16.mxu0 0
        %3726 = vmatpush1.bf16.xpose.msra.mxu0 0
        %3727 = vmatprep.subr.bf16.mxu0 0
        %3728 = vmatpush1.bf16.xpose.msra.mxu0 0
        %3729 = vmatprep.subr.bf16.mxu0 0
        %3730 = vmatpush1.bf16.xpose.msra.mxu0 0
        %3731 = vmatprep.subr.bf16.mxu0 0
        %3732 = vmatpush1.bf16.xpose.msra.mxu0 0
        %3733 = vmatprep.subr.bf16.mxu0 0
        %3734 = vmatpush1.bf16.xpose.msra.mxu0 0
        %3735 = vmatprep.subr.bf16.mxu0 0
        %3736 = vmatpush1.bf16.xpose.msra.mxu0 0
        %3737 = vmatprep.subr.bf16.mxu0 0
        %3738 = vmatpush1.bf16.xpose.msra.mxu0 0
        %3739 = vmatprep.subr.bf16.mxu0 0
        %3740 = vmatpush1.bf16.xpose.msra.mxu0 0
        %3741 = vmatprep.subr.bf16.mxu0 0
        %3742 = vmatpush1.bf16.xpose.msra.mxu0 0
        %3743 = vmatprep.subr.bf16.mxu0 0
        %3744 = vmatpush1.bf16.xpose.msra.mxu0 0
        %3745 = vmatprep.subr.bf16.mxu0 0
        %3746 = vmatpush1.bf16.xpose.msra.mxu0 0
        %3747 = vmatprep.mubr.bf16.mxu0 0
        %3748 = vmatmul.mubr.bf16.gmra.mrb[0].mxu0 %v3710
        %v3749 = vpop.f32.mrb[0].mxu0
        %v3750 = vadd.f32 %v532, %v3749
        %v3751 = vpop.f32.mrb[0].mxu0
        %v3752 = vpop.f32.mrb[0].mxu0
        %v3753 = vadd.f32 %v533, %v3752
        %v3754 = vpop.f32.mrb[0].mxu0
        %3755 = vdwg.mxu0
        %3756 = vrot.lane.b32.xlu0 %v3701, 64
        %v3757 = vpop.permute.xlu0 %3756
        %v3759 = vsel %vm536, %v3698, 0
        %v3762 = vsel %vm536, %v3757, 0
        %3764 = vmatprep.subr.bf16.mxu0 0
        %3765 = vmatpush1.bf16.xpose.msra.mxu0 %v3762
        %3766 = vmatprep.subr.bf16.mxu0 0
        %3767 = vmatpush1.bf16.xpose.msra.mxu0 0
        %3768 = vmatprep.subr.bf16.mxu0 0
        %3769 = vmatpush1.bf16.xpose.msra.mxu0 0
        %3770 = vmatprep.subr.bf16.mxu0 0
        %3771 = vmatpush1.bf16.xpose.msra.mxu0 0
        %3772 = vmatprep.subr.bf16.mxu0 0
        %3773 = vmatpush1.bf16.xpose.msra.mxu0 0
        %3774 = vmatprep.subr.bf16.mxu0 0
        %3775 = vmatpush1.bf16.xpose.msra.mxu0 0
        %3776 = vmatprep.subr.bf16.mxu0 0
        %3777 = vmatpush1.bf16.xpose.msra.mxu0 0
        %3778 = vmatprep.subr.bf16.mxu0 0
        %3779 = vmatpush1.bf16.xpose.msra.mxu0 0
        %3780 = vmatprep.subr.bf16.mxu0 0
        %3781 = vmatpush1.bf16.xpose.msra.mxu0 0
        %3782 = vmatprep.subr.bf16.mxu0 0
        %3783 = vmatpush1.bf16.xpose.msra.mxu0 0
        %3784 = vmatprep.subr.bf16.mxu0 0
        %3785 = vmatpush1.bf16.xpose.msra.mxu0 0
        %3786 = vmatprep.subr.bf16.mxu0 0
        %3787 = vmatpush1.bf16.xpose.msra.mxu0 0
        %3788 = vmatprep.subr.bf16.mxu0 0
        %3789 = vmatpush1.bf16.xpose.msra.mxu0 0
        %3790 = vmatprep.subr.bf16.mxu0 0
        %3791 = vmatpush1.bf16.xpose.msra.mxu0 0
        %3792 = vmatprep.subr.bf16.mxu0 0
        %3793 = vmatpush1.bf16.xpose.msra.mxu0 0
        %3794 = vmatprep.subr.bf16.mxu0 0
        %3795 = vmatpush1.bf16.xpose.msra.mxu0 0
        %3796 = vmatprep.mubr.bf16.mxu0 0
        %3797 = vmatmul.mubr.bf16.gmra.mrb[0].mxu0 %v3759
        %v3798 = vpop.f32.mrb[0].mxu0
        %v3799 = vadd.f32 %v532, %v3798
        %v3800 = vpop.f32.mrb[0].mxu0
        %v3801 = vpop.f32.mrb[0].mxu0
        %v3802 = vadd.f32 %v533, %v3801
        %v3803 = vpop.f32.mrb[0].mxu0
        %3804 = vdwg.mxu0
        %v3806 = vsel %vm536, %v3692, 0
        %v3809 = vsel %vm536, %v3701, 0
        %3811 = vmatprep.subr.bf16.mxu0 0
        %3812 = vmatpush1.bf16.xpose.msra.mxu0 %v3809
        %3813 = vmatprep.subr.bf16.mxu0 0
        %3814 = vmatpush1.bf16.xpose.msra.mxu0 0
        %3815 = vmatprep.subr.bf16.mxu0 0
        %3816 = vmatpush1.bf16.xpose.msra.mxu0 0
        %3817 = vmatprep.subr.bf16.mxu0 0
        %3818 = vmatpush1.bf16.xpose.msra.mxu0 0
        %3819 = vmatprep.subr.bf16.mxu0 0
        %3820 = vmatpush1.bf16.xpose.msra.mxu0 0
        %3821 = vmatprep.subr.bf16.mxu0 0
        %3822 = vmatpush1.bf16.xpose.msra.mxu0 0
        %3823 = vmatprep.subr.bf16.mxu0 0
        %3824 = vmatpush1.bf16.xpose.msra.mxu0 0
        %3825 = vmatprep.subr.bf16.mxu0 0
        %3826 = vmatpush1.bf16.xpose.msra.mxu0 0
        %3827 = vmatprep.subr.bf16.mxu0 0
        %3828 = vmatpush1.bf16.xpose.msra.mxu0 0
        %3829 = vmatprep.subr.bf16.mxu0 0
        %3830 = vmatpush1.bf16.xpose.msra.mxu0 0
        %3831 = vmatprep.subr.bf16.mxu0 0
        %3832 = vmatpush1.bf16.xpose.msra.mxu0 0
        %3833 = vmatprep.subr.bf16.mxu0 0
        %3834 = vmatpush1.bf16.xpose.msra.mxu0 0
        %3835 = vmatprep.subr.bf16.mxu0 0
        %3836 = vmatpush1.bf16.xpose.msra.mxu0 0
        %3837 = vmatprep.subr.bf16.mxu0 0
        %3838 = vmatpush1.bf16.xpose.msra.mxu0 0
        %3839 = vmatprep.subr.bf16.mxu0 0
        %3840 = vmatpush1.bf16.xpose.msra.mxu0 0
        %3841 = vmatprep.subr.bf16.mxu0 0
        %3842 = vmatpush1.bf16.xpose.msra.mxu0 0
        %3843 = vmatprep.mubr.bf16.mxu0 0
        %3844 = vmatmul.mubr.bf16.gmra.mrb[0].mxu0 %v3806
        %v3845 = vpop.f32.mrb[0].mxu0
        %v3846 = vadd.f32 %v532, %v3845
        %v3847 = vpop.f32.mrb[0].mxu0
        %v3848 = vpop.f32.mrb[0].mxu0
        %v3849 = vadd.f32 %v533, %v3848
        %v3850 = vpop.f32.mrb[0].mxu0
        %3851 = vdwg.mxu0
        %v3852 = vsel %vm1281, %v3750, -inf
        %3853 = vmax.xlane.f32.xlu0 %v3852
        %v3854 = vpop.xlane.xlu0 %3853
        %v3855 = vsel %vm1281, %v3753, -inf
        %3856 = vmax.xlane.f32.xlu0 %v3855
        %v3857 = vpop.xlane.xlu0 %3856
        %v3858 = vsel %vm1281, %v3799, -inf
        %3859 = vmax.xlane.f32.xlu0 %v3858
        %v3860 = vpop.xlane.xlu0 %3859
        %v3861 = vsel %vm1281, %v3802, -inf
        %3862 = vmax.xlane.f32.xlu0 %v3861
        %v3863 = vpop.xlane.xlu0 %3862
        %v3864 = vsel %vm1281, %v3846, -inf
        %3865 = vmax.xlane.f32.xlu0 %v3864
        %v3866 = vpop.xlane.xlu0 %3865
        %v3867 = vsel %vm1281, %v3849, -inf
        %3868 = vmax.xlane.f32.xlu0 %v3867
        %v3869 = vpop.xlane.xlu0 %3868
        %v3870 = vsub.f32 %v3750, %v3854
        %v3871 = vsub.f32 %v3753, %v3857
        %v3872 = vsub.f32 %v3799, %v3860
        %v3873 = vsub.f32 %v3802, %v3863
        %v3874 = vsub.f32 %v3846, %v3866
        %v3875 = vsub.f32 %v3849, %v3869
        %v3876 = vmul.f32 %v3870, 1.442695
        %v3877 = vpow.pop %v3876
        %v3878 = vmul.f32 %v3871, 1.442695
        %v3879 = vpow.pop %v3878
        %v3880 = vmul.f32 %v3872, 1.442695
        %v3881 = vpow.pop %v3880
        %v3882 = vmul.f32 %v3873, 1.442695
        %v3883 = vpow.pop %v3882
        %v3884 = vmul.f32 %v3874, 1.442695
        %v3885 = vpow.pop %v3884
        %v3886 = vmul.f32 %v3875, 1.442695
        %v3887 = vpow.pop %v3886
        %v3888 = vsel %vm1281, %v3877, 0.0
        %3889 = vadd.xlane.f32.xlu0 %v3888
        %v3890 = vpop.xlane.xlu0 %3889
        %v3891 = vsel %vm1281, %v3879, 0.0
        %3892 = vadd.xlane.f32.xlu0 %v3891
        %v3893 = vpop.xlane.xlu0 %3892
        %v3894 = vsel %vm1281, %v3881, 0.0
        %3895 = vadd.xlane.f32.xlu0 %v3894
        %v3896 = vpop.xlane.xlu0 %3895
        %v3897 = vsel %vm1281, %v3883, 0.0
        %3898 = vadd.xlane.f32.xlu0 %v3897
        %v3899 = vpop.xlane.xlu0 %3898
        %v3900 = vsel %vm1281, %v3885, 0.0
        %3901 = vadd.xlane.f32.xlu0 %v3900
        %v3902 = vpop.xlane.xlu0 %3901
        %v3903 = vsel %vm1281, %v3887, 0.0
        %3904 = vadd.xlane.f32.xlu0 %v3903
        %v3905 = vpop.xlane.xlu0 %3904
        %v3906 = vrcp.pop %v3890
        %v3907 = vrcp.pop %v3893
        %v3908 = vrcp.pop %v3896
        %v3909 = vrcp.pop %v3899
        %v3910 = vrcp.pop %v3902
        %v3911 = vrcp.pop %v3905
        %v3912 = vmul.f32 %v3877, %v3906
        %v3913 = vmul.f32 %v3879, %v3907
        %v3914 = vmul.f32 %v3881, %v3908
        %v3915 = vmul.f32 %v3883, %v3909
        %v3916 = vmul.f32 %v3885, %v3910
        %v3917 = vmul.f32 %v3887, %v3911
        %v3918 = vpack.c.bf16 %v3913, %v3912
        %v3919 = vpack.c.bf16 %v3915, %v3914
        %v3920 = vpack.c.bf16 %v3917, %v3916
        %v3922 = vsel %vm1281, %v3918, 0
        %3924 = vmatprep.subr.bf16.mxu0 0
        %3925 = vmatpush1.bf16.msra.mxu0 %v3694
        %3926 = vmatprep.subr.bf16.mxu0 0
        %3927 = vmatpush1.bf16.msra.mxu0 0
        %3928 = vmatprep.subr.bf16.mxu0 0
        %3929 = vmatpush1.bf16.msra.mxu0 0
        %3930 = vmatprep.subr.bf16.mxu0 0
        %3931 = vmatpush1.bf16.msra.mxu0 0
        %3932 = vmatprep.subr.bf16.mxu0 0
        %3933 = vmatpush1.bf16.msra.mxu0 0
        %3934 = vmatprep.subr.bf16.mxu0 0
        %3935 = vmatpush1.bf16.msra.mxu0 0
        %3936 = vmatprep.subr.bf16.mxu0 0
        %3937 = vmatpush1.bf16.msra.mxu0 0
        %3938 = vmatprep.subr.bf16.mxu0 0
        %3939 = vmatpush1.bf16.msra.mxu0 0
        %3940 = vmatprep.subr.bf16.mxu0 0
        %3941 = vmatpush1.bf16.msra.mxu0 0
        %3942 = vmatprep.subr.bf16.mxu0 0
        %3943 = vmatpush1.bf16.msra.mxu0 0
        %3944 = vmatprep.subr.bf16.mxu0 0
        %3945 = vmatpush1.bf16.msra.mxu0 0
        %3946 = vmatprep.subr.bf16.mxu0 0
        %3947 = vmatpush1.bf16.msra.mxu0 0
        %3948 = vmatprep.subr.bf16.mxu0 0
        %3949 = vmatpush1.bf16.msra.mxu0 0
        %3950 = vmatprep.subr.bf16.mxu0 0
        %3951 = vmatpush1.bf16.msra.mxu0 0
        %3952 = vmatprep.subr.bf16.mxu0 0
        %3953 = vmatpush1.bf16.msra.mxu0 0
        %3954 = vmatprep.subr.bf16.mxu0 0
        %3955 = vmatpush1.bf16.msra.mxu0 0
        %3956 = vmatprep.mubr.bf16.mxu0 0
        %3957 = vmatmul.mubr.bf16.gmra.mrb[0].mxu0 %v3922
        %v3958 = vpop.f32.mrb[0].mxu0
        %v3959 = vadd.f32 0.0, %v3958
        %v3960 = vpop.f32.mrb[0].mxu0
        %v3961 = vpop.f32.mrb[0].mxu0
        %v3962 = vadd.f32 0.0, %v3961
        %v3963 = vpop.f32.mrb[0].mxu0
        %3964 = vdwg.mxu0
        %v3966 = vsel %vm1281, %v3919, 0
        %3968 = vmatprep.subr.bf16.mxu0 0
        %3969 = vmatpush1.bf16.msra.mxu0 %v3704
        %3970 = vmatprep.subr.bf16.mxu0 0
        %3971 = vmatpush1.bf16.msra.mxu0 0
        %3972 = vmatprep.subr.bf16.mxu0 0
        %3973 = vmatpush1.bf16.msra.mxu0 0
        %3974 = vmatprep.subr.bf16.mxu0 0
        %3975 = vmatpush1.bf16.msra.mxu0 0
        %3976 = vmatprep.subr.bf16.mxu0 0
        %3977 = vmatpush1.bf16.msra.mxu0 0
        %3978 = vmatprep.subr.bf16.mxu0 0
        %3979 = vmatpush1.bf16.msra.mxu0 0
        %3980 = vmatprep.subr.bf16.mxu0 0
        %3981 = vmatpush1.bf16.msra.mxu0 0
        %3982 = vmatprep.subr.bf16.mxu0 0
        %3983 = vmatpush1.bf16.msra.mxu0 0
        %3984 = vmatprep.subr.bf16.mxu0 0
        %3985 = vmatpush1.bf16.msra.mxu0 0
        %3986 = vmatprep.subr.bf16.mxu0 0
        %3987 = vmatpush1.bf16.msra.mxu0 0
        %3988 = vmatprep.subr.bf16.mxu0 0
        %3989 = vmatpush1.bf16.msra.mxu0 0
        %3990 = vmatprep.subr.bf16.mxu0 0
        %3991 = vmatpush1.bf16.msra.mxu0 0
        %3992 = vmatprep.subr.bf16.mxu0 0
        %3993 = vmatpush1.bf16.msra.mxu0 0
        %3994 = vmatprep.subr.bf16.mxu0 0
        %3995 = vmatpush1.bf16.msra.mxu0 0
        %3996 = vmatprep.subr.bf16.mxu0 0
        %3997 = vmatpush1.bf16.msra.mxu0 0
        %3998 = vmatprep.subr.bf16.mxu0 0
        %3999 = vmatpush1.bf16.msra.mxu0 0
        %4000 = vmatprep.mubr.bf16.mxu0 0
        %4001 = vmatmul.mubr.bf16.gmra.mrb[0].mxu0 %v3966
        %v4002 = vpop.f32.mrb[0].mxu0
        %v4003 = vadd.f32 0.0, %v4002
        %v4004 = vpop.f32.mrb[0].mxu0
        %v4005 = vpop.f32.mrb[0].mxu0
        %v4006 = vadd.f32 0.0, %v4005
        %v4007 = vpop.f32.mrb[0].mxu0
        %4008 = vdwg.mxu0
        %v4010 = vsel %vm1281, %v3920, 0
        %4012 = vmatprep.subr.bf16.mxu0 0
        %4013 = vmatpush1.bf16.msra.mxu0 %v3695
        %4014 = vmatprep.subr.bf16.mxu0 0
        %4015 = vmatpush1.bf16.msra.mxu0 0
        %4016 = vmatprep.subr.bf16.mxu0 0
        %4017 = vmatpush1.bf16.msra.mxu0 0
        %4018 = vmatprep.subr.bf16.mxu0 0
        %4019 = vmatpush1.bf16.msra.mxu0 0
        %4020 = vmatprep.subr.bf16.mxu0 0
        %4021 = vmatpush1.bf16.msra.mxu0 0
        %4022 = vmatprep.subr.bf16.mxu0 0
        %4023 = vmatpush1.bf16.msra.mxu0 0
        %4024 = vmatprep.subr.bf16.mxu0 0
        %4025 = vmatpush1.bf16.msra.mxu0 0
        %4026 = vmatprep.subr.bf16.mxu0 0
        %4027 = vmatpush1.bf16.msra.mxu0 0
        %4028 = vmatprep.subr.bf16.mxu0 0
        %4029 = vmatpush1.bf16.msra.mxu0 0
        %4030 = vmatprep.subr.bf16.mxu0 0
        %4031 = vmatpush1.bf16.msra.mxu0 0
        %4032 = vmatprep.subr.bf16.mxu0 0
        %4033 = vmatpush1.bf16.msra.mxu0 0
        %4034 = vmatprep.subr.bf16.mxu0 0
        %4035 = vmatpush1.bf16.msra.mxu0 0
        %4036 = vmatprep.subr.bf16.mxu0 0
        %4037 = vmatpush1.bf16.msra.mxu0 0
        %4038 = vmatprep.subr.bf16.mxu0 0
        %4039 = vmatpush1.bf16.msra.mxu0 0
        %4040 = vmatprep.subr.bf16.mxu0 0
        %4041 = vmatpush1.bf16.msra.mxu0 0
        %4042 = vmatprep.subr.bf16.mxu0 0
        %4043 = vmatpush1.bf16.msra.mxu0 0
        %4044 = vmatprep.mubr.bf16.mxu0 0
        %4045 = vmatmul.mubr.bf16.gmra.mrb[0].mxu0 %v4010
        %v4046 = vpop.f32.mrb[0].mxu0
        %v4047 = vadd.f32 0.0, %v4046
        %v4048 = vpop.f32.mrb[0].mxu0
        %v4049 = vpop.f32.mrb[0].mxu0
        %v4050 = vadd.f32 0.0, %v4049
        %v4051 = vpop.f32.mrb[0].mxu0
        %4052 = vdwg.mxu0
        %v4053 = vpack.c.bf16 %v3962, %v3959
        %v4054 = vpack.c.bf16 %v4006, %v4003
        %v4055 = vpack.c.bf16 %v4050, %v4047
        %4057 = vrot.lane.b32.xlu0 %v4054, 64
        %v4058 = vpop.permute.xlu0 %4057
        %v4061 = vsel %vm536, %v4053, %v4058
        %s4063 = scalar_lea.vmem %s4, 192
        %v4064 = vld [vmem:[%s4063] sm:$0xff]
        %v4065 = vld [vmem:[%s4063 + $0x8] sm:$0xff]
        %v4066 = vld [vmem:[%s4063 + $0x10] sm:$0xff]
        %v4067 = vld [vmem:[%s4063 + $0x18] sm:$0xff]
        %v4068 = vld [vmem:[%s4063 + $0x20] sm:$0xff]
        %v4069 = vld [vmem:[%s4063 + $0x28] sm:$0xff]
        %v4070 = vld [vmem:[%s4063 + $0x30] sm:$0xff]
        %v4071 = vld [vmem:[%s4063 + $0x38] sm:$0xff]
        %v4072 = vld [vmem:[%s4063 + $0x40] sm:$0xff]
        %v4073 = vld [vmem:[%s4063 + $0x48] sm:$0xff]
        %v4074 = vld [vmem:[%s4063 + $0x50] sm:$0xff]
        %v4075 = vld [vmem:[%s4063 + $0x58] sm:$0xff]
        %v4076 = vld [vmem:[%s4063 + $0x60] sm:$0xff]
        %v4077 = vld [vmem:[%s4063 + $0x68] sm:$0xff]
        %v4078 = vld [vmem:[%s4063 + $0x70] sm:$0xff]
        %v4079 = vld [vmem:[%s4063 + $0x78] sm:$0xff]
        %v4080 = vld [vmem:[%s4063 + $0x80] sm:$0xff]
        %v4081 = vld [vmem:[%s4063 + $0x88] sm:$0xff]
        %v4082 = vld [vmem:[%s4063 + $0x90] sm:$0xff]
        %v4083 = vld [vmem:[%s4063 + $0x98] sm:$0xff]
        %v4084 = vld [vmem:[%s4063 + $0xa0] sm:$0xff]
        %v4085 = vld [vmem:[%s4063 + $0xa8] sm:$0xff]
        %v4086 = vld [vmem:[%s4063 + $0xb0] sm:$0xff]
        %v4087 = vld [vmem:[%s4063 + $0xb8] sm:$0xff]
        %s4088 = scalar_lea.vmem %s5, 2
        %v4089 = vld [vmem:[%s4088] sm:$0x3]
        %v4091 = vlaneseq
        %v4092 = vshrl.u32 %v4091, 7
        %v4093 = vsub.s32 0, %v4092
        %v4094 = vrot.slane %v4089, %v4093
        %v4095 = vlaneseq
        %v4096 = vshrl.u32 %v4095, 7
        %v4097 = vsub.s32 1, %v4096
        %v4098 = vrot.slane %v4089, %v4097
        %v4125 = vunpack.c.l.b16 %v4064
        %v4126 = vunpack.c.h.b16 %v4064
        %v4127 = vunpack.c.l.b16 %v4065
        %v4128 = vunpack.c.h.b16 %v4065
        %v4129 = vunpack.c.l.b16 %v4066
        %v4130 = vunpack.c.h.b16 %v4066
        %v4131 = vunpack.c.l.b16 %v4067
        %v4132 = vunpack.c.h.b16 %v4067
        %v4133 = vunpack.c.l.b16 %v4068
        %v4134 = vunpack.c.h.b16 %v4068
        %v4135 = vunpack.c.l.b16 %v4069
        %v4136 = vunpack.c.h.b16 %v4069
        %v4137 = vunpack.c.l.b16 %v4070
        %v4138 = vunpack.c.h.b16 %v4070
        %v4139 = vunpack.c.l.b16 %v4071
        %v4140 = vunpack.c.h.b16 %v4071
        %v4141 = vunpack.c.l.b16 %v4072
        %v4142 = vunpack.c.h.b16 %v4072
        %v4143 = vunpack.c.l.b16 %v4073
        %v4144 = vunpack.c.h.b16 %v4073
        %v4145 = vunpack.c.l.b16 %v4074
        %v4146 = vunpack.c.h.b16 %v4074
        %v4147 = vunpack.c.l.b16 %v4075
        %v4148 = vunpack.c.h.b16 %v4075
        %v4149 = vunpack.c.l.b16 %v4076
        %v4150 = vunpack.c.h.b16 %v4076
        %v4151 = vunpack.c.l.b16 %v4077
        %v4152 = vunpack.c.h.b16 %v4077
        %v4153 = vunpack.c.l.b16 %v4078
        %v4154 = vunpack.c.h.b16 %v4078
        %v4155 = vunpack.c.l.b16 %v4079
        %v4156 = vunpack.c.h.b16 %v4079
        %v4157 = vunpack.c.l.b16 %v4080
        %v4158 = vunpack.c.h.b16 %v4080
        %v4159 = vunpack.c.l.b16 %v4081
        %v4160 = vunpack.c.h.b16 %v4081
        %v4161 = vunpack.c.l.b16 %v4082
        %v4162 = vunpack.c.h.b16 %v4082
        %v4163 = vunpack.c.l.b16 %v4083
        %v4164 = vunpack.c.h.b16 %v4083
        %v4165 = vunpack.c.l.b16 %v4084
        %v4166 = vunpack.c.h.b16 %v4084
        %v4167 = vunpack.c.l.b16 %v4085
        %v4168 = vunpack.c.h.b16 %v4085
        %v4169 = vunpack.c.l.b16 %v4086
        %v4170 = vunpack.c.h.b16 %v4086
        %v4171 = vunpack.c.l.b16 %v4087
        %v4172 = vunpack.c.h.b16 %v4087
        %v4173 = vpack.c.b16 %v4127, %v4125
        %v4174 = vpack.c.b16 %v4128, %v4126
        %v4175 = vpack.c.b16 %v4131, %v4129
        %v4176 = vpack.c.b16 %v4132, %v4130
        %v4177 = vpack.c.b16 %v4135, %v4133
        %v4178 = vpack.c.b16 %v4136, %v4134
        %v4179 = vpack.c.b16 %v4139, %v4137
        %v4180 = vpack.c.b16 %v4140, %v4138
        %v4181 = vpack.c.b16 %v4143, %v4141
        %v4182 = vpack.c.b16 %v4144, %v4142
        %v4183 = vpack.c.b16 %v4147, %v4145
        %v4184 = vpack.c.b16 %v4148, %v4146
        %v4185 = vpack.c.b16 %v4151, %v4149
        %v4186 = vpack.c.b16 %v4152, %v4150
        %v4187 = vpack.c.b16 %v4155, %v4153
        %v4188 = vpack.c.b16 %v4156, %v4154
        %v4189 = vpack.c.b16 %v4159, %v4157
        %v4190 = vpack.c.b16 %v4160, %v4158
        %v4191 = vpack.c.b16 %v4163, %v4161
        %v4192 = vpack.c.b16 %v4164, %v4162
        %v4193 = vpack.c.b16 %v4167, %v4165
        %v4194 = vpack.c.b16 %v4168, %v4166
        %v4195 = vpack.c.b16 %v4171, %v4169
        %v4196 = vpack.c.b16 %v4172, %v4170
        %v4222 = vsel %vm536, %v4055, 0
        %4224 = vmatprep.subr.bf16.mxu0 %v4174
        %4225 = vmatpush1.bf16.msra.mxu0 %v4173
        %4226 = vmatprep.subr.bf16.mxu0 %v4176
        %4227 = vmatpush1.bf16.msra.mxu0 %v4175
        %4228 = vmatprep.subr.bf16.mxu0 %v4178
        %4229 = vmatpush1.bf16.msra.mxu0 %v4177
        %4230 = vmatprep.subr.bf16.mxu0 %v4180
        %4231 = vmatpush1.bf16.msra.mxu0 %v4179
        %4232 = vmatprep.subr.bf16.mxu0 %v4182
        %4233 = vmatpush1.bf16.msra.mxu0 %v4181
        %4234 = vmatprep.subr.bf16.mxu0 %v4184
        %4235 = vmatpush1.bf16.msra.mxu0 %v4183
        %4236 = vmatprep.subr.bf16.mxu0 %v4186
        %4237 = vmatpush1.bf16.msra.mxu0 %v4185
        %4238 = vmatprep.subr.bf16.mxu0 %v4188
        %4239 = vmatpush1.bf16.msra.mxu0 %v4187
        %4240 = vmatprep.subr.bf16.mxu0 %v4190
        %4241 = vmatpush1.bf16.msra.mxu0 %v4189
        %4242 = vmatprep.subr.bf16.mxu0 %v4192
        %4243 = vmatpush1.bf16.msra.mxu0 %v4191
        %4244 = vmatprep.subr.bf16.mxu0 %v4194
        %4245 = vmatpush1.bf16.msra.mxu0 %v4193
        %4246 = vmatprep.subr.bf16.mxu0 %v4196
        %4247 = vmatpush1.bf16.msra.mxu0 %v4195
        %4248 = vmatprep.subr.bf16.mxu0 0
        %4249 = vmatpush1.bf16.msra.mxu0 0
        %4250 = vmatprep.subr.bf16.mxu0 0
        %4251 = vmatpush1.bf16.msra.mxu0 0
        %4252 = vmatprep.subr.bf16.mxu0 0
        %4253 = vmatpush1.bf16.msra.mxu0 0
        %4254 = vmatprep.subr.bf16.mxu0 0
        %4255 = vmatpush1.bf16.msra.mxu0 0
        %4256 = vmatprep.mubr.bf16.mxu0 %v4222
        %4257 = vmatmul.mubr.bf16.gmra.mrb[0].mxu0 %v4061
        %v4258 = vpop.f32.mrb[0].mxu0
        %v4259 = vadd.f32 %v4094, %v4258
        %v4260 = vpop.f32.mrb[0].mxu0
        %v4261 = vadd.f32 %v4098, %v4260
        %v4262 = vpop.f32.mrb[0].mxu0
        %v4263 = vadd.f32 %v4094, %v4262
        %v4264 = vpop.f32.mrb[0].mxu0
        %v4265 = vadd.f32 %v4098, %v4264
        %4266 = vdwg.mxu0
        %v4267 = vadd.f32 %v3100, %v4259
        %v4268 = vadd.f32 %v3101, %v4261
        %v4269 = vadd.f32 %v3102, %v4263
        %v4270 = vadd.f32 %v3103, %v4265
        %s4271 = scalar_lea.vmem %s6, 2
        %v4272 = vld [vmem:[%s4271] sm:$0x3]
        %s4273 = scalar_lea.vmem %s7, 2
        %v4274 = vld [vmem:[%s4273] sm:$0x3]
        %v4275 = vsel %vm536, %v4268, 0.0
        %v4276 = vadd.f32 %v4267, %v4275
        %4277 = vadd.xlane.f32.xlu0 %v4276
        %v4278 = vpop.xlane.xlu0 %4277
        %v4279 = vsel %vm536, %v4270, 0.0
        %v4280 = vadd.f32 %v4269, %v4279
        %4281 = vadd.xlane.f32.xlu0 %v4280
        %v4282 = vpop.xlane.xlu0 %4281
        %v4283 = vmul.f32 %v4278, %v545
        %v4284 = vmul.f32 %v4282, %v545
        %v4285 = vsub.f32 %v4267, %v4283
        %v4286 = vsub.f32 %v4268, %v4283
        %v4287 = vsub.f32 %v4269, %v4284
        %v4288 = vsub.f32 %v4270, %v4284
        %v4289 = vmul.f32 %v4285, %v4285
        %v4290 = vmul.f32 %v4286, %v4286
        %v4291 = vmul.f32 %v4287, %v4287
        %v4292 = vmul.f32 %v4288, %v4288
        %v4293 = vsel %vm536, %v4290, 0.0
        %v4294 = vadd.f32 %v4289, %v4293
        %4295 = vadd.xlane.f32.xlu0 %v4294
        %v4296 = vpop.xlane.xlu0 %4295
        %v4297 = vsel %vm536, %v4292, 0.0
        %v4298 = vadd.f32 %v4291, %v4297
        %4299 = vadd.xlane.f32.xlu0 %v4298
        %v4300 = vpop.xlane.xlu0 %4299
        %v4301 = vmul.f32 %v4296, %v545
        %v4302 = vmul.f32 %v4300, %v545
        %v4303 = vadd.f32 %v4301, 1e-05
        %v4304 = vadd.f32 %v4302, 1e-05
        %v4305 = vrsqrt.pop %v4303
        %v4306 = vrsqrt.pop %v4304
        %v4307 = vmul.f32 %v4285, %v4305
        %v4308 = vmul.f32 %v4286, %v4305
        %v4309 = vmul.f32 %v4287, %v4306
        %v4310 = vmul.f32 %v4288, %v4306
        %v4312 = vlaneseq
        %v4313 = vshrl.u32 %v4312, 7
        %v4314 = vsub.s32 0, %v4313
        %v4315 = vrot.slane %v4272, %v4314
        %v4316 = vlaneseq
        %v4317 = vshrl.u32 %v4316, 7
        %v4318 = vsub.s32 1, %v4317
        %v4319 = vrot.slane %v4272, %v4318
        %v4322 = vmul.f32 %v4307, %v4315
        %v4323 = vmul.f32 %v4308, %v4319
        %v4324 = vmul.f32 %v4309, %v4315
        %v4325 = vmul.f32 %v4310, %v4319
        %v4327 = vlaneseq
        %v4328 = vshrl.u32 %v4327, 7
        %v4329 = vsub.s32 0, %v4328
        %v4330 = vrot.slane %v4274, %v4329
        %v4331 = vlaneseq
        %v4332 = vshrl.u32 %v4331, 7
        %v4333 = vsub.s32 1, %v4332
        %v4334 = vrot.slane %v4274, %v4333
        %v4337 = vadd.f32 %v4322, %v4330
        %v4338 = vadd.f32 %v4323, %v4334
        %v4339 = vadd.f32 %v4324, %v4330
        %v4340 = vadd.f32 %v4325, %v4334
        %v4341 = vpack.c.bf16 %v4339, %v4337
        %v4342 = vpack.c.bf16 %v4340, %v4338
        %s4343 = scalar_lea.vmem %s8, 576
        %v4344 = vld [vmem:[%s4343] sm:$0xff]
        %v4345 = vld [vmem:[%s4343 + $0x8] sm:$0xff]
        %v4346 = vld [vmem:[%s4343 + $0x10] sm:$0xff]
        %v4347 = vld [vmem:[%s4343 + $0x18] sm:$0xff]
        %v4348 = vld [vmem:[%s4343 + $0x20] sm:$0xff]
        %v4349 = vld [vmem:[%s4343 + $0x28] sm:$0xff]
        %v4350 = vld [vmem:[%s4343 + $0x30] sm:$0xff]
        %v4351 = vld [vmem:[%s4343 + $0x38] sm:$0xff]
        %v4352 = vld [vmem:[%s4343 + $0x40] sm:$0xff]
        %v4353 = vld [vmem:[%s4343 + $0x48] sm:$0xff]
        %v4354 = vld [vmem:[%s4343 + $0x50] sm:$0xff]
        %v4355 = vld [vmem:[%s4343 + $0x58] sm:$0xff]
        %v4356 = vld [vmem:[%s4343 + $0x60] sm:$0xff]
        %v4357 = vld [vmem:[%s4343 + $0x68] sm:$0xff]
        %v4358 = vld [vmem:[%s4343 + $0x70] sm:$0xff]
        %v4359 = vld [vmem:[%s4343 + $0x78] sm:$0xff]
        %v4360 = vld [vmem:[%s4343 + $0x80] sm:$0xff]
        %v4361 = vld [vmem:[%s4343 + $0x88] sm:$0xff]
        %v4362 = vld [vmem:[%s4343 + $0x90] sm:$0xff]
        %v4363 = vld [vmem:[%s4343 + $0x98] sm:$0xff]
        %v4364 = vld [vmem:[%s4343 + $0xa0] sm:$0xff]
        %v4365 = vld [vmem:[%s4343 + $0xa8] sm:$0xff]
        %v4366 = vld [vmem:[%s4343 + $0xb0] sm:$0xff]
        %v4367 = vld [vmem:[%s4343 + $0xb8] sm:$0xff]
        %v4368 = vld [vmem:[%s4343 + $0xc0] sm:$0xff]
        %v4369 = vld [vmem:[%s4343 + $0xc8] sm:$0xff]
        %v4370 = vld [vmem:[%s4343 + $0xd0] sm:$0xff]
        %v4371 = vld [vmem:[%s4343 + $0xd8] sm:$0xff]
        %v4372 = vld [vmem:[%s4343 + $0xe0] sm:$0xff]
        %v4373 = vld [vmem:[%s4343 + $0xe8] sm:$0xff]
        %v4374 = vld [vmem:[%s4343 + $0xf0] sm:$0xff]
        %v4375 = vld [vmem:[%s4343 + $0xf8] sm:$0xff]
        %v4376 = vld [vmem:[%s4343 + $0x100] sm:$0xff]
        %v4377 = vld [vmem:[%s4343 + $0x108] sm:$0xff]
        %v4378 = vld [vmem:[%s4343 + $0x110] sm:$0xff]
        %v4379 = vld [vmem:[%s4343 + $0x118] sm:$0xff]
        %v4380 = vld [vmem:[%s4343 + $0x120] sm:$0xff]
        %v4381 = vld [vmem:[%s4343 + $0x128] sm:$0xff]
        %v4382 = vld [vmem:[%s4343 + $0x130] sm:$0xff]
        %v4383 = vld [vmem:[%s4343 + $0x138] sm:$0xff]
        %v4384 = vld [vmem:[%s4343 + $0x140] sm:$0xff]
        %v4385 = vld [vmem:[%s4343 + $0x148] sm:$0xff]
        %v4386 = vld [vmem:[%s4343 + $0x150] sm:$0xff]
        %v4387 = vld [vmem:[%s4343 + $0x158] sm:$0xff]
        %v4388 = vld [vmem:[%s4343 + $0x160] sm:$0xff]
        %v4389 = vld [vmem:[%s4343 + $0x168] sm:$0xff]
        %v4390 = vld [vmem:[%s4343 + $0x170] sm:$0xff]
        %v4391 = vld [vmem:[%s4343 + $0x178] sm:$0xff]
        %v4392 = vld [vmem:[%s4343 + $0x180] sm:$0xff]
        %v4393 = vld [vmem:[%s4343 + $0x188] sm:$0xff]
        %v4394 = vld [vmem:[%s4343 + $0x190] sm:$0xff]
        %v4395 = vld [vmem:[%s4343 + $0x198] sm:$0xff]
        %v4396 = vld [vmem:[%s4343 + $0x1a0] sm:$0xff]
        %v4397 = vld [vmem:[%s4343 + $0x1a8] sm:$0xff]
        %v4398 = vld [vmem:[%s4343 + $0x1b0] sm:$0xff]
        %v4399 = vld [vmem:[%s4343 + $0x1b8] sm:$0xff]
        %v4400 = vld [vmem:[%s4343 + $0x1c0] sm:$0xff]
        %v4401 = vld [vmem:[%s4343 + $0x1c8] sm:$0xff]
        %v4402 = vld [vmem:[%s4343 + $0x1d0] sm:$0xff]
        %v4403 = vld [vmem:[%s4343 + $0x1d8] sm:$0xff]
        %v4404 = vld [vmem:[%s4343 + $0x1e0] sm:$0xff]
        %v4405 = vld [vmem:[%s4343 + $0x1e8] sm:$0xff]
        %v4406 = vld [vmem:[%s4343 + $0x1f0] sm:$0xff]
        %v4407 = vld [vmem:[%s4343 + $0x1f8] sm:$0xff]
        %v4408 = vld [vmem:[%s4343 + $0x200] sm:$0xff]
        %v4409 = vld [vmem:[%s4343 + $0x208] sm:$0xff]
        %v4410 = vld [vmem:[%s4343 + $0x210] sm:$0xff]
        %v4411 = vld [vmem:[%s4343 + $0x218] sm:$0xff]
        %v4412 = vld [vmem:[%s4343 + $0x220] sm:$0xff]
        %v4413 = vld [vmem:[%s4343 + $0x228] sm:$0xff]
        %v4414 = vld [vmem:[%s4343 + $0x230] sm:$0xff]
        %v4415 = vld [vmem:[%s4343 + $0x238] sm:$0xff]
        %s4416 = scalar_lea.vmem %s9, 6
        %v4417 = vld [vmem:[%s4416] sm:$0x3f]
        %v4419 = vlaneseq
        %v4420 = vshrl.u32 %v4419, 7
        %v4421 = vsub.s32 0, %v4420
        %v4422 = vrot.slane %v4417, %v4421
        %v4423 = vlaneseq
        %v4424 = vshrl.u32 %v4423, 7
        %v4425 = vsub.s32 1, %v4424
        %v4426 = vrot.slane %v4417, %v4425
        %v4427 = vlaneseq
        %v4428 = vshrl.u32 %v4427, 7
        %v4429 = vsub.s32 2, %v4428
        %v4430 = vrot.slane %v4417, %v4429
        %v4431 = vlaneseq
        %v4432 = vshrl.u32 %v4431, 7
        %v4433 = vsub.s32 3, %v4432
        %v4434 = vrot.slane %v4417, %v4433
        %v4435 = vlaneseq
        %v4436 = vshrl.u32 %v4435, 7
        %v4437 = vsub.s32 4, %v4436
        %v4438 = vrot.slane %v4417, %v4437
        %v4439 = vlaneseq
        %v4440 = vshrl.u32 %v4439, 7
        %v4441 = vsub.s32 5, %v4440
        %v4442 = vrot.slane %v4417, %v4441
        %v4521 = vunpack.c.l.b16 %v4344
        %v4522 = vunpack.c.h.b16 %v4344
        %v4523 = vunpack.c.l.b16 %v4345
        %v4524 = vunpack.c.h.b16 %v4345
        %v4525 = vunpack.c.l.b16 %v4346
        %v4526 = vunpack.c.h.b16 %v4346
        %v4527 = vunpack.c.l.b16 %v4347
        %v4528 = vunpack.c.h.b16 %v4347
        %v4529 = vunpack.c.l.b16 %v4348
        %v4530 = vunpack.c.h.b16 %v4348
        %v4531 = vunpack.c.l.b16 %v4349
        %v4532 = vunpack.c.h.b16 %v4349
        %v4533 = vunpack.c.l.b16 %v4350
        %v4534 = vunpack.c.h.b16 %v4350
        %v4535 = vunpack.c.l.b16 %v4351
        %v4536 = vunpack.c.h.b16 %v4351
        %v4537 = vunpack.c.l.b16 %v4352
        %v4538 = vunpack.c.h.b16 %v4352
        %v4539 = vunpack.c.l.b16 %v4353
        %v4540 = vunpack.c.h.b16 %v4353
        %v4541 = vunpack.c.l.b16 %v4354
        %v4542 = vunpack.c.h.b16 %v4354
        %v4543 = vunpack.c.l.b16 %v4355
        %v4544 = vunpack.c.h.b16 %v4355
        %v4545 = vunpack.c.l.b16 %v4356
        %v4546 = vunpack.c.h.b16 %v4356
        %v4547 = vunpack.c.l.b16 %v4357
        %v4548 = vunpack.c.h.b16 %v4357
        %v4549 = vunpack.c.l.b16 %v4358
        %v4550 = vunpack.c.h.b16 %v4358
        %v4551 = vunpack.c.l.b16 %v4359
        %v4552 = vunpack.c.h.b16 %v4359
        %v4553 = vunpack.c.l.b16 %v4360
        %v4554 = vunpack.c.h.b16 %v4360
        %v4555 = vunpack.c.l.b16 %v4361
        %v4556 = vunpack.c.h.b16 %v4361
        %v4557 = vunpack.c.l.b16 %v4362
        %v4558 = vunpack.c.h.b16 %v4362
        %v4559 = vunpack.c.l.b16 %v4363
        %v4560 = vunpack.c.h.b16 %v4363
        %v4561 = vunpack.c.l.b16 %v4364
        %v4562 = vunpack.c.h.b16 %v4364
        %v4563 = vunpack.c.l.b16 %v4365
        %v4564 = vunpack.c.h.b16 %v4365
        %v4565 = vunpack.c.l.b16 %v4366
        %v4566 = vunpack.c.h.b16 %v4366
        %v4567 = vunpack.c.l.b16 %v4367
        %v4568 = vunpack.c.h.b16 %v4367
        %v4569 = vunpack.c.l.b16 %v4368
        %v4570 = vunpack.c.h.b16 %v4368
        %v4571 = vunpack.c.l.b16 %v4369
        %v4572 = vunpack.c.h.b16 %v4369
        %v4573 = vunpack.c.l.b16 %v4370
        %v4574 = vunpack.c.h.b16 %v4370
        %v4575 = vunpack.c.l.b16 %v4371
        %v4576 = vunpack.c.h.b16 %v4371
        %v4577 = vunpack.c.l.b16 %v4372
        %v4578 = vunpack.c.h.b16 %v4372
        %v4579 = vunpack.c.l.b16 %v4373
        %v4580 = vunpack.c.h.b16 %v4373
        %v4581 = vunpack.c.l.b16 %v4374
        %v4582 = vunpack.c.h.b16 %v4374
        %v4583 = vunpack.c.l.b16 %v4375
        %v4584 = vunpack.c.h.b16 %v4375
        %v4585 = vunpack.c.l.b16 %v4376
        %v4586 = vunpack.c.h.b16 %v4376
        %v4587 = vunpack.c.l.b16 %v4377
        %v4588 = vunpack.c.h.b16 %v4377
        %v4589 = vunpack.c.l.b16 %v4378
        %v4590 = vunpack.c.h.b16 %v4378
        %v4591 = vunpack.c.l.b16 %v4379
        %v4592 = vunpack.c.h.b16 %v4379
        %v4593 = vunpack.c.l.b16 %v4380
        %v4594 = vunpack.c.h.b16 %v4380
        %v4595 = vunpack.c.l.b16 %v4381
        %v4596 = vunpack.c.h.b16 %v4381
        %v4597 = vunpack.c.l.b16 %v4382
        %v4598 = vunpack.c.h.b16 %v4382
        %v4599 = vunpack.c.l.b16 %v4383
        %v4600 = vunpack.c.h.b16 %v4383
        %v4601 = vunpack.c.l.b16 %v4384
        %v4602 = vunpack.c.h.b16 %v4384
        %v4603 = vunpack.c.l.b16 %v4385
        %v4604 = vunpack.c.h.b16 %v4385
        %v4605 = vunpack.c.l.b16 %v4386
        %v4606 = vunpack.c.h.b16 %v4386
        %v4607 = vunpack.c.l.b16 %v4387
        %v4608 = vunpack.c.h.b16 %v4387
        %v4609 = vunpack.c.l.b16 %v4388
        %v4610 = vunpack.c.h.b16 %v4388
        %v4611 = vunpack.c.l.b16 %v4389
        %v4612 = vunpack.c.h.b16 %v4389
        %v4613 = vunpack.c.l.b16 %v4390
        %v4614 = vunpack.c.h.b16 %v4390
        %v4615 = vunpack.c.l.b16 %v4391
        %v4616 = vunpack.c.h.b16 %v4391
        %v4617 = vunpack.c.l.b16 %v4392
        %v4618 = vunpack.c.h.b16 %v4392
        %v4619 = vunpack.c.l.b16 %v4393
        %v4620 = vunpack.c.h.b16 %v4393
        %v4621 = vunpack.c.l.b16 %v4394
        %v4622 = vunpack.c.h.b16 %v4394
        %v4623 = vunpack.c.l.b16 %v4395
        %v4624 = vunpack.c.h.b16 %v4395
        %v4625 = vunpack.c.l.b16 %v4396
        %v4626 = vunpack.c.h.b16 %v4396
        %v4627 = vunpack.c.l.b16 %v4397
        %v4628 = vunpack.c.h.b16 %v4397
        %v4629 = vunpack.c.l.b16 %v4398
        %v4630 = vunpack.c.h.b16 %v4398
        %v4631 = vunpack.c.l.b16 %v4399
        %v4632 = vunpack.c.h.b16 %v4399
        %v4633 = vunpack.c.l.b16 %v4400
        %v4634 = vunpack.c.h.b16 %v4400
        %v4635 = vunpack.c.l.b16 %v4401
        %v4636 = vunpack.c.h.b16 %v4401
        %v4637 = vunpack.c.l.b16 %v4402
        %v4638 = vunpack.c.h.b16 %v4402
        %v4639 = vunpack.c.l.b16 %v4403
        %v4640 = vunpack.c.h.b16 %v4403
        %v4641 = vunpack.c.l.b16 %v4404
        %v4642 = vunpack.c.h.b16 %v4404
        %v4643 = vunpack.c.l.b16 %v4405
        %v4644 = vunpack.c.h.b16 %v4405
        %v4645 = vunpack.c.l.b16 %v4406
        %v4646 = vunpack.c.h.b16 %v4406
        %v4647 = vunpack.c.l.b16 %v4407
        %v4648 = vunpack.c.h.b16 %v4407
        %v4649 = vunpack.c.l.b16 %v4408
        %v4650 = vunpack.c.h.b16 %v4408
        %v4651 = vunpack.c.l.b16 %v4409
        %v4652 = vunpack.c.h.b16 %v4409
        %v4653 = vunpack.c.l.b16 %v4410
        %v4654 = vunpack.c.h.b16 %v4410
        %v4655 = vunpack.c.l.b16 %v4411
        %v4656 = vunpack.c.h.b16 %v4411
        %v4657 = vunpack.c.l.b16 %v4412
        %v4658 = vunpack.c.h.b16 %v4412
        %v4659 = vunpack.c.l.b16 %v4413
        %v4660 = vunpack.c.h.b16 %v4413
        %v4661 = vunpack.c.l.b16 %v4414
        %v4662 = vunpack.c.h.b16 %v4414
        %v4663 = vunpack.c.l.b16 %v4415
        %v4664 = vunpack.c.h.b16 %v4415
        %v4665 = vpack.c.b16 %v4527, %v4521
        %v4666 = vpack.c.b16 %v4528, %v4522
        %v4667 = vpack.c.b16 %v4529, %v4523
        %v4668 = vpack.c.b16 %v4530, %v4524
        %v4669 = vpack.c.b16 %v4531, %v4525
        %v4670 = vpack.c.b16 %v4532, %v4526
        %v4671 = vpack.c.b16 %v4539, %v4533
        %v4672 = vpack.c.b16 %v4540, %v4534
        %v4673 = vpack.c.b16 %v4541, %v4535
        %v4674 = vpack.c.b16 %v4542, %v4536
        %v4675 = vpack.c.b16 %v4543, %v4537
        %v4676 = vpack.c.b16 %v4544, %v4538
        %v4677 = vpack.c.b16 %v4551, %v4545
        %v4678 = vpack.c.b16 %v4552, %v4546
        %v4679 = vpack.c.b16 %v4553, %v4547
        %v4680 = vpack.c.b16 %v4554, %v4548
        %v4681 = vpack.c.b16 %v4555, %v4549
        %v4682 = vpack.c.b16 %v4556, %v4550
        %v4683 = vpack.c.b16 %v4563, %v4557
        %v4684 = vpack.c.b16 %v4564, %v4558
        %v4685 = vpack.c.b16 %v4565, %v4559
        %v4686 = vpack.c.b16 %v4566, %v4560
        %v4687 = vpack.c.b16 %v4567, %v4561
        %v4688 = vpack.c.b16 %v4568, %v4562
        %v4689 = vpack.c.b16 %v4575, %v4569
        %v4690 = vpack.c.b16 %v4576, %v4570
        %v4691 = vpack.c.b16 %v4577, %v4571
        %v4692 = vpack.c.b16 %v4578, %v4572
        %v4693 = vpack.c.b16 %v4579, %v4573
        %v4694 = vpack.c.b16 %v4580, %v4574
        %v4695 = vpack.c.b16 %v4587, %v4581
        %v4696 = vpack.c.b16 %v4588, %v4582
        %v4697 = vpack.c.b16 %v4589, %v4583
        %v4698 = vpack.c.b16 %v4590, %v4584
        %v4699 = vpack.c.b16 %v4591, %v4585
        %v4700 = vpack.c.b16 %v4592, %v4586
        %v4701 = vpack.c.b16 %v4599, %v4593
        %v4702 = vpack.c.b16 %v4600, %v4594
        %v4703 = vpack.c.b16 %v4601, %v4595
        %v4704 = vpack.c.b16 %v4602, %v4596
        %v4705 = vpack.c.b16 %v4603, %v4597
        %v4706 = vpack.c.b16 %v4604, %v4598
        %v4707 = vpack.c.b16 %v4611, %v4605
        %v4708 = vpack.c.b16 %v4612, %v4606
        %v4709 = vpack.c.b16 %v4613, %v4607
        %v4710 = vpack.c.b16 %v4614, %v4608
        %v4711 = vpack.c.b16 %v4615, %v4609
        %v4712 = vpack.c.b16 %v4616, %v4610
        %v4713 = vpack.c.b16 %v4623, %v4617
        %v4714 = vpack.c.b16 %v4624, %v4618
        %v4715 = vpack.c.b16 %v4625, %v4619
        %v4716 = vpack.c.b16 %v4626, %v4620
        %v4717 = vpack.c.b16 %v4627, %v4621
        %v4718 = vpack.c.b16 %v4628, %v4622
        %v4719 = vpack.c.b16 %v4635, %v4629
        %v4720 = vpack.c.b16 %v4636, %v4630
        %v4721 = vpack.c.b16 %v4637, %v4631
        %v4722 = vpack.c.b16 %v4638, %v4632
        %v4723 = vpack.c.b16 %v4639, %v4633
        %v4724 = vpack.c.b16 %v4640, %v4634
        %v4725 = vpack.c.b16 %v4647, %v4641
        %v4726 = vpack.c.b16 %v4648, %v4642
        %v4727 = vpack.c.b16 %v4649, %v4643
        %v4728 = vpack.c.b16 %v4650, %v4644
        %v4729 = vpack.c.b16 %v4651, %v4645
        %v4730 = vpack.c.b16 %v4652, %v4646
        %v4731 = vpack.c.b16 %v4659, %v4653
        %v4732 = vpack.c.b16 %v4660, %v4654
        %v4733 = vpack.c.b16 %v4661, %v4655
        %v4734 = vpack.c.b16 %v4662, %v4656
        %v4735 = vpack.c.b16 %v4663, %v4657
        %v4736 = vpack.c.b16 %v4664, %v4658
        %v4810 = vsel %vm536, %v4342, 0
        %4812 = vmatprep.subr.bf16.mxu0 %v4666
        %4813 = vmatpush1.bf16.msra.mxu0 %v4665
        %4814 = vmatprep.subr.bf16.mxu0 %v4672
        %4815 = vmatpush1.bf16.msra.mxu0 %v4671
        %4816 = vmatprep.subr.bf16.mxu0 %v4678
        %4817 = vmatpush1.bf16.msra.mxu0 %v4677
        %4818 = vmatprep.subr.bf16.mxu0 %v4684
        %4819 = vmatpush1.bf16.msra.mxu0 %v4683
        %4820 = vmatprep.subr.bf16.mxu0 %v4690
        %4821 = vmatpush1.bf16.msra.mxu0 %v4689
        %4822 = vmatprep.subr.bf16.mxu0 %v4696
        %4823 = vmatpush1.bf16.msra.mxu0 %v4695
        %4824 = vmatprep.subr.bf16.mxu0 %v4702
        %4825 = vmatpush1.bf16.msra.mxu0 %v4701
        %4826 = vmatprep.subr.bf16.mxu0 %v4708
        %4827 = vmatpush1.bf16.msra.mxu0 %v4707
        %4828 = vmatprep.subr.bf16.mxu0 %v4714
        %4829 = vmatpush1.bf16.msra.mxu0 %v4713
        %4830 = vmatprep.subr.bf16.mxu0 %v4720
        %4831 = vmatpush1.bf16.msra.mxu0 %v4719
        %4832 = vmatprep.subr.bf16.mxu0 %v4726
        %4833 = vmatpush1.bf16.msra.mxu0 %v4725
        %4834 = vmatprep.subr.bf16.mxu0 %v4732
        %4835 = vmatpush1.bf16.msra.mxu0 %v4731
        %4836 = vmatprep.subr.bf16.mxu0 0
        %4837 = vmatpush1.bf16.msra.mxu0 0
        %4838 = vmatprep.subr.bf16.mxu0 0
        %4839 = vmatpush1.bf16.msra.mxu0 0
        %4840 = vmatprep.subr.bf16.mxu0 0
        %4841 = vmatpush1.bf16.msra.mxu0 0
        %4842 = vmatprep.subr.bf16.mxu0 0
        %4843 = vmatpush1.bf16.msra.mxu0 0
        %4844 = vmatprep.mubr.bf16.mxu0 %v4810
        %4845 = vmatmul.mubr.bf16.gmra.mrb[0].mxu0 %v4341
        %v4846 = vpop.f32.mrb[0].mxu0
        %v4847 = vadd.f32 %v4422, %v4846
        %v4848 = vpop.f32.mrb[0].mxu0
        %v4849 = vadd.f32 %v4426, %v4848
        %v4850 = vpop.f32.mrb[0].mxu0
        %v4851 = vadd.f32 %v4422, %v4850
        %v4852 = vpop.f32.mrb[0].mxu0
        %v4853 = vadd.f32 %v4426, %v4852
        %4854 = vdwg.mxu0
        %4855 = vmatprep.subr.bf16.mxu0 %v4668
        %4856 = vmatpush1.bf16.msra.mxu0 %v4667
        %4857 = vmatprep.subr.bf16.mxu0 %v4674
        %4858 = vmatpush1.bf16.msra.mxu0 %v4673
        %4859 = vmatprep.subr.bf16.mxu0 %v4680
        %4860 = vmatpush1.bf16.msra.mxu0 %v4679
        %4861 = vmatprep.subr.bf16.mxu0 %v4686
        %4862 = vmatpush1.bf16.msra.mxu0 %v4685
        %4863 = vmatprep.subr.bf16.mxu0 %v4692
        %4864 = vmatpush1.bf16.msra.mxu0 %v4691
        %4865 = vmatprep.subr.bf16.mxu0 %v4698
        %4866 = vmatpush1.bf16.msra.mxu0 %v4697
        %4867 = vmatprep.subr.bf16.mxu0 %v4704
        %4868 = vmatpush1.bf16.msra.mxu0 %v4703
        %4869 = vmatprep.subr.bf16.mxu0 %v4710
        %4870 = vmatpush1.bf16.msra.mxu0 %v4709
        %4871 = vmatprep.subr.bf16.mxu0 %v4716
        %4872 = vmatpush1.bf16.msra.mxu0 %v4715
        %4873 = vmatprep.subr.bf16.mxu0 %v4722
        %4874 = vmatpush1.bf16.msra.mxu0 %v4721
        %4875 = vmatprep.subr.bf16.mxu0 %v4728
        %4876 = vmatpush1.bf16.msra.mxu0 %v4727
        %4877 = vmatprep.subr.bf16.mxu0 %v4734
        %4878 = vmatpush1.bf16.msra.mxu0 %v4733
        %4879 = vmatprep.subr.bf16.mxu0 0
        %4880 = vmatpush1.bf16.msra.mxu0 0
        %4881 = vmatprep.subr.bf16.mxu0 0
        %4882 = vmatpush1.bf16.msra.mxu0 0
        %4883 = vmatprep.subr.bf16.mxu0 0
        %4884 = vmatpush1.bf16.msra.mxu0 0
        %4885 = vmatprep.subr.bf16.mxu0 0
        %4886 = vmatpush1.bf16.msra.mxu0 0
        %4887 = vmatprep.mubr.bf16.mxu0 %v4810
        %4888 = vmatmul.mubr.bf16.gmra.mrb[0].mxu0 %v4341
        %v4889 = vpop.f32.mrb[0].mxu0
        %v4890 = vadd.f32 %v4430, %v4889
        %v4891 = vpop.f32.mrb[0].mxu0
        %v4892 = vadd.f32 %v4434, %v4891
        %v4893 = vpop.f32.mrb[0].mxu0
        %v4894 = vadd.f32 %v4430, %v4893
        %v4895 = vpop.f32.mrb[0].mxu0
        %v4896 = vadd.f32 %v4434, %v4895
        %4897 = vdwg.mxu0
        %4898 = vmatprep.subr.bf16.mxu0 %v4670
        %4899 = vmatpush1.bf16.msra.mxu0 %v4669
        %4900 = vmatprep.subr.bf16.mxu0 %v4676
        %4901 = vmatpush1.bf16.msra.mxu0 %v4675
        %4902 = vmatprep.subr.bf16.mxu0 %v4682
        %4903 = vmatpush1.bf16.msra.mxu0 %v4681
        %4904 = vmatprep.subr.bf16.mxu0 %v4688
        %4905 = vmatpush1.bf16.msra.mxu0 %v4687
        %4906 = vmatprep.subr.bf16.mxu0 %v4694
        %4907 = vmatpush1.bf16.msra.mxu0 %v4693
        %4908 = vmatprep.subr.bf16.mxu0 %v4700
        %4909 = vmatpush1.bf16.msra.mxu0 %v4699
        %4910 = vmatprep.subr.bf16.mxu0 %v4706
        %4911 = vmatpush1.bf16.msra.mxu0 %v4705
        %4912 = vmatprep.subr.bf16.mxu0 %v4712
        %4913 = vmatpush1.bf16.msra.mxu0 %v4711
        %4914 = vmatprep.subr.bf16.mxu0 %v4718
        %4915 = vmatpush1.bf16.msra.mxu0 %v4717
        %4916 = vmatprep.subr.bf16.mxu0 %v4724
        %4917 = vmatpush1.bf16.msra.mxu0 %v4723
        %4918 = vmatprep.subr.bf16.mxu0 %v4730
        %4919 = vmatpush1.bf16.msra.mxu0 %v4729
        %4920 = vmatprep.subr.bf16.mxu0 %v4736
        %4921 = vmatpush1.bf16.msra.mxu0 %v4735
        %4922 = vmatprep.subr.bf16.mxu0 0
        %4923 = vmatpush1.bf16.msra.mxu0 0
        %4924 = vmatprep.subr.bf16.mxu0 0
        %4925 = vmatpush1.bf16.msra.mxu0 0
        %4926 = vmatprep.subr.bf16.mxu0 0
        %4927 = vmatpush1.bf16.msra.mxu0 0
        %4928 = vmatprep.subr.bf16.mxu0 0
        %4929 = vmatpush1.bf16.msra.mxu0 0
        %4930 = vmatprep.mubr.bf16.mxu0 %v4810
        %4931 = vmatmul.mubr.bf16.gmra.mrb[0].mxu0 %v4341
        %v4932 = vpop.f32.mrb[0].mxu0
        %v4933 = vadd.f32 %v4438, %v4932
        %v4934 = vpop.f32.mrb[0].mxu0
        %v4935 = vadd.f32 %v4442, %v4934
        %v4936 = vpop.f32.mrb[0].mxu0
        %v4937 = vadd.f32 %v4438, %v4936
        %v4938 = vpop.f32.mrb[0].mxu0
        %v4939 = vadd.f32 %v4442, %v4938
        %4940 = vdwg.mxu0
        %v4941 = vmax.f32 %v4847, 0.0
        %v4942 = vmax.f32 %v4849, 0.0
        %v4943 = vmax.f32 %v4890, 0.0
        %v4944 = vmax.f32 %v4892, 0.0
        %v4945 = vmax.f32 %v4933, 0.0
        %v4946 = vmax.f32 %v4935, 0.0
        %v4947 = vmax.f32 %v4851, 0.0
        %v4948 = vmax.f32 %v4853, 0.0
        %v4949 = vmax.f32 %v4894, 0.0
        %v4950 = vmax.f32 %v4896, 0.0
        %v4951 = vmax.f32 %v4937, 0.0
        %v4952 = vmax.f32 %v4939, 0.0
        %v4953 = vpack.c.bf16 %v4947, %v4941
        %v4954 = vpack.c.bf16 %v4948, %v4942
        %v4955 = vpack.c.bf16 %v4949, %v4943
        %v4956 = vpack.c.bf16 %v4950, %v4944
        %v4957 = vpack.c.bf16 %v4951, %v4945
        %v4958 = vpack.c.bf16 %v4952, %v4946
        %s4959 = scalar_lea.vmem %s10, 768
        %v4960 = vld [vmem:[%s4959] sm:$0xff]
        %v4961 = vld [vmem:[%s4959 + $0x8] sm:$0xff]
        %v4962 = vld [vmem:[%s4959 + $0x10] sm:$0xff]
        %v4963 = vld [vmem:[%s4959 + $0x18] sm:$0xff]
        %v4964 = vld [vmem:[%s4959 + $0x20] sm:$0xff]
        %v4965 = vld [vmem:[%s4959 + $0x28] sm:$0xff]
        %v4966 = vld [vmem:[%s4959 + $0x30] sm:$0xff]
        %v4967 = vld [vmem:[%s4959 + $0x38] sm:$0xff]
        %v4968 = vld [vmem:[%s4959 + $0x40] sm:$0xff]
        %v4969 = vld [vmem:[%s4959 + $0x48] sm:$0xff]
        %v4970 = vld [vmem:[%s4959 + $0x50] sm:$0xff]
        %v4971 = vld [vmem:[%s4959 + $0x58] sm:$0xff]
        %v4972 = vld [vmem:[%s4959 + $0x60] sm:$0xff]
        %v4973 = vld [vmem:[%s4959 + $0x68] sm:$0xff]
        %v4974 = vld [vmem:[%s4959 + $0x70] sm:$0xff]
        %v4975 = vld [vmem:[%s4959 + $0x78] sm:$0xff]
        %v4976 = vld [vmem:[%s4959 + $0x80] sm:$0xff]
        %v4977 = vld [vmem:[%s4959 + $0x88] sm:$0xff]
        %v4978 = vld [vmem:[%s4959 + $0x90] sm:$0xff]
        %v4979 = vld [vmem:[%s4959 + $0x98] sm:$0xff]
        %v4980 = vld [vmem:[%s4959 + $0xa0] sm:$0xff]
        %v4981 = vld [vmem:[%s4959 + $0xa8] sm:$0xff]
        %v4982 = vld [vmem:[%s4959 + $0xb0] sm:$0xff]
        %v4983 = vld [vmem:[%s4959 + $0xb8] sm:$0xff]
        %v4984 = vld [vmem:[%s4959 + $0xc0] sm:$0xff]
        %v4985 = vld [vmem:[%s4959 + $0xc8] sm:$0xff]
        %v4986 = vld [vmem:[%s4959 + $0xd0] sm:$0xff]
        %v4987 = vld [vmem:[%s4959 + $0xd8] sm:$0xff]
        %v4988 = vld [vmem:[%s4959 + $0xe0] sm:$0xff]
        %v4989 = vld [vmem:[%s4959 + $0xe8] sm:$0xff]
        %v4990 = vld [vmem:[%s4959 + $0xf0] sm:$0xff]
        %v4991 = vld [vmem:[%s4959 + $0xf8] sm:$0xff]
        %v4992 = vld [vmem:[%s4959 + $0x100] sm:$0xff]
        %v4993 = vld [vmem:[%s4959 + $0x108] sm:$0xff]
        %v4994 = vld [vmem:[%s4959 + $0x110] sm:$0xff]
        %v4995 = vld [vmem:[%s4959 + $0x118] sm:$0xff]
        %v4996 = vld [vmem:[%s4959 + $0x120] sm:$0xff]
        %v4997 = vld [vmem:[%s4959 + $0x128] sm:$0xff]
        %v4998 = vld [vmem:[%s4959 + $0x130] sm:$0xff]
        %v4999 = vld [vmem:[%s4959 + $0x138] sm:$0xff]
        %v5000 = vld [vmem:[%s4959 + $0x140] sm:$0xff]
        %v5001 = vld [vmem:[%s4959 + $0x148] sm:$0xff]
        %v5002 = vld [vmem:[%s4959 + $0x150] sm:$0xff]
        %v5003 = vld [vmem:[%s4959 + $0x158] sm:$0xff]
        %v5004 = vld [vmem:[%s4959 + $0x160] sm:$0xff]
        %v5005 = vld [vmem:[%s4959 + $0x168] sm:$0xff]
        %v5006 = vld [vmem:[%s4959 + $0x170] sm:$0xff]
        %v5007 = vld [vmem:[%s4959 + $0x178] sm:$0xff]
        %v5008 = vld [vmem:[%s4959 + $0x180] sm:$0xff]
        %v5009 = vld [vmem:[%s4959 + $0x188] sm:$0xff]
        %v5010 = vld [vmem:[%s4959 + $0x190] sm:$0xff]
        %v5011 = vld [vmem:[%s4959 + $0x198] sm:$0xff]
        %v5012 = vld [vmem:[%s4959 + $0x1a0] sm:$0xff]
        %v5013 = vld [vmem:[%s4959 + $0x1a8] sm:$0xff]
        %v5014 = vld [vmem:[%s4959 + $0x1b0] sm:$0xff]
        %v5015 = vld [vmem:[%s4959 + $0x1b8] sm:$0xff]
        %v5016 = vld [vmem:[%s4959 + $0x1c0] sm:$0xff]
        %v5017 = vld [vmem:[%s4959 + $0x1c8] sm:$0xff]
        %v5018 = vld [vmem:[%s4959 + $0x1d0] sm:$0xff]
        %v5019 = vld [vmem:[%s4959 + $0x1d8] sm:$0xff]
        %v5020 = vld [vmem:[%s4959 + $0x1e0] sm:$0xff]
        %v5021 = vld [vmem:[%s4959 + $0x1e8] sm:$0xff]
        %v5022 = vld [vmem:[%s4959 + $0x1f0] sm:$0xff]
        %v5023 = vld [vmem:[%s4959 + $0x1f8] sm:$0xff]
        %v5024 = vld [vmem:[%s4959 + $0x200] sm:$0xff]
        %v5025 = vld [vmem:[%s4959 + $0x208] sm:$0xff]
        %v5026 = vld [vmem:[%s4959 + $0x210] sm:$0xff]
        %v5027 = vld [vmem:[%s4959 + $0x218] sm:$0xff]
        %v5028 = vld [vmem:[%s4959 + $0x220] sm:$0xff]
        %v5029 = vld [vmem:[%s4959 + $0x228] sm:$0xff]
        %v5030 = vld [vmem:[%s4959 + $0x230] sm:$0xff]
        %v5031 = vld [vmem:[%s4959 + $0x238] sm:$0xff]
        %v5032 = vld [vmem:[%s4959 + $0x240] sm:$0xff]
        %v5033 = vld [vmem:[%s4959 + $0x248] sm:$0xff]
        %v5034 = vld [vmem:[%s4959 + $0x250] sm:$0xff]
        %v5035 = vld [vmem:[%s4959 + $0x258] sm:$0xff]
        %v5036 = vld [vmem:[%s4959 + $0x260] sm:$0xff]
        %v5037 = vld [vmem:[%s4959 + $0x268] sm:$0xff]
        %v5038 = vld [vmem:[%s4959 + $0x270] sm:$0xff]
        %v5039 = vld [vmem:[%s4959 + $0x278] sm:$0xff]
        %v5040 = vld [vmem:[%s4959 + $0x280] sm:$0xff]
        %v5041 = vld [vmem:[%s4959 + $0x288] sm:$0xff]
        %v5042 = vld [vmem:[%s4959 + $0x290] sm:$0xff]
        %v5043 = vld [vmem:[%s4959 + $0x298] sm:$0xff]
        %v5044 = vld [vmem:[%s4959 + $0x2a0] sm:$0xff]
        %v5045 = vld [vmem:[%s4959 + $0x2a8] sm:$0xff]
        %v5046 = vld [vmem:[%s4959 + $0x2b0] sm:$0xff]
        %v5047 = vld [vmem:[%s4959 + $0x2b8] sm:$0xff]
        %v5048 = vld [vmem:[%s4959 + $0x2c0] sm:$0xff]
        %v5049 = vld [vmem:[%s4959 + $0x2c8] sm:$0xff]
        %v5050 = vld [vmem:[%s4959 + $0x2d0] sm:$0xff]
        %v5051 = vld [vmem:[%s4959 + $0x2d8] sm:$0xff]
        %v5052 = vld [vmem:[%s4959 + $0x2e0] sm:$0xff]
        %v5053 = vld [vmem:[%s4959 + $0x2e8] sm:$0xff]
        %v5054 = vld [vmem:[%s4959 + $0x2f0] sm:$0xff]
        %v5055 = vld [vmem:[%s4959 + $0x2f8] sm:$0xff]
        %s5056 = scalar_lea.vmem %s11, 2
        %v5057 = vld [vmem:[%s5056] sm:$0x3]
        %v5059 = vlaneseq
        %v5060 = vshrl.u32 %v5059, 7
        %v5061 = vsub.s32 0, %v5060
        %v5062 = vrot.slane %v5057, %v5061
        %v5063 = vlaneseq
        %v5064 = vshrl.u32 %v5063, 7
        %v5065 = vsub.s32 1, %v5064
        %v5066 = vrot.slane %v5057, %v5065
        %v5165 = vunpack.c.l.b16 %v4960
        %v5166 = vunpack.c.h.b16 %v4960
        %v5167 = vunpack.c.l.b16 %v4961
        %v5168 = vunpack.c.h.b16 %v4961
        %v5169 = vunpack.c.l.b16 %v4962
        %v5170 = vunpack.c.h.b16 %v4962
        %v5171 = vunpack.c.l.b16 %v4963
        %v5172 = vunpack.c.h.b16 %v4963
        %v5173 = vunpack.c.l.b16 %v4964
        %v5174 = vunpack.c.h.b16 %v4964
        %v5175 = vunpack.c.l.b16 %v4965
        %v5176 = vunpack.c.h.b16 %v4965
        %v5177 = vunpack.c.l.b16 %v4966
        %v5178 = vunpack.c.h.b16 %v4966
        %v5179 = vunpack.c.l.b16 %v4967
        %v5180 = vunpack.c.h.b16 %v4967
        %v5181 = vunpack.c.l.b16 %v4968
        %v5182 = vunpack.c.h.b16 %v4968
        %v5183 = vunpack.c.l.b16 %v4969
        %v5184 = vunpack.c.h.b16 %v4969
        %v5185 = vunpack.c.l.b16 %v4970
        %v5186 = vunpack.c.h.b16 %v4970
        %v5187 = vunpack.c.l.b16 %v4971
        %v5188 = vunpack.c.h.b16 %v4971
        %v5189 = vunpack.c.l.b16 %v4972
        %v5190 = vunpack.c.h.b16 %v4972
        %v5191 = vunpack.c.l.b16 %v4973
        %v5192 = vunpack.c.h.b16 %v4973
        %v5193 = vunpack.c.l.b16 %v4974
        %v5194 = vunpack.c.h.b16 %v4974
        %v5195 = vunpack.c.l.b16 %v4975
        %v5196 = vunpack.c.h.b16 %v4975
        %v5197 = vunpack.c.l.b16 %v4976
        %v5198 = vunpack.c.h.b16 %v4976
        %v5199 = vunpack.c.l.b16 %v4977
        %v5200 = vunpack.c.h.b16 %v4977
        %v5201 = vunpack.c.l.b16 %v4978
        %v5202 = vunpack.c.h.b16 %v4978
        %v5203 = vunpack.c.l.b16 %v4979
        %v5204 = vunpack.c.h.b16 %v4979
        %v5205 = vunpack.c.l.b16 %v4980
        %v5206 = vunpack.c.h.b16 %v4980
        %v5207 = vunpack.c.l.b16 %v4981
        %v5208 = vunpack.c.h.b16 %v4981
        %v5209 = vunpack.c.l.b16 %v4982
        %v5210 = vunpack.c.h.b16 %v4982
        %v5211 = vunpack.c.l.b16 %v4983
        %v5212 = vunpack.c.h.b16 %v4983
        %v5213 = vunpack.c.l.b16 %v4984
        %v5214 = vunpack.c.h.b16 %v4984
        %v5215 = vunpack.c.l.b16 %v4985
        %v5216 = vunpack.c.h.b16 %v4985
        %v5217 = vunpack.c.l.b16 %v4986
        %v5218 = vunpack.c.h.b16 %v4986
        %v5219 = vunpack.c.l.b16 %v4987
        %v5220 = vunpack.c.h.b16 %v4987
        %v5221 = vunpack.c.l.b16 %v4988
        %v5222 = vunpack.c.h.b16 %v4988
        %v5223 = vunpack.c.l.b16 %v4989
        %v5224 = vunpack.c.h.b16 %v4989
        %v5225 = vunpack.c.l.b16 %v4990
        %v5226 = vunpack.c.h.b16 %v4990
        %v5227 = vunpack.c.l.b16 %v4991
        %v5228 = vunpack.c.h.b16 %v4991
        %v5229 = vunpack.c.l.b16 %v4992
        %v5230 = vunpack.c.h.b16 %v4992
        %v5231 = vunpack.c.l.b16 %v4993
        %v5232 = vunpack.c.h.b16 %v4993
        %v5233 = vunpack.c.l.b16 %v4994
        %v5234 = vunpack.c.h.b16 %v4994
        %v5235 = vunpack.c.l.b16 %v4995
        %v5236 = vunpack.c.h.b16 %v4995
        %v5237 = vunpack.c.l.b16 %v4996
        %v5238 = vunpack.c.h.b16 %v4996
        %v5239 = vunpack.c.l.b16 %v4997
        %v5240 = vunpack.c.h.b16 %v4997
        %v5241 = vunpack.c.l.b16 %v4998
        %v5242 = vunpack.c.h.b16 %v4998
        %v5243 = vunpack.c.l.b16 %v4999
        %v5244 = vunpack.c.h.b16 %v4999
        %v5245 = vunpack.c.l.b16 %v5000
        %v5246 = vunpack.c.h.b16 %v5000
        %v5247 = vunpack.c.l.b16 %v5001
        %v5248 = vunpack.c.h.b16 %v5001
        %v5249 = vunpack.c.l.b16 %v5002
        %v5250 = vunpack.c.h.b16 %v5002
        %v5251 = vunpack.c.l.b16 %v5003
        %v5252 = vunpack.c.h.b16 %v5003
        %v5253 = vunpack.c.l.b16 %v5004
        %v5254 = vunpack.c.h.b16 %v5004
        %v5255 = vunpack.c.l.b16 %v5005
        %v5256 = vunpack.c.h.b16 %v5005
        %v5257 = vunpack.c.l.b16 %v5006
        %v5258 = vunpack.c.h.b16 %v5006
        %v5259 = vunpack.c.l.b16 %v5007
        %v5260 = vunpack.c.h.b16 %v5007
        %v5261 = vunpack.c.l.b16 %v5008
        %v5262 = vunpack.c.h.b16 %v5008
        %v5263 = vunpack.c.l.b16 %v5009
        %v5264 = vunpack.c.h.b16 %v5009
        %v5265 = vunpack.c.l.b16 %v5010
        %v5266 = vunpack.c.h.b16 %v5010
        %v5267 = vunpack.c.l.b16 %v5011
        %v5268 = vunpack.c.h.b16 %v5011
        %v5269 = vunpack.c.l.b16 %v5012
        %v5270 = vunpack.c.h.b16 %v5012
        %v5271 = vunpack.c.l.b16 %v5013
        %v5272 = vunpack.c.h.b16 %v5013
        %v5273 = vunpack.c.l.b16 %v5014
        %v5274 = vunpack.c.h.b16 %v5014
        %v5275 = vunpack.c.l.b16 %v5015
        %v5276 = vunpack.c.h.b16 %v5015
        %v5277 = vunpack.c.l.b16 %v5016
        %v5278 = vunpack.c.h.b16 %v5016
        %v5279 = vunpack.c.l.b16 %v5017
        %v5280 = vunpack.c.h.b16 %v5017
        %v5281 = vunpack.c.l.b16 %v5018
        %v5282 = vunpack.c.h.b16 %v5018
        %v5283 = vunpack.c.l.b16 %v5019
        %v5284 = vunpack.c.h.b16 %v5019
        %v5285 = vunpack.c.l.b16 %v5020
        %v5286 = vunpack.c.h.b16 %v5020
        %v5287 = vunpack.c.l.b16 %v5021
        %v5288 = vunpack.c.h.b16 %v5021
        %v5289 = vunpack.c.l.b16 %v5022
        %v5290 = vunpack.c.h.b16 %v5022
        %v5291 = vunpack.c.l.b16 %v5023
        %v5292 = vunpack.c.h.b16 %v5023
        %v5293 = vunpack.c.l.b16 %v5024
        %v5294 = vunpack.c.h.b16 %v5024
        %v5295 = vunpack.c.l.b16 %v5025
        %v5296 = vunpack.c.h.b16 %v5025
        %v5297 = vunpack.c.l.b16 %v5026
        %v5298 = vunpack.c.h.b16 %v5026
        %v5299 = vunpack.c.l.b16 %v5027
        %v5300 = vunpack.c.h.b16 %v5027
        %v5301 = vunpack.c.l.b16 %v5028
        %v5302 = vunpack.c.h.b16 %v5028
        %v5303 = vunpack.c.l.b16 %v5029
        %v5304 = vunpack.c.h.b16 %v5029
        %v5305 = vunpack.c.l.b16 %v5030
        %v5306 = vunpack.c.h.b16 %v5030
        %v5307 = vunpack.c.l.b16 %v5031
        %v5308 = vunpack.c.h.b16 %v5031
        %v5309 = vunpack.c.l.b16 %v5032
        %v5310 = vunpack.c.h.b16 %v5032
        %v5311 = vunpack.c.l.b16 %v5033
        %v5312 = vunpack.c.h.b16 %v5033
        %v5313 = vunpack.c.l.b16 %v5034
        %v5314 = vunpack.c.h.b16 %v5034
        %v5315 = vunpack.c.l.b16 %v5035
        %v5316 = vunpack.c.h.b16 %v5035
        %v5317 = vunpack.c.l.b16 %v5036
        %v5318 = vunpack.c.h.b16 %v5036
        %v5319 = vunpack.c.l.b16 %v5037
        %v5320 = vunpack.c.h.b16 %v5037
        %v5321 = vunpack.c.l.b16 %v5038
        %v5322 = vunpack.c.h.b16 %v5038
        %v5323 = vunpack.c.l.b16 %v5039
        %v5324 = vunpack.c.h.b16 %v5039
        %v5325 = vunpack.c.l.b16 %v5040
        %v5326 = vunpack.c.h.b16 %v5040
        %v5327 = vunpack.c.l.b16 %v5041
        %v5328 = vunpack.c.h.b16 %v5041
        %v5329 = vunpack.c.l.b16 %v5042
        %v5330 = vunpack.c.h.b16 %v5042
        %v5331 = vunpack.c.l.b16 %v5043
        %v5332 = vunpack.c.h.b16 %v5043
        %v5333 = vunpack.c.l.b16 %v5044
        %v5334 = vunpack.c.h.b16 %v5044
        %v5335 = vunpack.c.l.b16 %v5045
        %v5336 = vunpack.c.h.b16 %v5045
        %v5337 = vunpack.c.l.b16 %v5046
        %v5338 = vunpack.c.h.b16 %v5046
        %v5339 = vunpack.c.l.b16 %v5047
        %v5340 = vunpack.c.h.b16 %v5047
        %v5341 = vunpack.c.l.b16 %v5048
        %v5342 = vunpack.c.h.b16 %v5048
        %v5343 = vunpack.c.l.b16 %v5049
        %v5344 = vunpack.c.h.b16 %v5049
        %v5345 = vunpack.c.l.b16 %v5050
        %v5346 = vunpack.c.h.b16 %v5050
        %v5347 = vunpack.c.l.b16 %v5051
        %v5348 = vunpack.c.h.b16 %v5051
        %v5349 = vunpack.c.l.b16 %v5052
        %v5350 = vunpack.c.h.b16 %v5052
        %v5351 = vunpack.c.l.b16 %v5053
        %v5352 = vunpack.c.h.b16 %v5053
        %v5353 = vunpack.c.l.b16 %v5054
        %v5354 = vunpack.c.h.b16 %v5054
        %v5355 = vunpack.c.l.b16 %v5055
        %v5356 = vunpack.c.h.b16 %v5055
        %v5357 = vpack.c.b16 %v5167, %v5165
        %v5358 = vpack.c.b16 %v5168, %v5166
        %v5359 = vpack.c.b16 %v5171, %v5169
        %v5360 = vpack.c.b16 %v5172, %v5170
        %v5361 = vpack.c.b16 %v5175, %v5173
        %v5362 = vpack.c.b16 %v5176, %v5174
        %v5363 = vpack.c.b16 %v5179, %v5177
        %v5364 = vpack.c.b16 %v5180, %v5178
        %v5365 = vpack.c.b16 %v5183, %v5181
        %v5366 = vpack.c.b16 %v5184, %v5182
        %v5367 = vpack.c.b16 %v5187, %v5185
        %v5368 = vpack.c.b16 %v5188, %v5186
        %v5369 = vpack.c.b16 %v5191, %v5189
        %v5370 = vpack.c.b16 %v5192, %v5190
        %v5371 = vpack.c.b16 %v5195, %v5193
        %v5372 = vpack.c.b16 %v5196, %v5194
        %v5373 = vpack.c.b16 %v5199, %v5197
        %v5374 = vpack.c.b16 %v5200, %v5198
        %v5375 = vpack.c.b16 %v5203, %v5201
        %v5376 = vpack.c.b16 %v5204, %v5202
        %v5377 = vpack.c.b16 %v5207, %v5205
        %v5378 = vpack.c.b16 %v5208, %v5206
        %v5379 = vpack.c.b16 %v5211, %v5209
        %v5380 = vpack.c.b16 %v5212, %v5210
        %v5381 = vpack.c.b16 %v5215, %v5213
        %v5382 = vpack.c.b16 %v5216, %v5214
        %v5383 = vpack.c.b16 %v5219, %v5217
        %v5384 = vpack.c.b16 %v5220, %v5218
        %v5385 = vpack.c.b16 %v5223, %v5221
        %v5386 = vpack.c.b16 %v5224, %v5222
        %v5387 = vpack.c.b16 %v5227, %v5225
        %v5388 = vpack.c.b16 %v5228, %v5226
        %v5389 = vpack.c.b16 %v5231, %v5229
        %v5390 = vpack.c.b16 %v5232, %v5230
        %v5391 = vpack.c.b16 %v5235, %v5233
        %v5392 = vpack.c.b16 %v5236, %v5234
        %v5393 = vpack.c.b16 %v5239, %v5237
        %v5394 = vpack.c.b16 %v5240, %v5238
        %v5395 = vpack.c.b16 %v5243, %v5241
        %v5396 = vpack.c.b16 %v5244, %v5242
        %v5397 = vpack.c.b16 %v5247, %v5245
        %v5398 = vpack.c.b16 %v5248, %v5246
        %v5399 = vpack.c.b16 %v5251, %v5249
        %v5400 = vpack.c.b16 %v5252, %v5250
        %v5401 = vpack.c.b16 %v5255, %v5253
        %v5402 = vpack.c.b16 %v5256, %v5254
        %v5403 = vpack.c.b16 %v5259, %v5257
        %v5404 = vpack.c.b16 %v5260, %v5258
        %v5405 = vpack.c.b16 %v5263, %v5261
        %v5406 = vpack.c.b16 %v5264, %v5262
        %v5407 = vpack.c.b16 %v5267, %v5265
        %v5408 = vpack.c.b16 %v5268, %v5266
        %v5409 = vpack.c.b16 %v5271, %v5269
        %v5410 = vpack.c.b16 %v5272, %v5270
        %v5411 = vpack.c.b16 %v5275, %v5273
        %v5412 = vpack.c.b16 %v5276, %v5274
        %v5413 = vpack.c.b16 %v5279, %v5277
        %v5414 = vpack.c.b16 %v5280, %v5278
        %v5415 = vpack.c.b16 %v5283, %v5281
        %v5416 = vpack.c.b16 %v5284, %v5282
        %v5417 = vpack.c.b16 %v5287, %v5285
        %v5418 = vpack.c.b16 %v5288, %v5286
        %v5419 = vpack.c.b16 %v5291, %v5289
        %v5420 = vpack.c.b16 %v5292, %v5290
        %v5421 = vpack.c.b16 %v5295, %v5293
        %v5422 = vpack.c.b16 %v5296, %v5294
        %v5423 = vpack.c.b16 %v5299, %v5297
        %v5424 = vpack.c.b16 %v5300, %v5298
        %v5425 = vpack.c.b16 %v5303, %v5301
        %v5426 = vpack.c.b16 %v5304, %v5302
        %v5427 = vpack.c.b16 %v5307, %v5305
        %v5428 = vpack.c.b16 %v5308, %v5306
        %v5429 = vpack.c.b16 %v5311, %v5309
        %v5430 = vpack.c.b16 %v5312, %v5310
        %v5431 = vpack.c.b16 %v5315, %v5313
        %v5432 = vpack.c.b16 %v5316, %v5314
        %v5433 = vpack.c.b16 %v5319, %v5317
        %v5434 = vpack.c.b16 %v5320, %v5318
        %v5435 = vpack.c.b16 %v5323, %v5321
        %v5436 = vpack.c.b16 %v5324, %v5322
        %v5437 = vpack.c.b16 %v5327, %v5325
        %v5438 = vpack.c.b16 %v5328, %v5326
        %v5439 = vpack.c.b16 %v5331, %v5329
        %v5440 = vpack.c.b16 %v5332, %v5330
        %v5441 = vpack.c.b16 %v5335, %v5333
        %v5442 = vpack.c.b16 %v5336, %v5334
        %v5443 = vpack.c.b16 %v5339, %v5337
        %v5444 = vpack.c.b16 %v5340, %v5338
        %v5445 = vpack.c.b16 %v5343, %v5341
        %v5446 = vpack.c.b16 %v5344, %v5342
        %v5447 = vpack.c.b16 %v5347, %v5345
        %v5448 = vpack.c.b16 %v5348, %v5346
        %v5449 = vpack.c.b16 %v5351, %v5349
        %v5450 = vpack.c.b16 %v5352, %v5350
        %v5451 = vpack.c.b16 %v5355, %v5353
        %v5452 = vpack.c.b16 %v5356, %v5354
        %5549 = vmatprep.subr.bf16.mxu0 %v5358
        %5550 = vmatpush1.bf16.msra.mxu0 %v5357
        %5551 = vmatprep.subr.bf16.mxu0 %v5360
        %5552 = vmatpush1.bf16.msra.mxu0 %v5359
        %5553 = vmatprep.subr.bf16.mxu0 %v5362
        %5554 = vmatpush1.bf16.msra.mxu0 %v5361
        %5555 = vmatprep.subr.bf16.mxu0 %v5364
        %5556 = vmatpush1.bf16.msra.mxu0 %v5363
        %5557 = vmatprep.subr.bf16.mxu0 %v5366
        %5558 = vmatpush1.bf16.msra.mxu0 %v5365
        %5559 = vmatprep.subr.bf16.mxu0 %v5368
        %5560 = vmatpush1.bf16.msra.mxu0 %v5367
        %5561 = vmatprep.subr.bf16.mxu0 %v5370
        %5562 = vmatpush1.bf16.msra.mxu0 %v5369
        %5563 = vmatprep.subr.bf16.mxu0 %v5372
        %5564 = vmatpush1.bf16.msra.mxu0 %v5371
        %5565 = vmatprep.subr.bf16.mxu0 %v5374
        %5566 = vmatpush1.bf16.msra.mxu0 %v5373
        %5567 = vmatprep.subr.bf16.mxu0 %v5376
        %5568 = vmatpush1.bf16.msra.mxu0 %v5375
        %5569 = vmatprep.subr.bf16.mxu0 %v5378
        %5570 = vmatpush1.bf16.msra.mxu0 %v5377
        %5571 = vmatprep.subr.bf16.mxu0 %v5380
        %5572 = vmatpush1.bf16.msra.mxu0 %v5379
        %5573 = vmatprep.subr.bf16.mxu0 %v5382
        %5574 = vmatpush1.bf16.msra.mxu0 %v5381
        %5575 = vmatprep.subr.bf16.mxu0 %v5384
        %5576 = vmatpush1.bf16.msra.mxu0 %v5383
        %5577 = vmatprep.subr.bf16.mxu0 %v5386
        %5578 = vmatpush1.bf16.msra.mxu0 %v5385
        %5579 = vmatprep.subr.bf16.mxu0 %v5388
        %5580 = vmatpush1.bf16.msra.mxu0 %v5387
        %5581 = vmatprep.mubr.bf16.mxu0 %v4954
        %5582 = vmatmul.mubr.bf16.gmra.mrb[0].mxu0 %v4953
        %v5583 = vpop.f32.mrb[0].mxu0
        %v5584 = vadd.f32 %v5062, %v5583
        %v5585 = vpop.f32.mrb[0].mxu0
        %v5586 = vadd.f32 %v5066, %v5585
        %v5587 = vpop.f32.mrb[0].mxu0
        %v5588 = vadd.f32 %v5062, %v5587
        %v5589 = vpop.f32.mrb[0].mxu0
        %v5590 = vadd.f32 %v5066, %v5589
        %5591 = vdwg.mxu0
        %5592 = vmatprep.subr.bf16.mxu0 %v5390
        %5593 = vmatpush1.bf16.msra.mxu0 %v5389
        %5594 = vmatprep.subr.bf16.mxu0 %v5392
        %5595 = vmatpush1.bf16.msra.mxu0 %v5391
        %5596 = vmatprep.subr.bf16.mxu0 %v5394
        %5597 = vmatpush1.bf16.msra.mxu0 %v5393
        %5598 = vmatprep.subr.bf16.mxu0 %v5396
        %5599 = vmatpush1.bf16.msra.mxu0 %v5395
        %5600 = vmatprep.subr.bf16.mxu0 %v5398
        %5601 = vmatpush1.bf16.msra.mxu0 %v5397
        %5602 = vmatprep.subr.bf16.mxu0 %v5400
        %5603 = vmatpush1.bf16.msra.mxu0 %v5399
        %5604 = vmatprep.subr.bf16.mxu0 %v5402
        %5605 = vmatpush1.bf16.msra.mxu0 %v5401
        %5606 = vmatprep.subr.bf16.mxu0 %v5404
        %5607 = vmatpush1.bf16.msra.mxu0 %v5403
        %5608 = vmatprep.subr.bf16.mxu0 %v5406
        %5609 = vmatpush1.bf16.msra.mxu0 %v5405
        %5610 = vmatprep.subr.bf16.mxu0 %v5408
        %5611 = vmatpush1.bf16.msra.mxu0 %v5407
        %5612 = vmatprep.subr.bf16.mxu0 %v5410
        %5613 = vmatpush1.bf16.msra.mxu0 %v5409
        %5614 = vmatprep.subr.bf16.mxu0 %v5412
        %5615 = vmatpush1.bf16.msra.mxu0 %v5411
        %5616 = vmatprep.subr.bf16.mxu0 %v5414
        %5617 = vmatpush1.bf16.msra.mxu0 %v5413
        %5618 = vmatprep.subr.bf16.mxu0 %v5416
        %5619 = vmatpush1.bf16.msra.mxu0 %v5415
        %5620 = vmatprep.subr.bf16.mxu0 %v5418
        %5621 = vmatpush1.bf16.msra.mxu0 %v5417
        %5622 = vmatprep.subr.bf16.mxu0 %v5420
        %5623 = vmatpush1.bf16.msra.mxu0 %v5419
        %5624 = vmatprep.mubr.bf16.mxu0 %v4956
        %5625 = vmatmul.mubr.bf16.gmra.mrb[0].mxu0 %v4955
        %v5626 = vpop.f32.mrb[0].mxu0
        %v5627 = vadd.f32 %v5584, %v5626
        %v5628 = vpop.f32.mrb[0].mxu0
        %v5629 = vadd.f32 %v5586, %v5628
        %v5630 = vpop.f32.mrb[0].mxu0
        %v5631 = vadd.f32 %v5588, %v5630
        %v5632 = vpop.f32.mrb[0].mxu0
        %v5633 = vadd.f32 %v5590, %v5632
        %5634 = vdwg.mxu0
        %5635 = vmatprep.subr.bf16.mxu0 %v5422
        %5636 = vmatpush1.bf16.msra.mxu0 %v5421
        %5637 = vmatprep.subr.bf16.mxu0 %v5424
        %5638 = vmatpush1.bf16.msra.mxu0 %v5423
        %5639 = vmatprep.subr.bf16.mxu0 %v5426
        %5640 = vmatpush1.bf16.msra.mxu0 %v5425
        %5641 = vmatprep.subr.bf16.mxu0 %v5428
        %5642 = vmatpush1.bf16.msra.mxu0 %v5427
        %5643 = vmatprep.subr.bf16.mxu0 %v5430
        %5644 = vmatpush1.bf16.msra.mxu0 %v5429
        %5645 = vmatprep.subr.bf16.mxu0 %v5432
        %5646 = vmatpush1.bf16.msra.mxu0 %v5431
        %5647 = vmatprep.subr.bf16.mxu0 %v5434
        %5648 = vmatpush1.bf16.msra.mxu0 %v5433
        %5649 = vmatprep.subr.bf16.mxu0 %v5436
        %5650 = vmatpush1.bf16.msra.mxu0 %v5435
        %5651 = vmatprep.subr.bf16.mxu0 %v5438
        %5652 = vmatpush1.bf16.msra.mxu0 %v5437
        %5653 = vmatprep.subr.bf16.mxu0 %v5440
        %5654 = vmatpush1.bf16.msra.mxu0 %v5439
        %5655 = vmatprep.subr.bf16.mxu0 %v5442
        %5656 = vmatpush1.bf16.msra.mxu0 %v5441
        %5657 = vmatprep.subr.bf16.mxu0 %v5444
        %5658 = vmatpush1.bf16.msra.mxu0 %v5443
        %5659 = vmatprep.subr.bf16.mxu0 %v5446
        %5660 = vmatpush1.bf16.msra.mxu0 %v5445
        %5661 = vmatprep.subr.bf16.mxu0 %v5448
        %5662 = vmatpush1.bf16.msra.mxu0 %v5447
        %5663 = vmatprep.subr.bf16.mxu0 %v5450
        %5664 = vmatpush1.bf16.msra.mxu0 %v5449
        %5665 = vmatprep.subr.bf16.mxu0 %v5452
        %5666 = vmatpush1.bf16.msra.mxu0 %v5451
        %5667 = vmatprep.mubr.bf16.mxu0 %v4958
        %5668 = vmatmul.mubr.bf16.gmra.mrb[0].mxu0 %v4957
        %v5669 = vpop.f32.mrb[0].mxu0
        %v5670 = vadd.f32 %v5627, %v5669
        %v5671 = vpop.f32.mrb[0].mxu0
        %v5672 = vadd.f32 %v5629, %v5671
        %v5673 = vpop.f32.mrb[0].mxu0
        %v5674 = vadd.f32 %v5631, %v5673
        %v5675 = vpop.f32.mrb[0].mxu0
        %v5676 = vadd.f32 %v5633, %v5675
        %5677 = vdwg.mxu0
        %v5678 = vadd.f32 %v4267, %v5670
        %v5679 = vadd.f32 %v4268, %v5672
        %v5680 = vadd.f32 %v4269, %v5674
        %v5681 = vadd.f32 %v4270, %v5676
        %s5682 = scalar_lea.vmem %s1, 4
        %v5683 = vld [vmem:[%s5682] sm:$0x3]
        %s5684 = scalar_lea.vmem %s2, 4
        %v5685 = vld [vmem:[%s5684] sm:$0x3]
        %v5686 = vsel %vm536, %v5679, 0.0
        %v5687 = vadd.f32 %v5678, %v5686
        %5688 = vadd.xlane.f32.xlu0 %v5687
        %v5689 = vpop.xlane.xlu0 %5688
        %v5690 = vsel %vm536, %v5681, 0.0
        %v5691 = vadd.f32 %v5680, %v5690
        %5692 = vadd.xlane.f32.xlu0 %v5691
        %v5693 = vpop.xlane.xlu0 %5692
        %v5694 = vmul.f32 %v5689, %v545
        %v5695 = vmul.f32 %v5693, %v545
        %v5696 = vsub.f32 %v5678, %v5694
        %v5697 = vsub.f32 %v5679, %v5694
        %v5698 = vsub.f32 %v5680, %v5695
        %v5699 = vsub.f32 %v5681, %v5695
        %v5700 = vmul.f32 %v5696, %v5696
        %v5701 = vmul.f32 %v5697, %v5697
        %v5702 = vmul.f32 %v5698, %v5698
        %v5703 = vmul.f32 %v5699, %v5699
        %v5704 = vsel %vm536, %v5701, 0.0
        %v5705 = vadd.f32 %v5700, %v5704
        %5706 = vadd.xlane.f32.xlu0 %v5705
        %v5707 = vpop.xlane.xlu0 %5706
        %v5708 = vsel %vm536, %v5703, 0.0
        %v5709 = vadd.f32 %v5702, %v5708
        %5710 = vadd.xlane.f32.xlu0 %v5709
        %v5711 = vpop.xlane.xlu0 %5710
        %v5712 = vmul.f32 %v5707, %v545
        %v5713 = vmul.f32 %v5711, %v545
        %v5714 = vadd.f32 %v5712, 1e-05
        %v5715 = vadd.f32 %v5713, 1e-05
        %v5716 = vrsqrt.pop %v5714
        %v5717 = vrsqrt.pop %v5715
        %v5718 = vmul.f32 %v5696, %v5716
        %v5719 = vmul.f32 %v5697, %v5716
        %v5720 = vmul.f32 %v5698, %v5717
        %v5721 = vmul.f32 %v5699, %v5717
        %v5723 = vlaneseq
        %v5724 = vshrl.u32 %v5723, 7
        %v5725 = vsub.s32 0, %v5724
        %v5726 = vrot.slane %v5683, %v5725
        %v5727 = vlaneseq
        %v5728 = vshrl.u32 %v5727, 7
        %v5729 = vsub.s32 1, %v5728
        %v5730 = vrot.slane %v5683, %v5729
        %v5733 = vmul.f32 %v5718, %v5726
        %v5734 = vmul.f32 %v5719, %v5730
        %v5735 = vmul.f32 %v5720, %v5726
        %v5736 = vmul.f32 %v5721, %v5730
        %v5738 = vlaneseq
        %v5739 = vshrl.u32 %v5738, 7
        %v5740 = vsub.s32 0, %v5739
        %v5741 = vrot.slane %v5685, %v5740
        %v5742 = vlaneseq
        %v5743 = vshrl.u32 %v5742, 7
        %v5744 = vsub.s32 1, %v5743
        %v5745 = vrot.slane %v5685, %v5744
        %v5748 = vadd.f32 %v5733, %v5741
        %v5749 = vadd.f32 %v5734, %v5745
        %v5750 = vadd.f32 %v5735, %v5741
        %v5751 = vadd.f32 %v5736, %v5745
        %v5752 = vpack.c.bf16 %v5750, %v5748
        %v5753 = vpack.c.bf16 %v5751, %v5749
        %s5754 = scalar_lea.vmem %s3, 960
        %v5755 = vld [vmem:[%s5754] sm:$0xff]
        %v5756 = vld [vmem:[%s5754 + $0x8] sm:$0xff]
        %v5757 = vld [vmem:[%s5754 + $0x10] sm:$0xf]
        %v5758 = vld [vmem:[%s5754 + $0x14] sm:$0xff]
        %v5759 = vld [vmem:[%s5754 + $0x1c] sm:$0xff]
        %v5760 = vld [vmem:[%s5754 + $0x24] sm:$0xf]
        %v5761 = vld [vmem:[%s5754 + $0x28] sm:$0xff]
        %v5762 = vld [vmem:[%s5754 + $0x30] sm:$0xff]
        %v5763 = vld [vmem:[%s5754 + $0x38] sm:$0xf]
        %v5764 = vld [vmem:[%s5754 + $0x3c] sm:$0xff]
        %v5765 = vld [vmem:[%s5754 + $0x44] sm:$0xff]
        %v5766 = vld [vmem:[%s5754 + $0x4c] sm:$0xf]
        %v5767 = vld [vmem:[%s5754 + $0x50] sm:$0xff]
        %v5768 = vld [vmem:[%s5754 + $0x58] sm:$0xff]
        %v5769 = vld [vmem:[%s5754 + $0x60] sm:$0xf]
        %v5770 = vld [vmem:[%s5754 + $0x64] sm:$0xff]
        %v5771 = vld [vmem:[%s5754 + $0x6c] sm:$0xff]
        %v5772 = vld [vmem:[%s5754 + $0x74] sm:$0xf]
        %v5773 = vld [vmem:[%s5754 + $0x78] sm:$0xff]
        %v5774 = vld [vmem:[%s5754 + $0x80] sm:$0xff]
        %v5775 = vld [vmem:[%s5754 + $0x88] sm:$0xf]
        %v5776 = vld [vmem:[%s5754 + $0x8c] sm:$0xff]
        %v5777 = vld [vmem:[%s5754 + $0x94] sm:$0xff]
        %v5778 = vld [vmem:[%s5754 + $0x9c] sm:$0xf]
        %v5779 = vld [vmem:[%s5754 + $0xa0] sm:$0xff]
        %v5780 = vld [vmem:[%s5754 + $0xa8] sm:$0xff]
        %v5781 = vld [vmem:[%s5754 + $0xb0] sm:$0xf]
        %v5782 = vld [vmem:[%s5754 + $0xb4] sm:$0xff]
        %v5783 = vld [vmem:[%s5754 + $0xbc] sm:$0xff]
        %v5784 = vld [vmem:[%s5754 + $0xc4] sm:$0xf]
        %v5785 = vld [vmem:[%s5754 + $0xc8] sm:$0xff]
        %v5786 = vld [vmem:[%s5754 + $0xd0] sm:$0xff]
        %v5787 = vld [vmem:[%s5754 + $0xd8] sm:$0xf]
        %v5788 = vld [vmem:[%s5754 + $0xdc] sm:$0xff]
        %v5789 = vld [vmem:[%s5754 + $0xe4] sm:$0xff]
        %v5790 = vld [vmem:[%s5754 + $0xec] sm:$0xf]
        %v5791 = vld [vmem:[%s5754 + $0xf0] sm:$0xff]
        %v5792 = vld [vmem:[%s5754 + $0xf8] sm:$0xff]
        %v5793 = vld [vmem:[%s5754 + $0x100] sm:$0xf]
        %v5794 = vld [vmem:[%s5754 + $0x104] sm:$0xff]
        %v5795 = vld [vmem:[%s5754 + $0x10c] sm:$0xff]
        %v5796 = vld [vmem:[%s5754 + $0x114] sm:$0xf]
        %v5797 = vld [vmem:[%s5754 + $0x118] sm:$0xff]
        %v5798 = vld [vmem:[%s5754 + $0x120] sm:$0xff]
        %v5799 = vld [vmem:[%s5754 + $0x128] sm:$0xf]
        %v5800 = vld [vmem:[%s5754 + $0x12c] sm:$0xff]
        %v5801 = vld [vmem:[%s5754 + $0x134] sm:$0xff]
        %v5802 = vld [vmem:[%s5754 + $0x13c] sm:$0xf]
        %v5803 = vld [vmem:[%s5754 + $0x140] sm:$0xff]
        %v5804 = vld [vmem:[%s5754 + $0x148] sm:$0xff]
        %v5805 = vld [vmem:[%s5754 + $0x150] sm:$0xf]
        %v5806 = vld [vmem:[%s5754 + $0x154] sm:$0xff]
        %v5807 = vld [vmem:[%s5754 + $0x15c] sm:$0xff]
        %v5808 = vld [vmem:[%s5754 + $0x164] sm:$0xf]
        %v5809 = vld [vmem:[%s5754 + $0x168] sm:$0xff]
        %v5810 = vld [vmem:[%s5754 + $0x170] sm:$0xff]
        %v5811 = vld [vmem:[%s5754 + $0x178] sm:$0xf]
        %v5812 = vld [vmem:[%s5754 + $0x17c] sm:$0xff]
        %v5813 = vld [vmem:[%s5754 + $0x184] sm:$0xff]
        %v5814 = vld [vmem:[%s5754 + $0x18c] sm:$0xf]
        %v5815 = vld [vmem:[%s5754 + $0x190] sm:$0xff]
        %v5816 = vld [vmem:[%s5754 + $0x198] sm:$0xff]
        %v5817 = vld [vmem:[%s5754 + $0x1a0] sm:$0xf]
        %v5818 = vld [vmem:[%s5754 + $0x1a4] sm:$0xff]
        %v5819 = vld [vmem:[%s5754 + $0x1ac] sm:$0xff]
        %v5820 = vld [vmem:[%s5754 + $0x1b4] sm:$0xf]
        %v5821 = vld [vmem:[%s5754 + $0x1b8] sm:$0xff]
        %v5822 = vld [vmem:[%s5754 + $0x1c0] sm:$0xff]
        %v5823 = vld [vmem:[%s5754 + $0x1c8] sm:$0xf]
        %v5824 = vld [vmem:[%s5754 + $0x1cc] sm:$0xff]
        %v5825 = vld [vmem:[%s5754 + $0x1d4] sm:$0xff]
        %v5826 = vld [vmem:[%s5754 + $0x1dc] sm:$0xf]
        %v5899 = vunpack.c.l.b16 %v5755
        %v5900 = vunpack.c.h.b16 %v5755
        %v5901 = vunpack.c.l.b16 %v5756
        %v5902 = vunpack.c.h.b16 %v5756
        %v5903 = vunpack.c.l.b16 %v5757
        %v5904 = vunpack.c.l.b16 %v5758
        %v5905 = vunpack.c.h.b16 %v5758
        %v5906 = vunpack.c.l.b16 %v5759
        %v5907 = vunpack.c.h.b16 %v5759
        %v5908 = vunpack.c.l.b16 %v5760
        %v5909 = vunpack.c.l.b16 %v5761
        %v5910 = vunpack.c.h.b16 %v5761
        %v5911 = vunpack.c.l.b16 %v5762
        %v5912 = vunpack.c.h.b16 %v5762
        %v5913 = vunpack.c.l.b16 %v5763
        %v5914 = vunpack.c.l.b16 %v5764
        %v5915 = vunpack.c.h.b16 %v5764
        %v5916 = vunpack.c.l.b16 %v5765
        %v5917 = vunpack.c.h.b16 %v5765
        %v5918 = vunpack.c.l.b16 %v5766
        %v5919 = vunpack.c.l.b16 %v5767
        %v5920 = vunpack.c.h.b16 %v5767
        %v5921 = vunpack.c.l.b16 %v5768
        %v5922 = vunpack.c.h.b16 %v5768
        %v5923 = vunpack.c.l.b16 %v5769
        %v5924 = vunpack.c.l.b16 %v5770
        %v5925 = vunpack.c.h.b16 %v5770
        %v5926 = vunpack.c.l.b16 %v5771
        %v5927 = vunpack.c.h.b16 %v5771
        %v5928 = vunpack.c.l.b16 %v5772
        %v5929 = vunpack.c.l.b16 %v5773
        %v5930 = vunpack.c.h.b16 %v5773
        %v5931 = vunpack.c.l.b16 %v5774
        %v5932 = vunpack.c.h.b16 %v5774
        %v5933 = vunpack.c.l.b16 %v5775
        %v5934 = vunpack.c.l.b16 %v5776
        %v5935 = vunpack.c.h.b16 %v5776
        %v5936 = vunpack.c.l.b16 %v5777
        %v5937 = vunpack.c.h.b16 %v5777
        %v5938 = vunpack.c.l.b16 %v5778
        %v5939 = vunpack.c.l.b16 %v5779
        %v5940 = vunpack.c.h.b16 %v5779
        %v5941 = vunpack.c.l.b16 %v5780
        %v5942 = vunpack.c.h.b16 %v5780
        %v5943 = vunpack.c.l.b16 %v5781
        %v5944 = vunpack.c.l.b16 %v5782
        %v5945 = vunpack.c.h.b16 %v5782
        %v5946 = vunpack.c.l.b16 %v5783
        %v5947 = vunpack.c.h.b16 %v5783
        %v5948 = vunpack.c.l.b16 %v5784
        %v5949 = vunpack.c.l.b16 %v5785
        %v5950 = vunpack.c.h.b16 %v5785
        %v5951 = vunpack.c.l.b16 %v5786
        %v5952 = vunpack.c.h.b16 %v5786
        %v5953 = vunpack.c.l.b16 %v5787
        %v5954 = vunpack.c.l.b16 %v5788
        %v5955 = vunpack.c.h.b16 %v5788
        %v5956 = vunpack.c.l.b16 %v5789
        %v5957 = vunpack.c.h.b16 %v5789
        %v5958 = vunpack.c.l.b16 %v5790
        %v5959 = vunpack.c.l.b16 %v5791
        %v5960 = vunpack.c.h.b16 %v5791
        %v5961 = vunpack.c.l.b16 %v5792
        %v5962 = vunpack.c.h.b16 %v5792
        %v5963 = vunpack.c.l.b16 %v5793
        %v5964 = vunpack.c.l.b16 %v5794
        %v5965 = vunpack.c.h.b16 %v5794
        %v5966 = vunpack.c.l.b16 %v5795
        %v5967 = vunpack.c.h.b16 %v5795
        %v5968 = vunpack.c.l.b16 %v5796
        %v5969 = vunpack.c.l.b16 %v5797
        %v5970 = vunpack.c.h.b16 %v5797
        %v5971 = vunpack.c.l.b16 %v5798
        %v5972 = vunpack.c.h.b16 %v5798
        %v5973 = vunpack.c.l.b16 %v5799
        %v5974 = vunpack.c.l.b16 %v5800
        %v5975 = vunpack.c.h.b16 %v5800
        %v5976 = vunpack.c.l.b16 %v5801
        %v5977 = vunpack.c.h.b16 %v5801
        %v5978 = vunpack.c.l.b16 %v5802
        %v5979 = vunpack.c.l.b16 %v5803
        %v5980 = vunpack.c.h.b16 %v5803
        %v5981 = vunpack.c.l.b16 %v5804
        %v5982 = vunpack.c.h.b16 %v5804
        %v5983 = vunpack.c.l.b16 %v5805
        %v5984 = vunpack.c.l.b16 %v5806
        %v5985 = vunpack.c.h.b16 %v5806
        %v5986 = vunpack.c.l.b16 %v5807
        %v5987 = vunpack.c.h.b16 %v5807
        %v5988 = vunpack.c.l.b16 %v5808
        %v5989 = vunpack.c.l.b16 %v5809
        %v5990 = vunpack.c.h.b16 %v5809
        %v5991 = vunpack.c.l.b16 %v5810
        %v5992 = vunpack.c.h.b16 %v5810
        %v5993 = vunpack.c.l.b16 %v5811
        %v5994 = vunpack.c.l.b16 %v5812
        %v5995 = vunpack.c.h.b16 %v5812
        %v5996 = vunpack.c.l.b16 %v5813
        %v5997 = vunpack.c.h.b16 %v5813
        %v5998 = vunpack.c.l.b16 %v5814
        %v5999 = vunpack.c.l.b16 %v5815
        %v6000 = vunpack.c.h.b16 %v5815
        %v6001 = vunpack.c.l.b16 %v5816
        %v6002 = vunpack.c.h.b16 %v5816
        %v6003 = vunpack.c.l.b16 %v5817
        %v6004 = vunpack.c.l.b16 %v5818
        %v6005 = vunpack.c.h.b16 %v5818
        %v6006 = vunpack.c.l.b16 %v5819
        %v6007 = vunpack.c.h.b16 %v5819
        %v6008 = vunpack.c.l.b16 %v5820
        %v6009 = vunpack.c.l.b16 %v5821
        %v6010 = vunpack.c.h.b16 %v5821
        %v6011 = vunpack.c.l.b16 %v5822
        %v6012 = vunpack.c.h.b16 %v5822
        %v6013 = vunpack.c.l.b16 %v5823
        %v6014 = vunpack.c.l.b16 %v5824
        %v6015 = vunpack.c.h.b16 %v5824
        %v6016 = vunpack.c.l.b16 %v5825
        %v6017 = vunpack.c.h.b16 %v5825
        %v6018 = vunpack.c.l.b16 %v5826
        %v6019 = vpack.c.b16 %v5904, %v5899
        %v6020 = vpack.c.b16 %v5905, %v5900
        %v6021 = vpack.c.b16 %v5906, %v5901
        %v6022 = vpack.c.b16 %v5907, %v5902
        %v6023 = vpack.c.b16 %v5908, %v5903
        %v6024 = vpack.c.b16 %v5914, %v5909
        %v6025 = vpack.c.b16 %v5915, %v5910
        %v6026 = vpack.c.b16 %v5916, %v5911
        %v6027 = vpack.c.b16 %v5917, %v5912
        %v6028 = vpack.c.b16 %v5918, %v5913
        %v6029 = vpack.c.b16 %v5924, %v5919
        %v6030 = vpack.c.b16 %v5925, %v5920
        %v6031 = vpack.c.b16 %v5926, %v5921
        %v6032 = vpack.c.b16 %v5927, %v5922
        %v6033 = vpack.c.b16 %v5928, %v5923
        %v6034 = vpack.c.b16 %v5934, %v5929
        %v6035 = vpack.c.b16 %v5935, %v5930
        %v6036 = vpack.c.b16 %v5936, %v5931
        %v6037 = vpack.c.b16 %v5937, %v5932
        %v6038 = vpack.c.b16 %v5938, %v5933
        %v6039 = vpack.c.b16 %v5944, %v5939
        %v6040 = vpack.c.b16 %v5945, %v5940
        %v6041 = vpack.c.b16 %v5946, %v5941
        %v6042 = vpack.c.b16 %v5947, %v5942
        %v6043 = vpack.c.b16 %v5948, %v5943
        %v6044 = vpack.c.b16 %v5954, %v5949
        %v6045 = vpack.c.b16 %v5955, %v5950
        %v6046 = vpack.c.b16 %v5956, %v5951
        %v6047 = vpack.c.b16 %v5957, %v5952
        %v6048 = vpack.c.b16 %v5958, %v5953
        %v6049 = vpack.c.b16 %v5964, %v5959
        %v6050 = vpack.c.b16 %v5965, %v5960
        %v6051 = vpack.c.b16 %v5966, %v5961
        %v6052 = vpack.c.b16 %v5967, %v5962
        %v6053 = vpack.c.b16 %v5968, %v5963
        %v6054 = vpack.c.b16 %v5974, %v5969
        %v6055 = vpack.c.b16 %v5975, %v5970
        %v6056 = vpack.c.b16 %v5976, %v5971
        %v6057 = vpack.c.b16 %v5977, %v5972
        %v6058 = vpack.c.b16 %v5978, %v5973
        %v6059 = vpack.c.b16 %v5984, %v5979
        %v6060 = vpack.c.b16 %v5985, %v5980
        %v6061 = vpack.c.b16 %v5986, %v5981
        %v6062 = vpack.c.b16 %v5987, %v5982
        %v6063 = vpack.c.b16 %v5988, %v5983
        %v6064 = vpack.c.b16 %v5994, %v5989
        %v6065 = vpack.c.b16 %v5995, %v5990
        %v6066 = vpack.c.b16 %v5996, %v5991
        %v6067 = vpack.c.b16 %v5997, %v5992
        %v6068 = vpack.c.b16 %v5998, %v5993
        %v6069 = vpack.c.b16 %v6004, %v5999
        %v6070 = vpack.c.b16 %v6005, %v6000
        %v6071 = vpack.c.b16 %v6006, %v6001
        %v6072 = vpack.c.b16 %v6007, %v6002
        %v6073 = vpack.c.b16 %v6008, %v6003
        %v6074 = vpack.c.b16 %v6014, %v6009
        %v6075 = vpack.c.b16 %v6015, %v6010
        %v6076 = vpack.c.b16 %v6016, %v6011
        %v6077 = vpack.c.b16 %v6017, %v6012
        %v6078 = vpack.c.b16 %v6018, %v6013
        %v6140 = vsel %vm536, %v5753, 0
        %6142 = vmatprep.subr.bf16.mxu0 %v6020
        %6143 = vmatpush1.bf16.msra.mxu0 %v6019
        %6144 = vmatprep.subr.bf16.mxu0 %v6025
        %6145 = vmatpush1.bf16.msra.mxu0 %v6024
        %6146 = vmatprep.subr.bf16.mxu0 %v6030
        %6147 = vmatpush1.bf16.msra.mxu0 %v6029
        %6148 = vmatprep.subr.bf16.mxu0 %v6035
        %6149 = vmatpush1.bf16.msra.mxu0 %v6034
        %6150 = vmatprep.subr.bf16.mxu0 %v6040
        %6151 = vmatpush1.bf16.msra.mxu0 %v6039
        %6152 = vmatprep.subr.bf16.mxu0 %v6045
        %6153 = vmatpush1.bf16.msra.mxu0 %v6044
        %6154 = vmatprep.subr.bf16.mxu0 %v6050
        %6155 = vmatpush1.bf16.msra.mxu0 %v6049
        %6156 = vmatprep.subr.bf16.mxu0 %v6055
        %6157 = vmatpush1.bf16.msra.mxu0 %v6054
        %6158 = vmatprep.subr.bf16.mxu0 %v6060
        %6159 = vmatpush1.bf16.msra.mxu0 %v6059
        %6160 = vmatprep.subr.bf16.mxu0 %v6065
        %6161 = vmatpush1.bf16.msra.mxu0 %v6064
        %6162 = vmatprep.subr.bf16.mxu0 %v6070
        %6163 = vmatpush1.bf16.msra.mxu0 %v6069
        %6164 = vmatprep.subr.bf16.mxu0 %v6075
        %6165 = vmatpush1.bf16.msra.mxu0 %v6074
        %6166 = vmatprep.subr.bf16.mxu0 0
        %6167 = vmatpush1.bf16.msra.mxu0 0
        %6168 = vmatprep.subr.bf16.mxu0 0
        %6169 = vmatpush1.bf16.msra.mxu0 0
        %6170 = vmatprep.subr.bf16.mxu0 0
        %6171 = vmatpush1.bf16.msra.mxu0 0
        %6172 = vmatprep.subr.bf16.mxu0 0
        %6173 = vmatpush1.bf16.msra.mxu0 0
        %6174 = vmatprep.mubr.bf16.mxu0 %v6140
        %6175 = vmatmul.mubr.bf16.gmra.mrb[0].mxu0 %v5752
        %v6176 = vpop.f32.mrb[0].mxu0
        %v6177 = vadd.f32 0.0, %v6176
        %v6178 = vpop.f32.mrb[0].mxu0
        %v6179 = vadd.f32 0.0, %v6178
        %v6180 = vpop.f32.mrb[0].mxu0
        %v6181 = vadd.f32 0.0, %v6180
        %v6182 = vpop.f32.mrb[0].mxu0
        %v6183 = vadd.f32 0.0, %v6182
        %6184 = vdwg.mxu0
        %6185 = vmatprep.subr.bf16.mxu0 %v6022
        %6186 = vmatpush1.bf16.msra.mxu0 %v6021
        %6187 = vmatprep.subr.bf16.mxu0 %v6027
        %6188 = vmatpush1.bf16.msra.mxu0 %v6026
        %6189 = vmatprep.subr.bf16.mxu0 %v6032
        %6190 = vmatpush1.bf16.msra.mxu0 %v6031
        %6191 = vmatprep.subr.bf16.mxu0 %v6037
        %6192 = vmatpush1.bf16.msra.mxu0 %v6036
        %6193 = vmatprep.subr.bf16.mxu0 %v6042
        %6194 = vmatpush1.bf16.msra.mxu0 %v6041
        %6195 = vmatprep.subr.bf16.mxu0 %v6047
        %6196 = vmatpush1.bf16.msra.mxu0 %v6046
        %6197 = vmatprep.subr.bf16.mxu0 %v6052
        %6198 = vmatpush1.bf16.msra.mxu0 %v6051
        %6199 = vmatprep.subr.bf16.mxu0 %v6057
        %6200 = vmatpush1.bf16.msra.mxu0 %v6056
        %6201 = vmatprep.subr.bf16.mxu0 %v6062
        %6202 = vmatpush1.bf16.msra.mxu0 %v6061
        %6203 = vmatprep.subr.bf16.mxu0 %v6067
        %6204 = vmatpush1.bf16.msra.mxu0 %v6066
        %6205 = vmatprep.subr.bf16.mxu0 %v6072
        %6206 = vmatpush1.bf16.msra.mxu0 %v6071
        %6207 = vmatprep.subr.bf16.mxu0 %v6077
        %6208 = vmatpush1.bf16.msra.mxu0 %v6076
        %6209 = vmatprep.subr.bf16.mxu0 0
        %6210 = vmatpush1.bf16.msra.mxu0 0
        %6211 = vmatprep.subr.bf16.mxu0 0
        %6212 = vmatpush1.bf16.msra.mxu0 0
        %6213 = vmatprep.subr.bf16.mxu0 0
        %6214 = vmatpush1.bf16.msra.mxu0 0
        %6215 = vmatprep.subr.bf16.mxu0 0
        %6216 = vmatpush1.bf16.msra.mxu0 0
        %6217 = vmatprep.mubr.bf16.mxu0 %v6140
        %6218 = vmatmul.mubr.bf16.gmra.mrb[0].mxu0 %v5752
        %v6219 = vpop.f32.mrb[0].mxu0
        %v6220 = vadd.f32 0.0, %v6219
        %v6221 = vpop.f32.mrb[0].mxu0
        %v6222 = vadd.f32 0.0, %v6221
        %v6223 = vpop.f32.mrb[0].mxu0
        %v6224 = vadd.f32 0.0, %v6223
        %v6225 = vpop.f32.mrb[0].mxu0
        %v6226 = vadd.f32 0.0, %v6225
        %6227 = vdwg.mxu0
        %6228 = vmatprep.subr.bf16.mxu0 0
        %6229 = vmatpush1.bf16.msra.mxu0 %v6023
        %6230 = vmatprep.subr.bf16.mxu0 0
        %6231 = vmatpush1.bf16.msra.mxu0 %v6028
        %6232 = vmatprep.subr.bf16.mxu0 0
        %6233 = vmatpush1.bf16.msra.mxu0 %v6033
        %6234 = vmatprep.subr.bf16.mxu0 0
        %6235 = vmatpush1.bf16.msra.mxu0 %v6038
        %6236 = vmatprep.subr.bf16.mxu0 0
        %6237 = vmatpush1.bf16.msra.mxu0 %v6043
        %6238 = vmatprep.subr.bf16.mxu0 0
        %6239 = vmatpush1.bf16.msra.mxu0 %v6048
        %6240 = vmatprep.subr.bf16.mxu0 0
        %6241 = vmatpush1.bf16.msra.mxu0 %v6053
        %6242 = vmatprep.subr.bf16.mxu0 0
        %6243 = vmatpush1.bf16.msra.mxu0 %v6058
        %6244 = vmatprep.subr.bf16.mxu0 0
        %6245 = vmatpush1.bf16.msra.mxu0 %v6063
        %6246 = vmatprep.subr.bf16.mxu0 0
        %6247 = vmatpush1.bf16.msra.mxu0 %v6068
        %6248 = vmatprep.subr.bf16.mxu0 0
        %6249 = vmatpush1.bf16.msra.mxu0 %v6073
        %6250 = vmatprep.subr.bf16.mxu0 0
        %6251 = vmatpush1.bf16.msra.mxu0 %v6078
        %6252 = vmatprep.subr.bf16.mxu0 0
        %6253 = vmatpush1.bf16.msra.mxu0 0
        %6254 = vmatprep.subr.bf16.mxu0 0
        %6255 = vmatpush1.bf16.msra.mxu0 0
        %6256 = vmatprep.subr.bf16.mxu0 0
        %6257 = vmatpush1.bf16.msra.mxu0 0
        %6258 = vmatprep.subr.bf16.mxu0 0
        %6259 = vmatpush1.bf16.msra.mxu0 0
        %6260 = vmatprep.mubr.bf16.mxu0 %v6140
        %6261 = vmatmul.mubr.bf16.gmra.mrb[0].mxu0 %v5752
        %v6262 = vpop.f32.mrb[0].mxu0
        %v6263 = vadd.f32 0.0, %v6262
        %v6264 = vpop.f32.mrb[0].mxu0
        %v6265 = vpop.f32.mrb[0].mxu0
        %v6266 = vadd.f32 0.0, %v6265
        %v6267 = vpop.f32.mrb[0].mxu0
        %6268 = vdwg.mxu0
        %v6269 = vpack.c.bf16 %v6181, %v6177
        %v6270 = vpack.c.bf16 %v6183, %v6179
        %v6271 = vpack.c.bf16 %v6224, %v6220
        %v6272 = vpack.c.bf16 %v6226, %v6222
        %v6273 = vpack.c.bf16 %v6266, %v6263
        %6275 = vrot.lane.b32.xlu0 %v6269, 64
        %v6276 = vpop.permute.xlu0 %6275
        %6278 = vrot.lane.b32.xlu0 %v6271, 64
        %v6279 = vpop.permute.xlu0 %6278
        %6281 = vrot.lane.b32.xlu0 %v6272, 64
        %v6282 = vpop.permute.xlu0 %6281
        %6285 = vrot.lane.b32.xlu0 %v6270, 64
        %v6286 = vpop.permute.xlu0 %6285
        %v6288 = vsel %vm536, %v6269, 0
        %v6291 = vsel %vm536, %v6286, 0
        %6293 = vmatprep.subr.bf16.mxu0 0
        %6294 = vmatpush1.bf16.xpose.msra.mxu0 %v6291
        %6295 = vmatprep.subr.bf16.mxu0 0
        %6296 = vmatpush1.bf16.xpose.msra.mxu0 0
        %6297 = vmatprep.subr.bf16.mxu0 0
        %6298 = vmatpush1.bf16.xpose.msra.mxu0 0
        %6299 = vmatprep.subr.bf16.mxu0 0
        %6300 = vmatpush1.bf16.xpose.msra.mxu0 0
        %6301 = vmatprep.subr.bf16.mxu0 0
        %6302 = vmatpush1.bf16.xpose.msra.mxu0 0
        %6303 = vmatprep.subr.bf16.mxu0 0
        %6304 = vmatpush1.bf16.xpose.msra.mxu0 0
        %6305 = vmatprep.subr.bf16.mxu0 0
        %6306 = vmatpush1.bf16.xpose.msra.mxu0 0
        %6307 = vmatprep.subr.bf16.mxu0 0
        %6308 = vmatpush1.bf16.xpose.msra.mxu0 0
        %6309 = vmatprep.subr.bf16.mxu0 0
        %6310 = vmatpush1.bf16.xpose.msra.mxu0 0
        %6311 = vmatprep.subr.bf16.mxu0 0
        %6312 = vmatpush1.bf16.xpose.msra.mxu0 0
        %6313 = vmatprep.subr.bf16.mxu0 0
        %6314 = vmatpush1.bf16.xpose.msra.mxu0 0
        %6315 = vmatprep.subr.bf16.mxu0 0
        %6316 = vmatpush1.bf16.xpose.msra.mxu0 0
        %6317 = vmatprep.subr.bf16.mxu0 0
        %6318 = vmatpush1.bf16.xpose.msra.mxu0 0
        %6319 = vmatprep.subr.bf16.mxu0 0
        %6320 = vmatpush1.bf16.xpose.msra.mxu0 0
        %6321 = vmatprep.subr.bf16.mxu0 0
        %6322 = vmatpush1.bf16.xpose.msra.mxu0 0
        %6323 = vmatprep.subr.bf16.mxu0 0
        %6324 = vmatpush1.bf16.xpose.msra.mxu0 0
        %6325 = vmatprep.mubr.bf16.mxu0 0
        %6326 = vmatmul.mubr.bf16.gmra.mrb[0].mxu0 %v6288
        %v6327 = vpop.f32.mrb[0].mxu0
        %v6328 = vadd.f32 %v532, %v6327
        %v6329 = vpop.f32.mrb[0].mxu0
        %v6330 = vpop.f32.mrb[0].mxu0
        %v6331 = vadd.f32 %v533, %v6330
        %v6332 = vpop.f32.mrb[0].mxu0
        %6333 = vdwg.mxu0
        %6334 = vrot.lane.b32.xlu0 %v6279, 64
        %v6335 = vpop.permute.xlu0 %6334
        %v6337 = vsel %vm536, %v6276, 0
        %v6340 = vsel %vm536, %v6335, 0
        %6342 = vmatprep.subr.bf16.mxu0 0
        %6343 = vmatpush1.bf16.xpose.msra.mxu0 %v6340
        %6344 = vmatprep.subr.bf16.mxu0 0
        %6345 = vmatpush1.bf16.xpose.msra.mxu0 0
        %6346 = vmatprep.subr.bf16.mxu0 0
        %6347 = vmatpush1.bf16.xpose.msra.mxu0 0
        %6348 = vmatprep.subr.bf16.mxu0 0
        %6349 = vmatpush1.bf16.xpose.msra.mxu0 0
        %6350 = vmatprep.subr.bf16.mxu0 0
        %6351 = vmatpush1.bf16.xpose.msra.mxu0 0
        %6352 = vmatprep.subr.bf16.mxu0 0
        %6353 = vmatpush1.bf16.xpose.msra.mxu0 0
        %6354 = vmatprep.subr.bf16.mxu0 0
        %6355 = vmatpush1.bf16.xpose.msra.mxu0 0
        %6356 = vmatprep.subr.bf16.mxu0 0
        %6357 = vmatpush1.bf16.xpose.msra.mxu0 0
        %6358 = vmatprep.subr.bf16.mxu0 0
        %6359 = vmatpush1.bf16.xpose.msra.mxu0 0
        %6360 = vmatprep.subr.bf16.mxu0 0
        %6361 = vmatpush1.bf16.xpose.msra.mxu0 0
        %6362 = vmatprep.subr.bf16.mxu0 0
        %6363 = vmatpush1.bf16.xpose.msra.mxu0 0
        %6364 = vmatprep.subr.bf16.mxu0 0
        %6365 = vmatpush1.bf16.xpose.msra.mxu0 0
        %6366 = vmatprep.subr.bf16.mxu0 0
        %6367 = vmatpush1.bf16.xpose.msra.mxu0 0
        %6368 = vmatprep.subr.bf16.mxu0 0
        %6369 = vmatpush1.bf16.xpose.msra.mxu0 0
        %6370 = vmatprep.subr.bf16.mxu0 0
        %6371 = vmatpush1.bf16.xpose.msra.mxu0 0
        %6372 = vmatprep.subr.bf16.mxu0 0
        %6373 = vmatpush1.bf16.xpose.msra.mxu0 0
        %6374 = vmatprep.mubr.bf16.mxu0 0
        %6375 = vmatmul.mubr.bf16.gmra.mrb[0].mxu0 %v6337
        %v6376 = vpop.f32.mrb[0].mxu0
        %v6377 = vadd.f32 %v532, %v6376
        %v6378 = vpop.f32.mrb[0].mxu0
        %v6379 = vpop.f32.mrb[0].mxu0
        %v6380 = vadd.f32 %v533, %v6379
        %v6381 = vpop.f32.mrb[0].mxu0
        %6382 = vdwg.mxu0
        %v6384 = vsel %vm536, %v6270, 0
        %v6387 = vsel %vm536, %v6279, 0
        %6389 = vmatprep.subr.bf16.mxu0 0
        %6390 = vmatpush1.bf16.xpose.msra.mxu0 %v6387
        %6391 = vmatprep.subr.bf16.mxu0 0
        %6392 = vmatpush1.bf16.xpose.msra.mxu0 0
        %6393 = vmatprep.subr.bf16.mxu0 0
        %6394 = vmatpush1.bf16.xpose.msra.mxu0 0
        %6395 = vmatprep.subr.bf16.mxu0 0
        %6396 = vmatpush1.bf16.xpose.msra.mxu0 0
        %6397 = vmatprep.subr.bf16.mxu0 0
        %6398 = vmatpush1.bf16.xpose.msra.mxu0 0
        %6399 = vmatprep.subr.bf16.mxu0 0
        %6400 = vmatpush1.bf16.xpose.msra.mxu0 0
        %6401 = vmatprep.subr.bf16.mxu0 0
        %6402 = vmatpush1.bf16.xpose.msra.mxu0 0
        %6403 = vmatprep.subr.bf16.mxu0 0
        %6404 = vmatpush1.bf16.xpose.msra.mxu0 0
        %6405 = vmatprep.subr.bf16.mxu0 0
        %6406 = vmatpush1.bf16.xpose.msra.mxu0 0
        %6407 = vmatprep.subr.bf16.mxu0 0
        %6408 = vmatpush1.bf16.xpose.msra.mxu0 0
        %6409 = vmatprep.subr.bf16.mxu0 0
        %6410 = vmatpush1.bf16.xpose.msra.mxu0 0
        %6411 = vmatprep.subr.bf16.mxu0 0
        %6412 = vmatpush1.bf16.xpose.msra.mxu0 0
        %6413 = vmatprep.subr.bf16.mxu0 0
        %6414 = vmatpush1.bf16.xpose.msra.mxu0 0
        %6415 = vmatprep.subr.bf16.mxu0 0
        %6416 = vmatpush1.bf16.xpose.msra.mxu0 0
        %6417 = vmatprep.subr.bf16.mxu0 0
        %6418 = vmatpush1.bf16.xpose.msra.mxu0 0
        %6419 = vmatprep.subr.bf16.mxu0 0
        %6420 = vmatpush1.bf16.xpose.msra.mxu0 0
        %6421 = vmatprep.mubr.bf16.mxu0 0
        %6422 = vmatmul.mubr.bf16.gmra.mrb[0].mxu0 %v6384
        %v6423 = vpop.f32.mrb[0].mxu0
        %v6424 = vadd.f32 %v532, %v6423
        %v6425 = vpop.f32.mrb[0].mxu0
        %v6426 = vpop.f32.mrb[0].mxu0
        %v6427 = vadd.f32 %v533, %v6426
        %v6428 = vpop.f32.mrb[0].mxu0
        %6429 = vdwg.mxu0
        %v6430 = vsel %vm1281, %v6328, -inf
        %6431 = vmax.xlane.f32.xlu0 %v6430
        %v6432 = vpop.xlane.xlu0 %6431
        %v6433 = vsel %vm1281, %v6331, -inf
        %6434 = vmax.xlane.f32.xlu0 %v6433
        %v6435 = vpop.xlane.xlu0 %6434
        %v6436 = vsel %vm1281, %v6377, -inf
        %6437 = vmax.xlane.f32.xlu0 %v6436
        %v6438 = vpop.xlane.xlu0 %6437
        %v6439 = vsel %vm1281, %v6380, -inf
        %6440 = vmax.xlane.f32.xlu0 %v6439
        %v6441 = vpop.xlane.xlu0 %6440
        %v6442 = vsel %vm1281, %v6424, -inf
        %6443 = vmax.xlane.f32.xlu0 %v6442
        %v6444 = vpop.xlane.xlu0 %6443
        %v6445 = vsel %vm1281, %v6427, -inf
        %6446 = vmax.xlane.f32.xlu0 %v6445
        %v6447 = vpop.xlane.xlu0 %6446
        %v6448 = vsub.f32 %v6328, %v6432
        %v6449 = vsub.f32 %v6331, %v6435
        %v6450 = vsub.f32 %v6377, %v6438
        %v6451 = vsub.f32 %v6380, %v6441
        %v6452 = vsub.f32 %v6424, %v6444
        %v6453 = vsub.f32 %v6427, %v6447
        %v6454 = vmul.f32 %v6448, 1.442695
        %v6455 = vpow.pop %v6454
        %v6456 = vmul.f32 %v6449, 1.442695
        %v6457 = vpow.pop %v6456
        %v6458 = vmul.f32 %v6450, 1.442695
        %v6459 = vpow.pop %v6458
        %v6460 = vmul.f32 %v6451, 1.442695
        %v6461 = vpow.pop %v6460
        %v6462 = vmul.f32 %v6452, 1.442695
        %v6463 = vpow.pop %v6462
        %v6464 = vmul.f32 %v6453, 1.442695
        %v6465 = vpow.pop %v6464
        %v6466 = vsel %vm1281, %v6455, 0.0
        %6467 = vadd.xlane.f32.xlu0 %v6466
        %v6468 = vpop.xlane.xlu0 %6467
        %v6469 = vsel %vm1281, %v6457, 0.0
        %6470 = vadd.xlane.f32.xlu0 %v6469
        %v6471 = vpop.xlane.xlu0 %6470
        %v6472 = vsel %vm1281, %v6459, 0.0
        %6473 = vadd.xlane.f32.xlu0 %v6472
        %v6474 = vpop.xlane.xlu0 %6473
        %v6475 = vsel %vm1281, %v6461, 0.0
        %6476 = vadd.xlane.f32.xlu0 %v6475
        %v6477 = vpop.xlane.xlu0 %6476
        %v6478 = vsel %vm1281, %v6463, 0.0
        %6479 = vadd.xlane.f32.xlu0 %v6478
        %v6480 = vpop.xlane.xlu0 %6479
        %v6481 = vsel %vm1281, %v6465, 0.0
        %6482 = vadd.xlane.f32.xlu0 %v6481
        %v6483 = vpop.xlane.xlu0 %6482
        %v6484 = vrcp.pop %v6468
        %v6485 = vrcp.pop %v6471
        %v6486 = vrcp.pop %v6474
        %v6487 = vrcp.pop %v6477
        %v6488 = vrcp.pop %v6480
        %v6489 = vrcp.pop %v6483
        %v6490 = vmul.f32 %v6455, %v6484
        %v6491 = vmul.f32 %v6457, %v6485
        %v6492 = vmul.f32 %v6459, %v6486
        %v6493 = vmul.f32 %v6461, %v6487
        %v6494 = vmul.f32 %v6463, %v6488
        %v6495 = vmul.f32 %v6465, %v6489
        %v6496 = vpack.c.bf16 %v6491, %v6490
        %v6497 = vpack.c.bf16 %v6493, %v6492
        %v6498 = vpack.c.bf16 %v6495, %v6494
        %v6500 = vsel %vm1281, %v6496, 0
        %6502 = vmatprep.subr.bf16.mxu0 0
        %6503 = vmatpush1.bf16.msra.mxu0 %v6272
        %6504 = vmatprep.subr.bf16.mxu0 0
        %6505 = vmatpush1.bf16.msra.mxu0 0
        %6506 = vmatprep.subr.bf16.mxu0 0
        %6507 = vmatpush1.bf16.msra.mxu0 0
        %6508 = vmatprep.subr.bf16.mxu0 0
        %6509 = vmatpush1.bf16.msra.mxu0 0
        %6510 = vmatprep.subr.bf16.mxu0 0
        %6511 = vmatpush1.bf16.msra.mxu0 0
        %6512 = vmatprep.subr.bf16.mxu0 0
        %6513 = vmatpush1.bf16.msra.mxu0 0
        %6514 = vmatprep.subr.bf16.mxu0 0
        %6515 = vmatpush1.bf16.msra.mxu0 0
        %6516 = vmatprep.subr.bf16.mxu0 0
        %6517 = vmatpush1.bf16.msra.mxu0 0
        %6518 = vmatprep.subr.bf16.mxu0 0
        %6519 = vmatpush1.bf16.msra.mxu0 0
        %6520 = vmatprep.subr.bf16.mxu0 0
        %6521 = vmatpush1.bf16.msra.mxu0 0
        %6522 = vmatprep.subr.bf16.mxu0 0
        %6523 = vmatpush1.bf16.msra.mxu0 0
        %6524 = vmatprep.subr.bf16.mxu0 0
        %6525 = vmatpush1.bf16.msra.mxu0 0
        %6526 = vmatprep.subr.bf16.mxu0 0
        %6527 = vmatpush1.bf16.msra.mxu0 0
        %6528 = vmatprep.subr.bf16.mxu0 0
        %6529 = vmatpush1.bf16.msra.mxu0 0
        %6530 = vmatprep.subr.bf16.mxu0 0
        %6531 = vmatpush1.bf16.msra.mxu0 0
        %6532 = vmatprep.subr.bf16.mxu0 0
        %6533 = vmatpush1.bf16.msra.mxu0 0
        %6534 = vmatprep.mubr.bf16.mxu0 0
        %6535 = vmatmul.mubr.bf16.gmra.mrb[0].mxu0 %v6500
        %v6536 = vpop.f32.mrb[0].mxu0
        %v6537 = vadd.f32 0.0, %v6536
        %v6538 = vpop.f32.mrb[0].mxu0
        %v6539 = vpop.f32.mrb[0].mxu0
        %v6540 = vadd.f32 0.0, %v6539
        %v6541 = vpop.f32.mrb[0].mxu0
        %6542 = vdwg.mxu0
        %v6544 = vsel %vm1281, %v6497, 0
        %6546 = vmatprep.subr.bf16.mxu0 0
        %6547 = vmatpush1.bf16.msra.mxu0 %v6282
        %6548 = vmatprep.subr.bf16.mxu0 0
        %6549 = vmatpush1.bf16.msra.mxu0 0
        %6550 = vmatprep.subr.bf16.mxu0 0
        %6551 = vmatpush1.bf16.msra.mxu0 0
        %6552 = vmatprep.subr.bf16.mxu0 0
        %6553 = vmatpush1.bf16.msra.mxu0 0
        %6554 = vmatprep.subr.bf16.mxu0 0
        %6555 = vmatpush1.bf16.msra.mxu0 0
        %6556 = vmatprep.subr.bf16.mxu0 0
        %6557 = vmatpush1.bf16.msra.mxu0 0
        %6558 = vmatprep.subr.bf16.mxu0 0
        %6559 = vmatpush1.bf16.msra.mxu0 0
        %6560 = vmatprep.subr.bf16.mxu0 0
        %6561 = vmatpush1.bf16.msra.mxu0 0
        %6562 = vmatprep.subr.bf16.mxu0 0
        %6563 = vmatpush1.bf16.msra.mxu0 0
        %6564 = vmatprep.subr.bf16.mxu0 0
        %6565 = vmatpush1.bf16.msra.mxu0 0
        %6566 = vmatprep.subr.bf16.mxu0 0
        %6567 = vmatpush1.bf16.msra.mxu0 0
        %6568 = vmatprep.subr.bf16.mxu0 0
        %6569 = vmatpush1.bf16.msra.mxu0 0
        %6570 = vmatprep.subr.bf16.mxu0 0
        %6571 = vmatpush1.bf16.msra.mxu0 0
        %6572 = vmatprep.subr.bf16.mxu0 0
        %6573 = vmatpush1.bf16.msra.mxu0 0
        %6574 = vmatprep.subr.bf16.mxu0 0
        %6575 = vmatpush1.bf16.msra.mxu0 0
        %6576 = vmatprep.subr.bf16.mxu0 0
        %6577 = vmatpush1.bf16.msra.mxu0 0
        %6578 = vmatprep.mubr.bf16.mxu0 0
        %6579 = vmatmul.mubr.bf16.gmra.mrb[0].mxu0 %v6544
        %v6580 = vpop.f32.mrb[0].mxu0
        %v6581 = vadd.f32 0.0, %v6580
        %v6582 = vpop.f32.mrb[0].mxu0
        %v6583 = vpop.f32.mrb[0].mxu0
        %v6584 = vadd.f32 0.0, %v6583
        %v6585 = vpop.f32.mrb[0].mxu0
        %6586 = vdwg.mxu0
        %v6588 = vsel %vm1281, %v6498, 0
        %6590 = vmatprep.subr.bf16.mxu0 0
        %6591 = vmatpush1.bf16.msra.mxu0 %v6273
        %6592 = vmatprep.subr.bf16.mxu0 0
        %6593 = vmatpush1.bf16.msra.mxu0 0
        %6594 = vmatprep.subr.bf16.mxu0 0
        %6595 = vmatpush1.bf16.msra.mxu0 0
        %6596 = vmatprep.subr.bf16.mxu0 0
        %6597 = vmatpush1.bf16.msra.mxu0 0
        %6598 = vmatprep.subr.bf16.mxu0 0
        %6599 = vmatpush1.bf16.msra.mxu0 0
        %6600 = vmatprep.subr.bf16.mxu0 0
        %6601 = vmatpush1.bf16.msra.mxu0 0
        %6602 = vmatprep.subr.bf16.mxu0 0
        %6603 = vmatpush1.bf16.msra.mxu0 0
        %6604 = vmatprep.subr.bf16.mxu0 0
        %6605 = vmatpush1.bf16.msra.mxu0 0
        %6606 = vmatprep.subr.bf16.mxu0 0
        %6607 = vmatpush1.bf16.msra.mxu0 0
        %6608 = vmatprep.subr.bf16.mxu0 0
        %6609 = vmatpush1.bf16.msra.mxu0 0
        %6610 = vmatprep.subr.bf16.mxu0 0
        %6611 = vmatpush1.bf16.msra.mxu0 0
        %6612 = vmatprep.subr.bf16.mxu0 0
        %6613 = vmatpush1.bf16.msra.mxu0 0
        %6614 = vmatprep.subr.bf16.mxu0 0
        %6615 = vmatpush1.bf16.msra.mxu0 0
        %6616 = vmatprep.subr.bf16.mxu0 0
        %6617 = vmatpush1.bf16.msra.mxu0 0
        %6618 = vmatprep.subr.bf16.mxu0 0
        %6619 = vmatpush1.bf16.msra.mxu0 0
        %6620 = vmatprep.subr.bf16.mxu0 0
        %6621 = vmatpush1.bf16.msra.mxu0 0
        %6622 = vmatprep.mubr.bf16.mxu0 0
        %6623 = vmatmul.mubr.bf16.gmra.mrb[0].mxu0 %v6588
        %v6624 = vpop.f32.mrb[0].mxu0
        %v6625 = vadd.f32 0.0, %v6624
        %v6626 = vpop.f32.mrb[0].mxu0
        %v6627 = vpop.f32.mrb[0].mxu0
        %v6628 = vadd.f32 0.0, %v6627
        %v6629 = vpop.f32.mrb[0].mxu0
        %6630 = vdwg.mxu0
        %v6631 = vpack.c.bf16 %v6540, %v6537
        %v6632 = vpack.c.bf16 %v6584, %v6581
        %v6633 = vpack.c.bf16 %v6628, %v6625
        %6635 = vrot.lane.b32.xlu0 %v6632, 64
        %v6636 = vpop.permute.xlu0 %6635
        %v6639 = vsel %vm536, %v6631, %v6636
        %s6641 = scalar_lea.vmem %s4, 384
        %v6642 = vld [vmem:[%s6641] sm:$0xff]
        %v6643 = vld [vmem:[%s6641 + $0x8] sm:$0xff]
        %v6644 = vld [vmem:[%s6641 + $0x10] sm:$0xff]
        %v6645 = vld [vmem:[%s6641 + $0x18] sm:$0xff]
        %v6646 = vld [vmem:[%s6641 + $0x20] sm:$0xff]
        %v6647 = vld [vmem:[%s6641 + $0x28] sm:$0xff]
        %v6648 = vld [vmem:[%s6641 + $0x30] sm:$0xff]
        %v6649 = vld [vmem:[%s6641 + $0x38] sm:$0xff]
        %v6650 = vld [vmem:[%s6641 + $0x40] sm:$0xff]
        %v6651 = vld [vmem:[%s6641 + $0x48] sm:$0xff]
        %v6652 = vld [vmem:[%s6641 + $0x50] sm:$0xff]
        %v6653 = vld [vmem:[%s6641 + $0x58] sm:$0xff]
        %v6654 = vld [vmem:[%s6641 + $0x60] sm:$0xff]
        %v6655 = vld [vmem:[%s6641 + $0x68] sm:$0xff]
        %v6656 = vld [vmem:[%s6641 + $0x70] sm:$0xff]
        %v6657 = vld [vmem:[%s6641 + $0x78] sm:$0xff]
        %v6658 = vld [vmem:[%s6641 + $0x80] sm:$0xff]
        %v6659 = vld [vmem:[%s6641 + $0x88] sm:$0xff]
        %v6660 = vld [vmem:[%s6641 + $0x90] sm:$0xff]
        %v6661 = vld [vmem:[%s6641 + $0x98] sm:$0xff]
        %v6662 = vld [vmem:[%s6641 + $0xa0] sm:$0xff]
        %v6663 = vld [vmem:[%s6641 + $0xa8] sm:$0xff]
        %v6664 = vld [vmem:[%s6641 + $0xb0] sm:$0xff]
        %v6665 = vld [vmem:[%s6641 + $0xb8] sm:$0xff]
        %s6666 = scalar_lea.vmem %s5, 4
        %v6667 = vld [vmem:[%s6666] sm:$0x3]
        %v6669 = vlaneseq
        %v6670 = vshrl.u32 %v6669, 7
        %v6671 = vsub.s32 0, %v6670
        %v6672 = vrot.slane %v6667, %v6671
        %v6673 = vlaneseq
        %v6674 = vshrl.u32 %v6673, 7
        %v6675 = vsub.s32 1, %v6674
        %v6676 = vrot.slane %v6667, %v6675
        %v6703 = vunpack.c.l.b16 %v6642
        %v6704 = vunpack.c.h.b16 %v6642
        %v6705 = vunpack.c.l.b16 %v6643
        %v6706 = vunpack.c.h.b16 %v6643
        %v6707 = vunpack.c.l.b16 %v6644
        %v6708 = vunpack.c.h.b16 %v6644
        %v6709 = vunpack.c.l.b16 %v6645
        %v6710 = vunpack.c.h.b16 %v6645
        %v6711 = vunpack.c.l.b16 %v6646
        %v6712 = vunpack.c.h.b16 %v6646
        %v6713 = vunpack.c.l.b16 %v6647
        %v6714 = vunpack.c.h.b16 %v6647
        %v6715 = vunpack.c.l.b16 %v6648
        %v6716 = vunpack.c.h.b16 %v6648
        %v6717 = vunpack.c.l.b16 %v6649
        %v6718 = vunpack.c.h.b16 %v6649
        %v6719 = vunpack.c.l.b16 %v6650
        %v6720 = vunpack.c.h.b16 %v6650
        %v6721 = vunpack.c.l.b16 %v6651
        %v6722 = vunpack.c.h.b16 %v6651
        %v6723 = vunpack.c.l.b16 %v6652
        %v6724 = vunpack.c.h.b16 %v6652
        %v6725 = vunpack.c.l.b16 %v6653
        %v6726 = vunpack.c.h.b16 %v6653
        %v6727 = vunpack.c.l.b16 %v6654
        %v6728 = vunpack.c.h.b16 %v6654
        %v6729 = vunpack.c.l.b16 %v6655
        %v6730 = vunpack.c.h.b16 %v6655
        %v6731 = vunpack.c.l.b16 %v6656
        %v6732 = vunpack.c.h.b16 %v6656
        %v6733 = vunpack.c.l.b16 %v6657
        %v6734 = vunpack.c.h.b16 %v6657
        %v6735 = vunpack.c.l.b16 %v6658
        %v6736 = vunpack.c.h.b16 %v6658
        %v6737 = vunpack.c.l.b16 %v6659
        %v6738 = vunpack.c.h.b16 %v6659
        %v6739 = vunpack.c.l.b16 %v6660
        %v6740 = vunpack.c.h.b16 %v6660
        %v6741 = vunpack.c.l.b16 %v6661
        %v6742 = vunpack.c.h.b16 %v6661
        %v6743 = vunpack.c.l.b16 %v6662
        %v6744 = vunpack.c.h.b16 %v6662
        %v6745 = vunpack.c.l.b16 %v6663
        %v6746 = vunpack.c.h.b16 %v6663
        %v6747 = vunpack.c.l.b16 %v6664
        %v6748 = vunpack.c.h.b16 %v6664
        %v6749 = vunpack.c.l.b16 %v6665
        %v6750 = vunpack.c.h.b16 %v6665
        %v6751 = vpack.c.b16 %v6705, %v6703
        %v6752 = vpack.c.b16 %v6706, %v6704
        %v6753 = vpack.c.b16 %v6709, %v6707
        %v6754 = vpack.c.b16 %v6710, %v6708
        %v6755 = vpack.c.b16 %v6713, %v6711
        %v6756 = vpack.c.b16 %v6714, %v6712
        %v6757 = vpack.c.b16 %v6717, %v6715
        %v6758 = vpack.c.b16 %v6718, %v6716
        %v6759 = vpack.c.b16 %v6721, %v6719
        %v6760 = vpack.c.b16 %v6722, %v6720
        %v6761 = vpack.c.b16 %v6725, %v6723
        %v6762 = vpack.c.b16 %v6726, %v6724
        %v6763 = vpack.c.b16 %v6729, %v6727
        %v6764 = vpack.c.b16 %v6730, %v6728
        %v6765 = vpack.c.b16 %v6733, %v6731
        %v6766 = vpack.c.b16 %v6734, %v6732
        %v6767 = vpack.c.b16 %v6737, %v6735
        %v6768 = vpack.c.b16 %v6738, %v6736
        %v6769 = vpack.c.b16 %v6741, %v6739
        %v6770 = vpack.c.b16 %v6742, %v6740
        %v6771 = vpack.c.b16 %v6745, %v6743
        %v6772 = vpack.c.b16 %v6746, %v6744
        %v6773 = vpack.c.b16 %v6749, %v6747
        %v6774 = vpack.c.b16 %v6750, %v6748
        %v6800 = vsel %vm536, %v6633, 0
        %6802 = vmatprep.subr.bf16.mxu0 %v6752
        %6803 = vmatpush1.bf16.msra.mxu0 %v6751
        %6804 = vmatprep.subr.bf16.mxu0 %v6754
        %6805 = vmatpush1.bf16.msra.mxu0 %v6753
        %6806 = vmatprep.subr.bf16.mxu0 %v6756
        %6807 = vmatpush1.bf16.msra.mxu0 %v6755
        %6808 = vmatprep.subr.bf16.mxu0 %v6758
        %6809 = vmatpush1.bf16.msra.mxu0 %v6757
        %6810 = vmatprep.subr.bf16.mxu0 %v6760
        %6811 = vmatpush1.bf16.msra.mxu0 %v6759
        %6812 = vmatprep.subr.bf16.mxu0 %v6762
        %6813 = vmatpush1.bf16.msra.mxu0 %v6761
        %6814 = vmatprep.subr.bf16.mxu0 %v6764
        %6815 = vmatpush1.bf16.msra.mxu0 %v6763
        %6816 = vmatprep.subr.bf16.mxu0 %v6766
        %6817 = vmatpush1.bf16.msra.mxu0 %v6765
        %6818 = vmatprep.subr.bf16.mxu0 %v6768
        %6819 = vmatpush1.bf16.msra.mxu0 %v6767
        %6820 = vmatprep.subr.bf16.mxu0 %v6770
        %6821 = vmatpush1.bf16.msra.mxu0 %v6769
        %6822 = vmatprep.subr.bf16.mxu0 %v6772
        %6823 = vmatpush1.bf16.msra.mxu0 %v6771
        %6824 = vmatprep.subr.bf16.mxu0 %v6774
        %6825 = vmatpush1.bf16.msra.mxu0 %v6773
        %6826 = vmatprep.subr.bf16.mxu0 0
        %6827 = vmatpush1.bf16.msra.mxu0 0
        %6828 = vmatprep.subr.bf16.mxu0 0
        %6829 = vmatpush1.bf16.msra.mxu0 0
        %6830 = vmatprep.subr.bf16.mxu0 0
        %6831 = vmatpush1.bf16.msra.mxu0 0
        %6832 = vmatprep.subr.bf16.mxu0 0
        %6833 = vmatpush1.bf16.msra.mxu0 0
        %6834 = vmatprep.mubr.bf16.mxu0 %v6800
        %6835 = vmatmul.mubr.bf16.gmra.mrb[0].mxu0 %v6639
        %v6836 = vpop.f32.mrb[0].mxu0
        %v6837 = vadd.f32 %v6672, %v6836
        %v6838 = vpop.f32.mrb[0].mxu0
        %v6839 = vadd.f32 %v6676, %v6838
        %v6840 = vpop.f32.mrb[0].mxu0
        %v6841 = vadd.f32 %v6672, %v6840
        %v6842 = vpop.f32.mrb[0].mxu0
        %v6843 = vadd.f32 %v6676, %v6842
        %6844 = vdwg.mxu0
        %v6845 = vadd.f32 %v5678, %v6837
        %v6846 = vadd.f32 %v5679, %v6839
        %v6847 = vadd.f32 %v5680, %v6841
        %v6848 = vadd.f32 %v5681, %v6843
        %s6849 = scalar_lea.vmem %s6, 4
        %v6850 = vld [vmem:[%s6849] sm:$0x3]
        %s6851 = scalar_lea.vmem %s7, 4
        %v6852 = vld [vmem:[%s6851] sm:$0x3]
        %v6853 = vsel %vm536, %v6846, 0.0
        %v6854 = vadd.f32 %v6845, %v6853
        %6855 = vadd.xlane.f32.xlu0 %v6854
        %v6856 = vpop.xlane.xlu0 %6855
        %v6857 = vsel %vm536, %v6848, 0.0
        %v6858 = vadd.f32 %v6847, %v6857
        %6859 = vadd.xlane.f32.xlu0 %v6858
        %v6860 = vpop.xlane.xlu0 %6859
        %v6861 = vmul.f32 %v6856, %v545
        %v6862 = vmul.f32 %v6860, %v545
        %v6863 = vsub.f32 %v6845, %v6861
        %v6864 = vsub.f32 %v6846, %v6861
        %v6865 = vsub.f32 %v6847, %v6862
        %v6866 = vsub.f32 %v6848, %v6862
        %v6867 = vmul.f32 %v6863, %v6863
        %v6868 = vmul.f32 %v6864, %v6864
        %v6869 = vmul.f32 %v6865, %v6865
        %v6870 = vmul.f32 %v6866, %v6866
        %v6871 = vsel %vm536, %v6868, 0.0
        %v6872 = vadd.f32 %v6867, %v6871
        %6873 = vadd.xlane.f32.xlu0 %v6872
        %v6874 = vpop.xlane.xlu0 %6873
        %v6875 = vsel %vm536, %v6870, 0.0
        %v6876 = vadd.f32 %v6869, %v6875
        %6877 = vadd.xlane.f32.xlu0 %v6876
        %v6878 = vpop.xlane.xlu0 %6877
        %v6879 = vmul.f32 %v6874, %v545
        %v6880 = vmul.f32 %v6878, %v545
        %v6881 = vadd.f32 %v6879, 1e-05
        %v6882 = vadd.f32 %v6880, 1e-05
        %v6883 = vrsqrt.pop %v6881
        %v6884 = vrsqrt.pop %v6882
        %v6885 = vmul.f32 %v6863, %v6883
        %v6886 = vmul.f32 %v6864, %v6883
        %v6887 = vmul.f32 %v6865, %v6884
        %v6888 = vmul.f32 %v6866, %v6884
        %v6890 = vlaneseq
        %v6891 = vshrl.u32 %v6890, 7
        %v6892 = vsub.s32 0, %v6891
        %v6893 = vrot.slane %v6850, %v6892
        %v6894 = vlaneseq
        %v6895 = vshrl.u32 %v6894, 7
        %v6896 = vsub.s32 1, %v6895
        %v6897 = vrot.slane %v6850, %v6896
        %v6900 = vmul.f32 %v6885, %v6893
        %v6901 = vmul.f32 %v6886, %v6897
        %v6902 = vmul.f32 %v6887, %v6893
        %v6903 = vmul.f32 %v6888, %v6897
        %v6905 = vlaneseq
        %v6906 = vshrl.u32 %v6905, 7
        %v6907 = vsub.s32 0, %v6906
        %v6908 = vrot.slane %v6852, %v6907
        %v6909 = vlaneseq
        %v6910 = vshrl.u32 %v6909, 7
        %v6911 = vsub.s32 1, %v6910
        %v6912 = vrot.slane %v6852, %v6911
        %v6915 = vadd.f32 %v6900, %v6908
        %v6916 = vadd.f32 %v6901, %v6912
        %v6917 = vadd.f32 %v6902, %v6908
        %v6918 = vadd.f32 %v6903, %v6912
        %v6919 = vpack.c.bf16 %v6917, %v6915
        %v6920 = vpack.c.bf16 %v6918, %v6916
        %s6921 = scalar_lea.vmem %s8, 1152
        %v6922 = vld [vmem:[%s6921] sm:$0xff]
        %v6923 = vld [vmem:[%s6921 + $0x8] sm:$0xff]
        %v6924 = vld [vmem:[%s6921 + $0x10] sm:$0xff]
        %v6925 = vld [vmem:[%s6921 + $0x18] sm:$0xff]
        %v6926 = vld [vmem:[%s6921 + $0x20] sm:$0xff]
        %v6927 = vld [vmem:[%s6921 + $0x28] sm:$0xff]
        %v6928 = vld [vmem:[%s6921 + $0x30] sm:$0xff]
        %v6929 = vld [vmem:[%s6921 + $0x38] sm:$0xff]
        %v6930 = vld [vmem:[%s6921 + $0x40] sm:$0xff]
        %v6931 = vld [vmem:[%s6921 + $0x48] sm:$0xff]
        %v6932 = vld [vmem:[%s6921 + $0x50] sm:$0xff]
        %v6933 = vld [vmem:[%s6921 + $0x58] sm:$0xff]
        %v6934 = vld [vmem:[%s6921 + $0x60] sm:$0xff]
        %v6935 = vld [vmem:[%s6921 + $0x68] sm:$0xff]
        %v6936 = vld [vmem:[%s6921 + $0x70] sm:$0xff]
        %v6937 = vld [vmem:[%s6921 + $0x78] sm:$0xff]
        %v6938 = vld [vmem:[%s6921 + $0x80] sm:$0xff]
        %v6939 = vld [vmem:[%s6921 + $0x88] sm:$0xff]
        %v6940 = vld [vmem:[%s6921 + $0x90] sm:$0xff]
        %v6941 = vld [vmem:[%s6921 + $0x98] sm:$0xff]
        %v6942 = vld [vmem:[%s6921 + $0xa0] sm:$0xff]
        %v6943 = vld [vmem:[%s6921 + $0xa8] sm:$0xff]
        %v6944 = vld [vmem:[%s6921 + $0xb0] sm:$0xff]
        %v6945 = vld [vmem:[%s6921 + $0xb8] sm:$0xff]
        %v6946 = vld [vmem:[%s6921 + $0xc0] sm:$0xff]
        %v6947 = vld [vmem:[%s6921 + $0xc8] sm:$0xff]
        %v6948 = vld [vmem:[%s6921 + $0xd0] sm:$0xff]
        %v6949 = vld [vmem:[%s6921 + $0xd8] sm:$0xff]
        %v6950 = vld [vmem:[%s6921 + $0xe0] sm:$0xff]
        %v6951 = vld [vmem:[%s6921 + $0xe8] sm:$0xff]
        %v6952 = vld [vmem:[%s6921 + $0xf0] sm:$0xff]
        %v6953 = vld [vmem:[%s6921 + $0xf8] sm:$0xff]
        %v6954 = vld [vmem:[%s6921 + $0x100] sm:$0xff]
        %v6955 = vld [vmem:[%s6921 + $0x108] sm:$0xff]
        %v6956 = vld [vmem:[%s6921 + $0x110] sm:$0xff]
        %v6957 = vld [vmem:[%s6921 + $0x118] sm:$0xff]
        %v6958 = vld [vmem:[%s6921 + $0x120] sm:$0xff]
        %v6959 = vld [vmem:[%s6921 + $0x128] sm:$0xff]
        %v6960 = vld [vmem:[%s6921 + $0x130] sm:$0xff]
        %v6961 = vld [vmem:[%s6921 + $0x138] sm:$0xff]
        %v6962 = vld [vmem:[%s6921 + $0x140] sm:$0xff]
        %v6963 = vld [vmem:[%s6921 + $0x148] sm:$0xff]
        %v6964 = vld [vmem:[%s6921 + $0x150] sm:$0xff]
        %v6965 = vld [vmem:[%s6921 + $0x158] sm:$0xff]
        %v6966 = vld [vmem:[%s6921 + $0x160] sm:$0xff]
        %v6967 = vld [vmem:[%s6921 + $0x168] sm:$0xff]
        %v6968 = vld [vmem:[%s6921 + $0x170] sm:$0xff]
        %v6969 = vld [vmem:[%s6921 + $0x178] sm:$0xff]
        %v6970 = vld [vmem:[%s6921 + $0x180] sm:$0xff]
        %v6971 = vld [vmem:[%s6921 + $0x188] sm:$0xff]
        %v6972 = vld [vmem:[%s6921 + $0x190] sm:$0xff]
        %v6973 = vld [vmem:[%s6921 + $0x198] sm:$0xff]
        %v6974 = vld [vmem:[%s6921 + $0x1a0] sm:$0xff]
        %v6975 = vld [vmem:[%s6921 + $0x1a8] sm:$0xff]
        %v6976 = vld [vmem:[%s6921 + $0x1b0] sm:$0xff]
        %v6977 = vld [vmem:[%s6921 + $0x1b8] sm:$0xff]
        %v6978 = vld [vmem:[%s6921 + $0x1c0] sm:$0xff]
        %v6979 = vld [vmem:[%s6921 + $0x1c8] sm:$0xff]
        %v6980 = vld [vmem:[%s6921 + $0x1d0] sm:$0xff]
        %v6981 = vld [vmem:[%s6921 + $0x1d8] sm:$0xff]
        %v6982 = vld [vmem:[%s6921 + $0x1e0] sm:$0xff]
        %v6983 = vld [vmem:[%s6921 + $0x1e8] sm:$0xff]
        %v6984 = vld [vmem:[%s6921 + $0x1f0] sm:$0xff]
        %v6985 = vld [vmem:[%s6921 + $0x1f8] sm:$0xff]
        %v6986 = vld [vmem:[%s6921 + $0x200] sm:$0xff]
        %v6987 = vld [vmem:[%s6921 + $0x208] sm:$0xff]
        %v6988 = vld [vmem:[%s6921 + $0x210] sm:$0xff]
        %v6989 = vld [vmem:[%s6921 + $0x218] sm:$0xff]
        %v6990 = vld [vmem:[%s6921 + $0x220] sm:$0xff]
        %v6991 = vld [vmem:[%s6921 + $0x228] sm:$0xff]
        %v6992 = vld [vmem:[%s6921 + $0x230] sm:$0xff]
        %v6993 = vld [vmem:[%s6921 + $0x238] sm:$0xff]
        %s6994 = scalar_lea.vmem %s9, 12
        %v6995 = vld [vmem:[%s6994] sm:$0x3f]
        %v6997 = vlaneseq
        %v6998 = vshrl.u32 %v6997, 7
        %v6999 = vsub.s32 0, %v6998
        %v7000 = vrot.slane %v6995, %v6999
        %v7001 = vlaneseq
        %v7002 = vshrl.u32 %v7001, 7
        %v7003 = vsub.s32 1, %v7002
        %v7004 = vrot.slane %v6995, %v7003
        %v7005 = vlaneseq
        %v7006 = vshrl.u32 %v7005, 7
        %v7007 = vsub.s32 2, %v7006
        %v7008 = vrot.slane %v6995, %v7007
        %v7009 = vlaneseq
        %v7010 = vshrl.u32 %v7009, 7
        %v7011 = vsub.s32 3, %v7010
        %v7012 = vrot.slane %v6995, %v7011
        %v7013 = vlaneseq
        %v7014 = vshrl.u32 %v7013, 7
        %v7015 = vsub.s32 4, %v7014
        %v7016 = vrot.slane %v6995, %v7015
        %v7017 = vlaneseq
        %v7018 = vshrl.u32 %v7017, 7
        %v7019 = vsub.s32 5, %v7018
        %v7020 = vrot.slane %v6995, %v7019
        %v7099 = vunpack.c.l.b16 %v6922
        %v7100 = vunpack.c.h.b16 %v6922
        %v7101 = vunpack.c.l.b16 %v6923
        %v7102 = vunpack.c.h.b16 %v6923
        %v7103 = vunpack.c.l.b16 %v6924
        %v7104 = vunpack.c.h.b16 %v6924
        %v7105 = vunpack.c.l.b16 %v6925
        %v7106 = vunpack.c.h.b16 %v6925
        %v7107 = vunpack.c.l.b16 %v6926
        %v7108 = vunpack.c.h.b16 %v6926
        %v7109 = vunpack.c.l.b16 %v6927
        %v7110 = vunpack.c.h.b16 %v6927
        %v7111 = vunpack.c.l.b16 %v6928
        %v7112 = vunpack.c.h.b16 %v6928
        %v7113 = vunpack.c.l.b16 %v6929
        %v7114 = vunpack.c.h.b16 %v6929
        %v7115 = vunpack.c.l.b16 %v6930
        %v7116 = vunpack.c.h.b16 %v6930
        %v7117 = vunpack.c.l.b16 %v6931
        %v7118 = vunpack.c.h.b16 %v6931
        %v7119 = vunpack.c.l.b16 %v6932
        %v7120 = vunpack.c.h.b16 %v6932
        %v7121 = vunpack.c.l.b16 %v6933
        %v7122 = vunpack.c.h.b16 %v6933
        %v7123 = vunpack.c.l.b16 %v6934
        %v7124 = vunpack.c.h.b16 %v6934
        %v7125 = vunpack.c.l.b16 %v6935
        %v7126 = vunpack.c.h.b16 %v6935
        %v7127 = vunpack.c.l.b16 %v6936
        %v7128 = vunpack.c.h.b16 %v6936
        %v7129 = vunpack.c.l.b16 %v6937
        %v7130 = vunpack.c.h.b16 %v6937
        %v7131 = vunpack.c.l.b16 %v6938
        %v7132 = vunpack.c.h.b16 %v6938
        %v7133 = vunpack.c.l.b16 %v6939
        %v7134 = vunpack.c.h.b16 %v6939
        %v7135 = vunpack.c.l.b16 %v6940
        %v7136 = vunpack.c.h.b16 %v6940
        %v7137 = vunpack.c.l.b16 %v6941
        %v7138 = vunpack.c.h.b16 %v6941
        %v7139 = vunpack.c.l.b16 %v6942
        %v7140 = vunpack.c.h.b16 %v6942
        %v7141 = vunpack.c.l.b16 %v6943
        %v7142 = vunpack.c.h.b16 %v6943
        %v7143 = vunpack.c.l.b16 %v6944
        %v7144 = vunpack.c.h.b16 %v6944
        %v7145 = vunpack.c.l.b16 %v6945
        %v7146 = vunpack.c.h.b16 %v6945
        %v7147 = vunpack.c.l.b16 %v6946
        %v7148 = vunpack.c.h.b16 %v6946
        %v7149 = vunpack.c.l.b16 %v6947
        %v7150 = vunpack.c.h.b16 %v6947
        %v7151 = vunpack.c.l.b16 %v6948
        %v7152 = vunpack.c.h.b16 %v6948
        %v7153 = vunpack.c.l.b16 %v6949
        %v7154 = vunpack.c.h.b16 %v6949
        %v7155 = vunpack.c.l.b16 %v6950
        %v7156 = vunpack.c.h.b16 %v6950
        %v7157 = vunpack.c.l.b16 %v6951
        %v7158 = vunpack.c.h.b16 %v6951
        %v7159 = vunpack.c.l.b16 %v6952
        %v7160 = vunpack.c.h.b16 %v6952
        %v7161 = vunpack.c.l.b16 %v6953
        %v7162 = vunpack.c.h.b16 %v6953
        %v7163 = vunpack.c.l.b16 %v6954
        %v7164 = vunpack.c.h.b16 %v6954
        %v7165 = vunpack.c.l.b16 %v6955
        %v7166 = vunpack.c.h.b16 %v6955
        %v7167 = vunpack.c.l.b16 %v6956
        %v7168 = vunpack.c.h.b16 %v6956
        %v7169 = vunpack.c.l.b16 %v6957
        %v7170 = vunpack.c.h.b16 %v6957
        %v7171 = vunpack.c.l.b16 %v6958
        %v7172 = vunpack.c.h.b16 %v6958
        %v7173 = vunpack.c.l.b16 %v6959
        %v7174 = vunpack.c.h.b16 %v6959
        %v7175 = vunpack.c.l.b16 %v6960
        %v7176 = vunpack.c.h.b16 %v6960
        %v7177 = vunpack.c.l.b16 %v6961
        %v7178 = vunpack.c.h.b16 %v6961
        %v7179 = vunpack.c.l.b16 %v6962
        %v7180 = vunpack.c.h.b16 %v6962
        %v7181 = vunpack.c.l.b16 %v6963
        %v7182 = vunpack.c.h.b16 %v6963
        %v7183 = vunpack.c.l.b16 %v6964
        %v7184 = vunpack.c.h.b16 %v6964
        %v7185 = vunpack.c.l.b16 %v6965
        %v7186 = vunpack.c.h.b16 %v6965
        %v7187 = vunpack.c.l.b16 %v6966
        %v7188 = vunpack.c.h.b16 %v6966
        %v7189 = vunpack.c.l.b16 %v6967
        %v7190 = vunpack.c.h.b16 %v6967
        %v7191 = vunpack.c.l.b16 %v6968
        %v7192 = vunpack.c.h.b16 %v6968
        %v7193 = vunpack.c.l.b16 %v6969
        %v7194 = vunpack.c.h.b16 %v6969
        %v7195 = vunpack.c.l.b16 %v6970
        %v7196 = vunpack.c.h.b16 %v6970
        %v7197 = vunpack.c.l.b16 %v6971
        %v7198 = vunpack.c.h.b16 %v6971
        %v7199 = vunpack.c.l.b16 %v6972
        %v7200 = vunpack.c.h.b16 %v6972
        %v7201 = vunpack.c.l.b16 %v6973
        %v7202 = vunpack.c.h.b16 %v6973
        %v7203 = vunpack.c.l.b16 %v6974
        %v7204 = vunpack.c.h.b16 %v6974
        %v7205 = vunpack.c.l.b16 %v6975
        %v7206 = vunpack.c.h.b16 %v6975
        %v7207 = vunpack.c.l.b16 %v6976
        %v7208 = vunpack.c.h.b16 %v6976
        %v7209 = vunpack.c.l.b16 %v6977
        %v7210 = vunpack.c.h.b16 %v6977
        %v7211 = vunpack.c.l.b16 %v6978
        %v7212 = vunpack.c.h.b16 %v6978
        %v7213 = vunpack.c.l.b16 %v6979
        %v7214 = vunpack.c.h.b16 %v6979
        %v7215 = vunpack.c.l.b16 %v6980
        %v7216 = vunpack.c.h.b16 %v6980
        %v7217 = vunpack.c.l.b16 %v6981
        %v7218 = vunpack.c.h.b16 %v6981
        %v7219 = vunpack.c.l.b16 %v6982
        %v7220 = vunpack.c.h.b16 %v6982
        %v7221 = vunpack.c.l.b16 %v6983
        %v7222 = vunpack.c.h.b16 %v6983
        %v7223 = vunpack.c.l.b16 %v6984
        %v7224 = vunpack.c.h.b16 %v6984
        %v7225 = vunpack.c.l.b16 %v6985
        %v7226 = vunpack.c.h.b16 %v6985
        %v7227 = vunpack.c.l.b16 %v6986
        %v7228 = vunpack.c.h.b16 %v6986
        %v7229 = vunpack.c.l.b16 %v6987
        %v7230 = vunpack.c.h.b16 %v6987
        %v7231 = vunpack.c.l.b16 %v6988
        %v7232 = vunpack.c.h.b16 %v6988
        %v7233 = vunpack.c.l.b16 %v6989
        %v7234 = vunpack.c.h.b16 %v6989
        %v7235 = vunpack.c.l.b16 %v6990
        %v7236 = vunpack.c.h.b16 %v6990
        %v7237 = vunpack.c.l.b16 %v6991
        %v7238 = vunpack.c.h.b16 %v6991
        %v7239 = vunpack.c.l.b16 %v6992
        %v7240 = vunpack.c.h.b16 %v6992
        %v7241 = vunpack.c.l.b16 %v6993
        %v7242 = vunpack.c.h.b16 %v6993
        %v7243 = vpack.c.b16 %v7105, %v7099
        %v7244 = vpack.c.b16 %v7106, %v7100
        %v7245 = vpack.c.b16 %v7107, %v7101
        %v7246 = vpack.c.b16 %v7108, %v7102
        %v7247 = vpack.c.b16 %v7109, %v7103
        %v7248 = vpack.c.b16 %v7110, %v7104
        %v7249 = vpack.c.b16 %v7117, %v7111
        %v7250 = vpack.c.b16 %v7118, %v7112
        %v7251 = vpack.c.b16 %v7119, %v7113
        %v7252 = vpack.c.b16 %v7120, %v7114
        %v7253 = vpack.c.b16 %v7121, %v7115
        %v7254 = vpack.c.b16 %v7122, %v7116
        %v7255 = vpack.c.b16 %v7129, %v7123
        %v7256 = vpack.c.b16 %v7130, %v7124
        %v7257 = vpack.c.b16 %v7131, %v7125
        %v7258 = vpack.c.b16 %v7132, %v7126
        %v7259 = vpack.c.b16 %v7133, %v7127
        %v7260 = vpack.c.b16 %v7134, %v7128
        %v7261 = vpack.c.b16 %v7141, %v7135
        %v7262 = vpack.c.b16 %v7142, %v7136
        %v7263 = vpack.c.b16 %v7143, %v7137
        %v7264 = vpack.c.b16 %v7144, %v7138
        %v7265 = vpack.c.b16 %v7145, %v7139
        %v7266 = vpack.c.b16 %v7146, %v7140
        %v7267 = vpack.c.b16 %v7153, %v7147
        %v7268 = vpack.c.b16 %v7154, %v7148
        %v7269 = vpack.c.b16 %v7155, %v7149
        %v7270 = vpack.c.b16 %v7156, %v7150
        %v7271 = vpack.c.b16 %v7157, %v7151
        %v7272 = vpack.c.b16 %v7158, %v7152
        %v7273 = vpack.c.b16 %v7165, %v7159
        %v7274 = vpack.c.b16 %v7166, %v7160
        %v7275 = vpack.c.b16 %v7167, %v7161
        %v7276 = vpack.c.b16 %v7168, %v7162
        %v7277 = vpack.c.b16 %v7169, %v7163
        %v7278 = vpack.c.b16 %v7170, %v7164
        %v7279 = vpack.c.b16 %v7177, %v7171
        %v7280 = vpack.c.b16 %v7178, %v7172
        %v7281 = vpack.c.b16 %v7179, %v7173
        %v7282 = vpack.c.b16 %v7180, %v7174
        %v7283 = vpack.c.b16 %v7181, %v7175
        %v7284 = vpack.c.b16 %v7182, %v7176
        %v7285 = vpack.c.b16 %v7189, %v7183
        %v7286 = vpack.c.b16 %v7190, %v7184
        %v7287 = vpack.c.b16 %v7191, %v7185
        %v7288 = vpack.c.b16 %v7192, %v7186
        %v7289 = vpack.c.b16 %v7193, %v7187
        %v7290 = vpack.c.b16 %v7194, %v7188
        %v7291 = vpack.c.b16 %v7201, %v7195
        %v7292 = vpack.c.b16 %v7202, %v7196
        %v7293 = vpack.c.b16 %v7203, %v7197
        %v7294 = vpack.c.b16 %v7204, %v7198
        %v7295 = vpack.c.b16 %v7205, %v7199
        %v7296 = vpack.c.b16 %v7206, %v7200
        %v7297 = vpack.c.b16 %v7213, %v7207
        %v7298 = vpack.c.b16 %v7214, %v7208
        %v7299 = vpack.c.b16 %v7215, %v7209
        %v7300 = vpack.c.b16 %v7216, %v7210
        %v7301 = vpack.c.b16 %v7217, %v7211
        %v7302 = vpack.c.b16 %v7218, %v7212
        %v7303 = vpack.c.b16 %v7225, %v7219
        %v7304 = vpack.c.b16 %v7226, %v7220
        %v7305 = vpack.c.b16 %v7227, %v7221
        %v7306 = vpack.c.b16 %v7228, %v7222
        %v7307 = vpack.c.b16 %v7229, %v7223
        %v7308 = vpack.c.b16 %v7230, %v7224
        %v7309 = vpack.c.b16 %v7237, %v7231
        %v7310 = vpack.c.b16 %v7238, %v7232
        %v7311 = vpack.c.b16 %v7239, %v7233
        %v7312 = vpack.c.b16 %v7240, %v7234
        %v7313 = vpack.c.b16 %v7241, %v7235
        %v7314 = vpack.c.b16 %v7242, %v7236
        %v7388 = vsel %vm536, %v6920, 0
        %7390 = vmatprep.subr.bf16.mxu0 %v7244
        %7391 = vmatpush1.bf16.msra.mxu0 %v7243
        %7392 = vmatprep.subr.bf16.mxu0 %v7250
        %7393 = vmatpush1.bf16.msra.mxu0 %v7249
        %7394 = vmatprep.subr.bf16.mxu0 %v7256
        %7395 = vmatpush1.bf16.msra.mxu0 %v7255
        %7396 = vmatprep.subr.bf16.mxu0 %v7262
        %7397 = vmatpush1.bf16.msra.mxu0 %v7261
        %7398 = vmatprep.subr.bf16.mxu0 %v7268
        %7399 = vmatpush1.bf16.msra.mxu0 %v7267
        %7400 = vmatprep.subr.bf16.mxu0 %v7274
        %7401 = vmatpush1.bf16.msra.mxu0 %v7273
        %7402 = vmatprep.subr.bf16.mxu0 %v7280
        %7403 = vmatpush1.bf16.msra.mxu0 %v7279
        %7404 = vmatprep.subr.bf16.mxu0 %v7286
        %7405 = vmatpush1.bf16.msra.mxu0 %v7285
        %7406 = vmatprep.subr.bf16.mxu0 %v7292
        %7407 = vmatpush1.bf16.msra.mxu0 %v7291
        %7408 = vmatprep.subr.bf16.mxu0 %v7298
        %7409 = vmatpush1.bf16.msra.mxu0 %v7297
        %7410 = vmatprep.subr.bf16.mxu0 %v7304
        %7411 = vmatpush1.bf16.msra.mxu0 %v7303
        %7412 = vmatprep.subr.bf16.mxu0 %v7310
        %7413 = vmatpush1.bf16.msra.mxu0 %v7309
        %7414 = vmatprep.subr.bf16.mxu0 0
        %7415 = vmatpush1.bf16.msra.mxu0 0
        %7416 = vmatprep.subr.bf16.mxu0 0
        %7417 = vmatpush1.bf16.msra.mxu0 0
        %7418 = vmatprep.subr.bf16.mxu0 0
        %7419 = vmatpush1.bf16.msra.mxu0 0
        %7420 = vmatprep.subr.bf16.mxu0 0
        %7421 = vmatpush1.bf16.msra.mxu0 0
        %7422 = vmatprep.mubr.bf16.mxu0 %v7388
        %7423 = vmatmul.mubr.bf16.gmra.mrb[0].mxu0 %v6919
        %v7424 = vpop.f32.mrb[0].mxu0
        %v7425 = vadd.f32 %v7000, %v7424
        %v7426 = vpop.f32.mrb[0].mxu0
        %v7427 = vadd.f32 %v7004, %v7426
        %v7428 = vpop.f32.mrb[0].mxu0
        %v7429 = vadd.f32 %v7000, %v7428
        %v7430 = vpop.f32.mrb[0].mxu0
        %v7431 = vadd.f32 %v7004, %v7430
        %7432 = vdwg.mxu0
        %7433 = vmatprep.subr.bf16.mxu0 %v7246
        %7434 = vmatpush1.bf16.msra.mxu0 %v7245
        %7435 = vmatprep.subr.bf16.mxu0 %v7252
        %7436 = vmatpush1.bf16.msra.mxu0 %v7251
        %7437 = vmatprep.subr.bf16.mxu0 %v7258
        %7438 = vmatpush1.bf16.msra.mxu0 %v7257
        %7439 = vmatprep.subr.bf16.mxu0 %v7264
        %7440 = vmatpush1.bf16.msra.mxu0 %v7263
        %7441 = vmatprep.subr.bf16.mxu0 %v7270
        %7442 = vmatpush1.bf16.msra.mxu0 %v7269
        %7443 = vmatprep.subr.bf16.mxu0 %v7276
        %7444 = vmatpush1.bf16.msra.mxu0 %v7275
        %7445 = vmatprep.subr.bf16.mxu0 %v7282
        %7446 = vmatpush1.bf16.msra.mxu0 %v7281
        %7447 = vmatprep.subr.bf16.mxu0 %v7288
        %7448 = vmatpush1.bf16.msra.mxu0 %v7287
        %7449 = vmatprep.subr.bf16.mxu0 %v7294
        %7450 = vmatpush1.bf16.msra.mxu0 %v7293
        %7451 = vmatprep.subr.bf16.mxu0 %v7300
        %7452 = vmatpush1.bf16.msra.mxu0 %v7299
        %7453 = vmatprep.subr.bf16.mxu0 %v7306
        %7454 = vmatpush1.bf16.msra.mxu0 %v7305
        %7455 = vmatprep.subr.bf16.mxu0 %v7312
        %7456 = vmatpush1.bf16.msra.mxu0 %v7311
        %7457 = vmatprep.subr.bf16.mxu0 0
        %7458 = vmatpush1.bf16.msra.mxu0 0
        %7459 = vmatprep.subr.bf16.mxu0 0
        %7460 = vmatpush1.bf16.msra.mxu0 0
        %7461 = vmatprep.subr.bf16.mxu0 0
        %7462 = vmatpush1.bf16.msra.mxu0 0
        %7463 = vmatprep.subr.bf16.mxu0 0
        %7464 = vmatpush1.bf16.msra.mxu0 0
        %7465 = vmatprep.mubr.bf16.mxu0 %v7388
        %7466 = vmatmul.mubr.bf16.gmra.mrb[0].mxu0 %v6919
        %v7467 = vpop.f32.mrb[0].mxu0
        %v7468 = vadd.f32 %v7008, %v7467
        %v7469 = vpop.f32.mrb[0].mxu0
        %v7470 = vadd.f32 %v7012, %v7469
        %v7471 = vpop.f32.mrb[0].mxu0
        %v7472 = vadd.f32 %v7008, %v7471
        %v7473 = vpop.f32.mrb[0].mxu0
        %v7474 = vadd.f32 %v7012, %v7473
        %7475 = vdwg.mxu0
        %7476 = vmatprep.subr.bf16.mxu0 %v7248
        %7477 = vmatpush1.bf16.msra.mxu0 %v7247
        %7478 = vmatprep.subr.bf16.mxu0 %v7254
        %7479 = vmatpush1.bf16.msra.mxu0 %v7253
        %7480 = vmatprep.subr.bf16.mxu0 %v7260
        %7481 = vmatpush1.bf16.msra.mxu0 %v7259
        %7482 = vmatprep.subr.bf16.mxu0 %v7266
        %7483 = vmatpush1.bf16.msra.mxu0 %v7265
        %7484 = vmatprep.subr.bf16.mxu0 %v7272
        %7485 = vmatpush1.bf16.msra.mxu0 %v7271
        %7486 = vmatprep.subr.bf16.mxu0 %v7278
        %7487 = vmatpush1.bf16.msra.mxu0 %v7277
        %7488 = vmatprep.subr.bf16.mxu0 %v7284
        %7489 = vmatpush1.bf16.msra.mxu0 %v7283
        %7490 = vmatprep.subr.bf16.mxu0 %v7290
        %7491 = vmatpush1.bf16.msra.mxu0 %v7289
        %7492 = vmatprep.subr.bf16.mxu0 %v7296
        %7493 = vmatpush1.bf16.msra.mxu0 %v7295
        %7494 = vmatprep.subr.bf16.mxu0 %v7302
        %7495 = vmatpush1.bf16.msra.mxu0 %v7301
        %7496 = vmatprep.subr.bf16.mxu0 %v7308
        %7497 = vmatpush1.bf16.msra.mxu0 %v7307
        %7498 = vmatprep.subr.bf16.mxu0 %v7314
        %7499 = vmatpush1.bf16.msra.mxu0 %v7313
        %7500 = vmatprep.subr.bf16.mxu0 0
        %7501 = vmatpush1.bf16.msra.mxu0 0
        %7502 = vmatprep.subr.bf16.mxu0 0
        %7503 = vmatpush1.bf16.msra.mxu0 0
        %7504 = vmatprep.subr.bf16.mxu0 0
        %7505 = vmatpush1.bf16.msra.mxu0 0
        %7506 = vmatprep.subr.bf16.mxu0 0
        %7507 = vmatpush1.bf16.msra.mxu0 0
        %7508 = vmatprep.mubr.bf16.mxu0 %v7388
        %7509 = vmatmul.mubr.bf16.gmra.mrb[0].mxu0 %v6919
        %v7510 = vpop.f32.mrb[0].mxu0
        %v7511 = vadd.f32 %v7016, %v7510
        %v7512 = vpop.f32.mrb[0].mxu0
        %v7513 = vadd.f32 %v7020, %v7512
        %v7514 = vpop.f32.mrb[0].mxu0
        %v7515 = vadd.f32 %v7016, %v7514
        %v7516 = vpop.f32.mrb[0].mxu0
        %v7517 = vadd.f32 %v7020, %v7516
        %7518 = vdwg.mxu0
        %v7519 = vmax.f32 %v7425, 0.0
        %v7520 = vmax.f32 %v7427, 0.0
        %v7521 = vmax.f32 %v7468, 0.0
        %v7522 = vmax.f32 %v7470, 0.0
        %v7523 = vmax.f32 %v7511, 0.0
        %v7524 = vmax.f32 %v7513, 0.0
        %v7525 = vmax.f32 %v7429, 0.0
        %v7526 = vmax.f32 %v7431, 0.0
        %v7527 = vmax.f32 %v7472, 0.0
        %v7528 = vmax.f32 %v7474, 0.0
        %v7529 = vmax.f32 %v7515, 0.0
        %v7530 = vmax.f32 %v7517, 0.0
        %v7531 = vpack.c.bf16 %v7525, %v7519
        %v7532 = vpack.c.bf16 %v7526, %v7520
        %v7533 = vpack.c.bf16 %v7527, %v7521
        %v7534 = vpack.c.bf16 %v7528, %v7522
        %v7535 = vpack.c.bf16 %v7529, %v7523
        %v7536 = vpack.c.bf16 %v7530, %v7524
        %s7537 = scalar_lea.vmem %s10, 1536
        %v7538 = vld [vmem:[%s7537] sm:$0xff]
        %v7539 = vld [vmem:[%s7537 + $0x8] sm:$0xff]
        %v7540 = vld [vmem:[%s7537 + $0x10] sm:$0xff]
        %v7541 = vld [vmem:[%s7537 + $0x18] sm:$0xff]
        %v7542 = vld [vmem:[%s7537 + $0x20] sm:$0xff]
        %v7543 = vld [vmem:[%s7537 + $0x28] sm:$0xff]
        %v7544 = vld [vmem:[%s7537 + $0x30] sm:$0xff]
        %v7545 = vld [vmem:[%s7537 + $0x38] sm:$0xff]
        %v7546 = vld [vmem:[%s7537 + $0x40] sm:$0xff]
        %v7547 = vld [vmem:[%s7537 + $0x48] sm:$0xff]
        %v7548 = vld [vmem:[%s7537 + $0x50] sm:$0xff]
        %v7549 = vld [vmem:[%s7537 + $0x58] sm:$0xff]
        %v7550 = vld [vmem:[%s7537 + $0x60] sm:$0xff]
        %v7551 = vld [vmem:[%s7537 + $0x68] sm:$0xff]
        %v7552 = vld [vmem:[%s7537 + $0x70] sm:$0xff]
        %v7553 = vld [vmem:[%s7537 + $0x78] sm:$0xff]
        %v7554 = vld [vmem:[%s7537 + $0x80] sm:$0xff]
        %v7555 = vld [vmem:[%s7537 + $0x88] sm:$0xff]
        %v7556 = vld [vmem:[%s7537 + $0x90] sm:$0xff]
        %v7557 = vld [vmem:[%s7537 + $0x98] sm:$0xff]
        %v7558 = vld [vmem:[%s7537 + $0xa0] sm:$0xff]
        %v7559 = vld [vmem:[%s7537 + $0xa8] sm:$0xff]
        %v7560 = vld [vmem:[%s7537 + $0xb0] sm:$0xff]
        %v7561 = vld [vmem:[%s7537 + $0xb8] sm:$0xff]
        %v7562 = vld [vmem:[%s7537 + $0xc0] sm:$0xff]
        %v7563 = vld [vmem:[%s7537 + $0xc8] sm:$0xff]
        %v7564 = vld [vmem:[%s7537 + $0xd0] sm:$0xff]
        %v7565 = vld [vmem:[%s7537 + $0xd8] sm:$0xff]
        %v7566 = vld [vmem:[%s7537 + $0xe0] sm:$0xff]
        %v7567 = vld [vmem:[%s7537 + $0xe8] sm:$0xff]
        %v7568 = vld [vmem:[%s7537 + $0xf0] sm:$0xff]
        %v7569 = vld [vmem:[%s7537 + $0xf8] sm:$0xff]
        %v7570 = vld [vmem:[%s7537 + $0x100] sm:$0xff]
        %v7571 = vld [vmem:[%s7537 + $0x108] sm:$0xff]
        %v7572 = vld [vmem:[%s7537 + $0x110] sm:$0xff]
        %v7573 = vld [vmem:[%s7537 + $0x118] sm:$0xff]
        %v7574 = vld [vmem:[%s7537 + $0x120] sm:$0xff]
        %v7575 = vld [vmem:[%s7537 + $0x128] sm:$0xff]
        %v7576 = vld [vmem:[%s7537 + $0x130] sm:$0xff]
        %v7577 = vld [vmem:[%s7537 + $0x138] sm:$0xff]
        %v7578 = vld [vmem:[%s7537 + $0x140] sm:$0xff]
        %v7579 = vld [vmem:[%s7537 + $0x148] sm:$0xff]
        %v7580 = vld [vmem:[%s7537 + $0x150] sm:$0xff]
        %v7581 = vld [vmem:[%s7537 + $0x158] sm:$0xff]
        %v7582 = vld [vmem:[%s7537 + $0x160] sm:$0xff]
        %v7583 = vld [vmem:[%s7537 + $0x168] sm:$0xff]
        %v7584 = vld [vmem:[%s7537 + $0x170] sm:$0xff]
        %v7585 = vld [vmem:[%s7537 + $0x178] sm:$0xff]
        %v7586 = vld [vmem:[%s7537 + $0x180] sm:$0xff]
        %v7587 = vld [vmem:[%s7537 + $0x188] sm:$0xff]
        %v7588 = vld [vmem:[%s7537 + $0x190] sm:$0xff]
        %v7589 = vld [vmem:[%s7537 + $0x198] sm:$0xff]
        %v7590 = vld [vmem:[%s7537 + $0x1a0] sm:$0xff]
        %v7591 = vld [vmem:[%s7537 + $0x1a8] sm:$0xff]
        %v7592 = vld [vmem:[%s7537 + $0x1b0] sm:$0xff]
        %v7593 = vld [vmem:[%s7537 + $0x1b8] sm:$0xff]
        %v7594 = vld [vmem:[%s7537 + $0x1c0] sm:$0xff]
        %v7595 = vld [vmem:[%s7537 + $0x1c8] sm:$0xff]
        %v7596 = vld [vmem:[%s7537 + $0x1d0] sm:$0xff]
        %v7597 = vld [vmem:[%s7537 + $0x1d8] sm:$0xff]
        %v7598 = vld [vmem:[%s7537 + $0x1e0] sm:$0xff]
        %v7599 = vld [vmem:[%s7537 + $0x1e8] sm:$0xff]
        %v7600 = vld [vmem:[%s7537 + $0x1f0] sm:$0xff]
        %v7601 = vld [vmem:[%s7537 + $0x1f8] sm:$0xff]
        %v7602 = vld [vmem:[%s7537 + $0x200] sm:$0xff]
        %v7603 = vld [vmem:[%s7537 + $0x208] sm:$0xff]
        %v7604 = vld [vmem:[%s7537 + $0x210] sm:$0xff]
        %v7605 = vld [vmem:[%s7537 + $0x218] sm:$0xff]
        %v7606 = vld [vmem:[%s7537 + $0x220] sm:$0xff]
        %v7607 = vld [vmem:[%s7537 + $0x228] sm:$0xff]
        %v7608 = vld [vmem:[%s7537 + $0x230] sm:$0xff]
        %v7609 = vld [vmem:[%s7537 + $0x238] sm:$0xff]
        %v7610 = vld [vmem:[%s7537 + $0x240] sm:$0xff]
        %v7611 = vld [vmem:[%s7537 + $0x248] sm:$0xff]
        %v7612 = vld [vmem:[%s7537 + $0x250] sm:$0xff]
        %v7613 = vld [vmem:[%s7537 + $0x258] sm:$0xff]
        %v7614 = vld [vmem:[%s7537 + $0x260] sm:$0xff]
        %v7615 = vld [vmem:[%s7537 + $0x268] sm:$0xff]
        %v7616 = vld [vmem:[%s7537 + $0x270] sm:$0xff]
        %v7617 = vld [vmem:[%s7537 + $0x278] sm:$0xff]
        %v7618 = vld [vmem:[%s7537 + $0x280] sm:$0xff]
        %v7619 = vld [vmem:[%s7537 + $0x288] sm:$0xff]
        %v7620 = vld [vmem:[%s7537 + $0x290] sm:$0xff]
        %v7621 = vld [vmem:[%s7537 + $0x298] sm:$0xff]
        %v7622 = vld [vmem:[%s7537 + $0x2a0] sm:$0xff]
        %v7623 = vld [vmem:[%s7537 + $0x2a8] sm:$0xff]
        %v7624 = vld [vmem:[%s7537 + $0x2b0] sm:$0xff]
        %v7625 = vld [vmem:[%s7537 + $0x2b8] sm:$0xff]
        %v7626 = vld [vmem:[%s7537 + $0x2c0] sm:$0xff]
        %v7627 = vld [vmem:[%s7537 + $0x2c8] sm:$0xff]
        %v7628 = vld [vmem:[%s7537 + $0x2d0] sm:$0xff]
        %v7629 = vld [vmem:[%s7537 + $0x2d8] sm:$0xff]
        %v7630 = vld [vmem:[%s7537 + $0x2e0] sm:$0xff]
        %v7631 = vld [vmem:[%s7537 + $0x2e8] sm:$0xff]
        %v7632 = vld [vmem:[%s7537 + $0x2f0] sm:$0xff]
        %v7633 = vld [vmem:[%s7537 + $0x2f8] sm:$0xff]
        %s7634 = scalar_lea.vmem %s11, 4
        %v7635 = vld [vmem:[%s7634] sm:$0x3]
        %v7637 = vlaneseq
        %v7638 = vshrl.u32 %v7637, 7
        %v7639 = vsub.s32 0, %v7638
        %v7640 = vrot.slane %v7635, %v7639
        %v7641 = vlaneseq
        %v7642 = vshrl.u32 %v7641, 7
        %v7643 = vsub.s32 1, %v7642
        %v7644 = vrot.slane %v7635, %v7643
        %v7743 = vunpack.c.l.b16 %v7538
        %v7744 = vunpack.c.h.b16 %v7538
        %v7745 = vunpack.c.l.b16 %v7539
        %v7746 = vunpack.c.h.b16 %v7539
        %v7747 = vunpack.c.l.b16 %v7540
        %v7748 = vunpack.c.h.b16 %v7540
        %v7749 = vunpack.c.l.b16 %v7541
        %v7750 = vunpack.c.h.b16 %v7541
        %v7751 = vunpack.c.l.b16 %v7542
        %v7752 = vunpack.c.h.b16 %v7542
        %v7753 = vunpack.c.l.b16 %v7543
        %v7754 = vunpack.c.h.b16 %v7543
        %v7755 = vunpack.c.l.b16 %v7544
        %v7756 = vunpack.c.h.b16 %v7544
        %v7757 = vunpack.c.l.b16 %v7545
        %v7758 = vunpack.c.h.b16 %v7545
        %v7759 = vunpack.c.l.b16 %v7546
        %v7760 = vunpack.c.h.b16 %v7546
        %v7761 = vunpack.c.l.b16 %v7547
        %v7762 = vunpack.c.h.b16 %v7547
        %v7763 = vunpack.c.l.b16 %v7548
        %v7764 = vunpack.c.h.b16 %v7548
        %v7765 = vunpack.c.l.b16 %v7549
        %v7766 = vunpack.c.h.b16 %v7549
        %v7767 = vunpack.c.l.b16 %v7550
        %v7768 = vunpack.c.h.b16 %v7550
        %v7769 = vunpack.c.l.b16 %v7551
        %v7770 = vunpack.c.h.b16 %v7551
        %v7771 = vunpack.c.l.b16 %v7552
        %v7772 = vunpack.c.h.b16 %v7552
        %v7773 = vunpack.c.l.b16 %v7553
        %v7774 = vunpack.c.h.b16 %v7553
        %v7775 = vunpack.c.l.b16 %v7554
        %v7776 = vunpack.c.h.b16 %v7554
        %v7777 = vunpack.c.l.b16 %v7555
        %v7778 = vunpack.c.h.b16 %v7555
        %v7779 = vunpack.c.l.b16 %v7556
        %v7780 = vunpack.c.h.b16 %v7556
        %v7781 = vunpack.c.l.b16 %v7557
        %v7782 = vunpack.c.h.b16 %v7557
        %v7783 = vunpack.c.l.b16 %v7558
        %v7784 = vunpack.c.h.b16 %v7558
        %v7785 = vunpack.c.l.b16 %v7559
        %v7786 = vunpack.c.h.b16 %v7559
        %v7787 = vunpack.c.l.b16 %v7560
        %v7788 = vunpack.c.h.b16 %v7560
        %v7789 = vunpack.c.l.b16 %v7561
        %v7790 = vunpack.c.h.b16 %v7561
        %v7791 = vunpack.c.l.b16 %v7562
        %v7792 = vunpack.c.h.b16 %v7562
        %v7793 = vunpack.c.l.b16 %v7563
        %v7794 = vunpack.c.h.b16 %v7563
        %v7795 = vunpack.c.l.b16 %v7564
        %v7796 = vunpack.c.h.b16 %v7564
        %v7797 = vunpack.c.l.b16 %v7565
        %v7798 = vunpack.c.h.b16 %v7565
        %v7799 = vunpack.c.l.b16 %v7566
        %v7800 = vunpack.c.h.b16 %v7566
        %v7801 = vunpack.c.l.b16 %v7567
        %v7802 = vunpack.c.h.b16 %v7567
        %v7803 = vunpack.c.l.b16 %v7568
        %v7804 = vunpack.c.h.b16 %v7568
        %v7805 = vunpack.c.l.b16 %v7569
        %v7806 = vunpack.c.h.b16 %v7569
        %v7807 = vunpack.c.l.b16 %v7570
        %v7808 = vunpack.c.h.b16 %v7570
        %v7809 = vunpack.c.l.b16 %v7571
        %v7810 = vunpack.c.h.b16 %v7571
        %v7811 = vunpack.c.l.b16 %v7572
        %v7812 = vunpack.c.h.b16 %v7572
        %v7813 = vunpack.c.l.b16 %v7573
        %v7814 = vunpack.c.h.b16 %v7573
        %v7815 = vunpack.c.l.b16 %v7574
        %v7816 = vunpack.c.h.b16 %v7574
        %v7817 = vunpack.c.l.b16 %v7575
        %v7818 = vunpack.c.h.b16 %v7575
        %v7819 = vunpack.c.l.b16 %v7576
        %v7820 = vunpack.c.h.b16 %v7576
        %v7821 = vunpack.c.l.b16 %v7577
        %v7822 = vunpack.c.h.b16 %v7577
        %v7823 = vunpack.c.l.b16 %v7578
        %v7824 = vunpack.c.h.b16 %v7578
        %v7825 = vunpack.c.l.b16 %v7579
        %v7826 = vunpack.c.h.b16 %v7579
        %v7827 = vunpack.c.l.b16 %v7580
        %v7828 = vunpack.c.h.b16 %v7580
        %v7829 = vunpack.c.l.b16 %v7581
        %v7830 = vunpack.c.h.b16 %v7581
        %v7831 = vunpack.c.l.b16 %v7582
        %v7832 = vunpack.c.h.b16 %v7582
        %v7833 = vunpack.c.l.b16 %v7583
        %v7834 = vunpack.c.h.b16 %v7583
        %v7835 = vunpack.c.l.b16 %v7584
        %v7836 = vunpack.c.h.b16 %v7584
        %v7837 = vunpack.c.l.b16 %v7585
        %v7838 = vunpack.c.h.b16 %v7585
        %v7839 = vunpack.c.l.b16 %v7586
        %v7840 = vunpack.c.h.b16 %v7586
        %v7841 = vunpack.c.l.b16 %v7587
        %v7842 = vunpack.c.h.b16 %v7587
        %v7843 = vunpack.c.l.b16 %v7588
        %v7844 = vunpack.c.h.b16 %v7588
        %v7845 = vunpack.c.l.b16 %v7589
        %v7846 = vunpack.c.h.b16 %v7589
        %v7847 = vunpack.c.l.b16 %v7590
        %v7848 = vunpack.c.h.b16 %v7590
        %v7849 = vunpack.c.l.b16 %v7591
        %v7850 = vunpack.c.h.b16 %v7591
        %v7851 = vunpack.c.l.b16 %v7592
        %v7852 = vunpack.c.h.b16 %v7592
        %v7853 = vunpack.c.l.b16 %v7593
        %v7854 = vunpack.c.h.b16 %v7593
        %v7855 = vunpack.c.l.b16 %v7594
        %v7856 = vunpack.c.h.b16 %v7594
        %v7857 = vunpack.c.l.b16 %v7595
        %v7858 = vunpack.c.h.b16 %v7595
        %v7859 = vunpack.c.l.b16 %v7596
        %v7860 = vunpack.c.h.b16 %v7596
        %v7861 = vunpack.c.l.b16 %v7597
        %v7862 = vunpack.c.h.b16 %v7597
        %v7863 = vunpack.c.l.b16 %v7598
        %v7864 = vunpack.c.h.b16 %v7598
        %v7865 = vunpack.c.l.b16 %v7599
        %v7866 = vunpack.c.h.b16 %v7599
        %v7867 = vunpack.c.l.b16 %v7600
        %v7868 = vunpack.c.h.b16 %v7600
        %v7869 = vunpack.c.l.b16 %v7601
        %v7870 = vunpack.c.h.b16 %v7601
        %v7871 = vunpack.c.l.b16 %v7602
        %v7872 = vunpack.c.h.b16 %v7602
        %v7873 = vunpack.c.l.b16 %v7603
        %v7874 = vunpack.c.h.b16 %v7603
        %v7875 = vunpack.c.l.b16 %v7604
        %v7876 = vunpack.c.h.b16 %v7604
        %v7877 = vunpack.c.l.b16 %v7605
        %v7878 = vunpack.c.h.b16 %v7605
        %v7879 = vunpack.c.l.b16 %v7606
        %v7880 = vunpack.c.h.b16 %v7606
        %v7881 = vunpack.c.l.b16 %v7607
        %v7882 = vunpack.c.h.b16 %v7607
        %v7883 = vunpack.c.l.b16 %v7608
        %v7884 = vunpack.c.h.b16 %v7608
        %v7885 = vunpack.c.l.b16 %v7609
        %v7886 = vunpack.c.h.b16 %v7609
        %v7887 = vunpack.c.l.b16 %v7610
        %v7888 = vunpack.c.h.b16 %v7610
        %v7889 = vunpack.c.l.b16 %v7611
        %v7890 = vunpack.c.h.b16 %v7611
        %v7891 = vunpack.c.l.b16 %v7612
        %v7892 = vunpack.c.h.b16 %v7612
        %v7893 = vunpack.c.l.b16 %v7613
        %v7894 = vunpack.c.h.b16 %v7613
        %v7895 = vunpack.c.l.b16 %v7614
        %v7896 = vunpack.c.h.b16 %v7614
        %v7897 = vunpack.c.l.b16 %v7615
        %v7898 = vunpack.c.h.b16 %v7615
        %v7899 = vunpack.c.l.b16 %v7616
        %v7900 = vunpack.c.h.b16 %v7616
        %v7901 = vunpack.c.l.b16 %v7617
        %v7902 = vunpack.c.h.b16 %v7617
        %v7903 = vunpack.c.l.b16 %v7618
        %v7904 = vunpack.c.h.b16 %v7618
        %v7905 = vunpack.c.l.b16 %v7619
        %v7906 = vunpack.c.h.b16 %v7619
        %v7907 = vunpack.c.l.b16 %v7620
        %v7908 = vunpack.c.h.b16 %v7620
        %v7909 = vunpack.c.l.b16 %v7621
        %v7910 = vunpack.c.h.b16 %v7621
        %v7911 = vunpack.c.l.b16 %v7622
        %v7912 = vunpack.c.h.b16 %v7622
        %v7913 = vunpack.c.l.b16 %v7623
        %v7914 = vunpack.c.h.b16 %v7623
        %v7915 = vunpack.c.l.b16 %v7624
        %v7916 = vunpack.c.h.b16 %v7624
        %v7917 = vunpack.c.l.b16 %v7625
        %v7918 = vunpack.c.h.b16 %v7625
        %v7919 = vunpack.c.l.b16 %v7626
        %v7920 = vunpack.c.h.b16 %v7626
        %v7921 = vunpack.c.l.b16 %v7627
        %v7922 = vunpack.c.h.b16 %v7627
        %v7923 = vunpack.c.l.b16 %v7628
        %v7924 = vunpack.c.h.b16 %v7628
        %v7925 = vunpack.c.l.b16 %v7629
        %v7926 = vunpack.c.h.b16 %v7629
        %v7927 = vunpack.c.l.b16 %v7630
        %v7928 = vunpack.c.h.b16 %v7630
        %v7929 = vunpack.c.l.b16 %v7631
        %v7930 = vunpack.c.h.b16 %v7631
        %v7931 = vunpack.c.l.b16 %v7632
        %v7932 = vunpack.c.h.b16 %v7632
        %v7933 = vunpack.c.l.b16 %v7633
        %v7934 = vunpack.c.h.b16 %v7633
        %v7935 = vpack.c.b16 %v7745, %v7743
        %v7936 = vpack.c.b16 %v7746, %v7744
        %v7937 = vpack.c.b16 %v7749, %v7747
        %v7938 = vpack.c.b16 %v7750, %v7748
        %v7939 = vpack.c.b16 %v7753, %v7751
        %v7940 = vpack.c.b16 %v7754, %v7752
        %v7941 = vpack.c.b16 %v7757, %v7755
        %v7942 = vpack.c.b16 %v7758, %v7756
        %v7943 = vpack.c.b16 %v7761, %v7759
        %v7944 = vpack.c.b16 %v7762, %v7760
        %v7945 = vpack.c.b16 %v7765, %v7763
        %v7946 = vpack.c.b16 %v7766, %v7764
        %v7947 = vpack.c.b16 %v7769, %v7767
        %v7948 = vpack.c.b16 %v7770, %v7768
        %v7949 = vpack.c.b16 %v7773, %v7771
        %v7950 = vpack.c.b16 %v7774, %v7772
        %v7951 = vpack.c.b16 %v7777, %v7775
        %v7952 = vpack.c.b16 %v7778, %v7776
        %v7953 = vpack.c.b16 %v7781, %v7779
        %v7954 = vpack.c.b16 %v7782, %v7780
        %v7955 = vpack.c.b16 %v7785, %v7783
        %v7956 = vpack.c.b16 %v7786, %v7784
        %v7957 = vpack.c.b16 %v7789, %v7787
        %v7958 = vpack.c.b16 %v7790, %v7788
        %v7959 = vpack.c.b16 %v7793, %v7791
        %v7960 = vpack.c.b16 %v7794, %v7792
        %v7961 = vpack.c.b16 %v7797, %v7795
        %v7962 = vpack.c.b16 %v7798, %v7796
        %v7963 = vpack.c.b16 %v7801, %v7799
        %v7964 = vpack.c.b16 %v7802, %v7800
        %v7965 = vpack.c.b16 %v7805, %v7803
        %v7966 = vpack.c.b16 %v7806, %v7804
        %v7967 = vpack.c.b16 %v7809, %v7807
        %v7968 = vpack.c.b16 %v7810, %v7808
        %v7969 = vpack.c.b16 %v7813, %v7811
        %v7970 = vpack.c.b16 %v7814, %v7812
        %v7971 = vpack.c.b16 %v7817, %v7815
        %v7972 = vpack.c.b16 %v7818, %v7816
        %v7973 = vpack.c.b16 %v7821, %v7819
        %v7974 = vpack.c.b16 %v7822, %v7820
        %v7975 = vpack.c.b16 %v7825, %v7823
        %v7976 = vpack.c.b16 %v7826, %v7824
        %v7977 = vpack.c.b16 %v7829, %v7827
        %v7978 = vpack.c.b16 %v7830, %v7828
        %v7979 = vpack.c.b16 %v7833, %v7831
        %v7980 = vpack.c.b16 %v7834, %v7832
        %v7981 = vpack.c.b16 %v7837, %v7835
        %v7982 = vpack.c.b16 %v7838, %v7836
        %v7983 = vpack.c.b16 %v7841, %v7839
        %v7984 = vpack.c.b16 %v7842, %v7840
        %v7985 = vpack.c.b16 %v7845, %v7843
        %v7986 = vpack.c.b16 %v7846, %v7844
        %v7987 = vpack.c.b16 %v7849, %v7847
        %v7988 = vpack.c.b16 %v7850, %v7848
        %v7989 = vpack.c.b16 %v7853, %v7851
        %v7990 = vpack.c.b16 %v7854, %v7852
        %v7991 = vpack.c.b16 %v7857, %v7855
        %v7992 = vpack.c.b16 %v7858, %v7856
        %v7993 = vpack.c.b16 %v7861, %v7859
        %v7994 = vpack.c.b16 %v7862, %v7860
        %v7995 = vpack.c.b16 %v7865, %v7863
        %v7996 = vpack.c.b16 %v7866, %v7864
        %v7997 = vpack.c.b16 %v7869, %v7867
        %v7998 = vpack.c.b16 %v7870, %v7868
        %v7999 = vpack.c.b16 %v7873, %v7871
        %v8000 = vpack.c.b16 %v7874, %v7872
        %v8001 = vpack.c.b16 %v7877, %v7875
        %v8002 = vpack.c.b16 %v7878, %v7876
        %v8003 = vpack.c.b16 %v7881, %v7879
        %v8004 = vpack.c.b16 %v7882, %v7880
        %v8005 = vpack.c.b16 %v7885, %v7883
        %v8006 = vpack.c.b16 %v7886, %v7884
        %v8007 = vpack.c.b16 %v7889, %v7887
        %v8008 = vpack.c.b16 %v7890, %v7888
        %v8009 = vpack.c.b16 %v7893, %v7891
        %v8010 = vpack.c.b16 %v7894, %v7892
        %v8011 = vpack.c.b16 %v7897, %v7895
        %v8012 = vpack.c.b16 %v7898, %v7896
        %v8013 = vpack.c.b16 %v7901, %v7899
        %v8014 = vpack.c.b16 %v7902, %v7900
        %v8015 = vpack.c.b16 %v7905, %v7903
        %v8016 = vpack.c.b16 %v7906, %v7904
        %v8017 = vpack.c.b16 %v7909, %v7907
        %v8018 = vpack.c.b16 %v7910, %v7908
        %v8019 = vpack.c.b16 %v7913, %v7911
        %v8020 = vpack.c.b16 %v7914, %v7912
        %v8021 = vpack.c.b16 %v7917, %v7915
        %v8022 = vpack.c.b16 %v7918, %v7916
        %v8023 = vpack.c.b16 %v7921, %v7919
        %v8024 = vpack.c.b16 %v7922, %v7920
        %v8025 = vpack.c.b16 %v7925, %v7923
        %v8026 = vpack.c.b16 %v7926, %v7924
        %v8027 = vpack.c.b16 %v7929, %v7927
        %v8028 = vpack.c.b16 %v7930, %v7928
        %v8029 = vpack.c.b16 %v7933, %v7931
        %v8030 = vpack.c.b16 %v7934, %v7932
        %8127 = vmatprep.subr.bf16.mxu0 %v7936
        %8128 = vmatpush1.bf16.msra.mxu0 %v7935
        %8129 = vmatprep.subr.bf16.mxu0 %v7938
        %8130 = vmatpush1.bf16.msra.mxu0 %v7937
        %8131 = vmatprep.subr.bf16.mxu0 %v7940
        %8132 = vmatpush1.bf16.msra.mxu0 %v7939
        %8133 = vmatprep.subr.bf16.mxu0 %v7942
        %8134 = vmatpush1.bf16.msra.mxu0 %v7941
        %8135 = vmatprep.subr.bf16.mxu0 %v7944
        %8136 = vmatpush1.bf16.msra.mxu0 %v7943
        %8137 = vmatprep.subr.bf16.mxu0 %v7946
        %8138 = vmatpush1.bf16.msra.mxu0 %v7945
        %8139 = vmatprep.subr.bf16.mxu0 %v7948
        %8140 = vmatpush1.bf16.msra.mxu0 %v7947
        %8141 = vmatprep.subr.bf16.mxu0 %v7950
        %8142 = vmatpush1.bf16.msra.mxu0 %v7949
        %8143 = vmatprep.subr.bf16.mxu0 %v7952
        %8144 = vmatpush1.bf16.msra.mxu0 %v7951
        %8145 = vmatprep.subr.bf16.mxu0 %v7954
        %8146 = vmatpush1.bf16.msra.mxu0 %v7953
        %8147 = vmatprep.subr.bf16.mxu0 %v7956
        %8148 = vmatpush1.bf16.msra.mxu0 %v7955
        %8149 = vmatprep.subr.bf16.mxu0 %v7958
        %8150 = vmatpush1.bf16.msra.mxu0 %v7957
        %8151 = vmatprep.subr.bf16.mxu0 %v7960
        %8152 = vmatpush1.bf16.msra.mxu0 %v7959
        %8153 = vmatprep.subr.bf16.mxu0 %v7962
        %8154 = vmatpush1.bf16.msra.mxu0 %v7961
        %8155 = vmatprep.subr.bf16.mxu0 %v7964
        %8156 = vmatpush1.bf16.msra.mxu0 %v7963
        %8157 = vmatprep.subr.bf16.mxu0 %v7966
        %8158 = vmatpush1.bf16.msra.mxu0 %v7965
        %8159 = vmatprep.mubr.bf16.mxu0 %v7532
        %8160 = vmatmul.mubr.bf16.gmra.mrb[0].mxu0 %v7531
        %v8161 = vpop.f32.mrb[0].mxu0
        %v8162 = vadd.f32 %v7640, %v8161
        %v8163 = vpop.f32.mrb[0].mxu0
        %v8164 = vadd.f32 %v7644, %v8163
        %v8165 = vpop.f32.mrb[0].mxu0
        %v8166 = vadd.f32 %v7640, %v8165
        %v8167 = vpop.f32.mrb[0].mxu0
        %v8168 = vadd.f32 %v7644, %v8167
        %8169 = vdwg.mxu0
        %8170 = vmatprep.subr.bf16.mxu0 %v7968
        %8171 = vmatpush1.bf16.msra.mxu0 %v7967
        %8172 = vmatprep.subr.bf16.mxu0 %v7970
        %8173 = vmatpush1.bf16.msra.mxu0 %v7969
        %8174 = vmatprep.subr.bf16.mxu0 %v7972
        %8175 = vmatpush1.bf16.msra.mxu0 %v7971
        %8176 = vmatprep.subr.bf16.mxu0 %v7974
        %8177 = vmatpush1.bf16.msra.mxu0 %v7973
        %8178 = vmatprep.subr.bf16.mxu0 %v7976
        %8179 = vmatpush1.bf16.msra.mxu0 %v7975
        %8180 = vmatprep.subr.bf16.mxu0 %v7978
        %8181 = vmatpush1.bf16.msra.mxu0 %v7977
        %8182 = vmatprep.subr.bf16.mxu0 %v7980
        %8183 = vmatpush1.bf16.msra.mxu0 %v7979
        %8184 = vmatprep.subr.bf16.mxu0 %v7982
        %8185 = vmatpush1.bf16.msra.mxu0 %v7981
        %8186 = vmatprep.subr.bf16.mxu0 %v7984
        %8187 = vmatpush1.bf16.msra.mxu0 %v7983
        %8188 = vmatprep.subr.bf16.mxu0 %v7986
        %8189 = vmatpush1.bf16.msra.mxu0 %v7985
        %8190 = vmatprep.subr.bf16.mxu0 %v7988
        %8191 = vmatpush1.bf16.msra.mxu0 %v7987
        %8192 = vmatprep.subr.bf16.mxu0 %v7990
        %8193 = vmatpush1.bf16.msra.mxu0 %v7989
        %8194 = vmatprep.subr.bf16.mxu0 %v7992
        %8195 = vmatpush1.bf16.msra.mxu0 %v7991
        %8196 = vmatprep.subr.bf16.mxu0 %v7994
        %8197 = vmatpush1.bf16.msra.mxu0 %v7993
        %8198 = vmatprep.subr.bf16.mxu0 %v7996
        %8199 = vmatpush1.bf16.msra.mxu0 %v7995
        %8200 = vmatprep.subr.bf16.mxu0 %v7998
        %8201 = vmatpush1.bf16.msra.mxu0 %v7997
        %8202 = vmatprep.mubr.bf16.mxu0 %v7534
        %8203 = vmatmul.mubr.bf16.gmra.mrb[0].mxu0 %v7533
        %v8204 = vpop.f32.mrb[0].mxu0
        %v8205 = vadd.f32 %v8162, %v8204
        %v8206 = vpop.f32.mrb[0].mxu0
        %v8207 = vadd.f32 %v8164, %v8206
        %v8208 = vpop.f32.mrb[0].mxu0
        %v8209 = vadd.f32 %v8166, %v8208
        %v8210 = vpop.f32.mrb[0].mxu0
        %v8211 = vadd.f32 %v8168, %v8210
        %8212 = vdwg.mxu0
        %8213 = vmatprep.subr.bf16.mxu0 %v8000
        %8214 = vmatpush1.bf16.msra.mxu0 %v7999
        %8215 = vmatprep.subr.bf16.mxu0 %v8002
        %8216 = vmatpush1.bf16.msra.mxu0 %v8001
        %8217 = vmatprep.subr.bf16.mxu0 %v8004
        %8218 = vmatpush1.bf16.msra.mxu0 %v8003
        %8219 = vmatprep.subr.bf16.mxu0 %v8006
        %8220 = vmatpush1.bf16.msra.mxu0 %v8005
        %8221 = vmatprep.subr.bf16.mxu0 %v8008
        %8222 = vmatpush1.bf16.msra.mxu0 %v8007
        %8223 = vmatprep.subr.bf16.mxu0 %v8010
        %8224 = vmatpush1.bf16.msra.mxu0 %v8009
        %8225 = vmatprep.subr.bf16.mxu0 %v8012
        %8226 = vmatpush1.bf16.msra.mxu0 %v8011
        %8227 = vmatprep.subr.bf16.mxu0 %v8014
        %8228 = vmatpush1.bf16.msra.mxu0 %v8013
        %8229 = vmatprep.subr.bf16.mxu0 %v8016
        %8230 = vmatpush1.bf16.msra.mxu0 %v8015
        %8231 = vmatprep.subr.bf16.mxu0 %v8018
        %8232 = vmatpush1.bf16.msra.mxu0 %v8017
        %8233 = vmatprep.subr.bf16.mxu0 %v8020
        %8234 = vmatpush1.bf16.msra.mxu0 %v8019
        %8235 = vmatprep.subr.bf16.mxu0 %v8022
        %8236 = vmatpush1.bf16.msra.mxu0 %v8021
        %8237 = vmatprep.subr.bf16.mxu0 %v8024
        %8238 = vmatpush1.bf16.msra.mxu0 %v8023
        %8239 = vmatprep.subr.bf16.mxu0 %v8026
        %8240 = vmatpush1.bf16.msra.mxu0 %v8025
        %8241 = vmatprep.subr.bf16.mxu0 %v8028
        %8242 = vmatpush1.bf16.msra.mxu0 %v8027
        %8243 = vmatprep.subr.bf16.mxu0 %v8030
        %8244 = vmatpush1.bf16.msra.mxu0 %v8029
        %8245 = vmatprep.mubr.bf16.mxu0 %v7536
        %8246 = vmatmul.mubr.bf16.gmra.mrb[0].mxu0 %v7535
        %v8247 = vpop.f32.mrb[0].mxu0
        %v8248 = vadd.f32 %v8205, %v8247
        %v8249 = vpop.f32.mrb[0].mxu0
        %v8250 = vadd.f32 %v8207, %v8249
        %v8251 = vpop.f32.mrb[0].mxu0
        %v8252 = vadd.f32 %v8209, %v8251
        %v8253 = vpop.f32.mrb[0].mxu0
        %v8254 = vadd.f32 %v8211, %v8253
        %8255 = vdwg.mxu0
        %v8256 = vadd.f32 %v6845, %v8248
        %v8257 = vadd.f32 %v6846, %v8250
        %v8258 = vadd.f32 %v6847, %v8252
        %v8259 = vadd.f32 %v6848, %v8254
        %v8260 = vld [vmem:[%s12] sm:$0x3]
        %v8261 = vld [vmem:[%s13] sm:$0x3]
        %v8262 = vsel %vm536, %v8257, 0.0
        %v8263 = vadd.f32 %v8256, %v8262
        %8264 = vadd.xlane.f32.xlu0 %v8263
        %v8265 = vpop.xlane.xlu0 %8264
        %v8266 = vsel %vm536, %v8259, 0.0
        %v8267 = vadd.f32 %v8258, %v8266
        %8268 = vadd.xlane.f32.xlu0 %v8267
        %v8269 = vpop.xlane.xlu0 %8268
        %v8270 = vmul.f32 %v8265, %v545
        %v8271 = vmul.f32 %v8269, %v545
        %v8272 = vsub.f32 %v8256, %v8270
        %v8273 = vsub.f32 %v8257, %v8270
        %v8274 = vsub.f32 %v8258, %v8271
        %v8275 = vsub.f32 %v8259, %v8271
        %v8276 = vmul.f32 %v8272, %v8272
        %v8277 = vmul.f32 %v8273, %v8273
        %v8278 = vmul.f32 %v8274, %v8274
        %v8279 = vmul.f32 %v8275, %v8275
        %v8280 = vsel %vm536, %v8277, 0.0
        %v8281 = vadd.f32 %v8276, %v8280
        %8282 = vadd.xlane.f32.xlu0 %v8281
        %v8283 = vpop.xlane.xlu0 %8282
        %v8284 = vsel %vm536, %v8279, 0.0
        %v8285 = vadd.f32 %v8278, %v8284
        %8286 = vadd.xlane.f32.xlu0 %v8285
        %v8287 = vpop.xlane.xlu0 %8286
        %v8288 = vmul.f32 %v8283, %v545
        %v8289 = vmul.f32 %v8287, %v545
        %v8290 = vadd.f32 %v8288, 1e-05
        %v8291 = vadd.f32 %v8289, 1e-05
        %v8292 = vrsqrt.pop %v8290
        %v8293 = vrsqrt.pop %v8291
        %v8294 = vmul.f32 %v8272, %v8292
        %v8295 = vmul.f32 %v8273, %v8292
        %v8296 = vmul.f32 %v8274, %v8293
        %v8297 = vmul.f32 %v8275, %v8293
        %v8299 = vlaneseq
        %v8300 = vshrl.u32 %v8299, 7
        %v8301 = vsub.s32 0, %v8300
        %v8302 = vrot.slane %v8260, %v8301
        %v8303 = vlaneseq
        %v8304 = vshrl.u32 %v8303, 7
        %v8305 = vsub.s32 1, %v8304
        %v8306 = vrot.slane %v8260, %v8305
        %v8309 = vmul.f32 %v8294, %v8302
        %v8310 = vmul.f32 %v8295, %v8306
        %v8311 = vmul.f32 %v8296, %v8302
        %v8312 = vmul.f32 %v8297, %v8306
        %v8314 = vlaneseq
        %v8315 = vshrl.u32 %v8314, 7
        %v8316 = vsub.s32 0, %v8315
        %v8317 = vrot.slane %v8261, %v8316
        %v8318 = vlaneseq
        %v8319 = vshrl.u32 %v8318, 7
        %v8320 = vsub.s32 1, %v8319
        %v8321 = vrot.slane %v8261, %v8320
        %v8324 = vadd.f32 %v8309, %v8317
        %v8325 = vadd.f32 %v8310, %v8321
        %v8326 = vadd.f32 %v8311, %v8317
        %v8327 = vadd.f32 %v8312, %v8321
        %v8328 = vpack.c.bf16 %v8326, %v8324
        %v8329 = vpack.c.bf16 %v8327, %v8325
        %v8330 = vld [vmem:[%s14] sm:$0xff]
        %v8331 = vld [vmem:[%s14 + $0x8] sm:$0xf]
        %v8332 = vld [vmem:[%s14 + $0xc] sm:$0xff]
        %v8333 = vld [vmem:[%s14 + $0x14] sm:$0xf]
        %v8334 = vld [vmem:[%s14 + $0x18] sm:$0xff]
        %v8335 = vld [vmem:[%s14 + $0x20] sm:$0xf]
        %v8336 = vld [vmem:[%s14 + $0x24] sm:$0xff]
        %v8337 = vld [vmem:[%s14 + $0x2c] sm:$0xf]
        %v8338 = vld [vmem:[%s14 + $0x30] sm:$0xff]
        %v8339 = vld [vmem:[%s14 + $0x38] sm:$0xf]
        %v8340 = vld [vmem:[%s14 + $0x3c] sm:$0xff]
        %v8341 = vld [vmem:[%s14 + $0x44] sm:$0xf]
        %v8342 = vld [vmem:[%s14 + $0x48] sm:$0xff]
        %v8343 = vld [vmem:[%s14 + $0x50] sm:$0xf]
        %v8344 = vld [vmem:[%s14 + $0x54] sm:$0xff]
        %v8345 = vld [vmem:[%s14 + $0x5c] sm:$0xf]
        %v8346 = vld [vmem:[%s14 + $0x60] sm:$0xff]
        %v8347 = vld [vmem:[%s14 + $0x68] sm:$0xf]
        %v8348 = vld [vmem:[%s14 + $0x6c] sm:$0xff]
        %v8349 = vld [vmem:[%s14 + $0x74] sm:$0xf]
        %v8350 = vld [vmem:[%s14 + $0x78] sm:$0xff]
        %v8351 = vld [vmem:[%s14 + $0x80] sm:$0xf]
        %v8352 = vld [vmem:[%s14 + $0x84] sm:$0xff]
        %v8353 = vld [vmem:[%s14 + $0x8c] sm:$0xf]
        %v8354 = vld [vmem:[%s14 + $0x90] sm:$0xff]
        %v8355 = vld [vmem:[%s14 + $0x98] sm:$0xf]
        %v8356 = vld [vmem:[%s14 + $0x9c] sm:$0xff]
        %v8357 = vld [vmem:[%s14 + $0xa4] sm:$0xf]
        %v8358 = vld [vmem:[%s14 + $0xa8] sm:$0xff]
        %v8359 = vld [vmem:[%s14 + $0xb0] sm:$0xf]
        %v8360 = vld [vmem:[%s14 + $0xb4] sm:$0xff]
        %v8361 = vld [vmem:[%s14 + $0xbc] sm:$0xf]
        %v8362 = vld [vmem:[%s14 + $0xc0] sm:$0xff]
        %v8363 = vld [vmem:[%s14 + $0xc8] sm:$0xf]
        %v8364 = vld [vmem:[%s14 + $0xcc] sm:$0xff]
        %v8365 = vld [vmem:[%s14 + $0xd4] sm:$0xf]
        %v8366 = vld [vmem:[%s14 + $0xd8] sm:$0xff]
        %v8367 = vld [vmem:[%s14 + $0xe0] sm:$0xf]
        %v8368 = vld [vmem:[%s14 + $0xe4] sm:$0xff]
        %v8369 = vld [vmem:[%s14 + $0xec] sm:$0xf]
        %v8370 = vld [vmem:[%s14 + $0xf0] sm:$0xff]
        %v8371 = vld [vmem:[%s14 + $0xf8] sm:$0xf]
        %v8372 = vld [vmem:[%s14 + $0xfc] sm:$0xff]
        %v8373 = vld [vmem:[%s14 + $0x104] sm:$0xf]
        %v8374 = vld [vmem:[%s14 + $0x108] sm:$0xff]
        %v8375 = vld [vmem:[%s14 + $0x110] sm:$0xf]
        %v8376 = vld [vmem:[%s14 + $0x114] sm:$0xff]
        %v8377 = vld [vmem:[%s14 + $0x11c] sm:$0xf]
        %v8378 = vld [vmem:[%s15] sm:$0x7]
        %v8380 = vlaneseq
        %v8381 = vshrl.u32 %v8380, 7
        %v8382 = vsub.s32 0, %v8381
        %v8383 = vrot.slane %v8378, %v8382
        %v8384 = vlaneseq
        %v8385 = vshrl.u32 %v8384, 7
        %v8386 = vsub.s32 1, %v8385
        %v8387 = vrot.slane %v8378, %v8386
        %v8388 = vlaneseq
        %v8389 = vshrl.u32 %v8388, 7
        %v8390 = vsub.s32 2, %v8389
        %v8391 = vrot.slane %v8378, %v8390
        %v8443 = vunpack.c.l.b16 %v8330
        %v8444 = vunpack.c.h.b16 %v8330
        %v8445 = vunpack.c.l.b16 %v8331
        %v8446 = vunpack.c.l.b16 %v8332
        %v8447 = vunpack.c.h.b16 %v8332
        %v8448 = vunpack.c.l.b16 %v8333
        %v8449 = vunpack.c.l.b16 %v8334
        %v8450 = vunpack.c.h.b16 %v8334
        %v8451 = vunpack.c.l.b16 %v8335
        %v8452 = vunpack.c.l.b16 %v8336
        %v8453 = vunpack.c.h.b16 %v8336
        %v8454 = vunpack.c.l.b16 %v8337
        %v8455 = vunpack.c.l.b16 %v8338
        %v8456 = vunpack.c.h.b16 %v8338
        %v8457 = vunpack.c.l.b16 %v8339
        %v8458 = vunpack.c.l.b16 %v8340
        %v8459 = vunpack.c.h.b16 %v8340
        %v8460 = vunpack.c.l.b16 %v8341
        %v8461 = vunpack.c.l.b16 %v8342
        %v8462 = vunpack.c.h.b16 %v8342
        %v8463 = vunpack.c.l.b16 %v8343
        %v8464 = vunpack.c.l.b16 %v8344
        %v8465 = vunpack.c.h.b16 %v8344
        %v8466 = vunpack.c.l.b16 %v8345
        %v8467 = vunpack.c.l.b16 %v8346
        %v8468 = vunpack.c.h.b16 %v8346
        %v8469 = vunpack.c.l.b16 %v8347
        %v8470 = vunpack.c.l.b16 %v8348
        %v8471 = vunpack.c.h.b16 %v8348
        %v8472 = vunpack.c.l.b16 %v8349
        %v8473 = vunpack.c.l.b16 %v8350
        %v8474 = vunpack.c.h.b16 %v8350
        %v8475 = vunpack.c.l.b16 %v8351
        %v8476 = vunpack.c.l.b16 %v8352
        %v8477 = vunpack.c.h.b16 %v8352
        %v8478 = vunpack.c.l.b16 %v8353
        %v8479 = vunpack.c.l.b16 %v8354
        %v8480 = vunpack.c.h.b16 %v8354
        %v8481 = vunpack.c.l.b16 %v8355
        %v8482 = vunpack.c.l.b16 %v8356
        %v8483 = vunpack.c.h.b16 %v8356
        %v8484 = vunpack.c.l.b16 %v8357
        %v8485 = vunpack.c.l.b16 %v8358
        %v8486 = vunpack.c.h.b16 %v8358
        %v8487 = vunpack.c.l.b16 %v8359
        %v8488 = vunpack.c.l.b16 %v8360
        %v8489 = vunpack.c.h.b16 %v8360
        %v8490 = vunpack.c.l.b16 %v8361
        %v8491 = vunpack.c.l.b16 %v8362
        %v8492 = vunpack.c.h.b16 %v8362
        %v8493 = vunpack.c.l.b16 %v8363
        %v8494 = vunpack.c.l.b16 %v8364
        %v8495 = vunpack.c.h.b16 %v8364
        %v8496 = vunpack.c.l.b16 %v8365
        %v8497 = vunpack.c.l.b16 %v8366
        %v8498 = vunpack.c.h.b16 %v8366
        %v8499 = vunpack.c.l.b16 %v8367
        %v8500 = vunpack.c.l.b16 %v8368
        %v8501 = vunpack.c.h.b16 %v8368
        %v8502 = vunpack.c.l.b16 %v8369
        %v8503 = vunpack.c.l.b16 %v8370
        %v8504 = vunpack.c.h.b16 %v8370
        %v8505 = vunpack.c.l.b16 %v8371
        %v8506 = vunpack.c.l.b16 %v8372
        %v8507 = vunpack.c.h.b16 %v8372
        %v8508 = vunpack.c.l.b16 %v8373
        %v8509 = vunpack.c.l.b16 %v8374
        %v8510 = vunpack.c.h.b16 %v8374
        %v8511 = vunpack.c.l.b16 %v8375
        %v8512 = vunpack.c.l.b16 %v8376
        %v8513 = vunpack.c.h.b16 %v8376
        %v8514 = vunpack.c.l.b16 %v8377
        %v8515 = vpack.c.b16 %v8446, %v8443
        %v8516 = vpack.c.b16 %v8447, %v8444
        %v8517 = vpack.c.b16 %v8448, %v8445
        %v8518 = vpack.c.b16 %v8452, %v8449
        %v8519 = vpack.c.b16 %v8453, %v8450
        %v8520 = vpack.c.b16 %v8454, %v8451
        %v8521 = vpack.c.b16 %v8458, %v8455
        %v8522 = vpack.c.b16 %v8459, %v8456
        %v8523 = vpack.c.b16 %v8460, %v8457
        %v8524 = vpack.c.b16 %v8464, %v8461
        %v8525 = vpack.c.b16 %v8465, %v8462
        %v8526 = vpack.c.b16 %v8466, %v8463
        %v8527 = vpack.c.b16 %v8470, %v8467
        %v8528 = vpack.c.b16 %v8471, %v8468
        %v8529 = vpack.c.b16 %v8472, %v8469
        %v8530 = vpack.c.b16 %v8476, %v8473
        %v8531 = vpack.c.b16 %v8477, %v8474
        %v8532 = vpack.c.b16 %v8478, %v8475
        %v8533 = vpack.c.b16 %v8482, %v8479
        %v8534 = vpack.c.b16 %v8483, %v8480
        %v8535 = vpack.c.b16 %v8484, %v8481
        %v8536 = vpack.c.b16 %v8488, %v8485
        %v8537 = vpack.c.b16 %v8489, %v8486
        %v8538 = vpack.c.b16 %v8490, %v8487
        %v8539 = vpack.c.b16 %v8494, %v8491
        %v8540 = vpack.c.b16 %v8495, %v8492
        %v8541 = vpack.c.b16 %v8496, %v8493
        %v8542 = vpack.c.b16 %v8500, %v8497
        %v8543 = vpack.c.b16 %v8501, %v8498
        %v8544 = vpack.c.b16 %v8502, %v8499
        %v8545 = vpack.c.b16 %v8506, %v8503
        %v8546 = vpack.c.b16 %v8507, %v8504
        %v8547 = vpack.c.b16 %v8508, %v8505
        %v8548 = vpack.c.b16 %v8512, %v8509
        %v8549 = vpack.c.b16 %v8513, %v8510
        %v8550 = vpack.c.b16 %v8514, %v8511
        %v8588 = vsel %vm536, %v8329, 0
        %8590 = vmatprep.subr.bf16.mxu0 %v8516
        %8591 = vmatpush1.bf16.msra.mxu0 %v8515
        %8592 = vmatprep.subr.bf16.mxu0 %v8519
        %8593 = vmatpush1.bf16.msra.mxu0 %v8518
        %8594 = vmatprep.subr.bf16.mxu0 %v8522
        %8595 = vmatpush1.bf16.msra.mxu0 %v8521
        %8596 = vmatprep.subr.bf16.mxu0 %v8525
        %8597 = vmatpush1.bf16.msra.mxu0 %v8524
        %8598 = vmatprep.subr.bf16.mxu0 %v8528
        %8599 = vmatpush1.bf16.msra.mxu0 %v8527
        %8600 = vmatprep.subr.bf16.mxu0 %v8531
        %8601 = vmatpush1.bf16.msra.mxu0 %v8530
        %8602 = vmatprep.subr.bf16.mxu0 %v8534
        %8603 = vmatpush1.bf16.msra.mxu0 %v8533
        %8604 = vmatprep.subr.bf16.mxu0 %v8537
        %8605 = vmatpush1.bf16.msra.mxu0 %v8536
        %8606 = vmatprep.subr.bf16.mxu0 %v8540
        %8607 = vmatpush1.bf16.msra.mxu0 %v8539
        %8608 = vmatprep.subr.bf16.mxu0 %v8543
        %8609 = vmatpush1.bf16.msra.mxu0 %v8542
        %8610 = vmatprep.subr.bf16.mxu0 %v8546
        %8611 = vmatpush1.bf16.msra.mxu0 %v8545
        %8612 = vmatprep.subr.bf16.mxu0 %v8549
        %8613 = vmatpush1.bf16.msra.mxu0 %v8548
        %8614 = vmatprep.subr.bf16.mxu0 0
        %8615 = vmatpush1.bf16.msra.mxu0 0
        %8616 = vmatprep.subr.bf16.mxu0 0
        %8617 = vmatpush1.bf16.msra.mxu0 0
        %8618 = vmatprep.subr.bf16.mxu0 0
        %8619 = vmatpush1.bf16.msra.mxu0 0
        %8620 = vmatprep.subr.bf16.mxu0 0
        %8621 = vmatpush1.bf16.msra.mxu0 0
        %8622 = vmatprep.mubr.bf16.mxu0 %v8588
        %8623 = vmatmul.mubr.bf16.gmra.mrb[0].mxu0 %v8328
        %v8624 = vpop.f32.mrb[0].mxu0
        %v8625 = vadd.f32 %v8383, %v8624
        %v8626 = vpop.f32.mrb[0].mxu0
        %v8627 = vadd.f32 %v8387, %v8626
        %v8628 = vpop.f32.mrb[0].mxu0
        %v8629 = vadd.f32 %v8383, %v8628
        %v8630 = vpop.f32.mrb[0].mxu0
        %v8631 = vadd.f32 %v8387, %v8630
        %8632 = vdwg.mxu0
        %8633 = vmatprep.subr.bf16.mxu0 0
        %8634 = vmatpush1.bf16.msra.mxu0 %v8517
        %8635 = vmatprep.subr.bf16.mxu0 0
        %8636 = vmatpush1.bf16.msra.mxu0 %v8520
        %8637 = vmatprep.subr.bf16.mxu0 0
        %8638 = vmatpush1.bf16.msra.mxu0 %v8523
        %8639 = vmatprep.subr.bf16.mxu0 0
        %8640 = vmatpush1.bf16.msra.mxu0 %v8526
        %8641 = vmatprep.subr.bf16.mxu0 0
        %8642 = vmatpush1.bf16.msra.mxu0 %v8529
        %8643 = vmatprep.subr.bf16.mxu0 0
        %8644 = vmatpush1.bf16.msra.mxu0 %v8532
        %8645 = vmatprep.subr.bf16.mxu0 0
        %8646 = vmatpush1.bf16.msra.mxu0 %v8535
        %8647 = vmatprep.subr.bf16.mxu0 0
        %8648 = vmatpush1.bf16.msra.mxu0 %v8538
        %8649 = vmatprep.subr.bf16.mxu0 0
        %8650 = vmatpush1.bf16.msra.mxu0 %v8541
        %8651 = vmatprep.subr.bf16.mxu0 0
        %8652 = vmatpush1.bf16.msra.mxu0 %v8544
        %8653 = vmatprep.subr.bf16.mxu0 0
        %8654 = vmatpush1.bf16.msra.mxu0 %v8547
        %8655 = vmatprep.subr.bf16.mxu0 0
        %8656 = vmatpush1.bf16.msra.mxu0 %v8550
        %8657 = vmatprep.subr.bf16.mxu0 0
        %8658 = vmatpush1.bf16.msra.mxu0 0
        %8659 = vmatprep.subr.bf16.mxu0 0
        %8660 = vmatpush1.bf16.msra.mxu0 0
        %8661 = vmatprep.subr.bf16.mxu0 0
        %8662 = vmatpush1.bf16.msra.mxu0 0
        %8663 = vmatprep.subr.bf16.mxu0 0
        %8664 = vmatpush1.bf16.msra.mxu0 0
        %8665 = vmatprep.mubr.bf16.mxu0 %v8588
        %8666 = vmatmul.mubr.bf16.gmra.mrb[0].mxu0 %v8328
        %v8667 = vpop.f32.mrb[0].mxu0
        %v8668 = vadd.f32 %v8391, %v8667
        %v8669 = vpop.f32.mrb[0].mxu0
        %v8670 = vpop.f32.mrb[0].mxu0
        %v8671 = vadd.f32 %v8391, %v8670
        %v8672 = vpop.f32.mrb[0].mxu0
        %8673 = vdwg.mxu0
        %8674 = vst [vmem:[%s514] sm:$0xff] %v8625
        %8675 = vst [vmem:[%s514 + $0x8] sm:$0xff] %v8627
        %8676 = vst [vmem:[%s514 + $0x10] sm:$0xff] %v8668
        %8677 = vst [vmem:[%s514 + $0x18] sm:$0xff] %v8629
        %8678 = vst [vmem:[%s514 + $0x20] sm:$0xff] %v8631
        %8679 = vst [vmem:[%s514 + $0x28] sm:$0xff] %v8671
        %s8680 = sand.u32 %s379, 1
        %s8681 = scalar_lea.sflag [#allocation3], %s8680
        %s8682 = sand.u32 %s379, 1
        %s8683 = smul.addr %s8682, 48
        %s8684 = scalar_lea.vmem [#allocation2], %s8683
        // Predicated region
        $region85: #{gpt_forward.1} parent=83 // pred_check
          %p8685 = pneg %p389
        $region86: #{gpt_forward.1} parent=83 // pred_check_branch
          %8687 = sbr.rel (%p8685) target = $region88
        $region87: #{gpt_forward.1} parent=83 // pred_region
          %s8689 = ssub.s32 768, 768
          %8690 = vsyncadd %s8681, %s8689
          %s8691 = smul.addr %s30, 6
          %s8692 = smul.addr %s8691, 128
          %s8693 = scalar_lea.hbm %s16, %s8692
          %s8694 = sshll.u32 %s8684, 4
          %s8695 = int_to_ptr.vmem [resolvable:$true] %s8694
          %8700 = dma.vmem_to_hbm [thread:$0]  %s8695, 768, %s8693, %s8681, 384, 384, 24
        $region88: #{gpt_forward.1} parent=83 // pred_fallthru
          _
      $region84: #{gpt_forward.1} parent=5 // pred_fallthru
        _
      %p8701 = scmp.le.s32.totalorder 2, %s25
      // Predicated region
      $region89: #{gpt_forward.1} parent=5 // pred_check
        %p8702 = pneg %p8701
      $region90: #{gpt_forward.1} parent=5 // pred_check_branch
        %8704 = sbr.rel (%p8702) target = $region92
      $region91: #{gpt_forward.1} parent=5 // pred_region
        %s8705 = ssub.s32 %s25, 2
        // Predicated region
        $region93: #{gpt_forward.1} parent=91 // pred_check
          %p8706 = pneg %p395
        $region94: #{gpt_forward.1} parent=91 // pred_check_branch
          %8708 = sbr.rel (%p8706) target = $region96
        $region95: #{gpt_forward.1} parent=91 // pred_region
          %s8709 = sand.u32 %s380, 1
          %s8710 = scalar_lea.sflag [#allocation3], %s8709
          %s8711 = sand.u32 %s380, 1
          %s8712 = smul.addr %s8711, 48
          %s8713 = scalar_lea.vmem [#allocation2], %s8712
          %8714 = dma.done %s8710, 768
        $region96: #{gpt_forward.1} parent=91 // pred_fallthru
          _
      $region92: #{gpt_forward.1} parent=5 // pred_fallthru
        _
    $region6: #{gpt_forward.1} parent=1 // loop_footer
      %s29 = sadd.s32 1, %s25
    $region7: #{gpt_forward.1} parent=1 // loop_footer_branch
      %24 = sbr.rel target = $region3
    $region8: #{gpt_forward.1} parent=1 // loop_exit
      _
    %8715 = vsyncpa [#allocation3], 1
    %s8716 = scalar_lea.sflag [#allocation3], 1
    %8717 = vsyncpa %s8716, 1

</llo_original>
